<compile_context>
chip_gen: v7x
topology: tpu7x:2x2x1
jax: 0.10.0
libtpu: 0.0.40
codegen_flags: <defaults>
</compile_context>

<pallas_src>
import functools

import jax
import jax.numpy as jnp
from jax import lax
from jax.experimental import pallas as pl
from jax.experimental.pallas import tpu as pltpu

_MASK_MIN = -1e30  # large FINITE negative: avoids exp(-inf - -inf) = NaN


# ------------- kernel 1: fused QKV projection + RMSNorm + RoPE --------------
def _qkv_norm_rope_kernel(x_ref, cos_ref, sin_ref, wqkv_ref, qn_ref, kn_ref,
                          q_out, k_out, v_out, acc_ref,
                          *, num_heads, num_kv_heads, head_dim, eps):
  kc = pl.program_id(2)

  @pl.when(kc == 0)
  def _():
    acc_ref[...] = jnp.zeros_like(acc_ref)

  # Single fused [q|k|v] matmul: one wide-N MXU stream, one f32 accumulator.
  acc_ref[...] += jnp.dot(x_ref[0], wqkv_ref[...],
                          preferred_element_type=jnp.float32)

  @pl.when(kc == pl.num_programs(2) - 1)
  def _():
    hd = head_dim
    half = hd // 2
    cos = cos_ref[...]          # (rp, hd) f32
    sin_signed = sin_ref[...]   # (rp, hd) f32, rotate_half sign pre-folded
    qw = qn_ref[...]            # (1, hd) f32, head_dim**-0.5 pre-folded
    kw = kn_ref[...]

    def norm_rope(t, w):
      # Qwen3RMSNorm in f32, then rotary embedding (XLU roll + VPU mul/add).
      var = jnp.mean(t * t, axis=-1, keepdims=True)
      t = t * lax.rsqrt(var + eps) * w
      return t * cos + pltpu.roll(t, shift=half, axis=1) * sin_signed

    k_off = num_heads * hd
    v_off = (num_heads + num_kv_heads) * hd
    for h in range(num_heads):
      q_out[0, h] = norm_rope(acc_ref[:, h * hd:(h + 1) * hd],
                              qw).astype(q_out.dtype)
    for h in range(num_kv_heads):
      k_out[0, h] = norm_rope(acc_ref[:, k_off + h * hd:k_off + (h + 1) * hd],
                              kw).astype(k_out.dtype)
      v_out[0, h] = acc_ref[:, v_off + h * hd:v_off + (h + 1) * hd].astype(
          v_out.dtype)


# ---------------- kernel 2: flash attention (GQA-folded, causal) ------------
def _flash_attn_kernel(*refs, causal, has_mask):
  if has_mask:
    q_ref, k_ref, v_ref, mask_ref, o_ref, m_ref, l_ref, acc_ref = refs
  else:
    q_ref, k_ref, v_ref, o_ref, m_ref, l_ref, acc_ref = refs
    mask_ref = None

  _, groups, tq, hd = q_ref.shape
  tk = k_ref.shape[2]
  qi = pl.program_id(2)
  ki = pl.program_id(3)

  @pl.when(ki == 0)
  def _():
    m_ref[...] = jnp.full_like(m_ref, -jnp.inf)
    l_ref[...] = jnp.zeros_like(l_ref)
    acc_ref[...] = jnp.zeros_like(acc_ref)

  def compute():
    # All `groups` query heads of this KV head share one K/V tile (GQA fold);
    # (groups*tq) LHS rows amortize the MXU RHS push of each K/V tile.
    q = q_ref[0].reshape(groups * tq, hd)
    k = k_ref[0, 0]
    s = lax.dot_general(q, k, (((1,), (1,)), ((), ())),
                        preferred_element_type=jnp.float32)   # (G*tq, tk)

    if has_mask or causal:
      s3 = s.reshape(groups, tq, tk)
      if has_mask:
        # Clamp to a finite min so an all-masked row never yields NaN.
        s3 = s3 + jnp.maximum(mask_ref[0, 0].astype(jnp.float32),
                              _MASK_MIN)[None]
      if causal:
        rows = lax.broadcasted_iota(jnp.int32, (tq, tk), 0) + qi * tq
        cols = lax.broadcasted_iota(jnp.int32, (tq, tk), 1) + ki * tk
        s3 = jnp.where((rows >= cols)[None], s3, _MASK_MIN)
      s = s3.reshape(groups * tq, tk)

    m_prev = m_ref[...]
    m_new = jnp.maximum(m_prev, jnp.max(s, axis=-1, keepdims=True))
    alpha = jnp.exp(m_prev - m_new)
    p = jnp.exp(s - m_new)
    l_ref[...] = alpha * l_ref[...] + jnp.sum(p, axis=-1, keepdims=True)
    acc_ref[...] = alpha * acc_ref[...] + jnp.dot(
        p.astype(v_ref.dtype), v_ref[0, 0], preferred_element_type=jnp.float32)
    m_ref[...] = m_new

  if causal:
    # Skip KV tiles entirely above the diagonal (index_maps are clamped in the
    # wrapper so these steps don't trigger new DMAs).
    @pl.when(ki * tk < (qi + 1) * tq)
    def _():
      compute()
  else:
    compute()

  @pl.when(ki == pl.num_programs(3) - 1)
  def _():
    out = acc_ref[...] * pl.reciprocal(l_ref[...], approx=True)
    # Write the (B, S, nh*hd) layout directly: lane-aligned per-group stores,
    # feeding o_proj with a 256-deep contraction and no transpose pass.
    for g in range(groups):
      o_ref[0, :, g * hd:(g + 1) * hd] = out[g * tq:(g + 1) * tq, :].astype(
          o_ref.dtype)


# ------------------- kernel 3: output projection (K-streamed) ---------------
def _o_proj_kernel(attn_ref, wo_ref, o_ref, acc_ref):
  kc = pl.program_id(2)

  @pl.when(kc == 0)
  def _():
    acc_ref[...] = jnp.zeros_like(acc_ref)

  acc_ref[...] += jnp.dot(attn_ref[0], wo_ref[...],
                          preferred_element_type=jnp.float32)

  @pl.when(kc == pl.num_programs(2) - 1)
  def _():
    o_ref[0] = acc_ref[...].astype(o_ref.dtype)


# --------------------------------- wrapper ----------------------------------
def _default_vmem_limit():
  # Per-generation scoped-VMEM budget: ~3/4 of physical VMEM (~96 MiB on
  # v5e/v6e's 128 MiB, 48 MiB on v7x's 64 MiB); conservative fallback.
  try:
    cap = int(pltpu.get_tpu_info().vmem_capacity_bytes)
  except Exception:
    cap = 64 * 1024 * 1024
  return max(32 * 1024 * 1024, min((cap * 3) // 4, 100 * 1024 * 1024))


def qwen3_attention(hidden_states, cos, sin, attention_mask, params, *,
                    num_heads, num_kv_heads, head_dim, eps=1e-6,
                    is_causal=False, compute_dtype=jnp.bfloat16,
                    q_block=None, kv_block=None, proj_row_block=None,
                    k_hidden_block=None, o_k_block=None,
                    vmem_limit_bytes=None):
  B, S, H = hidden_states.shape
  hd = head_dim
  nh, nkv = num_heads, num_kv_heads
  assert nh % nkv == 0, "num_heads must be a multiple of num_kv_heads"
  groups = nh // nkv
  out_dtype = hidden_states.dtype
  cd = compute_dtype
  nqkv = nh * hd

  # Flash tiles (v6e/v7x-friendly: 256-deep KV contraction; set kv_block=128
  # on v5e).  Projection tiles are decoupled and larger to amortize weight DMA.
  tq = q_block or min(S, 128)
  tk = kv_block or min(S, 256)
  rp = proj_row_block or min(S, 256)
  tkh = k_hidden_block or (256 if H % 256 == 0 else min(H, 128))
  tko = o_k_block or (256 if nqkv % 256 == 0 else hd)
  assert S % tq == 0 and S % tk == 0 and S % rp == 0, (
      "S must be divisible by q/kv/projection row tiles")
  assert H % tkh == 0 and nqkv % tko == 0, (
      "hidden dims must be divisible by the contraction tiles")
  # TODO(synk): no padding path for ragged S/H (production shapes are aligned).

  vmem_limit = vmem_limit_bytes or _default_vmem_limit()

  # Rotary tables are identical across the batch: keep a single (S, hd) copy.
  if cos.ndim == 3:
    cos = cos[0]
  if sin.ndim == 3:
    sin = sin[0]
  cos = cos.astype(jnp.float32)
  sin = sin.astype(jnp.float32)
  # Sign-fold rotate_half into sin once; kernel then only needs roll+mul+add.
  lane = jnp.arange(hd)[None, :]
  sin_signed = jnp.where(lane < hd // 2, -sin, sin)

  x = hidden_states.astype(cd)
  # TODO(synk): store the QKV weight pre-concatenated in production params.
  wqkv = jnp.concatenate([params["wq"], params["wk"], params["wv"]],
                         axis=1).astype(cd)
  wo = params["wo"].astype(cd)
  # Fold the attention scale (head_dim**-0.5) into the q-norm weight: RoPE is
  # linear, so scaling before it equals scaling the scores.
  qn = params["q_norm"].astype(jnp.float32).reshape(1, hd) * (hd ** -0.5)
  kn = params["k_norm"].astype(jnp.float32).reshape(1, hd)
  qkv_w = (nh + 2 * nkv) * hd

  # ---- 1) fused QKV projection (K-streamed) + per-head RMSNorm + RoPE ------
  q, k, v = pl.pallas_call(
      functools.partial(_qkv_norm_rope_kernel, num_heads=nh, num_kv_heads=nkv,
                        head_dim=hd, eps=eps),
      grid_spec=pltpu.PrefetchScalarGridSpec(
          num_scalar_prefetch=0,
          grid=(B, S // rp, H // tkh),
          in_specs=[
              pl.BlockSpec((1, rp, tkh), lambda b, si, kc: (b, si, kc)),
              pl.BlockSpec((rp, hd), lambda b, si, kc: (si, 0)),
              pl.BlockSpec((rp, hd), lambda b, si, kc: (si, 0)),
              pl.BlockSpec((tkh, qkv_w), lambda b, si, kc: (kc, 0)),
              pl.BlockSpec((1, hd), lambda b, si, kc: (0, 0)),
              pl.BlockSpec((1, hd), lambda b, si, kc: (0, 0)),
          ],
          out_specs=[
              pl.BlockSpec((1, nh, rp, hd), lambda b, si, kc: (b, 0, si, 0)),
              pl.BlockSpec((1, nkv, rp, hd), lambda b, si, kc: (b, 0, si, 0)),
              pl.BlockSpec((1, nkv, rp, hd), lambda b, si, kc: (b, 0, si, 0)),
          ],
          scratch_shapes=[pltpu.VMEM((rp, qkv_w), jnp.float32)]),
      out_shape=(
          jax.ShapeDtypeStruct((B, nh, S, hd), cd),
          jax.ShapeDtypeStruct((B, nkv, S, hd), cd),
          jax.ShapeDtypeStruct((B, nkv, S, hd), cd),
      ),
      compiler_params=pltpu.CompilerParams(
          dimension_semantics=("parallel", "parallel", "arbitrary"),
          vmem_limit_bytes=vmem_limit),
  )(x, cos, sin_signed, wqkv, qn, kn)

  # ---- 2) flash attention (online softmax, GQA fold, causal tile skip) -----
  has_mask = attention_mask is not None

  def _last_kv_block(qi):
    return ((qi + 1) * tq - 1) // tk

  def q_map(b, kv, qi, ki):
    return (b, kv, qi, 0)

  def kv_map(b, kv, qi, ki):
    if is_causal:
      ki = jnp.minimum(ki, _last_kv_block(qi))   # alias skipped tiles: no DMA
    return (b, kv, ki, 0)

  flash_in_specs = [
      pl.BlockSpec((1, groups, tq, hd), q_map),
      pl.BlockSpec((1, 1, tk, hd), kv_map),
      pl.BlockSpec((1, 1, tk, hd), kv_map),
  ]
  flash_args = [q, k, v]
  if has_mask:
    assert attention_mask.shape == (B, 1, S, S)

    def mask_map(b, kv, qi, ki):
      if is_causal:
        ki = jnp.minimum(ki, _last_kv_block(qi))
      return (b, 0, qi, ki)

    flash_in_specs.append(pl.BlockSpec((1, 1, tq, tk), mask_map))
    flash_args.append(attention_mask)   # kept in caller dtype (bf16 preferred)

  attn = pl.pallas_call(
      functools.partial(_flash_attn_kernel, causal=is_causal,
                        has_mask=has_mask),
      grid_spec=pltpu.PrefetchScalarGridSpec(
          num_scalar_prefetch=0,
          grid=(B, nkv, S // tq, S // tk),
          in_specs=flash_in_specs,
          out_specs=pl.BlockSpec((1, tq, groups * hd),
                                 lambda b, kv, qi, ki: (b, qi, kv)),
          scratch_shapes=[
              pltpu.VMEM((groups * tq, 1), jnp.float32),   # running max m
              pltpu.VMEM((groups * tq, 1), jnp.float32),   # running sum l
              pltpu.VMEM((groups * tq, hd), jnp.float32),  # output accumulator
          ]),
      out_shape=jax.ShapeDtypeStruct((B, S, nqkv), cd),
      compiler_params=pltpu.CompilerParams(
          dimension_semantics=("parallel", "parallel", "parallel",
                               "arbitrary"),
          vmem_limit_bytes=vmem_limit),
  )(*flash_args)

  # ---- 3) output projection: (B,S,nh*hd) @ (nh*hd,H), tko-deep contraction -
  out = pl.pallas_call(
      _o_proj_kernel,
      grid_spec=pltpu.PrefetchScalarGridSpec(
          num_scalar_prefetch=0,
          grid=(B, S // rp, nqkv // tko),
          in_specs=[
              pl.BlockSpec((1, rp, tko), lambda b, si, kc: (b, si, kc)),
              pl.BlockSpec((tko, H), lambda b, si, kc: (kc, 0)),
          ],
          out_specs=pl.BlockSpec((1, rp, H), lambda b, si, kc: (b, si, 0)),
          scratch_shapes=[pltpu.VMEM((rp, H), jnp.float32)]),
      out_shape=jax.ShapeDtypeStruct((B, S, H), out_dtype),
      compiler_params=pltpu.CompilerParams(
          dimension_semantics=("parallel", "parallel", "arbitrary"),
          vmem_limit_bytes=vmem_limit),
  )(attn, wo)

  return out


# ---------------------- pure-JAX reference (for checking) -------------------
def _reference(x, cos, sin, mask, params, num_heads, num_kv_heads, head_dim,
               eps=1e-6, compute_dtype=jnp.bfloat16):
  B, S, H = x.shape
  nh, nkv, hd = num_heads, num_kv_heads, head_dim
  cd = compute_dtype
  wq, wk = params["wq"].astype(cd), params["wk"].astype(cd)
  wv, wo = params["wv"].astype(cd), params["wo"].astype(cd)
  qn = params["q_norm"].astype(jnp.float32)
  kn = params["k_norm"].astype(jnp.float32)
  xc = x.astype(cd)

  q = jnp.einsum("bsh,hn->bsn", xc, wq,
                 preferred_element_type=jnp.float32).reshape(B, S, nh, hd)
  k = jnp.einsum("bsh,hn->bsn", xc, wk,
                 preferred_element_type=jnp.float32).reshape(B, S, nkv, hd)
  v = jnp.einsum("bsh,hn->bsn", xc, wv,
                 preferred_element_type=jnp.float32).reshape(B, S, nkv, hd)

  def rms(t, w):
    var = jnp.mean(t * t, axis=-1, keepdims=True)
    return t * lax.rsqrt(var + eps) * w

  def rotate_half(t):
    h = t.shape[-1] // 2
    return jnp.concatenate([-t[..., h:], t[..., :h]], axis=-1)

  if cos.ndim == 2:
    cos, sin = cos[None], sin[None]
  c = cos.astype(jnp.float32)[:, None]
  s = sin.astype(jnp.float32)[:, None]

  q = rms(q, qn).transpose(0, 2, 1, 3)     # (B, nh, S, hd)
  k = rms(k, kn).transpose(0, 2, 1, 3)     # (B, nkv, S, hd)
  v = v.transpose(0, 2, 1, 3)

  q = (q * c + rotate_half(q) * s) * (hd ** -0.5)
  k = k * c + rotate_half(k) * s

  q = q.astype(cd)
  k = jnp.repeat(k.astype(cd), nh // nkv, axis=1)
  v = jnp.repeat(v.astype(cd), nh // nkv, axis=1)

  scores = jnp.einsum("bhqd,bhkd->bhqk", q, k,
                      preferred_element_type=jnp.float32)
  if mask is not None:
    scores = scores + mask.astype(jnp.float32)
  p = jax.nn.softmax(scores, axis=-1).astype(cd)
  attn = jnp.einsum("bhqk,bhkd->bhqd", p, v,
                    preferred_element_type=jnp.float32).astype(cd)
  attn = attn.transpose(0, 2, 1, 3).reshape(B, S, nh * hd)
  out = jnp.einsum("bsn,nh->bsh", attn, wo,
                   preferred_element_type=jnp.float32)
  return out.astype(x.dtype)


if __name__ == "__main__":
  # Small but tile-aligned Qwen3-like config: hidden == num_heads * head_dim.
  B, S, H = 2, 512, 512
  num_heads, num_kv_heads, head_dim = 4, 2, 128
  eps = 1e-6
  rope_theta = 10000.0

  key = jax.random.PRNGKey(0)
  kx, kq, kk, kv, ko = jax.random.split(key, 5)

  x = jax.random.normal(kx, (B, S, H), dtype=jnp.float32)
  params = {
      "wq": 0.02 * jax.random.normal(kq, (H, num_heads * head_dim), jnp.float32),
      "wk": 0.02 * jax.random.normal(kk, (H, num_kv_heads * head_dim), jnp.float32),
      "wv": 0.02 * jax.random.normal(kv, (H, num_kv_heads * head_dim), jnp.float32),
      "wo": 0.02 * jax.random.normal(ko, (num_heads * head_dim, H), jnp.float32),
      "q_norm": jnp.ones((head_dim,), jnp.float32),
      "k_norm": jnp.ones((head_dim,), jnp.float32),
  }

  inv_freq = 1.0 / (rope_theta ** (jnp.arange(0, head_dim, 2, dtype=jnp.float32)
                                   / head_dim))
  pos = jnp.arange(S, dtype=jnp.float32)
  freqs = pos[:, None] * inv_freq[None, :]
  emb = jnp.concatenate([freqs, freqs], axis=-1)            # (S, hd)
  cos = jnp.broadcast_to(jnp.cos(emb)[None], (B, S, head_dim))
  sin = jnp.broadcast_to(jnp.sin(emb)[None], (B, S, head_dim))

  common = dict(num_heads=num_heads, num_kv_heads=num_kv_heads,
                head_dim=head_dim, eps=eps)

  # Additive causal bias (only used by the reference / HBM-mask test).
  causal_bias = jnp.where(jnp.arange(S)[:, None] >= jnp.arange(S)[None, :],
                          0.0, -1e9).astype(jnp.float32)
  causal_bias = jnp.broadcast_to(causal_bias[None, None], (B, 1, S, S))

  # 1) f32 compute, no mask (tight check).
  out_f32 = jax.block_until_ready(
      qwen3_attention(x, cos, sin, None, params,
                      compute_dtype=jnp.float32, **common))
  ref_f32 = _reference(x, cos, sin, None, params, num_heads, num_kv_heads,
                       head_dim, eps, compute_dtype=jnp.float32)
  err = float(jnp.max(jnp.abs(out_f32 - ref_f32)))
  assert out_f32.shape == (B, S, H)
  assert err < 5e-3, f"f32 mismatch: max abs err {err}"

  # 2) bf16 compute with IN-KERNEL causal masking (no HBM mask, tiles skipped).
  out_c = jax.block_until_ready(
      qwen3_attention(x, cos, sin, None, params, is_causal=True,
                      compute_dtype=jnp.bfloat16, **common))
  ref_c = _reference(x, cos, sin, causal_bias, params, num_heads,
                     num_kv_heads, head_dim, eps, compute_dtype=jnp.bfloat16)
  err = float(jnp.max(jnp.abs(out_c.astype(jnp.float32) -
                              ref_c.astype(jnp.float32))))
  assert err < 2e-2, f"causal bf16 mismatch: max abs err {err}"

  # 3) bf16 compute with an arbitrary additive HBM mask supplied in bf16.
  mask_bf16 = causal_bias.astype(jnp.bfloat16)
  out_m = jax.block_until_ready(
      qwen3_attention(x, cos, sin, mask_bf16, params,
                      compute_dtype=jnp.bfloat16, **common))
  ref_m = _reference(x, cos, sin, mask_bf16, params, num_heads, num_kv_heads,
                     head_dim, eps, compute_dtype=jnp.bfloat16)
  err = float(jnp.max(jnp.abs(out_m.astype(jnp.float32) -
                              ref_m.astype(jnp.float32))))
  assert err < 2e-2, f"masked bf16 mismatch: max abs err {err}"

  print("KERNEL_OK")
</pallas_src>

<mosaic_0001>
module attributes {stable_mosaic.version = 11 : i64} {
  func.func @_qkv_norm_rope_kernel(%arg0: i32, %arg1: i32, %arg2: i32, %arg3: memref<1x256x256xf32, #tpu.memory_space<vmem>>, %arg4: memref<256x128xf32, #tpu.memory_space<vmem>>, %arg5: memref<256x128xf32, #tpu.memory_space<vmem>>, %arg6: memref<256x1024xf32, #tpu.memory_space<vmem>>, %arg7: memref<1x128xf32, #tpu.memory_space<vmem>>, %arg8: memref<1x128xf32, #tpu.memory_space<vmem>>, %arg9: memref<1x4x256x128xf32, #tpu.memory_space<vmem>>, %arg10: memref<1x2x256x128xf32, #tpu.memory_space<vmem>>, %arg11: memref<1x2x256x128xf32, #tpu.memory_space<vmem>>, %arg12: memref<256x1024xf32, #tpu.memory_space<vmem>>) attributes {dimension_semantics = [#tpu.dimension_semantics<parallel>, #tpu.dimension_semantics<parallel>, #tpu.dimension_semantics<arbitrary>], iteration_bounds = array<i64: 2, 2, 2>, scalar_prefetch = 0 : i64, scratch_operands = 1 : i64, tpu.core_type = #tpu.core_type<tc>, window_params = [{transform_indices = @transform_0, window_bounds = array<i64: 1, 256, 256>}, {transform_indices = @transform_1, window_bounds = array<i64: 256, 128>}, {transform_indices = @transform_2, window_bounds = array<i64: 256, 128>}, {transform_indices = @transform_3, window_bounds = array<i64: 256, 1024>}, {pipeline_mode = #tpu.pipeline_mode<synchronous>, transform_indices = @transform_4, window_bounds = array<i64: 1, 128>}, {pipeline_mode = #tpu.pipeline_mode<synchronous>, transform_indices = @transform_5, window_bounds = array<i64: 1, 128>}, {transform_indices = @transform_6, window_bounds = array<i64: 1, 4, 256, 128>}, {transform_indices = @transform_7, window_bounds = array<i64: 1, 2, 256, 128>}, {transform_indices = @transform_8, window_bounds = array<i64: 1, 2, 256, 128>}]} {
    %c0_i32 = arith.constant 0 : i32
    %0 = arith.cmpi eq, %arg2, %c0_i32 : i32
    %1 = arith.extui %0 : i1 to i32
    %c0_i32_0 = arith.constant 0 : i32
    %2 = arith.cmpi ne, %1, %c0_i32_0 : i32
    scf.if %2 {
      %cst_10 = arith.constant 0.000000e+00 : f32
      %13 = vector.broadcast %cst_10 : f32 to vector<256x1024xf32>
      %c0_11 = arith.constant 0 : index
      %c0_12 = arith.constant 0 : index
      %14 = vector.load %arg12[%c0_11, %c0_12] : memref<256x1024xf32, #tpu.memory_space<vmem>>, vector<256x1024xf32>
      tpu.vector_store %arg12[%c0_11, %c0_12], %13 {strides = array<i32>} : memref<256x1024xf32, #tpu.memory_space<vmem>>, vector<256x1024xf32>,
    } else {
    }
    %c0 = arith.constant 0 : index
    %c0_1 = arith.constant 0 : index
    %3 = vector.load %arg12[%c0, %c0_1] : memref<256x1024xf32, #tpu.memory_space<vmem>>, vector<256x1024xf32>
    %c0_2 = arith.constant 0 : index
    %c0_3 = arith.constant 0 : index
    %c0_4 = arith.constant 0 : index
    %4 = vector.load %arg3[%c0_2, %c0_3, %c0_4] : memref<1x256x256xf32, #tpu.memory_space<vmem>>, vector<1x256x256xf32>
    %5 = vector.shape_cast %4 : vector<1x256x256xf32> to vector<256x256xf32>
    %c0_5 = arith.constant 0 : index
    %c0_6 = arith.constant 0 : index
    %6 = vector.load %arg6[%c0_5, %c0_6] : memref<256x1024xf32, #tpu.memory_space<vmem>>, vector<256x1024xf32>
    %cst = arith.constant dense<0.000000e+00> : vector<256x1024xf32>
    %7 = tpu.matmul %5, %6, %cst {dimension_numbers = #tpu.dot_dimension_numbers<[1], [0], [0], [1], [0, 0, 1, 1], [], []>} : vector<256x256xf32>, vector<256x1024xf32>, vector<256x1024xf32> -> vector<256x1024xf32>
    %8 = arith.addf %3, %7 : vector<256x1024xf32>
    %c0_7 = arith.constant 0 : index
    %c0_8 = arith.constant 0 : index
    %9 = vector.load %arg12[%c0_7, %c0_8] : memref<256x1024xf32, #tpu.memory_space<vmem>>, vector<256x1024xf32>
    tpu.vector_store %arg12[%c0_7, %c0_8], %8 {strides = array<i32>} : memref<256x1024xf32, #tpu.memory_space<vmem>>, vector<256x1024xf32>,
    %c1_i32 = arith.constant 1 : i32
    %10 = arith.cmpi eq, %arg2, %c1_i32 : i32
    %11 = arith.extui %10 : i1 to i32
    %c0_i32_9 = arith.constant 0 : i32
    %12 = arith.cmpi ne, %11, %c0_i32_9 : i32
    scf.if %12 {
      %c0_10 = arith.constant 0 : index
      %c0_11 = arith.constant 0 : index
      %13 = vector.load %arg4[%c0_10, %c0_11] : memref<256x128xf32, #tpu.memory_space<vmem>>, vector<256x128xf32>
      %c0_12 = arith.constant 0 : index
      %c0_13 = arith.constant 0 : index
      %14 = vector.load %arg5[%c0_12, %c0_13] : memref<256x128xf32, #tpu.memory_space<vmem>>, vector<256x128xf32>
      %c0_14 = arith.constant 0 : index
      %c0_15 = arith.constant 0 : index
      %15 = vector.load %arg7[%c0_14, %c0_15] : memref<1x128xf32, #tpu.memory_space<vmem>>, vector<1x128xf32>
      %c0_16 = arith.constant 0 : index
      %c0_17 = arith.constant 0 : index
      %16 = vector.load %arg8[%c0_16, %c0_17] : memref<1x128xf32, #tpu.memory_space<vmem>>, vector<1x128xf32>
      %c0_18 = arith.constant 0 : index
      %c0_19 = arith.constant 0 : index
      %17 = vector.load %arg12[%c0_18, %c0_19] : memref<256x1024xf32, #tpu.memory_space<vmem>>, vector<256x128xf32>
      %18 = arith.mulf %17, %17 : vector<256x128xf32>
      %cst_20 = arith.constant dense<0.000000e+00> : vector<256xf32>
      %19 = vector.multi_reduction <add>, %18, %cst_20 [1] : vector<256x128xf32> to vector<256xf32>
      %20 = vector.shape_cast %19 : vector<256xf32> to vector<256x1xf32>
      %cst_21 = arith.constant 1.280000e+02 : f32
      %21 = vector.broadcast %cst_21 : f32 to vector<256x1xf32>
      %22 = arith.divf %20, %21 : vector<256x1xf32>
      %cst_22 = arith.constant 9.99999997E-7 : f32
      %23 = vector.broadcast %cst_22 : f32 to vector<256x1xf32>
      %24 = arith.addf %22, %23 : vector<256x1xf32>
      %25 = math.rsqrt %24 : vector<256x1xf32>
      %26 = vector.broadcast %25 : vector<256x1xf32> to vector<256x128xf32>
      %27 = arith.mulf %17, %26 : vector<256x128xf32>
      %28 = vector.broadcast %15 : vector<1x128xf32> to vector<256x128xf32>
      %29 = arith.mulf %27, %28 : vector<256x128xf32>
      %30 = arith.mulf %29, %13 : vector<256x128xf32>
      %c64_i32 = arith.constant 64 : i32
      %31 = tpu.dynamic_rotate %29 by %c64_i32 dim 1 : vector<256x128xf32>, i32 -> vector<256x128xf32>
      %32 = arith.mulf %31, %14 : vector<256x128xf32>
      %33 = arith.addf %30, %32 : vector<256x128xf32>
      %c0_23 = arith.constant 0 : index
      %c0_24 = arith.constant 0 : index
      %c0_25 = arith.constant 0 : index
      %c0_26 = arith.constant 0 : index
      %34 = vector.load %arg9[%c0_23, %c0_24, %c0_25, %c0_26] : memref<1x4x256x128xf32, #tpu.memory_space<vmem>>, vector<1x1x256x128xf32>
      %35 = vector.shape_cast %34 : vector<1x1x256x128xf32> to vector<256x128xf32>
      %36 = vector.shape_cast %33 : vector<256x128xf32> to vector<1x1x256x128xf32>
      tpu.vector_store %arg9[%c0_23, %c0_24, %c0_25, %c0_26], %36 {strides = array<i32>} : memref<1x4x256x128xf32, #tpu.memory_space<vmem>>, vector<1x1x256x128xf32>,
      %c0_27 = arith.constant 0 : index
      %c128 = arith.constant 128 : index
      %37 = vector.load %arg12[%c0_27, %c128] : memref<256x1024xf32, #tpu.memory_space<vmem>>, vector<256x128xf32>
      %38 = arith.mulf %37, %37 : vector<256x128xf32>
      %cst_28 = arith.constant dense<0.000000e+00> : vector<256xf32>
      %39 = vector.multi_reduction <add>, %38, %cst_28 [1] : vector<256x128xf32> to vector<256xf32>
      %40 = vector.shape_cast %39 : vector<256xf32> to vector<256x1xf32>
      %cst_29 = arith.constant 1.280000e+02 : f32
      %41 = vector.broadcast %cst_29 : f32 to vector<256x1xf32>
      %42 = arith.divf %40, %41 : vector<256x1xf32>
      %cst_30 = arith.constant 9.99999997E-7 : f32
      %43 = vector.broadcast %cst_30 : f32 to vector<256x1xf32>
      %44 = arith.addf %42, %43 : vector<256x1xf32>
      %45 = math.rsqrt %44 : vector<256x1xf32>
      %46 = vector.broadcast %45 : vector<256x1xf32> to vector<256x128xf32>
      %47 = arith.mulf %37, %46 : vector<256x128xf32>
      %48 = vector.broadcast %15 : vector<1x128xf32> to vector<256x128xf32>
      %49 = arith.mulf %47, %48 : vector<256x128xf32>
      %50 = arith.mulf %49, %13 : vector<256x128xf32>
      %c64_i32_31 = arith.constant 64 : i32
      %51 = tpu.dynamic_rotate %49 by %c64_i32_31 dim 1 : vector<256x128xf32>, i32 -> vector<256x128xf32>
      %52 = arith.mulf %51, %14 : vector<256x128xf32>
      %53 = arith.addf %50, %52 : vector<256x128xf32>
      %c0_32 = arith.constant 0 : index
      %c1 = arith.constant 1 : index
      %c0_33 = arith.constant 0 : index
      %c0_34 = arith.constant 0 : index
      %54 = vector.load %arg9[%c0_32, %c1, %c0_33, %c0_34] : memref<1x4x256x128xf32, #tpu.memory_space<vmem>>, vector<1x1x256x128xf32>
      %55 = vector.shape_cast %54 : vector<1x1x256x128xf32> to vector<256x128xf32>
      %56 = vector.shape_cast %53 : vector<256x128xf32> to vector<1x1x256x128xf32>
      tpu.vector_store %arg9[%c0_32, %c1, %c0_33, %c0_34], %56 {strides = array<i32>} : memref<1x4x256x128xf32, #tpu.memory_space<vmem>>, vector<1x1x256x128xf32>,
      %c0_35 = arith.constant 0 : index
      %c256 = arith.constant 256 : index
      %57 = vector.load %arg12[%c0_35, %c256] : memref<256x1024xf32, #tpu.memory_space<vmem>>, vector<256x128xf32>
      %58 = arith.mulf %57, %57 : vector<256x128xf32>
      %cst_36 = arith.constant dense<0.000000e+00> : vector<256xf32>
      %59 = vector.multi_reduction <add>, %58, %cst_36 [1] : vector<256x128xf32> to vector<256xf32>
      %60 = vector.shape_cast %59 : vector<256xf32> to vector<256x1xf32>
      %cst_37 = arith.constant 1.280000e+02 : f32
      %61 = vector.broadcast %cst_37 : f32 to vector<256x1xf32>
      %62 = arith.divf %60, %61 : vector<256x1xf32>
      %cst_38 = arith.constant 9.99999997E-7 : f32
      %63 = vector.broadcast %cst_38 : f32 to vector<256x1xf32>
      %64 = arith.addf %62, %63 : vector<256x1xf32>
      %65 = math.rsqrt %64 : vector<256x1xf32>
      %66 = vector.broadcast %65 : vector<256x1xf32> to vector<256x128xf32>
      %67 = arith.mulf %57, %66 : vector<256x128xf32>
      %68 = vector.broadcast %15 : vector<1x128xf32> to vector<256x128xf32>
      %69 = arith.mulf %67, %68 : vector<256x128xf32>
      %70 = arith.mulf %69, %13 : vector<256x128xf32>
      %c64_i32_39 = arith.constant 64 : i32
      %71 = tpu.dynamic_rotate %69 by %c64_i32_39 dim 1 : vector<256x128xf32>, i32 -> vector<256x128xf32>
      %72 = arith.mulf %71, %14 : vector<256x128xf32>
      %73 = arith.addf %70, %72 : vector<256x128xf32>
      %c0_40 = arith.constant 0 : index
      %c2 = arith.constant 2 : index
      %c0_41 = arith.constant 0 : index
      %c0_42 = arith.constant 0 : index
      %74 = vector.load %arg9[%c0_40, %c2, %c0_41, %c0_42] : memref<1x4x256x128xf32, #tpu.memory_space<vmem>>, vector<1x1x256x128xf32>
      %75 = vector.shape_cast %74 : vector<1x1x256x128xf32> to vector<256x128xf32>
      %76 = vector.shape_cast %73 : vector<256x128xf32> to vector<1x1x256x128xf32>
      tpu.vector_store %arg9[%c0_40, %c2, %c0_41, %c0_42], %76 {strides = array<i32>} : memref<1x4x256x128xf32, #tpu.memory_space<vmem>>, vector<1x1x256x128xf32>,
      %c0_43 = arith.constant 0 : index
      %c384 = arith.constant 384 : index
      %77 = vector.load %arg12[%c0_43, %c384] : memref<256x1024xf32, #tpu.memory_space<vmem>>, vector<256x128xf32>
      %78 = arith.mulf %77, %77 : vector<256x128xf32>
      %cst_44 = arith.constant dense<0.000000e+00> : vector<256xf32>
      %79 = vector.multi_reduction <add>, %78, %cst_44 [1] : vector<256x128xf32> to vector<256xf32>
      %80 = vector.shape_cast %79 : vector<256xf32> to vector<256x1xf32>
      %cst_45 = arith.constant 1.280000e+02 : f32
      %81 = vector.broadcast %cst_45 : f32 to vector<256x1xf32>
      %82 = arith.divf %80, %81 : vector<256x1xf32>
      %cst_46 = arith.constant 9.99999997E-7 : f32
      %83 = vector.broadcast %cst_46 : f32 to vector<256x1xf32>
      %84 = arith.addf %82, %83 : vector<256x1xf32>
      %85 = math.rsqrt %84 : vector<256x1xf32>
      %86 = vector.broadcast %85 : vector<256x1xf32> to vector<256x128xf32>
      %87 = arith.mulf %77, %86 : vector<256x128xf32>
      %88 = vector.broadcast %15 : vector<1x128xf32> to vector<256x128xf32>
      %89 = arith.mulf %87, %88 : vector<256x128xf32>
      %90 = arith.mulf %89, %13 : vector<256x128xf32>
      %c64_i32_47 = arith.constant 64 : i32
      %91 = tpu.dynamic_rotate %89 by %c64_i32_47 dim 1 : vector<256x128xf32>, i32 -> vector<256x128xf32>
      %92 = arith.mulf %91, %14 : vector<256x128xf32>
      %93 = arith.addf %90, %92 : vector<256x128xf32>
      %c0_48 = arith.constant 0 : index
      %c3 = arith.constant 3 : index
      %c0_49 = arith.constant 0 : index
      %c0_50 = arith.constant 0 : index
      %94 = vector.load %arg9[%c0_48, %c3, %c0_49, %c0_50] : memref<1x4x256x128xf32, #tpu.memory_space<vmem>>, vector<1x1x256x128xf32>
      %95 = vector.shape_cast %94 : vector<1x1x256x128xf32> to vector<256x128xf32>
      %96 = vector.shape_cast %93 : vector<256x128xf32> to vector<1x1x256x128xf32>
      tpu.vector_store %arg9[%c0_48, %c3, %c0_49, %c0_50], %96 {strides = array<i32>} : memref<1x4x256x128xf32, #tpu.memory_space<vmem>>, vector<1x1x256x128xf32>,
      %c0_51 = arith.constant 0 : index
      %c512 = arith.constant 512 : index
      %97 = vector.load %arg12[%c0_51, %c512] : memref<256x1024xf32, #tpu.memory_space<vmem>>, vector<256x128xf32>
      %98 = arith.mulf %97, %97 : vector<256x128xf32>
      %cst_52 = arith.constant dense<0.000000e+00> : vector<256xf32>
      %99 = vector.multi_reduction <add>, %98, %cst_52 [1] : vector<256x128xf32> to vector<256xf32>
      %100 = vector.shape_cast %99 : vector<256xf32> to vector<256x1xf32>
      %cst_53 = arith.constant 1.280000e+02 : f32
      %101 = vector.broadcast %cst_53 : f32 to vector<256x1xf32>
      %102 = arith.divf %100, %101 : vector<256x1xf32>
      %cst_54 = arith.constant 9.99999997E-7 : f32
      %103 = vector.broadcast %cst_54 : f32 to vector<256x1xf32>
      %104 = arith.addf %102, %103 : vector<256x1xf32>
      %105 = math.rsqrt %104 : vector<256x1xf32>
      %106 = vector.broadcast %105 : vector<256x1xf32> to vector<256x128xf32>
      %107 = arith.mulf %97, %106 : vector<256x128xf32>
      %108 = vector.broadcast %16 : vector<1x128xf32> to vector<256x128xf32>
      %109 = arith.mulf %107, %108 : vector<256x128xf32>
      %110 = arith.mulf %109, %13 : vector<256x128xf32>
      %c64_i32_55 = arith.constant 64 : i32
      %111 = tpu.dynamic_rotate %109 by %c64_i32_55 dim 1 : vector<256x128xf32>, i32 -> vector<256x128xf32>
      %112 = arith.mulf %111, %14 : vector<256x128xf32>
      %113 = arith.addf %110, %112 : vector<256x128xf32>
      %c0_56 = arith.constant 0 : index
      %c0_57 = arith.constant 0 : index
      %c0_58 = arith.constant 0 : index
      %c0_59 = arith.constant 0 : index
      %114 = vector.load %arg10[%c0_56, %c0_57, %c0_58, %c0_59] : memref<1x2x256x128xf32, #tpu.memory_space<vmem>>, vector<1x1x256x128xf32>
      %115 = vector.shape_cast %114 : vector<1x1x256x128xf32> to vector<256x128xf32>
      %116 = vector.shape_cast %113 : vector<256x128xf32> to vector<1x1x256x128xf32>
      tpu.vector_store %arg10[%c0_56, %c0_57, %c0_58, %c0_59], %116 {strides = array<i32>} : memref<1x2x256x128xf32, #tpu.memory_space<vmem>>, vector<1x1x256x128xf32>,
      %c0_60 = arith.constant 0 : index
      %c768 = arith.constant 768 : index
      %117 = vector.load %arg12[%c0_60, %c768] : memref<256x1024xf32, #tpu.memory_space<vmem>>, vector<256x128xf32>
      %c0_61 = arith.constant 0 : index
      %c0_62 = arith.constant 0 : index
      %c0_63 = arith.constant 0 : index
      %c0_64 = arith.constant 0 : index
      %118 = vector.load %arg11[%c0_61, %c0_62, %c0_63, %c0_64] : memref<1x2x256x128xf32, #tpu.memory_space<vmem>>, vector<1x1x256x128xf32>
      %119 = vector.shape_cast %118 : vector<1x1x256x128xf32> to vector<256x128xf32>
      %120 = vector.shape_cast %117 : vector<256x128xf32> to vector<1x1x256x128xf32>
      tpu.vector_store %arg11[%c0_61, %c0_62, %c0_63, %c0_64], %120 {strides = array<i32>} : memref<1x2x256x128xf32, #tpu.memory_space<vmem>>, vector<1x1x256x128xf32>,
      %c0_65 = arith.constant 0 : index
      %c640 = arith.constant 640 : index
      %121 = vector.load %arg12[%c0_65, %c640] : memref<256x1024xf32, #tpu.memory_space<vmem>>, vector<256x128xf32>
      %122 = arith.mulf %121, %121 : vector<256x128xf32>
      %cst_66 = arith.constant dense<0.000000e+00> : vector<256xf32>
      %123 = vector.multi_reduction <add>, %122, %cst_66 [1] : vector<256x128xf32> to vector<256xf32>
      %124 = vector.shape_cast %123 : vector<256xf32> to vector<256x1xf32>
      %cst_67 = arith.constant 1.280000e+02 : f32
      %125 = vector.broadcast %cst_67 : f32 to vector<256x1xf32>
      %126 = arith.divf %124, %125 : vector<256x1xf32>
      %cst_68 = arith.constant 9.99999997E-7 : f32
      %127 = vector.broadcast %cst_68 : f32 to vector<256x1xf32>
      %128 = arith.addf %126, %127 : vector<256x1xf32>
      %129 = math.rsqrt %128 : vector<256x1xf32>
      %130 = vector.broadcast %129 : vector<256x1xf32> to vector<256x128xf32>
      %131 = arith.mulf %121, %130 : vector<256x128xf32>
      %132 = vector.broadcast %16 : vector<1x128xf32> to vector<256x128xf32>
      %133 = arith.mulf %131, %132 : vector<256x128xf32>
      %134 = arith.mulf %133, %13 : vector<256x128xf32>
      %c64_i32_69 = arith.constant 64 : i32
      %135 = tpu.dynamic_rotate %133 by %c64_i32_69 dim 1 : vector<256x128xf32>, i32 -> vector<256x128xf32>
      %136 = arith.mulf %135, %14 : vector<256x128xf32>
      %137 = arith.addf %134, %136 : vector<256x128xf32>
      %c0_70 = arith.constant 0 : index
      %c1_71 = arith.constant 1 : index
      %c0_72 = arith.constant 0 : index
      %c0_73 = arith.constant 0 : index
      %138 = vector.load %arg10[%c0_70, %c1_71, %c0_72, %c0_73] : memref<1x2x256x128xf32, #tpu.memory_space<vmem>>, vector<1x1x256x128xf32>
      %139 = vector.shape_cast %138 : vector<1x1x256x128xf32> to vector<256x128xf32>
      %140 = vector.shape_cast %137 : vector<256x128xf32> to vector<1x1x256x128xf32>
      tpu.vector_store %arg10[%c0_70, %c1_71, %c0_72, %c0_73], %140 {strides = array<i32>} : memref<1x2x256x128xf32, #tpu.memory_space<vmem>>, vector<1x1x256x128xf32>,
      %c0_74 = arith.constant 0 : index
      %c896 = arith.constant 896 : index
      %141 = vector.load %arg12[%c0_74, %c896] : memref<256x1024xf32, #tpu.memory_space<vmem>>, vector<256x128xf32>
      %c0_75 = arith.constant 0 : index
      %c1_76 = arith.constant 1 : index
      %c0_77 = arith.constant 0 : index
      %c0_78 = arith.constant 0 : index
      %142 = vector.load %arg11[%c0_75, %c1_76, %c0_77, %c0_78] : memref<1x2x256x128xf32, #tpu.memory_space<vmem>>, vector<1x1x256x128xf32>
      %143 = vector.shape_cast %142 : vector<1x1x256x128xf32> to vector<256x128xf32>
      %144 = vector.shape_cast %141 : vector<256x128xf32> to vector<1x1x256x128xf32>
      tpu.vector_store %arg11[%c0_75, %c1_76, %c0_77, %c0_78], %144 {strides = array<i32>} : memref<1x2x256x128xf32, #tpu.memory_space<vmem>>, vector<1x1x256x128xf32>,
    } else {
    }
    return
  }
  func.func @transform_0(%arg0: i32, %arg1: i32, %arg2: i32) -> (i32, i32, i32) {
    %c0_i32 = arith.constant 0 : i32
    return %arg0, %arg1, %arg2 : i32, i32, i32
  }
  func.func @transform_1(%arg0: i32, %arg1: i32, %arg2: i32) -> (i32, i32) {
    %c0_i32 = arith.constant 0 : i32
    %c0_i32_0 = arith.constant 0 : i32
    return %arg1, %c0_i32 : i32, i32
  }
  func.func @transform_2(%arg0: i32, %arg1: i32, %arg2: i32) -> (i32, i32) {
    %c0_i32 = arith.constant 0 : i32
    %c0_i32_0 = arith.constant 0 : i32
    return %arg1, %c0_i32 : i32, i32
  }
  func.func @transform_3(%arg0: i32, %arg1: i32, %arg2: i32) -> (i32, i32) {
    %c0_i32 = arith.constant 0 : i32
    %c0_i32_0 = arith.constant 0 : i32
    return %arg2, %c0_i32 : i32, i32
  }
  func.func @transform_4(%arg0: i32, %arg1: i32, %arg2: i32) -> (i32, i32) {
    %c0_i32 = arith.constant 0 : i32
    %c0_i32_0 = arith.constant 0 : i32
    %c0_i32_1 = arith.constant 0 : i32
    return %c0_i32, %c0_i32_0 : i32, i32
  }
  func.func @transform_5(%arg0: i32, %arg1: i32, %arg2: i32) -> (i32, i32) {
    %c0_i32 = arith.constant 0 : i32
    %c0_i32_0 = arith.constant 0 : i32
    %c0_i32_1 = arith.constant 0 : i32
    return %c0_i32, %c0_i32_0 : i32, i32
  }
  func.func @transform_6(%arg0: i32, %arg1: i32, %arg2: i32) -> (i32, i32, i32, i32) {
    %c0_i32 = arith.constant 0 : i32
    %c0_i32_0 = arith.constant 0 : i32
    %c0_i32_1 = arith.constant 0 : i32
    return %arg0, %c0_i32, %arg1, %c0_i32_0 : i32, i32, i32, i32
  }
  func.func @transform_7(%arg0: i32, %arg1: i32, %arg2: i32) -> (i32, i32, i32, i32) {
    %c0_i32 = arith.constant 0 : i32
    %c0_i32_0 = arith.constant 0 : i32
    %c0_i32_1 = arith.constant 0 : i32
    return %arg0, %c0_i32, %arg1, %c0_i32_0 : i32, i32, i32, i32
  }
  func.func @transform_8(%arg0: i32, %arg1: i32, %arg2: i32) -> (i32, i32, i32, i32) {
    %c0_i32 = arith.constant 0 : i32
    %c0_i32_0 = arith.constant 0 : i32
    %c0_i32_1 = arith.constant 0 : i32
    return %arg0, %c0_i32, %arg1, %c0_i32_0 : i32, i32, i32, i32
  }
}

</mosaic_0001>

<llo_original>
// kernel: tpu_custom_call.1
$region0: #{tpu_custom_call.1}
  #allocation0 [shape = 'u32[]', space=smem, size = 0x4, offset = 0x4, fixed_abs, tag = 'smem constant byte address 0x4 - core index']
  #allocation1 [shape = 'u32[144,128]{1,0:T(1,128)}', space=vmem, size = 0x12000, scoped, tag = 'internal scratch']
  #allocation2 [shape = 'f32[256,1024]{1,0:T(8,128)}', space=vmem, size = 0x100000, scoped, tag = 'scratch operand']
  #allocation18 [shape = 's32[]', space=sflag, size = 0x4, offset = 0, fixed_abs, tag = 'sflag constant byte address 0x0 - dummy sync flag']
  #allocation20 [shape = 's32[]', space=sflag, size = 0x4, offset = 0, fixed_abs, tag = 'sflag constant byte address 0x0 - dummy sync flag']
  #allocation22 [shape = 's32[]', space=sflag, size = 0x4, offset = 0, fixed_abs, tag = 'sflag constant byte address 0x0 - dummy sync flag']
  %s0 = inlined_call_operand.hbm [shape: f32[2,512,512], index: 0, kind: input, shape index: {}]
  %s1 = inlined_call_operand.hbm [shape: f32[512,128], index: 1, kind: input, shape index: {}]
  %s2 = inlined_call_operand.hbm [shape: f32[512,128], index: 2, kind: input, shape index: {}]
  %s3 = inlined_call_operand.hbm [shape: f32[512,1024], index: 3, kind: input, shape index: {}]
  %s4 = inlined_call_operand.hbm [shape: f32[1,128], index: 4, kind: input, shape index: {}]
  %s5 = inlined_call_operand.hbm [shape: f32[1,128], index: 5, kind: input, shape index: {}]
  %s6 = inlined_call_operand.hbm [shape: f32[2,4,512,128], index: 6, kind: output, shape index: {0}]
  %s7 = inlined_call_operand.hbm [shape: f32[2,2,512,128], index: 7, kind: output, shape index: {1}]
  %s8 = inlined_call_operand.hbm [shape: f32[2,2,512,128], index: 8, kind: output, shape index: {2}]
  %9 = xla_tuple %s6, %s7, %s8
  %s10 = sld [smem:[#allocation0]]
  $region105: #{tpu_custom_call.1} parent=0
    _
  %s12 = ssub.s32 1, %s10
  %s13 = scalar_select 0, %s12, %s10
  $region1: #{tpu_custom_call.1} parent=0
    #allocation3 [shape = 'u8[524288]{0}', space=vmem, size = 0x80000, scoped, tag = 'input window, operand 0']
    #allocation4 [shape = 's32[2]{0}', space=sflag, size = 0x8, scoped, tag = 'scoped memory for tpu_custom_call.1']
    #allocation5 [shape = 's32[2]{0}', space=sflag, size = 0x8, scoped, tag = 'scoped memory for tpu_custom_call.1']
    #allocation6 [shape = 'u8[262144]{0}', space=vmem, size = 0x40000, scoped, tag = 'input window, operand 1']
    #allocation7 [shape = 's32[2]{0}', space=sflag, size = 0x8, scoped, tag = 'scoped memory for tpu_custom_call.1']
    #allocation8 [shape = 'u8[262144]{0}', space=vmem, size = 0x40000, scoped, tag = 'input window, operand 2']
    #allocation9 [shape = 'u8[2097152]{0}', space=vmem, size = 0x200000, scoped, tag = 'input window, operand 3']
    #allocation10 [shape = 's32[2]{0}', space=sflag, size = 0x8, scoped, tag = 'scoped memory for tpu_custom_call.1']
    #allocation11 [shape = 'u8[512]{0}', space=vmem, size = 0x400, scoped, tag = 'input window, operand 4, single buffered']
    #allocation12 [shape = 'u8[512]{0}', space=vmem, size = 0x400, scoped, tag = 'input window, operand 5, single buffered']
    #allocation13 [shape = 's32[1]{0}', space=sflag, size = 0x4, scoped, tag = 'scoped memory for tpu_custom_call.1']
    #allocation14 [shape = 'u8[1048576]{0}', space=vmem, size = 0x100000, scoped, tag = 'output window, operand 0']
    #allocation15 [shape = 'u8[524288]{0}', space=vmem, size = 0x80000, scoped, tag = 'output window, operand 1']
    #allocation16 [shape = 's32[2]{0}', space=sflag, size = 0x8, scoped, tag = 'scoped memory for tpu_custom_call.1']
    #allocation17 [shape = 'u8[524288]{0}', space=vmem, size = 0x80000, scoped, tag = 'output window, operand 2']
    %14 = vsyncpa [#allocation4], 0
    %s15 = scalar_lea.sflag [#allocation4], 1
    %16 = vsyncpa %s15, 0
    %17 = vsyncpa [#allocation7], 0
    %s18 = scalar_lea.sflag [#allocation7], 1
    %19 = vsyncpa %s18, 0
    %20 = vsyncpa [#allocation10], 0
    %s21 = scalar_lea.sflag [#allocation10], 1
    %22 = vsyncpa %s21, 0
    %23 = vsyncpa [#allocation13], 0
    %24 = vsyncpa [#allocation5], 0
    %s25 = scalar_lea.sflag [#allocation5], 1
    %26 = vsyncpa %s25, 0
    %27 = vsyncpa [#allocation16], 0
    %s28 = scalar_lea.sflag [#allocation16], 1
    %29 = vsyncpa %s28, 0
    loop: start=0, step=1, limit=10
    $region2: #{tpu_custom_call.1} parent=1 // loop_pre_header
      _
    $region3: #{tpu_custom_call.1} parent=1 // loop_header
      %s31 = sphi 0, %s35
      %p32 = scmp.ge.s32.totalorder %s31, 10
      %s38 = sphi 0, %s57
      %s39 = sphi 0, %s53
      %s40 = sphi 0, %s49
      %s41 = sphi 0, %s38
      %s42 = sphi 0, %s39
      %s43 = sphi 0, %s40
      %s44 = sphi 0, %s41
      %s45 = sphi 0, %s42
      %s46 = sphi 0, %s43
      %s64 = sphi 0, %s66
      %s67 = sphi 0, %s64
      %s68 = sphi 0, %s67
      %s84 = sphi 0, %s68
      %s90 = sphi 0, %s92
      %s93 = sphi 0, %s90
      %s94 = sphi 0, %s93
      %s110 = sphi 0, %s94
      %s116 = sphi 0, %s118
      %s119 = sphi 0, %s116
      %s120 = sphi 0, %s119
      %s136 = sphi 0, %s120
      %s142 = sphi 0, %s144
      %s145 = sphi 0, %s142
      %s146 = sphi 0, %s145
      %s162 = sphi 0, %s146
      %s166 = sphi 0, %s166
      %s168 = sphi 0, %s166
      %s169 = sphi 0, %s168
      %s183 = sphi 0, %s169
      %s187 = sphi 0, %s187
      %s189 = sphi 0, %s187
      %s190 = sphi 0, %s189
      %s204 = sphi 0, %s190
      %s212 = sphi 0, %s214
      %s215 = sphi 0, %s212
      %s216 = sphi 0, %s215
      %s232 = sphi 0, %s216
      %s240 = sphi 0, %s242
      %s243 = sphi 0, %s240
      %s244 = sphi 0, %s243
      %s260 = sphi 0, %s244
      %s268 = sphi 0, %s270
      %s271 = sphi 0, %s268
      %s272 = sphi 0, %s271
      %s288 = sphi 0, %s272
    $region4: #{tpu_custom_call.1} parent=1 // loop_header_branch
      %34 = sbr.rel (%p32) target = $region8
    $region5: #{tpu_custom_call.1} parent=1 // loop_body
      %s36 = ssub.s32 %s31, 1
      %s37 = ssub.s32 %s31, 2
      %s47 = sadd.s32 1, %s40
      %p48 = scmp.ge.s32.totalorder %s47, 2
      %s49 = scalar_select %p48, 0, %s47
      %s50 = sadd.s32 1, %s39
      %s51 = scalar_select %p48, %s50, %s39
      %p52 = scmp.ge.s32.totalorder %s51, 2
      %s53 = scalar_select %p52, 0, %s51
      %s54 = sadd.s32 1, %s38
      %s55 = scalar_select %p52, %s54, %s38
      %p56 = scmp.ge.s32.totalorder %s55, 2
      %s57 = scalar_select %p56, 0, %s55
      %s58 = ssub.s32 %s38, %s57
      %s59 = ssub.s32 %s39, %s53
      %s60 = sor.u32 %s58, %s59
      %s61 = ssub.s32 %s40, %s49
      %s62 = sor.u32 %s60, %s61
      %p63 = scmp.eq.s32.totalorder %s62, 0
      %s65 = sadd.s32 %s64, 1
      %s66 = scalar_select %p63, %s64, %s65
      %p69 = pneg %p63
      %p70 = scmp.eq.s32.totalorder %s31, 7
      %p71 = por %p69, %p70
      %p72 = scmp.ne.s32.totalorder %s64, %s67
      %p73 = scmp.eq.s32.totalorder %s31, 0
      %p74 = por %p72, %p73
      %p75 = scmp.ne.s32.totalorder %s64, %s67
      %p76 = scmp.eq.s32.totalorder %s36, 7
      %p77 = por %p75, %p76
      %p78 = scmp.ne.s32.totalorder %s67, %s68
      %p79 = scmp.eq.s32.totalorder %s36, 0
      %p80 = por %p78, %p79
      %p81 = scmp.ne.s32.totalorder %s67, %s68
      %p82 = scmp.eq.s32.totalorder %s37, 7
      %p83 = por %p81, %p82
      %p85 = scmp.ne.s32.totalorder %s68, %s84
      %p86 = scmp.eq.s32.totalorder %s37, 0
      %p87 = por %p85, %p86
      %s88 = ssub.s32 %s39, %s53
      %p89 = scmp.eq.s32.totalorder %s88, 0
      %s91 = sadd.s32 %s90, 1
      %s92 = scalar_select %p89, %s90, %s91
      %p95 = pneg %p89
      %p96 = scmp.eq.s32.totalorder %s31, 7
      %p97 = por %p95, %p96
      %p98 = scmp.ne.s32.totalorder %s90, %s93
      %p99 = scmp.eq.s32.totalorder %s31, 0
      %p100 = por %p98, %p99
      %p101 = scmp.ne.s32.totalorder %s90, %s93
      %p102 = scmp.eq.s32.totalorder %s36, 7
      %p103 = por %p101, %p102
      %p104 = scmp.ne.s32.totalorder %s93, %s94
      %p105 = scmp.eq.s32.totalorder %s36, 0
      %p106 = por %p104, %p105
      %p107 = scmp.ne.s32.totalorder %s93, %s94
      %p108 = scmp.eq.s32.totalorder %s37, 7
      %p109 = por %p107, %p108
      %p111 = scmp.ne.s32.totalorder %s94, %s110
      %p112 = scmp.eq.s32.totalorder %s37, 0
      %p113 = por %p111, %p112
      %s114 = ssub.s32 %s39, %s53
      %p115 = scmp.eq.s32.totalorder %s114, 0
      %s117 = sadd.s32 %s116, 1
      %s118 = scalar_select %p115, %s116, %s117
      %p121 = pneg %p115
      %p122 = scmp.eq.s32.totalorder %s31, 7
      %p123 = por %p121, %p122
      %p124 = scmp.ne.s32.totalorder %s116, %s119
      %p125 = scmp.eq.s32.totalorder %s31, 0
      %p126 = por %p124, %p125
      %p127 = scmp.ne.s32.totalorder %s116, %s119
      %p128 = scmp.eq.s32.totalorder %s36, 7
      %p129 = por %p127, %p128
      %p130 = scmp.ne.s32.totalorder %s119, %s120
      %p131 = scmp.eq.s32.totalorder %s36, 0
      %p132 = por %p130, %p131
      %p133 = scmp.ne.s32.totalorder %s119, %s120
      %p134 = scmp.eq.s32.totalorder %s37, 7
      %p135 = por %p133, %p134
      %p137 = scmp.ne.s32.totalorder %s120, %s136
      %p138 = scmp.eq.s32.totalorder %s37, 0
      %p139 = por %p137, %p138
      %s140 = ssub.s32 %s40, %s49
      %p141 = scmp.eq.s32.totalorder %s140, 0
      %s143 = sadd.s32 %s142, 1
      %s144 = scalar_select %p141, %s142, %s143
      %p147 = pneg %p141
      %p148 = scmp.eq.s32.totalorder %s31, 7
      %p149 = por %p147, %p148
      %p150 = scmp.ne.s32.totalorder %s142, %s145
      %p151 = scmp.eq.s32.totalorder %s31, 0
      %p152 = por %p150, %p151
      %p153 = scmp.ne.s32.totalorder %s142, %s145
      %p154 = scmp.eq.s32.totalorder %s36, 7
      %p155 = por %p153, %p154
      %p156 = scmp.ne.s32.totalorder %s145, %s146
      %p157 = scmp.eq.s32.totalorder %s36, 0
      %p158 = por %p156, %p157
      %p159 = scmp.ne.s32.totalorder %s145, %s146
      %p160 = scmp.eq.s32.totalorder %s37, 7
      %p161 = por %p159, %p160
      %p163 = scmp.ne.s32.totalorder %s146, %s162
      %p164 = scmp.eq.s32.totalorder %s37, 0
      %p165 = por %p163, %p164
      %s167 = sadd.s32 %s166, 1
      %p170 = scmp.eq.s32.totalorder %s31, 7
      %p171 = scmp.ne.s32.totalorder %s166, %s168
      %p172 = scmp.eq.s32.totalorder %s31, 0
      %p173 = por %p171, %p172
      %p174 = scmp.ne.s32.totalorder %s166, %s168
      %p175 = scmp.eq.s32.totalorder %s36, 7
      %p176 = por %p174, %p175
      %p177 = scmp.ne.s32.totalorder %s168, %s169
      %p178 = scmp.eq.s32.totalorder %s36, 0
      %p179 = por %p177, %p178
      %p180 = scmp.ne.s32.totalorder %s168, %s169
      %p181 = scmp.eq.s32.totalorder %s37, 7
      %p182 = por %p180, %p181
      %p184 = scmp.ne.s32.totalorder %s169, %s183
      %p185 = scmp.eq.s32.totalorder %s37, 0
      %p186 = por %p184, %p185
      %s188 = sadd.s32 %s187, 1
      %p191 = scmp.eq.s32.totalorder %s31, 7
      %p192 = scmp.ne.s32.totalorder %s187, %s189
      %p193 = scmp.eq.s32.totalorder %s31, 0
      %p194 = por %p192, %p193
      %p195 = scmp.ne.s32.totalorder %s187, %s189
      %p196 = scmp.eq.s32.totalorder %s36, 7
      %p197 = por %p195, %p196
      %p198 = scmp.ne.s32.totalorder %s189, %s190
      %p199 = scmp.eq.s32.totalorder %s36, 0
      %p200 = por %p198, %p199
      %p201 = scmp.ne.s32.totalorder %s189, %s190
      %p202 = scmp.eq.s32.totalorder %s37, 7
      %p203 = por %p201, %p202
      %p205 = scmp.ne.s32.totalorder %s190, %s204
      %p206 = scmp.eq.s32.totalorder %s37, 0
      %p207 = por %p205, %p206
      %s208 = ssub.s32 %s38, %s57
      %s209 = ssub.s32 %s39, %s53
      %s210 = sor.u32 %s208, %s209
      %p211 = scmp.eq.s32.totalorder %s210, 0
      %s213 = sadd.s32 %s212, 1
      %s214 = scalar_select %p211, %s212, %s213
      %p217 = pneg %p211
      %p218 = scmp.eq.s32.totalorder %s31, 7
      %p219 = por %p217, %p218
      %p220 = scmp.ne.s32.totalorder %s212, %s215
      %p221 = scmp.eq.s32.totalorder %s31, 0
      %p222 = por %p220, %p221
      %p223 = scmp.ne.s32.totalorder %s212, %s215
      %p224 = scmp.eq.s32.totalorder %s36, 7
      %p225 = por %p223, %p224
      %p226 = scmp.ne.s32.totalorder %s215, %s216
      %p227 = scmp.eq.s32.totalorder %s36, 0
      %p228 = por %p226, %p227
      %p229 = scmp.ne.s32.totalorder %s215, %s216
      %p230 = scmp.eq.s32.totalorder %s37, 7
      %p231 = por %p229, %p230
      %p233 = scmp.ne.s32.totalorder %s216, %s232
      %p234 = scmp.eq.s32.totalorder %s37, 0
      %p235 = por %p233, %p234
      %s236 = ssub.s32 %s38, %s57
      %s237 = ssub.s32 %s39, %s53
      %s238 = sor.u32 %s236, %s237
      %p239 = scmp.eq.s32.totalorder %s238, 0
      %s241 = sadd.s32 %s240, 1
      %s242 = scalar_select %p239, %s240, %s241
      %p245 = pneg %p239
      %p246 = scmp.eq.s32.totalorder %s31, 7
      %p247 = por %p245, %p246
      %p248 = scmp.ne.s32.totalorder %s240, %s243
      %p249 = scmp.eq.s32.totalorder %s31, 0
      %p250 = por %p248, %p249
      %p251 = scmp.ne.s32.totalorder %s240, %s243
      %p252 = scmp.eq.s32.totalorder %s36, 7
      %p253 = por %p251, %p252
      %p254 = scmp.ne.s32.totalorder %s243, %s244
      %p255 = scmp.eq.s32.totalorder %s36, 0
      %p256 = por %p254, %p255
      %p257 = scmp.ne.s32.totalorder %s243, %s244
      %p258 = scmp.eq.s32.totalorder %s37, 7
      %p259 = por %p257, %p258
      %p261 = scmp.ne.s32.totalorder %s244, %s260
      %p262 = scmp.eq.s32.totalorder %s37, 0
      %p263 = por %p261, %p262
      %s264 = ssub.s32 %s38, %s57
      %s265 = ssub.s32 %s39, %s53
      %s266 = sor.u32 %s264, %s265
      %p267 = scmp.eq.s32.totalorder %s266, 0
      %s269 = sadd.s32 %s268, 1
      %s270 = scalar_select %p267, %s268, %s269
      %p273 = pneg %p267
      %p274 = scmp.eq.s32.totalorder %s31, 7
      %p275 = por %p273, %p274
      %p276 = scmp.ne.s32.totalorder %s268, %s271
      %p277 = scmp.eq.s32.totalorder %s31, 0
      %p278 = por %p276, %p277
      %p279 = scmp.ne.s32.totalorder %s268, %s271
      %p280 = scmp.eq.s32.totalorder %s36, 7
      %p281 = por %p279, %p280
      %p282 = scmp.ne.s32.totalorder %s271, %s272
      %p283 = scmp.eq.s32.totalorder %s36, 0
      %p284 = por %p282, %p283
      %p285 = scmp.ne.s32.totalorder %s271, %s272
      %p286 = scmp.eq.s32.totalorder %s37, 7
      %p287 = por %p285, %p286
      %p289 = scmp.ne.s32.totalorder %s272, %s288
      %p290 = scmp.eq.s32.totalorder %s37, 0
      %p291 = por %p289, %p290
      %p292 = scmp.le.s32.totalorder 1, %s31
      %p293 = scmp.lt.s32.totalorder %s31, 9
      %p294 = pnand %p292, %p293
      %p295 = pneg %p294
      // Predicated region
      $region9: #{tpu_custom_call.1} parent=5 // pred_check
        _
      $region10: #{tpu_custom_call.1} parent=5 // pred_check_branch
        %297 = sbr.rel (%p294) target = $region12
      $region11: #{tpu_custom_call.1} parent=5 // pred_region
        %s298 = ssub.s32 %s31, 1
        // Predicated region
        $region13: #{tpu_custom_call.1} parent=11 // pred_check
          %p299 = pneg %p179
        $region14: #{tpu_custom_call.1} parent=11 // pred_check_branch
          %301 = sbr.rel (%p299) target = $region16
        $region15: #{tpu_custom_call.1} parent=11 // pred_region
          %s303 = ssub.s32 16, 16
          %304 = vsyncadd [#allocation10], %s303
          %s306 = sshll.u32 [#allocation11], 4
          %s307 = int_to_ptr.vmem [resolvable:$true] %s306
          %309 = dma.hbm_to_vmem [thread:$0]  %s4, 16, %s307, [#allocation10]
        $region16: #{tpu_custom_call.1} parent=11 // pred_fallthru
          _
        // Predicated region
        $region17: #{tpu_custom_call.1} parent=11 // pred_check
          %p310 = pneg %p200
        $region18: #{tpu_custom_call.1} parent=11 // pred_check_branch
          %312 = sbr.rel (%p310) target = $region20
        $region19: #{tpu_custom_call.1} parent=11 // pred_region
          %s314 = ssub.s32 16, 16
          %315 = vsyncadd [#allocation13], %s314
          %s317 = sshll.u32 [#allocation12], 4
          %s318 = int_to_ptr.vmem [resolvable:$true] %s317
          %320 = dma.hbm_to_vmem [thread:$0]  %s5, 16, %s318, [#allocation13]
        $region20: #{tpu_custom_call.1} parent=11 // pred_fallthru
          _
      $region12: #{tpu_custom_call.1} parent=5 // pred_fallthru
        _
      %p321 = scmp.lt.s32.totalorder %s31, 8
      // Predicated region
      $region21: #{tpu_custom_call.1} parent=5 // pred_check
        %p322 = pneg %p321
      $region22: #{tpu_custom_call.1} parent=5 // pred_check_branch
        %324 = sbr.rel (%p322) target = $region24
      $region23: #{tpu_custom_call.1} parent=5 // pred_region
        // Predicated region
        $region25: #{tpu_custom_call.1} parent=23 // pred_check
          %p325 = pneg %p74
        $region26: #{tpu_custom_call.1} parent=23 // pred_check_branch
          %327 = sbr.rel (%p325) target = $region28
        $region27: #{tpu_custom_call.1} parent=23 // pred_region
          %s328 = sand.u32 %s64, 1
          %s329 = scalar_lea.sflag [#allocation4], %s328
          %s330 = sand.u32 %s64, 1
          %s331 = smul.addr %s330, 512
          %s332 = scalar_lea.vmem [#allocation3], %s331
          %s333 = smul.u32 32, %s39
          %s334 = smul.u32 2, %s40
          %s336 = ssub.s32 8192, 8192
          %337 = vsyncadd %s329, %s336
          %s338 = smul.addr %s333, 4
          %s339 = sadd.s32 %s334, %s338
          %s340 = smul.addr %s38, 256
          %s341 = sadd.s32 %s339, %s340
          %s342 = smul.addr %s341, 128
          %s343 = scalar_lea.hbm %s0, %s342
          %s344 = sshll.u32 %s332, 4
          %s345 = int_to_ptr.vmem [resolvable:$true] %s344
          %350 = dma.hbm_to_vmem [thread:$0]  %s343, 8192, %s345, %s329, 512, 256, 16
        $region28: #{tpu_custom_call.1} parent=23 // pred_fallthru
          _
        // Predicated region
        $region29: #{tpu_custom_call.1} parent=23 // pred_check
          %p351 = pneg %p100
        $region30: #{tpu_custom_call.1} parent=23 // pred_check_branch
          %353 = sbr.rel (%p351) target = $region32
        $region31: #{tpu_custom_call.1} parent=23 // pred_region
          %s354 = sand.u32 %s31, 1
          %s355 = scalar_lea.sflag [#allocation7], %s354
          %s356 = sand.u32 %s90, 1
          %s357 = smul.addr %s356, 256
          %s358 = scalar_lea.vmem [#allocation6], %s357
          %s359 = smul.u32 32, %s39
          %s361 = ssub.s32 4096, 4096
          %362 = vsyncadd %s355, %s361
          %s363 = smul.addr %s359, 128
          %s364 = scalar_lea.hbm %s1, %s363
          %s365 = sshll.u32 %s358, 4
          %s366 = int_to_ptr.vmem [resolvable:$true] %s365
          %371 = dma.hbm_to_vmem [thread:$0]  %s364, 4096, %s366, %s355, 128, 128, 8
        $region32: #{tpu_custom_call.1} parent=23 // pred_fallthru
          _
        // Predicated region
        $region33: #{tpu_custom_call.1} parent=23 // pred_check
          %p372 = pneg %p126
        $region34: #{tpu_custom_call.1} parent=23 // pred_check_branch
          %374 = sbr.rel (%p372) target = $region36
        $region35: #{tpu_custom_call.1} parent=23 // pred_region
          %s375 = sand.u32 %s31, 1
          %s376 = scalar_lea.sflag [#allocation7], %s375
          %s377 = sand.u32 %s116, 1
          %s378 = smul.addr %s377, 256
          %s379 = scalar_lea.vmem [#allocation8], %s378
          %s380 = smul.u32 32, %s39
          %s382 = ssub.s32 4096, 4096
          %383 = vsyncadd %s376, %s382
          %s384 = smul.addr %s380, 128
          %s385 = scalar_lea.hbm %s2, %s384
          %s386 = sshll.u32 %s379, 4
          %s387 = int_to_ptr.vmem [resolvable:$true] %s386
          %392 = dma.hbm_to_vmem [thread:$0]  %s385, 4096, %s387, %s376, 128, 128, 8
        $region36: #{tpu_custom_call.1} parent=23 // pred_fallthru
          _
        // Predicated region
        $region37: #{tpu_custom_call.1} parent=23 // pred_check
          %p393 = pneg %p152
        $region38: #{tpu_custom_call.1} parent=23 // pred_check_branch
          %395 = sbr.rel (%p393) target = $region40
        $region39: #{tpu_custom_call.1} parent=23 // pred_region
          %s396 = sand.u32 %s31, 1
          %s397 = scalar_lea.sflag [#allocation10], %s396
          %s398 = sand.u32 %s142, 1
          %s399 = smul.addr %s398, 2048
          %s400 = scalar_lea.vmem [#allocation9], %s399
          %s401 = smul.u32 32, %s40
          %s403 = ssub.s32 32768, 32768
          %404 = vsyncadd %s397, %s403
          %s405 = smul.addr %s401, 8
          %s406 = smul.addr %s405, 128
          %s407 = scalar_lea.hbm %s3, %s406
          %s408 = sshll.u32 %s400, 4
          %s409 = int_to_ptr.vmem [resolvable:$true] %s408
          %414 = dma.hbm_to_vmem [thread:$0]  %s407, 32768, %s409, %s397, 1024, 1024, 64
        $region40: #{tpu_custom_call.1} parent=23 // pred_fallthru
          _
      $region24: #{tpu_custom_call.1} parent=5 // pred_fallthru
        _
      %p415 = scmp.le.s32.totalorder 1, %s31
      %p416 = scmp.lt.s32.totalorder %s31, 9
      %p417 = pnand %p415, %p416
      %p418 = pneg %p417
      // Predicated region
      $region41: #{tpu_custom_call.1} parent=5 // pred_check
        _
      $region42: #{tpu_custom_call.1} parent=5 // pred_check_branch
        %420 = sbr.rel (%p417) target = $region44
      $region43: #{tpu_custom_call.1} parent=5 // pred_region
        %s421 = ssub.s32 %s31, 1
        %s422 = sand.u32 %s67, 1
        %s423 = scalar_lea.sflag [#allocation4], %s422
        %s424 = sand.u32 %s67, 1
        %s425 = smul.addr %s424, 512
        %s426 = scalar_lea.vmem [#allocation3], %s425
        // Predicated region
        $region45: #{tpu_custom_call.1} parent=43 // pred_check
          %p427 = pneg %p80
        $region46: #{tpu_custom_call.1} parent=43 // pred_check_branch
          %429 = sbr.rel (%p427) target = $region48
        $region47: #{tpu_custom_call.1} parent=43 // pred_region
          %430 = dma.done %s423, 8192
        $region48: #{tpu_custom_call.1} parent=43 // pred_fallthru
          _
        %s431 = sand.u32 %s36, 1
        %s432 = scalar_lea.sflag [#allocation7], %s431
        %s433 = sand.u32 %s93, 1
        %s434 = smul.addr %s433, 256
        %s435 = scalar_lea.vmem [#allocation6], %s434
        // Predicated region
        $region49: #{tpu_custom_call.1} parent=43 // pred_check
          %p436 = pneg %p106
        $region50: #{tpu_custom_call.1} parent=43 // pred_check_branch
          %438 = sbr.rel (%p436) target = $region52
        $region51: #{tpu_custom_call.1} parent=43 // pred_region
          %439 = dma.done %s432, 4096
        $region52: #{tpu_custom_call.1} parent=43 // pred_fallthru
          _
        %s440 = sand.u32 %s36, 1
        %s441 = scalar_lea.sflag [#allocation7], %s440
        %s442 = sand.u32 %s119, 1
        %s443 = smul.addr %s442, 256
        %s444 = scalar_lea.vmem [#allocation8], %s443
        // Predicated region
        $region53: #{tpu_custom_call.1} parent=43 // pred_check
          %p445 = pneg %p132
        $region54: #{tpu_custom_call.1} parent=43 // pred_check_branch
          %447 = sbr.rel (%p445) target = $region56
        $region55: #{tpu_custom_call.1} parent=43 // pred_region
          %448 = dma.done %s441, 4096
        $region56: #{tpu_custom_call.1} parent=43 // pred_fallthru
          _
        %s449 = sand.u32 %s36, 1
        %s450 = scalar_lea.sflag [#allocation10], %s449
        %s451 = sand.u32 %s145, 1
        %s452 = smul.addr %s451, 2048
        %s453 = scalar_lea.vmem [#allocation9], %s452
        // Predicated region
        $region57: #{tpu_custom_call.1} parent=43 // pred_check
          %p454 = pneg %p158
        $region58: #{tpu_custom_call.1} parent=43 // pred_check_branch
          %456 = sbr.rel (%p454) target = $region60
        $region59: #{tpu_custom_call.1} parent=43 // pred_region
          %457 = dma.done %s450, 32768
        $region60: #{tpu_custom_call.1} parent=43 // pred_fallthru
          _
        // Predicated region
        $region61: #{tpu_custom_call.1} parent=43 // pred_check
          %p458 = pneg %p179
        $region62: #{tpu_custom_call.1} parent=43 // pred_check_branch
          %460 = sbr.rel (%p458) target = $region64
        $region63: #{tpu_custom_call.1} parent=43 // pred_region
          %461 = dma.done [#allocation10], 16
        $region64: #{tpu_custom_call.1} parent=43 // pred_fallthru
          _
        // Predicated region
        $region65: #{tpu_custom_call.1} parent=43 // pred_check
          %p462 = pneg %p200
        $region66: #{tpu_custom_call.1} parent=43 // pred_check_branch
          %464 = sbr.rel (%p462) target = $region68
        $region67: #{tpu_custom_call.1} parent=43 // pred_region
          %465 = dma.done [#allocation13], 16
        $region68: #{tpu_custom_call.1} parent=43 // pred_fallthru
          _
        %s466 = sand.u32 %s67, 1
        %s467 = scalar_lea.sflag [#allocation4], %s466
        %s468 = sand.u32 %s67, 1
        %s469 = smul.addr %s468, 512
        %s470 = scalar_lea.vmem [#allocation3], %s469
        %p471 = pneg %p80
        %p472 = pneg %p77
        %s473 = sand.u32 %s36, 1
        %s474 = scalar_lea.sflag [#allocation7], %s473
        %s475 = sand.u32 %s93, 1
        %s476 = smul.addr %s475, 256
        %s477 = scalar_lea.vmem [#allocation6], %s476
        %p478 = pneg %p106
        %p479 = pneg %p103
        %s480 = sand.u32 %s36, 1
        %s481 = scalar_lea.sflag [#allocation7], %s480
        %s482 = sand.u32 %s119, 1
        %s483 = smul.addr %s482, 256
        %s484 = scalar_lea.vmem [#allocation8], %s483
        %p485 = pneg %p132
        %p486 = pneg %p129
        %s487 = sand.u32 %s36, 1
        %s488 = scalar_lea.sflag [#allocation10], %s487
        %s489 = sand.u32 %s145, 1
        %s490 = smul.addr %s489, 2048
        %s491 = scalar_lea.vmem [#allocation9], %s490
        %p492 = pneg %p158
        %p493 = pneg %p155
        %p494 = pneg %p179
        %p495 = pneg %p176
        %p496 = pneg %p200
        %p497 = pneg %p197
        %p498 = pneg %p228
        %p499 = pneg %p225
        %s500 = sand.u32 %s215, 1
        %s501 = scalar_lea.sflag [#allocation5], %s500
        %s502 = sand.u32 %s215, 1
        %s503 = smul.addr %s502, 1024
        %s504 = scalar_lea.vmem [#allocation14], %s503
        %p505 = pneg %p256
        %p506 = pneg %p253
        %s507 = sand.u32 %s36, 1
        %s508 = scalar_lea.sflag [#allocation16], %s507
        %s509 = sand.u32 %s243, 1
        %s510 = smul.addr %s509, 512
        %s511 = scalar_lea.vmem [#allocation15], %s510
        %p512 = pneg %p284
        %p513 = pneg %p281
        %s514 = sand.u32 %s36, 1
        %s515 = scalar_lea.sflag [#allocation16], %s514
        %s516 = sand.u32 %s271, 1
        %s517 = smul.addr %s516, 512
        %s518 = scalar_lea.vmem [#allocation17], %s517
        %s519 = smul.u32 32, %s42
        %s520 = smul.u32 2, %s43
        %s521 = smul.u32 32, %s42
        %s522 = smul.u32 32, %s42
        %s523 = smul.u32 32, %s43
        %s524 = smul.u32 32, %s42
        %s525 = smul.u32 32, %s42
        %s526 = smul.u32 32, %s42
        %p527 = scmp.eq.s32.totalorder %s43, 0
        // Predicated region
        $region69: #{tpu_custom_call.1} parent=43 // pred_check
          %p528 = pneg %p527
        $region70: #{tpu_custom_call.1} parent=43 // pred_check_branch
          %530 = sbr.rel (%p528) target = $region72
        $region71: #{tpu_custom_call.1} parent=43 // pred_region
          %531 = vst [vmem:[#allocation2] sm:$0xff] 0.0
          %532 = vst [vmem:[#allocation2 + $0x8] sm:$0xff] 0.0
          %533 = vst [vmem:[#allocation2 + $0x10] sm:$0xff] 0.0
          %534 = vst [vmem:[#allocation2 + $0x18] sm:$0xff] 0.0
          %535 = vst [vmem:[#allocation2 + $0x20] sm:$0xff] 0.0
          %536 = vst [vmem:[#allocation2 + $0x28] sm:$0xff] 0.0
          %537 = vst [vmem:[#allocation2 + $0x30] sm:$0xff] 0.0
          %538 = vst [vmem:[#allocation2 + $0x38] sm:$0xff] 0.0
          %539 = vst [vmem:[#allocation2 + $0x40] sm:$0xff] 0.0
          %540 = vst [vmem:[#allocation2 + $0x48] sm:$0xff] 0.0
          %541 = vst [vmem:[#allocation2 + $0x50] sm:$0xff] 0.0
          %542 = vst [vmem:[#allocation2 + $0x58] sm:$0xff] 0.0
          %543 = vst [vmem:[#allocation2 + $0x60] sm:$0xff] 0.0
          %544 = vst [vmem:[#allocation2 + $0x68] sm:$0xff] 0.0
          %545 = vst [vmem:[#allocation2 + $0x70] sm:$0xff] 0.0
          %546 = vst [vmem:[#allocation2 + $0x78] sm:$0xff] 0.0
          %547 = vst [vmem:[#allocation2 + $0x80] sm:$0xff] 0.0
          %548 = vst [vmem:[#allocation2 + $0x88] sm:$0xff] 0.0
          %549 = vst [vmem:[#allocation2 + $0x90] sm:$0xff] 0.0
          %550 = vst [vmem:[#allocation2 + $0x98] sm:$0xff] 0.0
          %551 = vst [vmem:[#allocation2 + $0xa0] sm:$0xff] 0.0
          %552 = vst [vmem:[#allocation2 + $0xa8] sm:$0xff] 0.0
          %553 = vst [vmem:[#allocation2 + $0xb0] sm:$0xff] 0.0
          %554 = vst [vmem:[#allocation2 + $0xb8] sm:$0xff] 0.0
          %555 = vst [vmem:[#allocation2 + $0xc0] sm:$0xff] 0.0
          %556 = vst [vmem:[#allocation2 + $0xc8] sm:$0xff] 0.0
          %557 = vst [vmem:[#allocation2 + $0xd0] sm:$0xff] 0.0
          %558 = vst [vmem:[#allocation2 + $0xd8] sm:$0xff] 0.0
          %559 = vst [vmem:[#allocation2 + $0xe0] sm:$0xff] 0.0
          %560 = vst [vmem:[#allocation2 + $0xe8] sm:$0xff] 0.0
          %561 = vst [vmem:[#allocation2 + $0xf0] sm:$0xff] 0.0
          %562 = vst [vmem:[#allocation2 + $0xf8] sm:$0xff] 0.0
          %563 = vst [vmem:[#allocation2 + $0x100] sm:$0xff] 0.0
          %564 = vst [vmem:[#allocation2 + $0x108] sm:$0xff] 0.0
          %565 = vst [vmem:[#allocation2 + $0x110] sm:$0xff] 0.0
          %566 = vst [vmem:[#allocation2 + $0x118] sm:$0xff] 0.0
          %567 = vst [vmem:[#allocation2 + $0x120] sm:$0xff] 0.0
          %568 = vst [vmem:[#allocation2 + $0x128] sm:$0xff] 0.0
          %569 = vst [vmem:[#allocation2 + $0x130] sm:$0xff] 0.0
          %570 = vst [vmem:[#allocation2 + $0x138] sm:$0xff] 0.0
          %571 = vst [vmem:[#allocation2 + $0x140] sm:$0xff] 0.0
          %572 = vst [vmem:[#allocation2 + $0x148] sm:$0xff] 0.0
          %573 = vst [vmem:[#allocation2 + $0x150] sm:$0xff] 0.0
          %574 = vst [vmem:[#allocation2 + $0x158] sm:$0xff] 0.0
          %575 = vst [vmem:[#allocation2 + $0x160] sm:$0xff] 0.0
          %576 = vst [vmem:[#allocation2 + $0x168] sm:$0xff] 0.0
          %577 = vst [vmem:[#allocation2 + $0x170] sm:$0xff] 0.0
          %578 = vst [vmem:[#allocation2 + $0x178] sm:$0xff] 0.0
          %579 = vst [vmem:[#allocation2 + $0x180] sm:$0xff] 0.0
          %580 = vst [vmem:[#allocation2 + $0x188] sm:$0xff] 0.0
          %581 = vst [vmem:[#allocation2 + $0x190] sm:$0xff] 0.0
          %582 = vst [vmem:[#allocation2 + $0x198] sm:$0xff] 0.0
          %583 = vst [vmem:[#allocation2 + $0x1a0] sm:$0xff] 0.0
          %584 = vst [vmem:[#allocation2 + $0x1a8] sm:$0xff] 0.0
          %585 = vst [vmem:[#allocation2 + $0x1b0] sm:$0xff] 0.0
          %586 = vst [vmem:[#allocation2 + $0x1b8] sm:$0xff] 0.0
          %587 = vst [vmem:[#allocation2 + $0x1c0] sm:$0xff] 0.0
          %588 = vst [vmem:[#allocation2 + $0x1c8] sm:$0xff] 0.0
          %589 = vst [vmem:[#allocation2 + $0x1d0] sm:$0xff] 0.0
          %590 = vst [vmem:[#allocation2 + $0x1d8] sm:$0xff] 0.0
          %591 = vst [vmem:[#allocation2 + $0x1e0] sm:$0xff] 0.0
          %592 = vst [vmem:[#allocation2 + $0x1e8] sm:$0xff] 0.0
          %593 = vst [vmem:[#allocation2 + $0x1f0] sm:$0xff] 0.0
          %594 = vst [vmem:[#allocation2 + $0x1f8] sm:$0xff] 0.0
          %595 = vst [vmem:[#allocation2 + $0x200] sm:$0xff] 0.0
          %596 = vst [vmem:[#allocation2 + $0x208] sm:$0xff] 0.0
          %597 = vst [vmem:[#allocation2 + $0x210] sm:$0xff] 0.0
          %598 = vst [vmem:[#allocation2 + $0x218] sm:$0xff] 0.0
          %599 = vst [vmem:[#allocation2 + $0x220] sm:$0xff] 0.0
          %600 = vst [vmem:[#allocation2 + $0x228] sm:$0xff] 0.0
          %601 = vst [vmem:[#allocation2 + $0x230] sm:$0xff] 0.0
          %602 = vst [vmem:[#allocation2 + $0x238] sm:$0xff] 0.0
          %603 = vst [vmem:[#allocation2 + $0x240] sm:$0xff] 0.0
          %604 = vst [vmem:[#allocation2 + $0x248] sm:$0xff] 0.0
          %605 = vst [vmem:[#allocation2 + $0x250] sm:$0xff] 0.0
          %606 = vst [vmem:[#allocation2 + $0x258] sm:$0xff] 0.0
          %607 = vst [vmem:[#allocation2 + $0x260] sm:$0xff] 0.0
          %608 = vst [vmem:[#allocation2 + $0x268] sm:$0xff] 0.0
          %609 = vst [vmem:[#allocation2 + $0x270] sm:$0xff] 0.0
          %610 = vst [vmem:[#allocation2 + $0x278] sm:$0xff] 0.0
          %611 = vst [vmem:[#allocation2 + $0x280] sm:$0xff] 0.0
          %612 = vst [vmem:[#allocation2 + $0x288] sm:$0xff] 0.0
          %613 = vst [vmem:[#allocation2 + $0x290] sm:$0xff] 0.0
          %614 = vst [vmem:[#allocation2 + $0x298] sm:$0xff] 0.0
          %615 = vst [vmem:[#allocation2 + $0x2a0] sm:$0xff] 0.0
          %616 = vst [vmem:[#allocation2 + $0x2a8] sm:$0xff] 0.0
          %617 = vst [vmem:[#allocation2 + $0x2b0] sm:$0xff] 0.0
          %618 = vst [vmem:[#allocation2 + $0x2b8] sm:$0xff] 0.0
          %619 = vst [vmem:[#allocation2 + $0x2c0] sm:$0xff] 0.0
          %620 = vst [vmem:[#allocation2 + $0x2c8] sm:$0xff] 0.0
          %621 = vst [vmem:[#allocation2 + $0x2d0] sm:$0xff] 0.0
          %622 = vst [vmem:[#allocation2 + $0x2d8] sm:$0xff] 0.0
          %623 = vst [vmem:[#allocation2 + $0x2e0] sm:$0xff] 0.0
          %624 = vst [vmem:[#allocation2 + $0x2e8] sm:$0xff] 0.0
          %625 = vst [vmem:[#allocation2 + $0x2f0] sm:$0xff] 0.0
          %626 = vst [vmem:[#allocation2 + $0x2f8] sm:$0xff] 0.0
          %627 = vst [vmem:[#allocation2 + $0x300] sm:$0xff] 0.0
          %628 = vst [vmem:[#allocation2 + $0x308] sm:$0xff] 0.0
          %629 = vst [vmem:[#allocation2 + $0x310] sm:$0xff] 0.0
          %630 = vst [vmem:[#allocation2 + $0x318] sm:$0xff] 0.0
          %631 = vst [vmem:[#allocation2 + $0x320] sm:$0xff] 0.0
          %632 = vst [vmem:[#allocation2 + $0x328] sm:$0xff] 0.0
          %633 = vst [vmem:[#allocation2 + $0x330] sm:$0xff] 0.0
          %634 = vst [vmem:[#allocation2 + $0x338] sm:$0xff] 0.0
          %635 = vst [vmem:[#allocation2 + $0x340] sm:$0xff] 0.0
          %636 = vst [vmem:[#allocation2 + $0x348] sm:$0xff] 0.0
          %637 = vst [vmem:[#allocation2 + $0x350] sm:$0xff] 0.0
          %638 = vst [vmem:[#allocation2 + $0x358] sm:$0xff] 0.0
          %639 = vst [vmem:[#allocation2 + $0x360] sm:$0xff] 0.0
          %640 = vst [vmem:[#allocation2 + $0x368] sm:$0xff] 0.0
          %641 = vst [vmem:[#allocation2 + $0x370] sm:$0xff] 0.0
          %642 = vst [vmem:[#allocation2 + $0x378] sm:$0xff] 0.0
          %643 = vst [vmem:[#allocation2 + $0x380] sm:$0xff] 0.0
          %644 = vst [vmem:[#allocation2 + $0x388] sm:$0xff] 0.0
          %645 = vst [vmem:[#allocation2 + $0x390] sm:$0xff] 0.0
          %646 = vst [vmem:[#allocation2 + $0x398] sm:$0xff] 0.0
          %647 = vst [vmem:[#allocation2 + $0x3a0] sm:$0xff] 0.0
          %648 = vst [vmem:[#allocation2 + $0x3a8] sm:$0xff] 0.0
          %649 = vst [vmem:[#allocation2 + $0x3b0] sm:$0xff] 0.0
          %650 = vst [vmem:[#allocation2 + $0x3b8] sm:$0xff] 0.0
          %651 = vst [vmem:[#allocation2 + $0x3c0] sm:$0xff] 0.0
          %652 = vst [vmem:[#allocation2 + $0x3c8] sm:$0xff] 0.0
          %653 = vst [vmem:[#allocation2 + $0x3d0] sm:$0xff] 0.0
          %654 = vst [vmem:[#allocation2 + $0x3d8] sm:$0xff] 0.0
          %655 = vst [vmem:[#allocation2 + $0x3e0] sm:$0xff] 0.0
          %656 = vst [vmem:[#allocation2 + $0x3e8] sm:$0xff] 0.0
          %657 = vst [vmem:[#allocation2 + $0x3f0] sm:$0xff] 0.0
          %658 = vst [vmem:[#allocation2 + $0x3f8] sm:$0xff] 0.0
          %659 = vst [vmem:[#allocation2 + $0x400] sm:$0xff] 0.0
          %660 = vst [vmem:[#allocation2 + $0x408] sm:$0xff] 0.0
          %661 = vst [vmem:[#allocation2 + $0x410] sm:$0xff] 0.0
          %662 = vst [vmem:[#allocation2 + $0x418] sm:$0xff] 0.0
          %663 = vst [vmem:[#allocation2 + $0x420] sm:$0xff] 0.0
          %664 = vst [vmem:[#allocation2 + $0x428] sm:$0xff] 0.0
          %665 = vst [vmem:[#allocation2 + $0x430] sm:$0xff] 0.0
          %666 = vst [vmem:[#allocation2 + $0x438] sm:$0xff] 0.0
          %667 = vst [vmem:[#allocation2 + $0x440] sm:$0xff] 0.0
          %668 = vst [vmem:[#allocation2 + $0x448] sm:$0xff] 0.0
          %669 = vst [vmem:[#allocation2 + $0x450] sm:$0xff] 0.0
          %670 = vst [vmem:[#allocation2 + $0x458] sm:$0xff] 0.0
          %671 = vst [vmem:[#allocation2 + $0x460] sm:$0xff] 0.0
          %672 = vst [vmem:[#allocation2 + $0x468] sm:$0xff] 0.0
          %673 = vst [vmem:[#allocation2 + $0x470] sm:$0xff] 0.0
          %674 = vst [vmem:[#allocation2 + $0x478] sm:$0xff] 0.0
          %675 = vst [vmem:[#allocation2 + $0x480] sm:$0xff] 0.0
          %676 = vst [vmem:[#allocation2 + $0x488] sm:$0xff] 0.0
          %677 = vst [vmem:[#allocation2 + $0x490] sm:$0xff] 0.0
          %678 = vst [vmem:[#allocation2 + $0x498] sm:$0xff] 0.0
          %679 = vst [vmem:[#allocation2 + $0x4a0] sm:$0xff] 0.0
          %680 = vst [vmem:[#allocation2 + $0x4a8] sm:$0xff] 0.0
          %681 = vst [vmem:[#allocation2 + $0x4b0] sm:$0xff] 0.0
          %682 = vst [vmem:[#allocation2 + $0x4b8] sm:$0xff] 0.0
          %683 = vst [vmem:[#allocation2 + $0x4c0] sm:$0xff] 0.0
          %684 = vst [vmem:[#allocation2 + $0x4c8] sm:$0xff] 0.0
          %685 = vst [vmem:[#allocation2 + $0x4d0] sm:$0xff] 0.0
          %686 = vst [vmem:[#allocation2 + $0x4d8] sm:$0xff] 0.0
          %687 = vst [vmem:[#allocation2 + $0x4e0] sm:$0xff] 0.0
          %688 = vst [vmem:[#allocation2 + $0x4e8] sm:$0xff] 0.0
          %689 = vst [vmem:[#allocation2 + $0x4f0] sm:$0xff] 0.0
          %690 = vst [vmem:[#allocation2 + $0x4f8] sm:$0xff] 0.0
          %691 = vst [vmem:[#allocation2 + $0x500] sm:$0xff] 0.0
          %692 = vst [vmem:[#allocation2 + $0x508] sm:$0xff] 0.0
          %693 = vst [vmem:[#allocation2 + $0x510] sm:$0xff] 0.0
          %694 = vst [vmem:[#allocation2 + $0x518] sm:$0xff] 0.0
          %695 = vst [vmem:[#allocation2 + $0x520] sm:$0xff] 0.0
          %696 = vst [vmem:[#allocation2 + $0x528] sm:$0xff] 0.0
          %697 = vst [vmem:[#allocation2 + $0x530] sm:$0xff] 0.0
          %698 = vst [vmem:[#allocation2 + $0x538] sm:$0xff] 0.0
          %699 = vst [vmem:[#allocation2 + $0x540] sm:$0xff] 0.0
          %700 = vst [vmem:[#allocation2 + $0x548] sm:$0xff] 0.0
          %701 = vst [vmem:[#allocation2 + $0x550] sm:$0xff] 0.0
          %702 = vst [vmem:[#allocation2 + $0x558] sm:$0xff] 0.0
          %703 = vst [vmem:[#allocation2 + $0x560] sm:$0xff] 0.0
          %704 = vst [vmem:[#allocation2 + $0x568] sm:$0xff] 0.0
          %705 = vst [vmem:[#allocation2 + $0x570] sm:$0xff] 0.0
          %706 = vst [vmem:[#allocation2 + $0x578] sm:$0xff] 0.0
          %707 = vst [vmem:[#allocation2 + $0x580] sm:$0xff] 0.0
          %708 = vst [vmem:[#allocation2 + $0x588] sm:$0xff] 0.0
          %709 = vst [vmem:[#allocation2 + $0x590] sm:$0xff] 0.0
          %710 = vst [vmem:[#allocation2 + $0x598] sm:$0xff] 0.0
          %711 = vst [vmem:[#allocation2 + $0x5a0] sm:$0xff] 0.0
          %712 = vst [vmem:[#allocation2 + $0x5a8] sm:$0xff] 0.0
          %713 = vst [vmem:[#allocation2 + $0x5b0] sm:$0xff] 0.0
          %714 = vst [vmem:[#allocation2 + $0x5b8] sm:$0xff] 0.0
          %715 = vst [vmem:[#allocation2 + $0x5c0] sm:$0xff] 0.0
          %716 = vst [vmem:[#allocation2 + $0x5c8] sm:$0xff] 0.0
          %717 = vst [vmem:[#allocation2 + $0x5d0] sm:$0xff] 0.0
          %718 = vst [vmem:[#allocation2 + $0x5d8] sm:$0xff] 0.0
          %719 = vst [vmem:[#allocation2 + $0x5e0] sm:$0xff] 0.0
          %720 = vst [vmem:[#allocation2 + $0x5e8] sm:$0xff] 0.0
          %721 = vst [vmem:[#allocation2 + $0x5f0] sm:$0xff] 0.0
          %722 = vst [vmem:[#allocation2 + $0x5f8] sm:$0xff] 0.0
          %723 = vst [vmem:[#allocation2 + $0x600] sm:$0xff] 0.0
          %724 = vst [vmem:[#allocation2 + $0x608] sm:$0xff] 0.0
          %725 = vst [vmem:[#allocation2 + $0x610] sm:$0xff] 0.0
          %726 = vst [vmem:[#allocation2 + $0x618] sm:$0xff] 0.0
          %727 = vst [vmem:[#allocation2 + $0x620] sm:$0xff] 0.0
          %728 = vst [vmem:[#allocation2 + $0x628] sm:$0xff] 0.0
          %729 = vst [vmem:[#allocation2 + $0x630] sm:$0xff] 0.0
          %730 = vst [vmem:[#allocation2 + $0x638] sm:$0xff] 0.0
          %731 = vst [vmem:[#allocation2 + $0x640] sm:$0xff] 0.0
          %732 = vst [vmem:[#allocation2 + $0x648] sm:$0xff] 0.0
          %733 = vst [vmem:[#allocation2 + $0x650] sm:$0xff] 0.0
          %734 = vst [vmem:[#allocation2 + $0x658] sm:$0xff] 0.0
          %735 = vst [vmem:[#allocation2 + $0x660] sm:$0xff] 0.0
          %736 = vst [vmem:[#allocation2 + $0x668] sm:$0xff] 0.0
          %737 = vst [vmem:[#allocation2 + $0x670] sm:$0xff] 0.0
          %738 = vst [vmem:[#allocation2 + $0x678] sm:$0xff] 0.0
          %739 = vst [vmem:[#allocation2 + $0x680] sm:$0xff] 0.0
          %740 = vst [vmem:[#allocation2 + $0x688] sm:$0xff] 0.0
          %741 = vst [vmem:[#allocation2 + $0x690] sm:$0xff] 0.0
          %742 = vst [vmem:[#allocation2 + $0x698] sm:$0xff] 0.0
          %743 = vst [vmem:[#allocation2 + $0x6a0] sm:$0xff] 0.0
          %744 = vst [vmem:[#allocation2 + $0x6a8] sm:$0xff] 0.0
          %745 = vst [vmem:[#allocation2 + $0x6b0] sm:$0xff] 0.0
          %746 = vst [vmem:[#allocation2 + $0x6b8] sm:$0xff] 0.0
          %747 = vst [vmem:[#allocation2 + $0x6c0] sm:$0xff] 0.0
          %748 = vst [vmem:[#allocation2 + $0x6c8] sm:$0xff] 0.0
          %749 = vst [vmem:[#allocation2 + $0x6d0] sm:$0xff] 0.0
          %750 = vst [vmem:[#allocation2 + $0x6d8] sm:$0xff] 0.0
          %751 = vst [vmem:[#allocation2 + $0x6e0] sm:$0xff] 0.0
          %752 = vst [vmem:[#allocation2 + $0x6e8] sm:$0xff] 0.0
          %753 = vst [vmem:[#allocation2 + $0x6f0] sm:$0xff] 0.0
          %754 = vst [vmem:[#allocation2 + $0x6f8] sm:$0xff] 0.0
          %755 = vst [vmem:[#allocation2 + $0x700] sm:$0xff] 0.0
          %756 = vst [vmem:[#allocation2 + $0x708] sm:$0xff] 0.0
          %757 = vst [vmem:[#allocation2 + $0x710] sm:$0xff] 0.0
          %758 = vst [vmem:[#allocation2 + $0x718] sm:$0xff] 0.0
          %759 = vst [vmem:[#allocation2 + $0x720] sm:$0xff] 0.0
          %760 = vst [vmem:[#allocation2 + $0x728] sm:$0xff] 0.0
          %761 = vst [vmem:[#allocation2 + $0x730] sm:$0xff] 0.0
          %762 = vst [vmem:[#allocation2 + $0x738] sm:$0xff] 0.0
          %763 = vst [vmem:[#allocation2 + $0x740] sm:$0xff] 0.0
          %764 = vst [vmem:[#allocation2 + $0x748] sm:$0xff] 0.0
          %765 = vst [vmem:[#allocation2 + $0x750] sm:$0xff] 0.0
          %766 = vst [vmem:[#allocation2 + $0x758] sm:$0xff] 0.0
          %767 = vst [vmem:[#allocation2 + $0x760] sm:$0xff] 0.0
          %768 = vst [vmem:[#allocation2 + $0x768] sm:$0xff] 0.0
          %769 = vst [vmem:[#allocation2 + $0x770] sm:$0xff] 0.0
          %770 = vst [vmem:[#allocation2 + $0x778] sm:$0xff] 0.0
          %771 = vst [vmem:[#allocation2 + $0x780] sm:$0xff] 0.0
          %772 = vst [vmem:[#allocation2 + $0x788] sm:$0xff] 0.0
          %773 = vst [vmem:[#allocation2 + $0x790] sm:$0xff] 0.0
          %774 = vst [vmem:[#allocation2 + $0x798] sm:$0xff] 0.0
          %775 = vst [vmem:[#allocation2 + $0x7a0] sm:$0xff] 0.0
          %776 = vst [vmem:[#allocation2 + $0x7a8] sm:$0xff] 0.0
          %777 = vst [vmem:[#allocation2 + $0x7b0] sm:$0xff] 0.0
          %778 = vst [vmem:[#allocation2 + $0x7b8] sm:$0xff] 0.0
          %779 = vst [vmem:[#allocation2 + $0x7c0] sm:$0xff] 0.0
          %780 = vst [vmem:[#allocation2 + $0x7c8] sm:$0xff] 0.0
          %781 = vst [vmem:[#allocation2 + $0x7d0] sm:$0xff] 0.0
          %782 = vst [vmem:[#allocation2 + $0x7d8] sm:$0xff] 0.0
          %783 = vst [vmem:[#allocation2 + $0x7e0] sm:$0xff] 0.0
          %784 = vst [vmem:[#allocation2 + $0x7e8] sm:$0xff] 0.0
          %785 = vst [vmem:[#allocation2 + $0x7f0] sm:$0xff] 0.0
          %786 = vst [vmem:[#allocation2 + $0x7f8] sm:$0xff] 0.0
        $region72: #{tpu_custom_call.1} parent=43 // pred_fallthru
          _
        %v787 = vld [vmem:[#allocation2] sm:$0xff]
        %v788 = vld [vmem:[#allocation2 + $0x8] sm:$0xff]
        %v789 = vld [vmem:[#allocation2 + $0x10] sm:$0xff]
        %v790 = vld [vmem:[#allocation2 + $0x18] sm:$0xff]
        %v791 = vld [vmem:[#allocation2 + $0x20] sm:$0xff]
        %v792 = vld [vmem:[#allocation2 + $0x28] sm:$0xff]
        %v793 = vld [vmem:[#allocation2 + $0x30] sm:$0xff]
        %v794 = vld [vmem:[#allocation2 + $0x38] sm:$0xff]
        %v795 = vld [vmem:[#allocation2 + $0x40] sm:$0xff]
        %v796 = vld [vmem:[#allocation2 + $0x48] sm:$0xff]
        %v797 = vld [vmem:[#allocation2 + $0x50] sm:$0xff]
        %v798 = vld [vmem:[#allocation2 + $0x58] sm:$0xff]
        %v799 = vld [vmem:[#allocation2 + $0x60] sm:$0xff]
        %v800 = vld [vmem:[#allocation2 + $0x68] sm:$0xff]
        %v801 = vld [vmem:[#allocation2 + $0x70] sm:$0xff]
        %v802 = vld [vmem:[#allocation2 + $0x78] sm:$0xff]
        %v803 = vld [vmem:[#allocation2 + $0x80] sm:$0xff]
        %v804 = vld [vmem:[#allocation2 + $0x88] sm:$0xff]
        %v805 = vld [vmem:[#allocation2 + $0x90] sm:$0xff]
        %v806 = vld [vmem:[#allocation2 + $0x98] sm:$0xff]
        %v807 = vld [vmem:[#allocation2 + $0xa0] sm:$0xff]
        %v808 = vld [vmem:[#allocation2 + $0xa8] sm:$0xff]
        %v809 = vld [vmem:[#allocation2 + $0xb0] sm:$0xff]
        %v810 = vld [vmem:[#allocation2 + $0xb8] sm:$0xff]
        %v811 = vld [vmem:[#allocation2 + $0xc0] sm:$0xff]
        %v812 = vld [vmem:[#allocation2 + $0xc8] sm:$0xff]
        %v813 = vld [vmem:[#allocation2 + $0xd0] sm:$0xff]
        %v814 = vld [vmem:[#allocation2 + $0xd8] sm:$0xff]
        %v815 = vld [vmem:[#allocation2 + $0xe0] sm:$0xff]
        %v816 = vld [vmem:[#allocation2 + $0xe8] sm:$0xff]
        %v817 = vld [vmem:[#allocation2 + $0xf0] sm:$0xff]
        %v818 = vld [vmem:[#allocation2 + $0xf8] sm:$0xff]
        %v819 = vld [vmem:[#allocation2 + $0x100] sm:$0xff]
        %v820 = vld [vmem:[#allocation2 + $0x108] sm:$0xff]
        %v821 = vld [vmem:[#allocation2 + $0x110] sm:$0xff]
        %v822 = vld [vmem:[#allocation2 + $0x118] sm:$0xff]
        %v823 = vld [vmem:[#allocation2 + $0x120] sm:$0xff]
        %v824 = vld [vmem:[#allocation2 + $0x128] sm:$0xff]
        %v825 = vld [vmem:[#allocation2 + $0x130] sm:$0xff]
        %v826 = vld [vmem:[#allocation2 + $0x138] sm:$0xff]
        %v827 = vld [vmem:[#allocation2 + $0x140] sm:$0xff]
        %v828 = vld [vmem:[#allocation2 + $0x148] sm:$0xff]
        %v829 = vld [vmem:[#allocation2 + $0x150] sm:$0xff]
        %v830 = vld [vmem:[#allocation2 + $0x158] sm:$0xff]
        %v831 = vld [vmem:[#allocation2 + $0x160] sm:$0xff]
        %v832 = vld [vmem:[#allocation2 + $0x168] sm:$0xff]
        %v833 = vld [vmem:[#allocation2 + $0x170] sm:$0xff]
        %v834 = vld [vmem:[#allocation2 + $0x178] sm:$0xff]
        %v835 = vld [vmem:[#allocation2 + $0x180] sm:$0xff]
        %v836 = vld [vmem:[#allocation2 + $0x188] sm:$0xff]
        %v837 = vld [vmem:[#allocation2 + $0x190] sm:$0xff]
        %v838 = vld [vmem:[#allocation2 + $0x198] sm:$0xff]
        %v839 = vld [vmem:[#allocation2 + $0x1a0] sm:$0xff]
        %v840 = vld [vmem:[#allocation2 + $0x1a8] sm:$0xff]
        %v841 = vld [vmem:[#allocation2 + $0x1b0] sm:$0xff]
        %v842 = vld [vmem:[#allocation2 + $0x1b8] sm:$0xff]
        %v843 = vld [vmem:[#allocation2 + $0x1c0] sm:$0xff]
        %v844 = vld [vmem:[#allocation2 + $0x1c8] sm:$0xff]
        %v845 = vld [vmem:[#allocation2 + $0x1d0] sm:$0xff]
        %v846 = vld [vmem:[#allocation2 + $0x1d8] sm:$0xff]
        %v847 = vld [vmem:[#allocation2 + $0x1e0] sm:$0xff]
        %v848 = vld [vmem:[#allocation2 + $0x1e8] sm:$0xff]
        %v849 = vld [vmem:[#allocation2 + $0x1f0] sm:$0xff]
        %v850 = vld [vmem:[#allocation2 + $0x1f8] sm:$0xff]
        %v851 = vld [vmem:[#allocation2 + $0x200] sm:$0xff]
        %v852 = vld [vmem:[#allocation2 + $0x208] sm:$0xff]
        %v853 = vld [vmem:[#allocation2 + $0x210] sm:$0xff]
        %v854 = vld [vmem:[#allocation2 + $0x218] sm:$0xff]
        %v855 = vld [vmem:[#allocation2 + $0x220] sm:$0xff]
        %v856 = vld [vmem:[#allocation2 + $0x228] sm:$0xff]
        %v857 = vld [vmem:[#allocation2 + $0x230] sm:$0xff]
        %v858 = vld [vmem:[#allocation2 + $0x238] sm:$0xff]
        %v859 = vld [vmem:[#allocation2 + $0x240] sm:$0xff]
        %v860 = vld [vmem:[#allocation2 + $0x248] sm:$0xff]
        %v861 = vld [vmem:[#allocation2 + $0x250] sm:$0xff]
        %v862 = vld [vmem:[#allocation2 + $0x258] sm:$0xff]
        %v863 = vld [vmem:[#allocation2 + $0x260] sm:$0xff]
        %v864 = vld [vmem:[#allocation2 + $0x268] sm:$0xff]
        %v865 = vld [vmem:[#allocation2 + $0x270] sm:$0xff]
        %v866 = vld [vmem:[#allocation2 + $0x278] sm:$0xff]
        %v867 = vld [vmem:[#allocation2 + $0x280] sm:$0xff]
        %v868 = vld [vmem:[#allocation2 + $0x288] sm:$0xff]
        %v869 = vld [vmem:[#allocation2 + $0x290] sm:$0xff]
        %v870 = vld [vmem:[#allocation2 + $0x298] sm:$0xff]
        %v871 = vld [vmem:[#allocation2 + $0x2a0] sm:$0xff]
        %v872 = vld [vmem:[#allocation2 + $0x2a8] sm:$0xff]
        %v873 = vld [vmem:[#allocation2 + $0x2b0] sm:$0xff]
        %v874 = vld [vmem:[#allocation2 + $0x2b8] sm:$0xff]
        %v875 = vld [vmem:[#allocation2 + $0x2c0] sm:$0xff]
        %v876 = vld [vmem:[#allocation2 + $0x2c8] sm:$0xff]
        %v877 = vld [vmem:[#allocation2 + $0x2d0] sm:$0xff]
        %v878 = vld [vmem:[#allocation2 + $0x2d8] sm:$0xff]
        %v879 = vld [vmem:[#allocation2 + $0x2e0] sm:$0xff]
        %v880 = vld [vmem:[#allocation2 + $0x2e8] sm:$0xff]
        %v881 = vld [vmem:[#allocation2 + $0x2f0] sm:$0xff]
        %v882 = vld [vmem:[#allocation2 + $0x2f8] sm:$0xff]
        %v883 = vld [vmem:[#allocation2 + $0x300] sm:$0xff]
        %v884 = vld [vmem:[#allocation2 + $0x308] sm:$0xff]
        %v885 = vld [vmem:[#allocation2 + $0x310] sm:$0xff]
        %v886 = vld [vmem:[#allocation2 + $0x318] sm:$0xff]
        %v887 = vld [vmem:[#allocation2 + $0x320] sm:$0xff]
        %v888 = vld [vmem:[#allocation2 + $0x328] sm:$0xff]
        %v889 = vld [vmem:[#allocation2 + $0x330] sm:$0xff]
        %v890 = vld [vmem:[#allocation2 + $0x338] sm:$0xff]
        %v891 = vld [vmem:[#allocation2 + $0x340] sm:$0xff]
        %v892 = vld [vmem:[#allocation2 + $0x348] sm:$0xff]
        %v893 = vld [vmem:[#allocation2 + $0x350] sm:$0xff]
        %v894 = vld [vmem:[#allocation2 + $0x358] sm:$0xff]
        %v895 = vld [vmem:[#allocation2 + $0x360] sm:$0xff]
        %v896 = vld [vmem:[#allocation2 + $0x368] sm:$0xff]
        %v897 = vld [vmem:[#allocation2 + $0x370] sm:$0xff]
        %v898 = vld [vmem:[#allocation2 + $0x378] sm:$0xff]
        %v899 = vld [vmem:[#allocation2 + $0x380] sm:$0xff]
        %v900 = vld [vmem:[#allocation2 + $0x388] sm:$0xff]
        %v901 = vld [vmem:[#allocation2 + $0x390] sm:$0xff]
        %v902 = vld [vmem:[#allocation2 + $0x398] sm:$0xff]
        %v903 = vld [vmem:[#allocation2 + $0x3a0] sm:$0xff]
        %v904 = vld [vmem:[#allocation2 + $0x3a8] sm:$0xff]
        %v905 = vld [vmem:[#allocation2 + $0x3b0] sm:$0xff]
        %v906 = vld [vmem:[#allocation2 + $0x3b8] sm:$0xff]
        %v907 = vld [vmem:[#allocation2 + $0x3c0] sm:$0xff]
        %v908 = vld [vmem:[#allocation2 + $0x3c8] sm:$0xff]
        %v909 = vld [vmem:[#allocation2 + $0x3d0] sm:$0xff]
        %v910 = vld [vmem:[#allocation2 + $0x3d8] sm:$0xff]
        %v911 = vld [vmem:[#allocation2 + $0x3e0] sm:$0xff]
        %v912 = vld [vmem:[#allocation2 + $0x3e8] sm:$0xff]
        %v913 = vld [vmem:[#allocation2 + $0x3f0] sm:$0xff]
        %v914 = vld [vmem:[#allocation2 + $0x3f8] sm:$0xff]
        %v915 = vld [vmem:[#allocation2 + $0x400] sm:$0xff]
        %v916 = vld [vmem:[#allocation2 + $0x408] sm:$0xff]
        %v917 = vld [vmem:[#allocation2 + $0x410] sm:$0xff]
        %v918 = vld [vmem:[#allocation2 + $0x418] sm:$0xff]
        %v919 = vld [vmem:[#allocation2 + $0x420] sm:$0xff]
        %v920 = vld [vmem:[#allocation2 + $0x428] sm:$0xff]
        %v921 = vld [vmem:[#allocation2 + $0x430] sm:$0xff]
        %v922 = vld [vmem:[#allocation2 + $0x438] sm:$0xff]
        %v923 = vld [vmem:[#allocation2 + $0x440] sm:$0xff]
        %v924 = vld [vmem:[#allocation2 + $0x448] sm:$0xff]
        %v925 = vld [vmem:[#allocation2 + $0x450] sm:$0xff]
        %v926 = vld [vmem:[#allocation2 + $0x458] sm:$0xff]
        %v927 = vld [vmem:[#allocation2 + $0x460] sm:$0xff]
        %v928 = vld [vmem:[#allocation2 + $0x468] sm:$0xff]
        %v929 = vld [vmem:[#allocation2 + $0x470] sm:$0xff]
        %v930 = vld [vmem:[#allocation2 + $0x478] sm:$0xff]
        %v931 = vld [vmem:[#allocation2 + $0x480] sm:$0xff]
        %v932 = vld [vmem:[#allocation2 + $0x488] sm:$0xff]
        %v933 = vld [vmem:[#allocation2 + $0x490] sm:$0xff]
        %v934 = vld [vmem:[#allocation2 + $0x498] sm:$0xff]
        %v935 = vld [vmem:[#allocation2 + $0x4a0] sm:$0xff]
        %v936 = vld [vmem:[#allocation2 + $0x4a8] sm:$0xff]
        %v937 = vld [vmem:[#allocation2 + $0x4b0] sm:$0xff]
        %v938 = vld [vmem:[#allocation2 + $0x4b8] sm:$0xff]
        %v939 = vld [vmem:[#allocation2 + $0x4c0] sm:$0xff]
        %v940 = vld [vmem:[#allocation2 + $0x4c8] sm:$0xff]
        %v941 = vld [vmem:[#allocation2 + $0x4d0] sm:$0xff]
        %v942 = vld [vmem:[#allocation2 + $0x4d8] sm:$0xff]
        %v943 = vld [vmem:[#allocation2 + $0x4e0] sm:$0xff]
        %v944 = vld [vmem:[#allocation2 + $0x4e8] sm:$0xff]
        %v945 = vld [vmem:[#allocation2 + $0x4f0] sm:$0xff]
        %v946 = vld [vmem:[#allocation2 + $0x4f8] sm:$0xff]
        %v947 = vld [vmem:[#allocation2 + $0x500] sm:$0xff]
        %v948 = vld [vmem:[#allocation2 + $0x508] sm:$0xff]
        %v949 = vld [vmem:[#allocation2 + $0x510] sm:$0xff]
        %v950 = vld [vmem:[#allocation2 + $0x518] sm:$0xff]
        %v951 = vld [vmem:[#allocation2 + $0x520] sm:$0xff]
        %v952 = vld [vmem:[#allocation2 + $0x528] sm:$0xff]
        %v953 = vld [vmem:[#allocation2 + $0x530] sm:$0xff]
        %v954 = vld [vmem:[#allocation2 + $0x538] sm:$0xff]
        %v955 = vld [vmem:[#allocation2 + $0x540] sm:$0xff]
        %v956 = vld [vmem:[#allocation2 + $0x548] sm:$0xff]
        %v957 = vld [vmem:[#allocation2 + $0x550] sm:$0xff]
        %v958 = vld [vmem:[#allocation2 + $0x558] sm:$0xff]
        %v959 = vld [vmem:[#allocation2 + $0x560] sm:$0xff]
        %v960 = vld [vmem:[#allocation2 + $0x568] sm:$0xff]
        %v961 = vld [vmem:[#allocation2 + $0x570] sm:$0xff]
        %v962 = vld [vmem:[#allocation2 + $0x578] sm:$0xff]
        %v963 = vld [vmem:[#allocation2 + $0x580] sm:$0xff]
        %v964 = vld [vmem:[#allocation2 + $0x588] sm:$0xff]
        %v965 = vld [vmem:[#allocation2 + $0x590] sm:$0xff]
        %v966 = vld [vmem:[#allocation2 + $0x598] sm:$0xff]
        %v967 = vld [vmem:[#allocation2 + $0x5a0] sm:$0xff]
        %v968 = vld [vmem:[#allocation2 + $0x5a8] sm:$0xff]
        %v969 = vld [vmem:[#allocation2 + $0x5b0] sm:$0xff]
        %v970 = vld [vmem:[#allocation2 + $0x5b8] sm:$0xff]
        %v971 = vld [vmem:[#allocation2 + $0x5c0] sm:$0xff]
        %v972 = vld [vmem:[#allocation2 + $0x5c8] sm:$0xff]
        %v973 = vld [vmem:[#allocation2 + $0x5d0] sm:$0xff]
        %v974 = vld [vmem:[#allocation2 + $0x5d8] sm:$0xff]
        %v975 = vld [vmem:[#allocation2 + $0x5e0] sm:$0xff]
        %v976 = vld [vmem:[#allocation2 + $0x5e8] sm:$0xff]
        %v977 = vld [vmem:[#allocation2 + $0x5f0] sm:$0xff]
        %v978 = vld [vmem:[#allocation2 + $0x5f8] sm:$0xff]
        %v979 = vld [vmem:[#allocation2 + $0x600] sm:$0xff]
        %v980 = vld [vmem:[#allocation2 + $0x608] sm:$0xff]
        %v981 = vld [vmem:[#allocation2 + $0x610] sm:$0xff]
        %v982 = vld [vmem:[#allocation2 + $0x618] sm:$0xff]
        %v983 = vld [vmem:[#allocation2 + $0x620] sm:$0xff]
        %v984 = vld [vmem:[#allocation2 + $0x628] sm:$0xff]
        %v985 = vld [vmem:[#allocation2 + $0x630] sm:$0xff]
        %v986 = vld [vmem:[#allocation2 + $0x638] sm:$0xff]
        %v987 = vld [vmem:[#allocation2 + $0x640] sm:$0xff]
        %v988 = vld [vmem:[#allocation2 + $0x648] sm:$0xff]
        %v989 = vld [vmem:[#allocation2 + $0x650] sm:$0xff]
        %v990 = vld [vmem:[#allocation2 + $0x658] sm:$0xff]
        %v991 = vld [vmem:[#allocation2 + $0x660] sm:$0xff]
        %v992 = vld [vmem:[#allocation2 + $0x668] sm:$0xff]
        %v993 = vld [vmem:[#allocation2 + $0x670] sm:$0xff]
        %v994 = vld [vmem:[#allocation2 + $0x678] sm:$0xff]
        %v995 = vld [vmem:[#allocation2 + $0x680] sm:$0xff]
        %v996 = vld [vmem:[#allocation2 + $0x688] sm:$0xff]
        %v997 = vld [vmem:[#allocation2 + $0x690] sm:$0xff]
        %v998 = vld [vmem:[#allocation2 + $0x698] sm:$0xff]
        %v999 = vld [vmem:[#allocation2 + $0x6a0] sm:$0xff]
        %v1000 = vld [vmem:[#allocation2 + $0x6a8] sm:$0xff]
        %v1001 = vld [vmem:[#allocation2 + $0x6b0] sm:$0xff]
        %v1002 = vld [vmem:[#allocation2 + $0x6b8] sm:$0xff]
        %v1003 = vld [vmem:[#allocation2 + $0x6c0] sm:$0xff]
        %v1004 = vld [vmem:[#allocation2 + $0x6c8] sm:$0xff]
        %v1005 = vld [vmem:[#allocation2 + $0x6d0] sm:$0xff]
        %v1006 = vld [vmem:[#allocation2 + $0x6d8] sm:$0xff]
        %v1007 = vld [vmem:[#allocation2 + $0x6e0] sm:$0xff]
        %v1008 = vld [vmem:[#allocation2 + $0x6e8] sm:$0xff]
        %v1009 = vld [vmem:[#allocation2 + $0x6f0] sm:$0xff]
        %v1010 = vld [vmem:[#allocation2 + $0x6f8] sm:$0xff]
        %v1011 = vld [vmem:[#allocation2 + $0x700] sm:$0xff]
        %v1012 = vld [vmem:[#allocation2 + $0x708] sm:$0xff]
        %v1013 = vld [vmem:[#allocation2 + $0x710] sm:$0xff]
        %v1014 = vld [vmem:[#allocation2 + $0x718] sm:$0xff]
        %v1015 = vld [vmem:[#allocation2 + $0x720] sm:$0xff]
        %v1016 = vld [vmem:[#allocation2 + $0x728] sm:$0xff]
        %v1017 = vld [vmem:[#allocation2 + $0x730] sm:$0xff]
        %v1018 = vld [vmem:[#allocation2 + $0x738] sm:$0xff]
        %v1019 = vld [vmem:[#allocation2 + $0x740] sm:$0xff]
        %v1020 = vld [vmem:[#allocation2 + $0x748] sm:$0xff]
        %v1021 = vld [vmem:[#allocation2 + $0x750] sm:$0xff]
        %v1022 = vld [vmem:[#allocation2 + $0x758] sm:$0xff]
        %v1023 = vld [vmem:[#allocation2 + $0x760] sm:$0xff]
        %v1024 = vld [vmem:[#allocation2 + $0x768] sm:$0xff]
        %v1025 = vld [vmem:[#allocation2 + $0x770] sm:$0xff]
        %v1026 = vld [vmem:[#allocation2 + $0x778] sm:$0xff]
        %v1027 = vld [vmem:[#allocation2 + $0x780] sm:$0xff]
        %v1028 = vld [vmem:[#allocation2 + $0x788] sm:$0xff]
        %v1029 = vld [vmem:[#allocation2 + $0x790] sm:$0xff]
        %v1030 = vld [vmem:[#allocation2 + $0x798] sm:$0xff]
        %v1031 = vld [vmem:[#allocation2 + $0x7a0] sm:$0xff]
        %v1032 = vld [vmem:[#allocation2 + $0x7a8] sm:$0xff]
        %v1033 = vld [vmem:[#allocation2 + $0x7b0] sm:$0xff]
        %v1034 = vld [vmem:[#allocation2 + $0x7b8] sm:$0xff]
        %v1035 = vld [vmem:[#allocation2 + $0x7c0] sm:$0xff]
        %v1036 = vld [vmem:[#allocation2 + $0x7c8] sm:$0xff]
        %v1037 = vld [vmem:[#allocation2 + $0x7d0] sm:$0xff]
        %v1038 = vld [vmem:[#allocation2 + $0x7d8] sm:$0xff]
        %v1039 = vld [vmem:[#allocation2 + $0x7e0] sm:$0xff]
        %v1040 = vld [vmem:[#allocation2 + $0x7e8] sm:$0xff]
        %v1041 = vld [vmem:[#allocation2 + $0x7f0] sm:$0xff]
        %v1042 = vld [vmem:[#allocation2 + $0x7f8] sm:$0xff]
        %v1043 = vld [vmem:[%s426] sm:$0xff]
        %v1044 = vld [vmem:[%s426 + $0x8] sm:$0xff]
        %v1045 = vld [vmem:[%s426 + $0x10] sm:$0xff]
        %v1046 = vld [vmem:[%s426 + $0x18] sm:$0xff]
        %v1047 = vld [vmem:[%s426 + $0x20] sm:$0xff]
        %v1048 = vld [vmem:[%s426 + $0x28] sm:$0xff]
        %v1049 = vld [vmem:[%s426 + $0x30] sm:$0xff]
        %v1050 = vld [vmem:[%s426 + $0x38] sm:$0xff]
        %v1051 = vld [vmem:[%s426 + $0x40] sm:$0xff]
        %v1052 = vld [vmem:[%s426 + $0x48] sm:$0xff]
        %v1053 = vld [vmem:[%s426 + $0x50] sm:$0xff]
        %v1054 = vld [vmem:[%s426 + $0x58] sm:$0xff]
        %v1055 = vld [vmem:[%s426 + $0x60] sm:$0xff]
        %v1056 = vld [vmem:[%s426 + $0x68] sm:$0xff]
        %v1057 = vld [vmem:[%s426 + $0x70] sm:$0xff]
        %v1058 = vld [vmem:[%s426 + $0x78] sm:$0xff]
        %v1059 = vld [vmem:[%s426 + $0x80] sm:$0xff]
        %v1060 = vld [vmem:[%s426 + $0x88] sm:$0xff]
        %v1061 = vld [vmem:[%s426 + $0x90] sm:$0xff]
        %v1062 = vld [vmem:[%s426 + $0x98] sm:$0xff]
        %v1063 = vld [vmem:[%s426 + $0xa0] sm:$0xff]
        %v1064 = vld [vmem:[%s426 + $0xa8] sm:$0xff]
        %v1065 = vld [vmem:[%s426 + $0xb0] sm:$0xff]
        %v1066 = vld [vmem:[%s426 + $0xb8] sm:$0xff]
        %v1067 = vld [vmem:[%s426 + $0xc0] sm:$0xff]
        %v1068 = vld [vmem:[%s426 + $0xc8] sm:$0xff]
        %v1069 = vld [vmem:[%s426 + $0xd0] sm:$0xff]
        %v1070 = vld [vmem:[%s426 + $0xd8] sm:$0xff]
        %v1071 = vld [vmem:[%s426 + $0xe0] sm:$0xff]
        %v1072 = vld [vmem:[%s426 + $0xe8] sm:$0xff]
        %v1073 = vld [vmem:[%s426 + $0xf0] sm:$0xff]
        %v1074 = vld [vmem:[%s426 + $0xf8] sm:$0xff]
        %v1075 = vld [vmem:[%s426 + $0x100] sm:$0xff]
        %v1076 = vld [vmem:[%s426 + $0x108] sm:$0xff]
        %v1077 = vld [vmem:[%s426 + $0x110] sm:$0xff]
        %v1078 = vld [vmem:[%s426 + $0x118] sm:$0xff]
        %v1079 = vld [vmem:[%s426 + $0x120] sm:$0xff]
        %v1080 = vld [vmem:[%s426 + $0x128] sm:$0xff]
        %v1081 = vld [vmem:[%s426 + $0x130] sm:$0xff]
        %v1082 = vld [vmem:[%s426 + $0x138] sm:$0xff]
        %v1083 = vld [vmem:[%s426 + $0x140] sm:$0xff]
        %v1084 = vld [vmem:[%s426 + $0x148] sm:$0xff]
        %v1085 = vld [vmem:[%s426 + $0x150] sm:$0xff]
        %v1086 = vld [vmem:[%s426 + $0x158] sm:$0xff]
        %v1087 = vld [vmem:[%s426 + $0x160] sm:$0xff]
        %v1088 = vld [vmem:[%s426 + $0x168] sm:$0xff]
        %v1089 = vld [vmem:[%s426 + $0x170] sm:$0xff]
        %v1090 = vld [vmem:[%s426 + $0x178] sm:$0xff]
        %v1091 = vld [vmem:[%s426 + $0x180] sm:$0xff]
        %v1092 = vld [vmem:[%s426 + $0x188] sm:$0xff]
        %v1093 = vld [vmem:[%s426 + $0x190] sm:$0xff]
        %v1094 = vld [vmem:[%s426 + $0x198] sm:$0xff]
        %v1095 = vld [vmem:[%s426 + $0x1a0] sm:$0xff]
        %v1096 = vld [vmem:[%s426 + $0x1a8] sm:$0xff]
        %v1097 = vld [vmem:[%s426 + $0x1b0] sm:$0xff]
        %v1098 = vld [vmem:[%s426 + $0x1b8] sm:$0xff]
        %v1099 = vld [vmem:[%s426 + $0x1c0] sm:$0xff]
        %v1100 = vld [vmem:[%s426 + $0x1c8] sm:$0xff]
        %v1101 = vld [vmem:[%s426 + $0x1d0] sm:$0xff]
        %v1102 = vld [vmem:[%s426 + $0x1d8] sm:$0xff]
        %v1103 = vld [vmem:[%s426 + $0x1e0] sm:$0xff]
        %v1104 = vld [vmem:[%s426 + $0x1e8] sm:$0xff]
        %v1105 = vld [vmem:[%s426 + $0x1f0] sm:$0xff]
        %v1106 = vld [vmem:[%s426 + $0x1f8] sm:$0xff]
        %v1107 = vld [vmem:[%s453] sm:$0xff]
        %v1108 = vld [vmem:[%s453 + $0x8] sm:$0xff]
        %v1109 = vld [vmem:[%s453 + $0x10] sm:$0xff]
        %v1110 = vld [vmem:[%s453 + $0x18] sm:$0xff]
        %v1111 = vld [vmem:[%s453 + $0x20] sm:$0xff]
        %v1112 = vld [vmem:[%s453 + $0x28] sm:$0xff]
        %v1113 = vld [vmem:[%s453 + $0x30] sm:$0xff]
        %v1114 = vld [vmem:[%s453 + $0x38] sm:$0xff]
        %v1115 = vld [vmem:[%s453 + $0x40] sm:$0xff]
        %v1116 = vld [vmem:[%s453 + $0x48] sm:$0xff]
        %v1117 = vld [vmem:[%s453 + $0x50] sm:$0xff]
        %v1118 = vld [vmem:[%s453 + $0x58] sm:$0xff]
        %v1119 = vld [vmem:[%s453 + $0x60] sm:$0xff]
        %v1120 = vld [vmem:[%s453 + $0x68] sm:$0xff]
        %v1121 = vld [vmem:[%s453 + $0x70] sm:$0xff]
        %v1122 = vld [vmem:[%s453 + $0x78] sm:$0xff]
        %v1123 = vld [vmem:[%s453 + $0x80] sm:$0xff]
        %v1124 = vld [vmem:[%s453 + $0x88] sm:$0xff]
        %v1125 = vld [vmem:[%s453 + $0x90] sm:$0xff]
        %v1126 = vld [vmem:[%s453 + $0x98] sm:$0xff]
        %v1127 = vld [vmem:[%s453 + $0xa0] sm:$0xff]
        %v1128 = vld [vmem:[%s453 + $0xa8] sm:$0xff]
        %v1129 = vld [vmem:[%s453 + $0xb0] sm:$0xff]
        %v1130 = vld [vmem:[%s453 + $0xb8] sm:$0xff]
        %v1131 = vld [vmem:[%s453 + $0xc0] sm:$0xff]
        %v1132 = vld [vmem:[%s453 + $0xc8] sm:$0xff]
        %v1133 = vld [vmem:[%s453 + $0xd0] sm:$0xff]
        %v1134 = vld [vmem:[%s453 + $0xd8] sm:$0xff]
        %v1135 = vld [vmem:[%s453 + $0xe0] sm:$0xff]
        %v1136 = vld [vmem:[%s453 + $0xe8] sm:$0xff]
        %v1137 = vld [vmem:[%s453 + $0xf0] sm:$0xff]
        %v1138 = vld [vmem:[%s453 + $0xf8] sm:$0xff]
        %v1139 = vld [vmem:[%s453 + $0x100] sm:$0xff]
        %v1140 = vld [vmem:[%s453 + $0x108] sm:$0xff]
        %v1141 = vld [vmem:[%s453 + $0x110] sm:$0xff]
        %v1142 = vld [vmem:[%s453 + $0x118] sm:$0xff]
        %v1143 = vld [vmem:[%s453 + $0x120] sm:$0xff]
        %v1144 = vld [vmem:[%s453 + $0x128] sm:$0xff]
        %v1145 = vld [vmem:[%s453 + $0x130] sm:$0xff]
        %v1146 = vld [vmem:[%s453 + $0x138] sm:$0xff]
        %v1147 = vld [vmem:[%s453 + $0x140] sm:$0xff]
        %v1148 = vld [vmem:[%s453 + $0x148] sm:$0xff]
        %v1149 = vld [vmem:[%s453 + $0x150] sm:$0xff]
        %v1150 = vld [vmem:[%s453 + $0x158] sm:$0xff]
        %v1151 = vld [vmem:[%s453 + $0x160] sm:$0xff]
        %v1152 = vld [vmem:[%s453 + $0x168] sm:$0xff]
        %v1153 = vld [vmem:[%s453 + $0x170] sm:$0xff]
        %v1154 = vld [vmem:[%s453 + $0x178] sm:$0xff]
        %v1155 = vld [vmem:[%s453 + $0x180] sm:$0xff]
        %v1156 = vld [vmem:[%s453 + $0x188] sm:$0xff]
        %v1157 = vld [vmem:[%s453 + $0x190] sm:$0xff]
        %v1158 = vld [vmem:[%s453 + $0x198] sm:$0xff]
        %v1159 = vld [vmem:[%s453 + $0x1a0] sm:$0xff]
        %v1160 = vld [vmem:[%s453 + $0x1a8] sm:$0xff]
        %v1161 = vld [vmem:[%s453 + $0x1b0] sm:$0xff]
        %v1162 = vld [vmem:[%s453 + $0x1b8] sm:$0xff]
        %v1163 = vld [vmem:[%s453 + $0x1c0] sm:$0xff]
        %v1164 = vld [vmem:[%s453 + $0x1c8] sm:$0xff]
        %v1165 = vld [vmem:[%s453 + $0x1d0] sm:$0xff]
        %v1166 = vld [vmem:[%s453 + $0x1d8] sm:$0xff]
        %v1167 = vld [vmem:[%s453 + $0x1e0] sm:$0xff]
        %v1168 = vld [vmem:[%s453 + $0x1e8] sm:$0xff]
        %v1169 = vld [vmem:[%s453 + $0x1f0] sm:$0xff]
        %v1170 = vld [vmem:[%s453 + $0x1f8] sm:$0xff]
        %v1171 = vld [vmem:[%s453 + $0x200] sm:$0xff]
        %v1172 = vld [vmem:[%s453 + $0x208] sm:$0xff]
        %v1173 = vld [vmem:[%s453 + $0x210] sm:$0xff]
        %v1174 = vld [vmem:[%s453 + $0x218] sm:$0xff]
        %v1175 = vld [vmem:[%s453 + $0x220] sm:$0xff]
        %v1176 = vld [vmem:[%s453 + $0x228] sm:$0xff]
        %v1177 = vld [vmem:[%s453 + $0x230] sm:$0xff]
        %v1178 = vld [vmem:[%s453 + $0x238] sm:$0xff]
        %v1179 = vld [vmem:[%s453 + $0x240] sm:$0xff]
        %v1180 = vld [vmem:[%s453 + $0x248] sm:$0xff]
        %v1181 = vld [vmem:[%s453 + $0x250] sm:$0xff]
        %v1182 = vld [vmem:[%s453 + $0x258] sm:$0xff]
        %v1183 = vld [vmem:[%s453 + $0x260] sm:$0xff]
        %v1184 = vld [vmem:[%s453 + $0x268] sm:$0xff]
        %v1185 = vld [vmem:[%s453 + $0x270] sm:$0xff]
        %v1186 = vld [vmem:[%s453 + $0x278] sm:$0xff]
        %v1187 = vld [vmem:[%s453 + $0x280] sm:$0xff]
        %v1188 = vld [vmem:[%s453 + $0x288] sm:$0xff]
        %v1189 = vld [vmem:[%s453 + $0x290] sm:$0xff]
        %v1190 = vld [vmem:[%s453 + $0x298] sm:$0xff]
        %v1191 = vld [vmem:[%s453 + $0x2a0] sm:$0xff]
        %v1192 = vld [vmem:[%s453 + $0x2a8] sm:$0xff]
        %v1193 = vld [vmem:[%s453 + $0x2b0] sm:$0xff]
        %v1194 = vld [vmem:[%s453 + $0x2b8] sm:$0xff]
        %v1195 = vld [vmem:[%s453 + $0x2c0] sm:$0xff]
        %v1196 = vld [vmem:[%s453 + $0x2c8] sm:$0xff]
        %v1197 = vld [vmem:[%s453 + $0x2d0] sm:$0xff]
        %v1198 = vld [vmem:[%s453 + $0x2d8] sm:$0xff]
        %v1199 = vld [vmem:[%s453 + $0x2e0] sm:$0xff]
        %v1200 = vld [vmem:[%s453 + $0x2e8] sm:$0xff]
        %v1201 = vld [vmem:[%s453 + $0x2f0] sm:$0xff]
        %v1202 = vld [vmem:[%s453 + $0x2f8] sm:$0xff]
        %v1203 = vld [vmem:[%s453 + $0x300] sm:$0xff]
        %v1204 = vld [vmem:[%s453 + $0x308] sm:$0xff]
        %v1205 = vld [vmem:[%s453 + $0x310] sm:$0xff]
        %v1206 = vld [vmem:[%s453 + $0x318] sm:$0xff]
        %v1207 = vld [vmem:[%s453 + $0x320] sm:$0xff]
        %v1208 = vld [vmem:[%s453 + $0x328] sm:$0xff]
        %v1209 = vld [vmem:[%s453 + $0x330] sm:$0xff]
        %v1210 = vld [vmem:[%s453 + $0x338] sm:$0xff]
        %v1211 = vld [vmem:[%s453 + $0x340] sm:$0xff]
        %v1212 = vld [vmem:[%s453 + $0x348] sm:$0xff]
        %v1213 = vld [vmem:[%s453 + $0x350] sm:$0xff]
        %v1214 = vld [vmem:[%s453 + $0x358] sm:$0xff]
        %v1215 = vld [vmem:[%s453 + $0x360] sm:$0xff]
        %v1216 = vld [vmem:[%s453 + $0x368] sm:$0xff]
        %v1217 = vld [vmem:[%s453 + $0x370] sm:$0xff]
        %v1218 = vld [vmem:[%s453 + $0x378] sm:$0xff]
        %v1219 = vld [vmem:[%s453 + $0x380] sm:$0xff]
        %v1220 = vld [vmem:[%s453 + $0x388] sm:$0xff]
        %v1221 = vld [vmem:[%s453 + $0x390] sm:$0xff]
        %v1222 = vld [vmem:[%s453 + $0x398] sm:$0xff]
        %v1223 = vld [vmem:[%s453 + $0x3a0] sm:$0xff]
        %v1224 = vld [vmem:[%s453 + $0x3a8] sm:$0xff]
        %v1225 = vld [vmem:[%s453 + $0x3b0] sm:$0xff]
        %v1226 = vld [vmem:[%s453 + $0x3b8] sm:$0xff]
        %v1227 = vld [vmem:[%s453 + $0x3c0] sm:$0xff]
        %v1228 = vld [vmem:[%s453 + $0x3c8] sm:$0xff]
        %v1229 = vld [vmem:[%s453 + $0x3d0] sm:$0xff]
        %v1230 = vld [vmem:[%s453 + $0x3d8] sm:$0xff]
        %v1231 = vld [vmem:[%s453 + $0x3e0] sm:$0xff]
        %v1232 = vld [vmem:[%s453 + $0x3e8] sm:$0xff]
        %v1233 = vld [vmem:[%s453 + $0x3f0] sm:$0xff]
        %v1234 = vld [vmem:[%s453 + $0x3f8] sm:$0xff]
        %v1235 = vld [vmem:[%s453 + $0x400] sm:$0xff]
        %v1236 = vld [vmem:[%s453 + $0x408] sm:$0xff]
        %v1237 = vld [vmem:[%s453 + $0x410] sm:$0xff]
        %v1238 = vld [vmem:[%s453 + $0x418] sm:$0xff]
        %v1239 = vld [vmem:[%s453 + $0x420] sm:$0xff]
        %v1240 = vld [vmem:[%s453 + $0x428] sm:$0xff]
        %v1241 = vld [vmem:[%s453 + $0x430] sm:$0xff]
        %v1242 = vld [vmem:[%s453 + $0x438] sm:$0xff]
        %v1243 = vld [vmem:[%s453 + $0x440] sm:$0xff]
        %v1244 = vld [vmem:[%s453 + $0x448] sm:$0xff]
        %v1245 = vld [vmem:[%s453 + $0x450] sm:$0xff]
        %v1246 = vld [vmem:[%s453 + $0x458] sm:$0xff]
        %v1247 = vld [vmem:[%s453 + $0x460] sm:$0xff]
        %v1248 = vld [vmem:[%s453 + $0x468] sm:$0xff]
        %v1249 = vld [vmem:[%s453 + $0x470] sm:$0xff]
        %v1250 = vld [vmem:[%s453 + $0x478] sm:$0xff]
        %v1251 = vld [vmem:[%s453 + $0x480] sm:$0xff]
        %v1252 = vld [vmem:[%s453 + $0x488] sm:$0xff]
        %v1253 = vld [vmem:[%s453 + $0x490] sm:$0xff]
        %v1254 = vld [vmem:[%s453 + $0x498] sm:$0xff]
        %v1255 = vld [vmem:[%s453 + $0x4a0] sm:$0xff]
        %v1256 = vld [vmem:[%s453 + $0x4a8] sm:$0xff]
        %v1257 = vld [vmem:[%s453 + $0x4b0] sm:$0xff]
        %v1258 = vld [vmem:[%s453 + $0x4b8] sm:$0xff]
        %v1259 = vld [vmem:[%s453 + $0x4c0] sm:$0xff]
        %v1260 = vld [vmem:[%s453 + $0x4c8] sm:$0xff]
        %v1261 = vld [vmem:[%s453 + $0x4d0] sm:$0xff]
        %v1262 = vld [vmem:[%s453 + $0x4d8] sm:$0xff]
        %v1263 = vld [vmem:[%s453 + $0x4e0] sm:$0xff]
        %v1264 = vld [vmem:[%s453 + $0x4e8] sm:$0xff]
        %v1265 = vld [vmem:[%s453 + $0x4f0] sm:$0xff]
        %v1266 = vld [vmem:[%s453 + $0x4f8] sm:$0xff]
        %v1267 = vld [vmem:[%s453 + $0x500] sm:$0xff]
        %v1268 = vld [vmem:[%s453 + $0x508] sm:$0xff]
        %v1269 = vld [vmem:[%s453 + $0x510] sm:$0xff]
        %v1270 = vld [vmem:[%s453 + $0x518] sm:$0xff]
        %v1271 = vld [vmem:[%s453 + $0x520] sm:$0xff]
        %v1272 = vld [vmem:[%s453 + $0x528] sm:$0xff]
        %v1273 = vld [vmem:[%s453 + $0x530] sm:$0xff]
        %v1274 = vld [vmem:[%s453 + $0x538] sm:$0xff]
        %v1275 = vld [vmem:[%s453 + $0x540] sm:$0xff]
        %v1276 = vld [vmem:[%s453 + $0x548] sm:$0xff]
        %v1277 = vld [vmem:[%s453 + $0x550] sm:$0xff]
        %v1278 = vld [vmem:[%s453 + $0x558] sm:$0xff]
        %v1279 = vld [vmem:[%s453 + $0x560] sm:$0xff]
        %v1280 = vld [vmem:[%s453 + $0x568] sm:$0xff]
        %v1281 = vld [vmem:[%s453 + $0x570] sm:$0xff]
        %v1282 = vld [vmem:[%s453 + $0x578] sm:$0xff]
        %v1283 = vld [vmem:[%s453 + $0x580] sm:$0xff]
        %v1284 = vld [vmem:[%s453 + $0x588] sm:$0xff]
        %v1285 = vld [vmem:[%s453 + $0x590] sm:$0xff]
        %v1286 = vld [vmem:[%s453 + $0x598] sm:$0xff]
        %v1287 = vld [vmem:[%s453 + $0x5a0] sm:$0xff]
        %v1288 = vld [vmem:[%s453 + $0x5a8] sm:$0xff]
        %v1289 = vld [vmem:[%s453 + $0x5b0] sm:$0xff]
        %v1290 = vld [vmem:[%s453 + $0x5b8] sm:$0xff]
        %v1291 = vld [vmem:[%s453 + $0x5c0] sm:$0xff]
        %v1292 = vld [vmem:[%s453 + $0x5c8] sm:$0xff]
        %v1293 = vld [vmem:[%s453 + $0x5d0] sm:$0xff]
        %v1294 = vld [vmem:[%s453 + $0x5d8] sm:$0xff]
        %v1295 = vld [vmem:[%s453 + $0x5e0] sm:$0xff]
        %v1296 = vld [vmem:[%s453 + $0x5e8] sm:$0xff]
        %v1297 = vld [vmem:[%s453 + $0x5f0] sm:$0xff]
        %v1298 = vld [vmem:[%s453 + $0x5f8] sm:$0xff]
        %v1299 = vld [vmem:[%s453 + $0x600] sm:$0xff]
        %v1300 = vld [vmem:[%s453 + $0x608] sm:$0xff]
        %v1301 = vld [vmem:[%s453 + $0x610] sm:$0xff]
        %v1302 = vld [vmem:[%s453 + $0x618] sm:$0xff]
        %v1303 = vld [vmem:[%s453 + $0x620] sm:$0xff]
        %v1304 = vld [vmem:[%s453 + $0x628] sm:$0xff]
        %v1305 = vld [vmem:[%s453 + $0x630] sm:$0xff]
        %v1306 = vld [vmem:[%s453 + $0x638] sm:$0xff]
        %v1307 = vld [vmem:[%s453 + $0x640] sm:$0xff]
        %v1308 = vld [vmem:[%s453 + $0x648] sm:$0xff]
        %v1309 = vld [vmem:[%s453 + $0x650] sm:$0xff]
        %v1310 = vld [vmem:[%s453 + $0x658] sm:$0xff]
        %v1311 = vld [vmem:[%s453 + $0x660] sm:$0xff]
        %v1312 = vld [vmem:[%s453 + $0x668] sm:$0xff]
        %v1313 = vld [vmem:[%s453 + $0x670] sm:$0xff]
        %v1314 = vld [vmem:[%s453 + $0x678] sm:$0xff]
        %v1315 = vld [vmem:[%s453 + $0x680] sm:$0xff]
        %v1316 = vld [vmem:[%s453 + $0x688] sm:$0xff]
        %v1317 = vld [vmem:[%s453 + $0x690] sm:$0xff]
        %v1318 = vld [vmem:[%s453 + $0x698] sm:$0xff]
        %v1319 = vld [vmem:[%s453 + $0x6a0] sm:$0xff]
        %v1320 = vld [vmem:[%s453 + $0x6a8] sm:$0xff]
        %v1321 = vld [vmem:[%s453 + $0x6b0] sm:$0xff]
        %v1322 = vld [vmem:[%s453 + $0x6b8] sm:$0xff]
        %v1323 = vld [vmem:[%s453 + $0x6c0] sm:$0xff]
        %v1324 = vld [vmem:[%s453 + $0x6c8] sm:$0xff]
        %v1325 = vld [vmem:[%s453 + $0x6d0] sm:$0xff]
        %v1326 = vld [vmem:[%s453 + $0x6d8] sm:$0xff]
        %v1327 = vld [vmem:[%s453 + $0x6e0] sm:$0xff]
        %v1328 = vld [vmem:[%s453 + $0x6e8] sm:$0xff]
        %v1329 = vld [vmem:[%s453 + $0x6f0] sm:$0xff]
        %v1330 = vld [vmem:[%s453 + $0x6f8] sm:$0xff]
        %v1331 = vld [vmem:[%s453 + $0x700] sm:$0xff]
        %v1332 = vld [vmem:[%s453 + $0x708] sm:$0xff]
        %v1333 = vld [vmem:[%s453 + $0x710] sm:$0xff]
        %v1334 = vld [vmem:[%s453 + $0x718] sm:$0xff]
        %v1335 = vld [vmem:[%s453 + $0x720] sm:$0xff]
        %v1336 = vld [vmem:[%s453 + $0x728] sm:$0xff]
        %v1337 = vld [vmem:[%s453 + $0x730] sm:$0xff]
        %v1338 = vld [vmem:[%s453 + $0x738] sm:$0xff]
        %v1339 = vld [vmem:[%s453 + $0x740] sm:$0xff]
        %v1340 = vld [vmem:[%s453 + $0x748] sm:$0xff]
        %v1341 = vld [vmem:[%s453 + $0x750] sm:$0xff]
        %v1342 = vld [vmem:[%s453 + $0x758] sm:$0xff]
        %v1343 = vld [vmem:[%s453 + $0x760] sm:$0xff]
        %v1344 = vld [vmem:[%s453 + $0x768] sm:$0xff]
        %v1345 = vld [vmem:[%s453 + $0x770] sm:$0xff]
        %v1346 = vld [vmem:[%s453 + $0x778] sm:$0xff]
        %v1347 = vld [vmem:[%s453 + $0x780] sm:$0xff]
        %v1348 = vld [vmem:[%s453 + $0x788] sm:$0xff]
        %v1349 = vld [vmem:[%s453 + $0x790] sm:$0xff]
        %v1350 = vld [vmem:[%s453 + $0x798] sm:$0xff]
        %v1351 = vld [vmem:[%s453 + $0x7a0] sm:$0xff]
        %v1352 = vld [vmem:[%s453 + $0x7a8] sm:$0xff]
        %v1353 = vld [vmem:[%s453 + $0x7b0] sm:$0xff]
        %v1354 = vld [vmem:[%s453 + $0x7b8] sm:$0xff]
        %v1355 = vld [vmem:[%s453 + $0x7c0] sm:$0xff]
        %v1356 = vld [vmem:[%s453 + $0x7c8] sm:$0xff]
        %v1357 = vld [vmem:[%s453 + $0x7d0] sm:$0xff]
        %v1358 = vld [vmem:[%s453 + $0x7d8] sm:$0xff]
        %v1359 = vld [vmem:[%s453 + $0x7e0] sm:$0xff]
        %v1360 = vld [vmem:[%s453 + $0x7e8] sm:$0xff]
        %v1361 = vld [vmem:[%s453 + $0x7f0] sm:$0xff]
        %v1362 = vld [vmem:[%s453 + $0x7f8] sm:$0xff]
        %1363 = vmatprep.subr.mxu0 %v1108
        %1364 = vmatpush1.msra.mxu0 %v1107
        %1365 = vmatprep.subr.mxu0 %v1116
        %1366 = vmatpush1.msra.mxu0 %v1115
        %1367 = vmatprep.subr.mxu0 %v1124
        %1368 = vmatpush1.msra.mxu0 %v1123
        %1369 = vmatprep.subr.mxu0 %v1132
        %1370 = vmatpush1.msra.mxu0 %v1131
        %1371 = vmatprep.subr.mxu0 %v1140
        %1372 = vmatpush1.msra.mxu0 %v1139
        %1373 = vmatprep.subr.mxu0 %v1148
        %1374 = vmatpush1.msra.mxu0 %v1147
        %1375 = vmatprep.subr.mxu0 %v1156
        %1376 = vmatpush1.msra.mxu0 %v1155
        %1377 = vmatprep.subr.mxu0 %v1164
        %1378 = vmatpush1.msra.mxu0 %v1163
        %1379 = vmatprep.subr.mxu0 %v1172
        %1380 = vmatpush1.msra.mxu0 %v1171
        %1381 = vmatprep.subr.mxu0 %v1180
        %1382 = vmatpush1.msra.mxu0 %v1179
        %1383 = vmatprep.subr.mxu0 %v1188
        %1384 = vmatpush1.msra.mxu0 %v1187
        %1385 = vmatprep.subr.mxu0 %v1196
        %1386 = vmatpush1.msra.mxu0 %v1195
        %1387 = vmatprep.subr.mxu0 %v1204
        %1388 = vmatpush1.msra.mxu0 %v1203
        %1389 = vmatprep.subr.mxu0 %v1212
        %1390 = vmatpush1.msra.mxu0 %v1211
        %1391 = vmatprep.subr.mxu0 %v1220
        %1392 = vmatpush1.msra.mxu0 %v1219
        %1393 = vmatprep.subr.mxu0 %v1228
        %1394 = vmatpush1.msra.mxu0 %v1227
        %1395 = vmatprep.subr.mxu0 %v1236
        %1396 = vmatpush1.msra.mxu0 %v1235
        %1397 = vmatprep.subr.mxu0 %v1244
        %1398 = vmatpush1.msra.mxu0 %v1243
        %1399 = vmatprep.subr.mxu0 %v1252
        %1400 = vmatpush1.msra.mxu0 %v1251
        %1401 = vmatprep.subr.mxu0 %v1260
        %1402 = vmatpush1.msra.mxu0 %v1259
        %1403 = vmatprep.subr.mxu0 %v1268
        %1404 = vmatpush1.msra.mxu0 %v1267
        %1405 = vmatprep.subr.mxu0 %v1276
        %1406 = vmatpush1.msra.mxu0 %v1275
        %1407 = vmatprep.subr.mxu0 %v1284
        %1408 = vmatpush1.msra.mxu0 %v1283
        %1409 = vmatprep.subr.mxu0 %v1292
        %1410 = vmatpush1.msra.mxu0 %v1291
        %1411 = vmatprep.subr.mxu0 %v1300
        %1412 = vmatpush1.msra.mxu0 %v1299
        %1413 = vmatprep.subr.mxu0 %v1308
        %1414 = vmatpush1.msra.mxu0 %v1307
        %1415 = vmatprep.subr.mxu0 %v1316
        %1416 = vmatpush1.msra.mxu0 %v1315
        %1417 = vmatprep.subr.mxu0 %v1324
        %1418 = vmatpush1.msra.mxu0 %v1323
        %1419 = vmatprep.subr.mxu0 %v1332
        %1420 = vmatpush1.msra.mxu0 %v1331
        %1421 = vmatprep.subr.mxu0 %v1340
        %1422 = vmatpush1.msra.mxu0 %v1339
        %1423 = vmatprep.subr.mxu0 %v1348
        %1424 = vmatpush1.msra.mxu0 %v1347
        %1425 = vmatprep.subr.mxu0 %v1356
        %1426 = vmatpush1.msra.mxu0 %v1355
        %1427 = vmatprep.mubr.f32.mxu0 %v1044
        %1428 = vmatmul.mubr.f32.gmra.mrb[0].mxu0 %v1043
        %v1429 = vpop.f32.mrb[0].mxu0
        %v1430 = vadd.f32 0.0, %v1429
        %v1431 = vpop.f32.mrb[0].mxu0
        %v1432 = vadd.f32 0.0, %v1431
        %1433 = vmatprep.mubr.f32.mxu0 %v1046
        %1434 = vmatmul.mubr.f32.gmra.mrb[0].mxu0 %v1045
        %v1435 = vpop.f32.mrb[0].mxu0
        %v1436 = vadd.f32 0.0, %v1435
        %v1437 = vpop.f32.mrb[0].mxu0
        %v1438 = vadd.f32 0.0, %v1437
        %1439 = vmatprep.mubr.f32.mxu0 %v1048
        %1440 = vmatmul.mubr.f32.gmra.mrb[0].mxu0 %v1047
        %v1441 = vpop.f32.mrb[0].mxu0
        %v1442 = vadd.f32 0.0, %v1441
        %v1443 = vpop.f32.mrb[0].mxu0
        %v1444 = vadd.f32 0.0, %v1443
        %1445 = vmatprep.mubr.f32.mxu0 %v1050
        %1446 = vmatmul.mubr.f32.gmra.mrb[0].mxu0 %v1049
        %v1447 = vpop.f32.mrb[0].mxu0
        %v1448 = vadd.f32 0.0, %v1447
        %v1449 = vpop.f32.mrb[0].mxu0
        %v1450 = vadd.f32 0.0, %v1449
        %1451 = vmatprep.mubr.f32.mxu0 %v1052
        %1452 = vmatmul.mubr.f32.gmra.mrb[0].mxu0 %v1051
        %v1453 = vpop.f32.mrb[0].mxu0
        %v1454 = vadd.f32 0.0, %v1453
        %v1455 = vpop.f32.mrb[0].mxu0
        %v1456 = vadd.f32 0.0, %v1455
        %1457 = vmatprep.mubr.f32.mxu0 %v1054
        %1458 = vmatmul.mubr.f32.gmra.mrb[0].mxu0 %v1053
        %v1459 = vpop.f32.mrb[0].mxu0
        %v1460 = vadd.f32 0.0, %v1459
        %v1461 = vpop.f32.mrb[0].mxu0
        %v1462 = vadd.f32 0.0, %v1461
        %1463 = vmatprep.mubr.f32.mxu0 %v1056
        %1464 = vmatmul.mubr.f32.gmra.mrb[0].mxu0 %v1055
        %v1465 = vpop.f32.mrb[0].mxu0
        %v1466 = vadd.f32 0.0, %v1465
        %v1467 = vpop.f32.mrb[0].mxu0
        %v1468 = vadd.f32 0.0, %v1467
        %1469 = vmatprep.mubr.f32.mxu0 %v1058
        %1470 = vmatmul.mubr.f32.gmra.mrb[0].mxu0 %v1057
        %v1471 = vpop.f32.mrb[0].mxu0
        %v1472 = vadd.f32 0.0, %v1471
        %v1473 = vpop.f32.mrb[0].mxu0
        %v1474 = vadd.f32 0.0, %v1473
        %1475 = vmatprep.mubr.f32.mxu0 %v1060
        %1476 = vmatmul.mubr.f32.gmra.mrb[0].mxu0 %v1059
        %v1477 = vpop.f32.mrb[0].mxu0
        %v1478 = vadd.f32 0.0, %v1477
        %v1479 = vpop.f32.mrb[0].mxu0
        %v1480 = vadd.f32 0.0, %v1479
        %1481 = vmatprep.mubr.f32.mxu0 %v1062
        %1482 = vmatmul.mubr.f32.gmra.mrb[0].mxu0 %v1061
        %v1483 = vpop.f32.mrb[0].mxu0
        %v1484 = vadd.f32 0.0, %v1483
        %v1485 = vpop.f32.mrb[0].mxu0
        %v1486 = vadd.f32 0.0, %v1485
        %1487 = vmatprep.mubr.f32.mxu0 %v1064
        %1488 = vmatmul.mubr.f32.gmra.mrb[0].mxu0 %v1063
        %v1489 = vpop.f32.mrb[0].mxu0
        %v1490 = vadd.f32 0.0, %v1489
        %v1491 = vpop.f32.mrb[0].mxu0
        %v1492 = vadd.f32 0.0, %v1491
        %1493 = vmatprep.mubr.f32.mxu0 %v1066
        %1494 = vmatmul.mubr.f32.gmra.mrb[0].mxu0 %v1065
        %v1495 = vpop.f32.mrb[0].mxu0
        %v1496 = vadd.f32 0.0, %v1495
        %v1497 = vpop.f32.mrb[0].mxu0
        %v1498 = vadd.f32 0.0, %v1497
        %1499 = vmatprep.mubr.f32.mxu0 %v1068
        %1500 = vmatmul.mubr.f32.gmra.mrb[0].mxu0 %v1067
        %v1501 = vpop.f32.mrb[0].mxu0
        %v1502 = vadd.f32 0.0, %v1501
        %v1503 = vpop.f32.mrb[0].mxu0
        %v1504 = vadd.f32 0.0, %v1503
        %1505 = vmatprep.mubr.f32.mxu0 %v1070
        %1506 = vmatmul.mubr.f32.gmra.mrb[0].mxu0 %v1069
        %v1507 = vpop.f32.mrb[0].mxu0
        %v1508 = vadd.f32 0.0, %v1507
        %v1509 = vpop.f32.mrb[0].mxu0
        %v1510 = vadd.f32 0.0, %v1509
        %1511 = vmatprep.mubr.f32.mxu0 %v1072
        %1512 = vmatmul.mubr.f32.gmra.mrb[0].mxu0 %v1071
        %v1513 = vpop.f32.mrb[0].mxu0
        %v1514 = vadd.f32 0.0, %v1513
        %v1515 = vpop.f32.mrb[0].mxu0
        %v1516 = vadd.f32 0.0, %v1515
        %1517 = vmatprep.mubr.f32.mxu0 %v1074
        %1518 = vmatmul.mubr.f32.gmra.mrb[0].mxu0 %v1073
        %v1519 = vpop.f32.mrb[0].mxu0
        %v1520 = vadd.f32 0.0, %v1519
        %v1521 = vpop.f32.mrb[0].mxu0
        %v1522 = vadd.f32 0.0, %v1521
        %1523 = vmatprep.mubr.f32.mxu0 %v1076
        %1524 = vmatmul.mubr.f32.gmra.mrb[0].mxu0 %v1075
        %v1525 = vpop.f32.mrb[0].mxu0
        %v1526 = vadd.f32 0.0, %v1525
        %v1527 = vpop.f32.mrb[0].mxu0
        %v1528 = vadd.f32 0.0, %v1527
        %1529 = vmatprep.mubr.f32.mxu0 %v1078
        %1530 = vmatmul.mubr.f32.gmra.mrb[0].mxu0 %v1077
        %v1531 = vpop.f32.mrb[0].mxu0
        %v1532 = vadd.f32 0.0, %v1531
        %v1533 = vpop.f32.mrb[0].mxu0
        %v1534 = vadd.f32 0.0, %v1533
        %1535 = vmatprep.mubr.f32.mxu0 %v1080
        %1536 = vmatmul.mubr.f32.gmra.mrb[0].mxu0 %v1079
        %v1537 = vpop.f32.mrb[0].mxu0
        %v1538 = vadd.f32 0.0, %v1537
        %v1539 = vpop.f32.mrb[0].mxu0
        %v1540 = vadd.f32 0.0, %v1539
        %1541 = vmatprep.mubr.f32.mxu0 %v1082
        %1542 = vmatmul.mubr.f32.gmra.mrb[0].mxu0 %v1081
        %v1543 = vpop.f32.mrb[0].mxu0
        %v1544 = vadd.f32 0.0, %v1543
        %v1545 = vpop.f32.mrb[0].mxu0
        %v1546 = vadd.f32 0.0, %v1545
        %1547 = vmatprep.mubr.f32.mxu0 %v1084
        %1548 = vmatmul.mubr.f32.gmra.mrb[0].mxu0 %v1083
        %v1549 = vpop.f32.mrb[0].mxu0
        %v1550 = vadd.f32 0.0, %v1549
        %v1551 = vpop.f32.mrb[0].mxu0
        %v1552 = vadd.f32 0.0, %v1551
        %1553 = vmatprep.mubr.f32.mxu0 %v1086
        %1554 = vmatmul.mubr.f32.gmra.mrb[0].mxu0 %v1085
        %v1555 = vpop.f32.mrb[0].mxu0
        %v1556 = vadd.f32 0.0, %v1555
        %v1557 = vpop.f32.mrb[0].mxu0
        %v1558 = vadd.f32 0.0, %v1557
        %1559 = vmatprep.mubr.f32.mxu0 %v1088
        %1560 = vmatmul.mubr.f32.gmra.mrb[0].mxu0 %v1087
        %v1561 = vpop.f32.mrb[0].mxu0
        %v1562 = vadd.f32 0.0, %v1561
        %v1563 = vpop.f32.mrb[0].mxu0
        %v1564 = vadd.f32 0.0, %v1563
        %1565 = vmatprep.mubr.f32.mxu0 %v1090
        %1566 = vmatmul.mubr.f32.gmra.mrb[0].mxu0 %v1089
        %v1567 = vpop.f32.mrb[0].mxu0
        %v1568 = vadd.f32 0.0, %v1567
        %v1569 = vpop.f32.mrb[0].mxu0
        %v1570 = vadd.f32 0.0, %v1569
        %1571 = vmatprep.mubr.f32.mxu0 %v1092
        %1572 = vmatmul.mubr.f32.gmra.mrb[0].mxu0 %v1091
        %v1573 = vpop.f32.mrb[0].mxu0
        %v1574 = vadd.f32 0.0, %v1573
        %v1575 = vpop.f32.mrb[0].mxu0
        %v1576 = vadd.f32 0.0, %v1575
        %1577 = vmatprep.mubr.f32.mxu0 %v1094
        %1578 = vmatmul.mubr.f32.gmra.mrb[0].mxu0 %v1093
        %v1579 = vpop.f32.mrb[0].mxu0
        %v1580 = vadd.f32 0.0, %v1579
        %v1581 = vpop.f32.mrb[0].mxu0
        %v1582 = vadd.f32 0.0, %v1581
        %1583 = vmatprep.mubr.f32.mxu0 %v1096
        %1584 = vmatmul.mubr.f32.gmra.mrb[0].mxu0 %v1095
        %v1585 = vpop.f32.mrb[0].mxu0
        %v1586 = vadd.f32 0.0, %v1585
        %v1587 = vpop.f32.mrb[0].mxu0
        %v1588 = vadd.f32 0.0, %v1587
        %1589 = vmatprep.mubr.f32.mxu0 %v1098
        %1590 = vmatmul.mubr.f32.gmra.mrb[0].mxu0 %v1097
        %v1591 = vpop.f32.mrb[0].mxu0
        %v1592 = vadd.f32 0.0, %v1591
        %v1593 = vpop.f32.mrb[0].mxu0
        %v1594 = vadd.f32 0.0, %v1593
        %1595 = vmatprep.mubr.f32.mxu0 %v1100
        %1596 = vmatmul.mubr.f32.gmra.mrb[0].mxu0 %v1099
        %v1597 = vpop.f32.mrb[0].mxu0
        %v1598 = vadd.f32 0.0, %v1597
        %v1599 = vpop.f32.mrb[0].mxu0
        %v1600 = vadd.f32 0.0, %v1599
        %1601 = vmatprep.mubr.f32.mxu0 %v1102
        %1602 = vmatmul.mubr.f32.gmra.mrb[0].mxu0 %v1101
        %v1603 = vpop.f32.mrb[0].mxu0
        %v1604 = vadd.f32 0.0, %v1603
        %v1605 = vpop.f32.mrb[0].mxu0
        %v1606 = vadd.f32 0.0, %v1605
        %1607 = vmatprep.mubr.f32.mxu0 %v1104
        %1608 = vmatmul.mubr.f32.gmra.mrb[0].mxu0 %v1103
        %v1609 = vpop.f32.mrb[0].mxu0
        %v1610 = vadd.f32 0.0, %v1609
        %v1611 = vpop.f32.mrb[0].mxu0
        %v1612 = vadd.f32 0.0, %v1611
        %1613 = vmatprep.mubr.f32.mxu0 %v1106
        %1614 = vmatmul.mubr.f32.gmra.mrb[0].mxu0 %v1105
        %v1615 = vpop.f32.mrb[0].mxu0
        %v1616 = vadd.f32 0.0, %v1615
        %v1617 = vpop.f32.mrb[0].mxu0
        %v1618 = vadd.f32 0.0, %v1617
        %1619 = vdwg.mxu0
        %1620 = vmatprep.subr.mxu0 %v1110
        %1621 = vmatpush1.msra.mxu0 %v1109
        %1622 = vmatprep.subr.mxu0 %v1118
        %1623 = vmatpush1.msra.mxu0 %v1117
        %1624 = vmatprep.subr.mxu0 %v1126
        %1625 = vmatpush1.msra.mxu0 %v1125
        %1626 = vmatprep.subr.mxu0 %v1134
        %1627 = vmatpush1.msra.mxu0 %v1133
        %1628 = vmatprep.subr.mxu0 %v1142
        %1629 = vmatpush1.msra.mxu0 %v1141
        %1630 = vmatprep.subr.mxu0 %v1150
        %1631 = vmatpush1.msra.mxu0 %v1149
        %1632 = vmatprep.subr.mxu0 %v1158
        %1633 = vmatpush1.msra.mxu0 %v1157
        %1634 = vmatprep.subr.mxu0 %v1166
        %1635 = vmatpush1.msra.mxu0 %v1165
        %1636 = vmatprep.subr.mxu0 %v1174
        %1637 = vmatpush1.msra.mxu0 %v1173
        %1638 = vmatprep.subr.mxu0 %v1182
        %1639 = vmatpush1.msra.mxu0 %v1181
        %1640 = vmatprep.subr.mxu0 %v1190
        %1641 = vmatpush1.msra.mxu0 %v1189
        %1642 = vmatprep.subr.mxu0 %v1198
        %1643 = vmatpush1.msra.mxu0 %v1197
        %1644 = vmatprep.subr.mxu0 %v1206
        %1645 = vmatpush1.msra.mxu0 %v1205
        %1646 = vmatprep.subr.mxu0 %v1214
        %1647 = vmatpush1.msra.mxu0 %v1213
        %1648 = vmatprep.subr.mxu0 %v1222
        %1649 = vmatpush1.msra.mxu0 %v1221
        %1650 = vmatprep.subr.mxu0 %v1230
        %1651 = vmatpush1.msra.mxu0 %v1229
        %1652 = vmatprep.subr.mxu0 %v1238
        %1653 = vmatpush1.msra.mxu0 %v1237
        %1654 = vmatprep.subr.mxu0 %v1246
        %1655 = vmatpush1.msra.mxu0 %v1245
        %1656 = vmatprep.subr.mxu0 %v1254
        %1657 = vmatpush1.msra.mxu0 %v1253
        %1658 = vmatprep.subr.mxu0 %v1262
        %1659 = vmatpush1.msra.mxu0 %v1261
        %1660 = vmatprep.subr.mxu0 %v1270
        %1661 = vmatpush1.msra.mxu0 %v1269
        %1662 = vmatprep.subr.mxu0 %v1278
        %1663 = vmatpush1.msra.mxu0 %v1277
        %1664 = vmatprep.subr.mxu0 %v1286
        %1665 = vmatpush1.msra.mxu0 %v1285
        %1666 = vmatprep.subr.mxu0 %v1294
        %1667 = vmatpush1.msra.mxu0 %v1293
        %1668 = vmatprep.subr.mxu0 %v1302
        %1669 = vmatpush1.msra.mxu0 %v1301
        %1670 = vmatprep.subr.mxu0 %v1310
        %1671 = vmatpush1.msra.mxu0 %v1309
        %1672 = vmatprep.subr.mxu0 %v1318
        %1673 = vmatpush1.msra.mxu0 %v1317
        %1674 = vmatprep.subr.mxu0 %v1326
        %1675 = vmatpush1.msra.mxu0 %v1325
        %1676 = vmatprep.subr.mxu0 %v1334
        %1677 = vmatpush1.msra.mxu0 %v1333
        %1678 = vmatprep.subr.mxu0 %v1342
        %1679 = vmatpush1.msra.mxu0 %v1341
        %1680 = vmatprep.subr.mxu0 %v1350
        %1681 = vmatpush1.msra.mxu0 %v1349
        %1682 = vmatprep.subr.mxu0 %v1358
        %1683 = vmatpush1.msra.mxu0 %v1357
        %1684 = vmatprep.mubr.f32.mxu0 %v1044
        %1685 = vmatmul.mubr.f32.gmra.mrb[0].mxu0 %v1043
        %v1686 = vpop.f32.mrb[0].mxu0
        %v1687 = vadd.f32 0.0, %v1686
        %v1688 = vpop.f32.mrb[0].mxu0
        %v1689 = vadd.f32 0.0, %v1688
        %1690 = vmatprep.mubr.f32.mxu0 %v1046
        %1691 = vmatmul.mubr.f32.gmra.mrb[0].mxu0 %v1045
        %v1692 = vpop.f32.mrb[0].mxu0
        %v1693 = vadd.f32 0.0, %v1692
        %v1694 = vpop.f32.mrb[0].mxu0
        %v1695 = vadd.f32 0.0, %v1694
        %1696 = vmatprep.mubr.f32.mxu0 %v1048
        %1697 = vmatmul.mubr.f32.gmra.mrb[0].mxu0 %v1047
        %v1698 = vpop.f32.mrb[0].mxu0
        %v1699 = vadd.f32 0.0, %v1698
        %v1700 = vpop.f32.mrb[0].mxu0
        %v1701 = vadd.f32 0.0, %v1700
        %1702 = vmatprep.mubr.f32.mxu0 %v1050
        %1703 = vmatmul.mubr.f32.gmra.mrb[0].mxu0 %v1049
        %v1704 = vpop.f32.mrb[0].mxu0
        %v1705 = vadd.f32 0.0, %v1704
        %v1706 = vpop.f32.mrb[0].mxu0
        %v1707 = vadd.f32 0.0, %v1706
        %1708 = vmatprep.mubr.f32.mxu0 %v1052
        %1709 = vmatmul.mubr.f32.gmra.mrb[0].mxu0 %v1051
        %v1710 = vpop.f32.mrb[0].mxu0
        %v1711 = vadd.f32 0.0, %v1710
        %v1712 = vpop.f32.mrb[0].mxu0
        %v1713 = vadd.f32 0.0, %v1712
        %1714 = vmatprep.mubr.f32.mxu0 %v1054
        %1715 = vmatmul.mubr.f32.gmra.mrb[0].mxu0 %v1053
        %v1716 = vpop.f32.mrb[0].mxu0
        %v1717 = vadd.f32 0.0, %v1716
        %v1718 = vpop.f32.mrb[0].mxu0
        %v1719 = vadd.f32 0.0, %v1718
        %1720 = vmatprep.mubr.f32.mxu0 %v1056
        %1721 = vmatmul.mubr.f32.gmra.mrb[0].mxu0 %v1055
        %v1722 = vpop.f32.mrb[0].mxu0
        %v1723 = vadd.f32 0.0, %v1722
        %v1724 = vpop.f32.mrb[0].mxu0
        %v1725 = vadd.f32 0.0, %v1724
        %1726 = vmatprep.mubr.f32.mxu0 %v1058
        %1727 = vmatmul.mubr.f32.gmra.mrb[0].mxu0 %v1057
        %v1728 = vpop.f32.mrb[0].mxu0
        %v1729 = vadd.f32 0.0, %v1728
        %v1730 = vpop.f32.mrb[0].mxu0
        %v1731 = vadd.f32 0.0, %v1730
        %1732 = vmatprep.mubr.f32.mxu0 %v1060
        %1733 = vmatmul.mubr.f32.gmra.mrb[0].mxu0 %v1059
        %v1734 = vpop.f32.mrb[0].mxu0
        %v1735 = vadd.f32 0.0, %v1734
        %v1736 = vpop.f32.mrb[0].mxu0
        %v1737 = vadd.f32 0.0, %v1736
        %1738 = vmatprep.mubr.f32.mxu0 %v1062
        %1739 = vmatmul.mubr.f32.gmra.mrb[0].mxu0 %v1061
        %v1740 = vpop.f32.mrb[0].mxu0
        %v1741 = vadd.f32 0.0, %v1740
        %v1742 = vpop.f32.mrb[0].mxu0
        %v1743 = vadd.f32 0.0, %v1742
        %1744 = vmatprep.mubr.f32.mxu0 %v1064
        %1745 = vmatmul.mubr.f32.gmra.mrb[0].mxu0 %v1063
        %v1746 = vpop.f32.mrb[0].mxu0
        %v1747 = vadd.f32 0.0, %v1746
        %v1748 = vpop.f32.mrb[0].mxu0
        %v1749 = vadd.f32 0.0, %v1748
        %1750 = vmatprep.mubr.f32.mxu0 %v1066
        %1751 = vmatmul.mubr.f32.gmra.mrb[0].mxu0 %v1065
        %v1752 = vpop.f32.mrb[0].mxu0
        %v1753 = vadd.f32 0.0, %v1752
        %v1754 = vpop.f32.mrb[0].mxu0
        %v1755 = vadd.f32 0.0, %v1754
        %1756 = vmatprep.mubr.f32.mxu0 %v1068
        %1757 = vmatmul.mubr.f32.gmra.mrb[0].mxu0 %v1067
        %v1758 = vpop.f32.mrb[0].mxu0
        %v1759 = vadd.f32 0.0, %v1758
        %v1760 = vpop.f32.mrb[0].mxu0
        %v1761 = vadd.f32 0.0, %v1760
        %1762 = vmatprep.mubr.f32.mxu0 %v1070
        %1763 = vmatmul.mubr.f32.gmra.mrb[0].mxu0 %v1069
        %v1764 = vpop.f32.mrb[0].mxu0
        %v1765 = vadd.f32 0.0, %v1764
        %v1766 = vpop.f32.mrb[0].mxu0
        %v1767 = vadd.f32 0.0, %v1766
        %1768 = vmatprep.mubr.f32.mxu0 %v1072
        %1769 = vmatmul.mubr.f32.gmra.mrb[0].mxu0 %v1071
        %v1770 = vpop.f32.mrb[0].mxu0
        %v1771 = vadd.f32 0.0, %v1770
        %v1772 = vpop.f32.mrb[0].mxu0
        %v1773 = vadd.f32 0.0, %v1772
        %1774 = vmatprep.mubr.f32.mxu0 %v1074
        %1775 = vmatmul.mubr.f32.gmra.mrb[0].mxu0 %v1073
        %v1776 = vpop.f32.mrb[0].mxu0
        %v1777 = vadd.f32 0.0, %v1776
        %v1778 = vpop.f32.mrb[0].mxu0
        %v1779 = vadd.f32 0.0, %v1778
        %1780 = vmatprep.mubr.f32.mxu0 %v1076
        %1781 = vmatmul.mubr.f32.gmra.mrb[0].mxu0 %v1075
        %v1782 = vpop.f32.mrb[0].mxu0
        %v1783 = vadd.f32 0.0, %v1782
        %v1784 = vpop.f32.mrb[0].mxu0
        %v1785 = vadd.f32 0.0, %v1784
        %1786 = vmatprep.mubr.f32.mxu0 %v1078
        %1787 = vmatmul.mubr.f32.gmra.mrb[0].mxu0 %v1077
        %v1788 = vpop.f32.mrb[0].mxu0
        %v1789 = vadd.f32 0.0, %v1788
        %v1790 = vpop.f32.mrb[0].mxu0
        %v1791 = vadd.f32 0.0, %v1790
        %1792 = vmatprep.mubr.f32.mxu0 %v1080
        %1793 = vmatmul.mubr.f32.gmra.mrb[0].mxu0 %v1079
        %v1794 = vpop.f32.mrb[0].mxu0
        %v1795 = vadd.f32 0.0, %v1794
        %v1796 = vpop.f32.mrb[0].mxu0
        %v1797 = vadd.f32 0.0, %v1796
        %1798 = vmatprep.mubr.f32.mxu0 %v1082
        %1799 = vmatmul.mubr.f32.gmra.mrb[0].mxu0 %v1081
        %v1800 = vpop.f32.mrb[0].mxu0
        %v1801 = vadd.f32 0.0, %v1800
        %v1802 = vpop.f32.mrb[0].mxu0
        %v1803 = vadd.f32 0.0, %v1802
        %1804 = vmatprep.mubr.f32.mxu0 %v1084
        %1805 = vmatmul.mubr.f32.gmra.mrb[0].mxu0 %v1083
        %v1806 = vpop.f32.mrb[0].mxu0
        %v1807 = vadd.f32 0.0, %v1806
        %v1808 = vpop.f32.mrb[0].mxu0
        %v1809 = vadd.f32 0.0, %v1808
        %1810 = vmatprep.mubr.f32.mxu0 %v1086
        %1811 = vmatmul.mubr.f32.gmra.mrb[0].mxu0 %v1085
        %v1812 = vpop.f32.mrb[0].mxu0
        %v1813 = vadd.f32 0.0, %v1812
        %v1814 = vpop.f32.mrb[0].mxu0
        %v1815 = vadd.f32 0.0, %v1814
        %1816 = vmatprep.mubr.f32.mxu0 %v1088
        %1817 = vmatmul.mubr.f32.gmra.mrb[0].mxu0 %v1087
        %v1818 = vpop.f32.mrb[0].mxu0
        %v1819 = vadd.f32 0.0, %v1818
        %v1820 = vpop.f32.mrb[0].mxu0
        %v1821 = vadd.f32 0.0, %v1820
        %1822 = vmatprep.mubr.f32.mxu0 %v1090
        %1823 = vmatmul.mubr.f32.gmra.mrb[0].mxu0 %v1089
        %v1824 = vpop.f32.mrb[0].mxu0
        %v1825 = vadd.f32 0.0, %v1824
        %v1826 = vpop.f32.mrb[0].mxu0
        %v1827 = vadd.f32 0.0, %v1826
        %1828 = vmatprep.mubr.f32.mxu0 %v1092
        %1829 = vmatmul.mubr.f32.gmra.mrb[0].mxu0 %v1091
        %v1830 = vpop.f32.mrb[0].mxu0
        %v1831 = vadd.f32 0.0, %v1830
        %v1832 = vpop.f32.mrb[0].mxu0
        %v1833 = vadd.f32 0.0, %v1832
        %1834 = vmatprep.mubr.f32.mxu0 %v1094
        %1835 = vmatmul.mubr.f32.gmra.mrb[0].mxu0 %v1093
        %v1836 = vpop.f32.mrb[0].mxu0
        %v1837 = vadd.f32 0.0, %v1836
        %v1838 = vpop.f32.mrb[0].mxu0
        %v1839 = vadd.f32 0.0, %v1838
        %1840 = vmatprep.mubr.f32.mxu0 %v1096
        %1841 = vmatmul.mubr.f32.gmra.mrb[0].mxu0 %v1095
        %v1842 = vpop.f32.mrb[0].mxu0
        %v1843 = vadd.f32 0.0, %v1842
        %v1844 = vpop.f32.mrb[0].mxu0
        %v1845 = vadd.f32 0.0, %v1844
        %1846 = vmatprep.mubr.f32.mxu0 %v1098
        %1847 = vmatmul.mubr.f32.gmra.mrb[0].mxu0 %v1097
        %v1848 = vpop.f32.mrb[0].mxu0
        %v1849 = vadd.f32 0.0, %v1848
        %v1850 = vpop.f32.mrb[0].mxu0
        %v1851 = vadd.f32 0.0, %v1850
        %1852 = vmatprep.mubr.f32.mxu0 %v1100
        %1853 = vmatmul.mubr.f32.gmra.mrb[0].mxu0 %v1099
        %v1854 = vpop.f32.mrb[0].mxu0
        %v1855 = vadd.f32 0.0, %v1854
        %v1856 = vpop.f32.mrb[0].mxu0
        %v1857 = vadd.f32 0.0, %v1856
        %1858 = vmatprep.mubr.f32.mxu0 %v1102
        %1859 = vmatmul.mubr.f32.gmra.mrb[0].mxu0 %v1101
        %v1860 = vpop.f32.mrb[0].mxu0
        %v1861 = vadd.f32 0.0, %v1860
        %v1862 = vpop.f32.mrb[0].mxu0
        %v1863 = vadd.f32 0.0, %v1862
        %1864 = vmatprep.mubr.f32.mxu0 %v1104
        %1865 = vmatmul.mubr.f32.gmra.mrb[0].mxu0 %v1103
        %v1866 = vpop.f32.mrb[0].mxu0
        %v1867 = vadd.f32 0.0, %v1866
        %v1868 = vpop.f32.mrb[0].mxu0
        %v1869 = vadd.f32 0.0, %v1868
        %1870 = vmatprep.mubr.f32.mxu0 %v1106
        %1871 = vmatmul.mubr.f32.gmra.mrb[0].mxu0 %v1105
        %v1872 = vpop.f32.mrb[0].mxu0
        %v1873 = vadd.f32 0.0, %v1872
        %v1874 = vpop.f32.mrb[0].mxu0
        %v1875 = vadd.f32 0.0, %v1874
        %1876 = vdwg.mxu0
        %1877 = vmatprep.subr.mxu0 %v1112
        %1878 = vmatpush1.msra.mxu0 %v1111
        %1879 = vmatprep.subr.mxu0 %v1120
        %1880 = vmatpush1.msra.mxu0 %v1119
        %1881 = vmatprep.subr.mxu0 %v1128
        %1882 = vmatpush1.msra.mxu0 %v1127
        %1883 = vmatprep.subr.mxu0 %v1136
        %1884 = vmatpush1.msra.mxu0 %v1135
        %1885 = vmatprep.subr.mxu0 %v1144
        %1886 = vmatpush1.msra.mxu0 %v1143
        %1887 = vmatprep.subr.mxu0 %v1152
        %1888 = vmatpush1.msra.mxu0 %v1151
        %1889 = vmatprep.subr.mxu0 %v1160
        %1890 = vmatpush1.msra.mxu0 %v1159
        %1891 = vmatprep.subr.mxu0 %v1168
        %1892 = vmatpush1.msra.mxu0 %v1167
        %1893 = vmatprep.subr.mxu0 %v1176
        %1894 = vmatpush1.msra.mxu0 %v1175
        %1895 = vmatprep.subr.mxu0 %v1184
        %1896 = vmatpush1.msra.mxu0 %v1183
        %1897 = vmatprep.subr.mxu0 %v1192
        %1898 = vmatpush1.msra.mxu0 %v1191
        %1899 = vmatprep.subr.mxu0 %v1200
        %1900 = vmatpush1.msra.mxu0 %v1199
        %1901 = vmatprep.subr.mxu0 %v1208
        %1902 = vmatpush1.msra.mxu0 %v1207
        %1903 = vmatprep.subr.mxu0 %v1216
        %1904 = vmatpush1.msra.mxu0 %v1215
        %1905 = vmatprep.subr.mxu0 %v1224
        %1906 = vmatpush1.msra.mxu0 %v1223
        %1907 = vmatprep.subr.mxu0 %v1232
        %1908 = vmatpush1.msra.mxu0 %v1231
        %1909 = vmatprep.subr.mxu0 %v1240
        %1910 = vmatpush1.msra.mxu0 %v1239
        %1911 = vmatprep.subr.mxu0 %v1248
        %1912 = vmatpush1.msra.mxu0 %v1247
        %1913 = vmatprep.subr.mxu0 %v1256
        %1914 = vmatpush1.msra.mxu0 %v1255
        %1915 = vmatprep.subr.mxu0 %v1264
        %1916 = vmatpush1.msra.mxu0 %v1263
        %1917 = vmatprep.subr.mxu0 %v1272
        %1918 = vmatpush1.msra.mxu0 %v1271
        %1919 = vmatprep.subr.mxu0 %v1280
        %1920 = vmatpush1.msra.mxu0 %v1279
        %1921 = vmatprep.subr.mxu0 %v1288
        %1922 = vmatpush1.msra.mxu0 %v1287
        %1923 = vmatprep.subr.mxu0 %v1296
        %1924 = vmatpush1.msra.mxu0 %v1295
        %1925 = vmatprep.subr.mxu0 %v1304
        %1926 = vmatpush1.msra.mxu0 %v1303
        %1927 = vmatprep.subr.mxu0 %v1312
        %1928 = vmatpush1.msra.mxu0 %v1311
        %1929 = vmatprep.subr.mxu0 %v1320
        %1930 = vmatpush1.msra.mxu0 %v1319
        %1931 = vmatprep.subr.mxu0 %v1328
        %1932 = vmatpush1.msra.mxu0 %v1327
        %1933 = vmatprep.subr.mxu0 %v1336
        %1934 = vmatpush1.msra.mxu0 %v1335
        %1935 = vmatprep.subr.mxu0 %v1344
        %1936 = vmatpush1.msra.mxu0 %v1343
        %1937 = vmatprep.subr.mxu0 %v1352
        %1938 = vmatpush1.msra.mxu0 %v1351
        %1939 = vmatprep.subr.mxu0 %v1360
        %1940 = vmatpush1.msra.mxu0 %v1359
        %1941 = vmatprep.mubr.f32.mxu0 %v1044
        %1942 = vmatmul.mubr.f32.gmra.mrb[0].mxu0 %v1043
        %v1943 = vpop.f32.mrb[0].mxu0
        %v1944 = vadd.f32 0.0, %v1943
        %v1945 = vpop.f32.mrb[0].mxu0
        %v1946 = vadd.f32 0.0, %v1945
        %1947 = vmatprep.mubr.f32.mxu0 %v1046
        %1948 = vmatmul.mubr.f32.gmra.mrb[0].mxu0 %v1045
        %v1949 = vpop.f32.mrb[0].mxu0
        %v1950 = vadd.f32 0.0, %v1949
        %v1951 = vpop.f32.mrb[0].mxu0
        %v1952 = vadd.f32 0.0, %v1951
        %1953 = vmatprep.mubr.f32.mxu0 %v1048
        %1954 = vmatmul.mubr.f32.gmra.mrb[0].mxu0 %v1047
        %v1955 = vpop.f32.mrb[0].mxu0
        %v1956 = vadd.f32 0.0, %v1955
        %v1957 = vpop.f32.mrb[0].mxu0
        %v1958 = vadd.f32 0.0, %v1957
        %1959 = vmatprep.mubr.f32.mxu0 %v1050
        %1960 = vmatmul.mubr.f32.gmra.mrb[0].mxu0 %v1049
        %v1961 = vpop.f32.mrb[0].mxu0
        %v1962 = vadd.f32 0.0, %v1961
        %v1963 = vpop.f32.mrb[0].mxu0
        %v1964 = vadd.f32 0.0, %v1963
        %1965 = vmatprep.mubr.f32.mxu0 %v1052
        %1966 = vmatmul.mubr.f32.gmra.mrb[0].mxu0 %v1051
        %v1967 = vpop.f32.mrb[0].mxu0
        %v1968 = vadd.f32 0.0, %v1967
        %v1969 = vpop.f32.mrb[0].mxu0
        %v1970 = vadd.f32 0.0, %v1969
        %1971 = vmatprep.mubr.f32.mxu0 %v1054
        %1972 = vmatmul.mubr.f32.gmra.mrb[0].mxu0 %v1053
        %v1973 = vpop.f32.mrb[0].mxu0
        %v1974 = vadd.f32 0.0, %v1973
        %v1975 = vpop.f32.mrb[0].mxu0
        %v1976 = vadd.f32 0.0, %v1975
        %1977 = vmatprep.mubr.f32.mxu0 %v1056
        %1978 = vmatmul.mubr.f32.gmra.mrb[0].mxu0 %v1055
        %v1979 = vpop.f32.mrb[0].mxu0
        %v1980 = vadd.f32 0.0, %v1979
        %v1981 = vpop.f32.mrb[0].mxu0
        %v1982 = vadd.f32 0.0, %v1981
        %1983 = vmatprep.mubr.f32.mxu0 %v1058
        %1984 = vmatmul.mubr.f32.gmra.mrb[0].mxu0 %v1057
        %v1985 = vpop.f32.mrb[0].mxu0
        %v1986 = vadd.f32 0.0, %v1985
        %v1987 = vpop.f32.mrb[0].mxu0
        %v1988 = vadd.f32 0.0, %v1987
        %1989 = vmatprep.mubr.f32.mxu0 %v1060
        %1990 = vmatmul.mubr.f32.gmra.mrb[0].mxu0 %v1059
        %v1991 = vpop.f32.mrb[0].mxu0
        %v1992 = vadd.f32 0.0, %v1991
        %v1993 = vpop.f32.mrb[0].mxu0
        %v1994 = vadd.f32 0.0, %v1993
        %1995 = vmatprep.mubr.f32.mxu0 %v1062
        %1996 = vmatmul.mubr.f32.gmra.mrb[0].mxu0 %v1061
        %v1997 = vpop.f32.mrb[0].mxu0
        %v1998 = vadd.f32 0.0, %v1997
        %v1999 = vpop.f32.mrb[0].mxu0
        %v2000 = vadd.f32 0.0, %v1999
        %2001 = vmatprep.mubr.f32.mxu0 %v1064
        %2002 = vmatmul.mubr.f32.gmra.mrb[0].mxu0 %v1063
        %v2003 = vpop.f32.mrb[0].mxu0
        %v2004 = vadd.f32 0.0, %v2003
        %v2005 = vpop.f32.mrb[0].mxu0
        %v2006 = vadd.f32 0.0, %v2005
        %2007 = vmatprep.mubr.f32.mxu0 %v1066
        %2008 = vmatmul.mubr.f32.gmra.mrb[0].mxu0 %v1065
        %v2009 = vpop.f32.mrb[0].mxu0
        %v2010 = vadd.f32 0.0, %v2009
        %v2011 = vpop.f32.mrb[0].mxu0
        %v2012 = vadd.f32 0.0, %v2011
        %2013 = vmatprep.mubr.f32.mxu0 %v1068
        %2014 = vmatmul.mubr.f32.gmra.mrb[0].mxu0 %v1067
        %v2015 = vpop.f32.mrb[0].mxu0
        %v2016 = vadd.f32 0.0, %v2015
        %v2017 = vpop.f32.mrb[0].mxu0
        %v2018 = vadd.f32 0.0, %v2017
        %2019 = vmatprep.mubr.f32.mxu0 %v1070
        %2020 = vmatmul.mubr.f32.gmra.mrb[0].mxu0 %v1069
        %v2021 = vpop.f32.mrb[0].mxu0
        %v2022 = vadd.f32 0.0, %v2021
        %v2023 = vpop.f32.mrb[0].mxu0
        %v2024 = vadd.f32 0.0, %v2023
        %2025 = vmatprep.mubr.f32.mxu0 %v1072
        %2026 = vmatmul.mubr.f32.gmra.mrb[0].mxu0 %v1071
        %v2027 = vpop.f32.mrb[0].mxu0
        %v2028 = vadd.f32 0.0, %v2027
        %v2029 = vpop.f32.mrb[0].mxu0
        %v2030 = vadd.f32 0.0, %v2029
        %2031 = vmatprep.mubr.f32.mxu0 %v1074
        %2032 = vmatmul.mubr.f32.gmra.mrb[0].mxu0 %v1073
        %v2033 = vpop.f32.mrb[0].mxu0
        %v2034 = vadd.f32 0.0, %v2033
        %v2035 = vpop.f32.mrb[0].mxu0
        %v2036 = vadd.f32 0.0, %v2035
        %2037 = vmatprep.mubr.f32.mxu0 %v1076
        %2038 = vmatmul.mubr.f32.gmra.mrb[0].mxu0 %v1075
        %v2039 = vpop.f32.mrb[0].mxu0
        %v2040 = vadd.f32 0.0, %v2039
        %v2041 = vpop.f32.mrb[0].mxu0
        %v2042 = vadd.f32 0.0, %v2041
        %2043 = vmatprep.mubr.f32.mxu0 %v1078
        %2044 = vmatmul.mubr.f32.gmra.mrb[0].mxu0 %v1077
        %v2045 = vpop.f32.mrb[0].mxu0
        %v2046 = vadd.f32 0.0, %v2045
        %v2047 = vpop.f32.mrb[0].mxu0
        %v2048 = vadd.f32 0.0, %v2047
        %2049 = vmatprep.mubr.f32.mxu0 %v1080
        %2050 = vmatmul.mubr.f32.gmra.mrb[0].mxu0 %v1079
        %v2051 = vpop.f32.mrb[0].mxu0
        %v2052 = vadd.f32 0.0, %v2051
        %v2053 = vpop.f32.mrb[0].mxu0
        %v2054 = vadd.f32 0.0, %v2053
        %2055 = vmatprep.mubr.f32.mxu0 %v1082
        %2056 = vmatmul.mubr.f32.gmra.mrb[0].mxu0 %v1081
        %v2057 = vpop.f32.mrb[0].mxu0
        %v2058 = vadd.f32 0.0, %v2057
        %v2059 = vpop.f32.mrb[0].mxu0
        %v2060 = vadd.f32 0.0, %v2059
        %2061 = vmatprep.mubr.f32.mxu0 %v1084
        %2062 = vmatmul.mubr.f32.gmra.mrb[0].mxu0 %v1083
        %v2063 = vpop.f32.mrb[0].mxu0
        %v2064 = vadd.f32 0.0, %v2063
        %v2065 = vpop.f32.mrb[0].mxu0
        %v2066 = vadd.f32 0.0, %v2065
        %2067 = vmatprep.mubr.f32.mxu0 %v1086
        %2068 = vmatmul.mubr.f32.gmra.mrb[0].mxu0 %v1085
        %v2069 = vpop.f32.mrb[0].mxu0
        %v2070 = vadd.f32 0.0, %v2069
        %v2071 = vpop.f32.mrb[0].mxu0
        %v2072 = vadd.f32 0.0, %v2071
        %2073 = vmatprep.mubr.f32.mxu0 %v1088
        %2074 = vmatmul.mubr.f32.gmra.mrb[0].mxu0 %v1087
        %v2075 = vpop.f32.mrb[0].mxu0
        %v2076 = vadd.f32 0.0, %v2075
        %v2077 = vpop.f32.mrb[0].mxu0
        %v2078 = vadd.f32 0.0, %v2077
        %2079 = vmatprep.mubr.f32.mxu0 %v1090
        %2080 = vmatmul.mubr.f32.gmra.mrb[0].mxu0 %v1089
        %v2081 = vpop.f32.mrb[0].mxu0
        %v2082 = vadd.f32 0.0, %v2081
        %v2083 = vpop.f32.mrb[0].mxu0
        %v2084 = vadd.f32 0.0, %v2083
        %2085 = vmatprep.mubr.f32.mxu0 %v1092
        %2086 = vmatmul.mubr.f32.gmra.mrb[0].mxu0 %v1091
        %v2087 = vpop.f32.mrb[0].mxu0
        %v2088 = vadd.f32 0.0, %v2087
        %v2089 = vpop.f32.mrb[0].mxu0
        %v2090 = vadd.f32 0.0, %v2089
        %2091 = vmatprep.mubr.f32.mxu0 %v1094
        %2092 = vmatmul.mubr.f32.gmra.mrb[0].mxu0 %v1093
        %v2093 = vpop.f32.mrb[0].mxu0
        %v2094 = vadd.f32 0.0, %v2093
        %v2095 = vpop.f32.mrb[0].mxu0
        %v2096 = vadd.f32 0.0, %v2095
        %2097 = vmatprep.mubr.f32.mxu0 %v1096
        %2098 = vmatmul.mubr.f32.gmra.mrb[0].mxu0 %v1095
        %v2099 = vpop.f32.mrb[0].mxu0
        %v2100 = vadd.f32 0.0, %v2099
        %v2101 = vpop.f32.mrb[0].mxu0
        %v2102 = vadd.f32 0.0, %v2101
        %2103 = vmatprep.mubr.f32.mxu0 %v1098
        %2104 = vmatmul.mubr.f32.gmra.mrb[0].mxu0 %v1097
        %v2105 = vpop.f32.mrb[0].mxu0
        %v2106 = vadd.f32 0.0, %v2105
        %v2107 = vpop.f32.mrb[0].mxu0
        %v2108 = vadd.f32 0.0, %v2107
        %2109 = vmatprep.mubr.f32.mxu0 %v1100
        %2110 = vmatmul.mubr.f32.gmra.mrb[0].mxu0 %v1099
        %v2111 = vpop.f32.mrb[0].mxu0
        %v2112 = vadd.f32 0.0, %v2111
        %v2113 = vpop.f32.mrb[0].mxu0
        %v2114 = vadd.f32 0.0, %v2113
        %2115 = vmatprep.mubr.f32.mxu0 %v1102
        %2116 = vmatmul.mubr.f32.gmra.mrb[0].mxu0 %v1101
        %v2117 = vpop.f32.mrb[0].mxu0
        %v2118 = vadd.f32 0.0, %v2117
        %v2119 = vpop.f32.mrb[0].mxu0
        %v2120 = vadd.f32 0.0, %v2119
        %2121 = vmatprep.mubr.f32.mxu0 %v1104
        %2122 = vmatmul.mubr.f32.gmra.mrb[0].mxu0 %v1103
        %v2123 = vpop.f32.mrb[0].mxu0
        %v2124 = vadd.f32 0.0, %v2123
        %v2125 = vpop.f32.mrb[0].mxu0
        %v2126 = vadd.f32 0.0, %v2125
        %2127 = vmatprep.mubr.f32.mxu0 %v1106
        %2128 = vmatmul.mubr.f32.gmra.mrb[0].mxu0 %v1105
        %v2129 = vpop.f32.mrb[0].mxu0
        %v2130 = vadd.f32 0.0, %v2129
        %v2131 = vpop.f32.mrb[0].mxu0
        %v2132 = vadd.f32 0.0, %v2131
        %2133 = vdwg.mxu0
        %2134 = vmatprep.subr.mxu0 %v1114
        %2135 = vmatpush1.msra.mxu0 %v1113
        %2136 = vmatprep.subr.mxu0 %v1122
        %2137 = vmatpush1.msra.mxu0 %v1121
        %2138 = vmatprep.subr.mxu0 %v1130
        %2139 = vmatpush1.msra.mxu0 %v1129
        %2140 = vmatprep.subr.mxu0 %v1138
        %2141 = vmatpush1.msra.mxu0 %v1137
        %2142 = vmatprep.subr.mxu0 %v1146
        %2143 = vmatpush1.msra.mxu0 %v1145
        %2144 = vmatprep.subr.mxu0 %v1154
        %2145 = vmatpush1.msra.mxu0 %v1153
        %2146 = vmatprep.subr.mxu0 %v1162
        %2147 = vmatpush1.msra.mxu0 %v1161
        %2148 = vmatprep.subr.mxu0 %v1170
        %2149 = vmatpush1.msra.mxu0 %v1169
        %2150 = vmatprep.subr.mxu0 %v1178
        %2151 = vmatpush1.msra.mxu0 %v1177
        %2152 = vmatprep.subr.mxu0 %v1186
        %2153 = vmatpush1.msra.mxu0 %v1185
        %2154 = vmatprep.subr.mxu0 %v1194
        %2155 = vmatpush1.msra.mxu0 %v1193
        %2156 = vmatprep.subr.mxu0 %v1202
        %2157 = vmatpush1.msra.mxu0 %v1201
        %2158 = vmatprep.subr.mxu0 %v1210
        %2159 = vmatpush1.msra.mxu0 %v1209
        %2160 = vmatprep.subr.mxu0 %v1218
        %2161 = vmatpush1.msra.mxu0 %v1217
        %2162 = vmatprep.subr.mxu0 %v1226
        %2163 = vmatpush1.msra.mxu0 %v1225
        %2164 = vmatprep.subr.mxu0 %v1234
        %2165 = vmatpush1.msra.mxu0 %v1233
        %2166 = vmatprep.subr.mxu0 %v1242
        %2167 = vmatpush1.msra.mxu0 %v1241
        %2168 = vmatprep.subr.mxu0 %v1250
        %2169 = vmatpush1.msra.mxu0 %v1249
        %2170 = vmatprep.subr.mxu0 %v1258
        %2171 = vmatpush1.msra.mxu0 %v1257
        %2172 = vmatprep.subr.mxu0 %v1266
        %2173 = vmatpush1.msra.mxu0 %v1265
        %2174 = vmatprep.subr.mxu0 %v1274
        %2175 = vmatpush1.msra.mxu0 %v1273
        %2176 = vmatprep.subr.mxu0 %v1282
        %2177 = vmatpush1.msra.mxu0 %v1281
        %2178 = vmatprep.subr.mxu0 %v1290
        %2179 = vmatpush1.msra.mxu0 %v1289
        %2180 = vmatprep.subr.mxu0 %v1298
        %2181 = vmatpush1.msra.mxu0 %v1297
        %2182 = vmatprep.subr.mxu0 %v1306
        %2183 = vmatpush1.msra.mxu0 %v1305
        %2184 = vmatprep.subr.mxu0 %v1314
        %2185 = vmatpush1.msra.mxu0 %v1313
        %2186 = vmatprep.subr.mxu0 %v1322
        %2187 = vmatpush1.msra.mxu0 %v1321
        %2188 = vmatprep.subr.mxu0 %v1330
        %2189 = vmatpush1.msra.mxu0 %v1329
        %2190 = vmatprep.subr.mxu0 %v1338
        %2191 = vmatpush1.msra.mxu0 %v1337
        %2192 = vmatprep.subr.mxu0 %v1346
        %2193 = vmatpush1.msra.mxu0 %v1345
        %2194 = vmatprep.subr.mxu0 %v1354
        %2195 = vmatpush1.msra.mxu0 %v1353
        %2196 = vmatprep.subr.mxu0 %v1362
        %2197 = vmatpush1.msra.mxu0 %v1361
        %2198 = vmatprep.mubr.f32.mxu0 %v1044
        %2199 = vmatmul.mubr.f32.gmra.mrb[0].mxu0 %v1043
        %v2200 = vpop.f32.mrb[0].mxu0
        %v2201 = vadd.f32 0.0, %v2200
        %v2202 = vpop.f32.mrb[0].mxu0
        %v2203 = vadd.f32 0.0, %v2202
        %2204 = vmatprep.mubr.f32.mxu0 %v1046
        %2205 = vmatmul.mubr.f32.gmra.mrb[0].mxu0 %v1045
        %v2206 = vpop.f32.mrb[0].mxu0
        %v2207 = vadd.f32 0.0, %v2206
        %v2208 = vpop.f32.mrb[0].mxu0
        %v2209 = vadd.f32 0.0, %v2208
        %2210 = vmatprep.mubr.f32.mxu0 %v1048
        %2211 = vmatmul.mubr.f32.gmra.mrb[0].mxu0 %v1047
        %v2212 = vpop.f32.mrb[0].mxu0
        %v2213 = vadd.f32 0.0, %v2212
        %v2214 = vpop.f32.mrb[0].mxu0
        %v2215 = vadd.f32 0.0, %v2214
        %2216 = vmatprep.mubr.f32.mxu0 %v1050
        %2217 = vmatmul.mubr.f32.gmra.mrb[0].mxu0 %v1049
        %v2218 = vpop.f32.mrb[0].mxu0
        %v2219 = vadd.f32 0.0, %v2218
        %v2220 = vpop.f32.mrb[0].mxu0
        %v2221 = vadd.f32 0.0, %v2220
        %2222 = vmatprep.mubr.f32.mxu0 %v1052
        %2223 = vmatmul.mubr.f32.gmra.mrb[0].mxu0 %v1051
        %v2224 = vpop.f32.mrb[0].mxu0
        %v2225 = vadd.f32 0.0, %v2224
        %v2226 = vpop.f32.mrb[0].mxu0
        %v2227 = vadd.f32 0.0, %v2226
        %2228 = vmatprep.mubr.f32.mxu0 %v1054
        %2229 = vmatmul.mubr.f32.gmra.mrb[0].mxu0 %v1053
        %v2230 = vpop.f32.mrb[0].mxu0
        %v2231 = vadd.f32 0.0, %v2230
        %v2232 = vpop.f32.mrb[0].mxu0
        %v2233 = vadd.f32 0.0, %v2232
        %2234 = vmatprep.mubr.f32.mxu0 %v1056
        %2235 = vmatmul.mubr.f32.gmra.mrb[0].mxu0 %v1055
        %v2236 = vpop.f32.mrb[0].mxu0
        %v2237 = vadd.f32 0.0, %v2236
        %v2238 = vpop.f32.mrb[0].mxu0
        %v2239 = vadd.f32 0.0, %v2238
        %2240 = vmatprep.mubr.f32.mxu0 %v1058
        %2241 = vmatmul.mubr.f32.gmra.mrb[0].mxu0 %v1057
        %v2242 = vpop.f32.mrb[0].mxu0
        %v2243 = vadd.f32 0.0, %v2242
        %v2244 = vpop.f32.mrb[0].mxu0
        %v2245 = vadd.f32 0.0, %v2244
        %2246 = vmatprep.mubr.f32.mxu0 %v1060
        %2247 = vmatmul.mubr.f32.gmra.mrb[0].mxu0 %v1059
        %v2248 = vpop.f32.mrb[0].mxu0
        %v2249 = vadd.f32 0.0, %v2248
        %v2250 = vpop.f32.mrb[0].mxu0
        %v2251 = vadd.f32 0.0, %v2250
        %2252 = vmatprep.mubr.f32.mxu0 %v1062
        %2253 = vmatmul.mubr.f32.gmra.mrb[0].mxu0 %v1061
        %v2254 = vpop.f32.mrb[0].mxu0
        %v2255 = vadd.f32 0.0, %v2254
        %v2256 = vpop.f32.mrb[0].mxu0
        %v2257 = vadd.f32 0.0, %v2256
        %2258 = vmatprep.mubr.f32.mxu0 %v1064
        %2259 = vmatmul.mubr.f32.gmra.mrb[0].mxu0 %v1063
        %v2260 = vpop.f32.mrb[0].mxu0
        %v2261 = vadd.f32 0.0, %v2260
        %v2262 = vpop.f32.mrb[0].mxu0
        %v2263 = vadd.f32 0.0, %v2262
        %2264 = vmatprep.mubr.f32.mxu0 %v1066
        %2265 = vmatmul.mubr.f32.gmra.mrb[0].mxu0 %v1065
        %v2266 = vpop.f32.mrb[0].mxu0
        %v2267 = vadd.f32 0.0, %v2266
        %v2268 = vpop.f32.mrb[0].mxu0
        %v2269 = vadd.f32 0.0, %v2268
        %2270 = vmatprep.mubr.f32.mxu0 %v1068
        %2271 = vmatmul.mubr.f32.gmra.mrb[0].mxu0 %v1067
        %v2272 = vpop.f32.mrb[0].mxu0
        %v2273 = vadd.f32 0.0, %v2272
        %v2274 = vpop.f32.mrb[0].mxu0
        %v2275 = vadd.f32 0.0, %v2274
        %2276 = vmatprep.mubr.f32.mxu0 %v1070
        %2277 = vmatmul.mubr.f32.gmra.mrb[0].mxu0 %v1069
        %v2278 = vpop.f32.mrb[0].mxu0
        %v2279 = vadd.f32 0.0, %v2278
        %v2280 = vpop.f32.mrb[0].mxu0
        %v2281 = vadd.f32 0.0, %v2280
        %2282 = vmatprep.mubr.f32.mxu0 %v1072
        %2283 = vmatmul.mubr.f32.gmra.mrb[0].mxu0 %v1071
        %v2284 = vpop.f32.mrb[0].mxu0
        %v2285 = vadd.f32 0.0, %v2284
        %v2286 = vpop.f32.mrb[0].mxu0
        %v2287 = vadd.f32 0.0, %v2286
        %2288 = vmatprep.mubr.f32.mxu0 %v1074
        %2289 = vmatmul.mubr.f32.gmra.mrb[0].mxu0 %v1073
        %v2290 = vpop.f32.mrb[0].mxu0
        %v2291 = vadd.f32 0.0, %v2290
        %v2292 = vpop.f32.mrb[0].mxu0
        %v2293 = vadd.f32 0.0, %v2292
        %2294 = vmatprep.mubr.f32.mxu0 %v1076
        %2295 = vmatmul.mubr.f32.gmra.mrb[0].mxu0 %v1075
        %v2296 = vpop.f32.mrb[0].mxu0
        %v2297 = vadd.f32 0.0, %v2296
        %v2298 = vpop.f32.mrb[0].mxu0
        %v2299 = vadd.f32 0.0, %v2298
        %2300 = vmatprep.mubr.f32.mxu0 %v1078
        %2301 = vmatmul.mubr.f32.gmra.mrb[0].mxu0 %v1077
        %v2302 = vpop.f32.mrb[0].mxu0
        %v2303 = vadd.f32 0.0, %v2302
        %v2304 = vpop.f32.mrb[0].mxu0
        %v2305 = vadd.f32 0.0, %v2304
        %2306 = vmatprep.mubr.f32.mxu0 %v1080
        %2307 = vmatmul.mubr.f32.gmra.mrb[0].mxu0 %v1079
        %v2308 = vpop.f32.mrb[0].mxu0
        %v2309 = vadd.f32 0.0, %v2308
        %v2310 = vpop.f32.mrb[0].mxu0
        %v2311 = vadd.f32 0.0, %v2310
        %2312 = vmatprep.mubr.f32.mxu0 %v1082
        %2313 = vmatmul.mubr.f32.gmra.mrb[0].mxu0 %v1081
        %v2314 = vpop.f32.mrb[0].mxu0
        %v2315 = vadd.f32 0.0, %v2314
        %v2316 = vpop.f32.mrb[0].mxu0
        %v2317 = vadd.f32 0.0, %v2316
        %2318 = vmatprep.mubr.f32.mxu0 %v1084
        %2319 = vmatmul.mubr.f32.gmra.mrb[0].mxu0 %v1083
        %v2320 = vpop.f32.mrb[0].mxu0
        %v2321 = vadd.f32 0.0, %v2320
        %v2322 = vpop.f32.mrb[0].mxu0
        %v2323 = vadd.f32 0.0, %v2322
        %2324 = vmatprep.mubr.f32.mxu0 %v1086
        %2325 = vmatmul.mubr.f32.gmra.mrb[0].mxu0 %v1085
        %v2326 = vpop.f32.mrb[0].mxu0
        %v2327 = vadd.f32 0.0, %v2326
        %v2328 = vpop.f32.mrb[0].mxu0
        %v2329 = vadd.f32 0.0, %v2328
        %2330 = vmatprep.mubr.f32.mxu0 %v1088
        %2331 = vmatmul.mubr.f32.gmra.mrb[0].mxu0 %v1087
        %v2332 = vpop.f32.mrb[0].mxu0
        %v2333 = vadd.f32 0.0, %v2332
        %v2334 = vpop.f32.mrb[0].mxu0
        %v2335 = vadd.f32 0.0, %v2334
        %2336 = vmatprep.mubr.f32.mxu0 %v1090
        %2337 = vmatmul.mubr.f32.gmra.mrb[0].mxu0 %v1089
        %v2338 = vpop.f32.mrb[0].mxu0
        %v2339 = vadd.f32 0.0, %v2338
        %v2340 = vpop.f32.mrb[0].mxu0
        %v2341 = vadd.f32 0.0, %v2340
        %2342 = vmatprep.mubr.f32.mxu0 %v1092
        %2343 = vmatmul.mubr.f32.gmra.mrb[0].mxu0 %v1091
        %v2344 = vpop.f32.mrb[0].mxu0
        %v2345 = vadd.f32 0.0, %v2344
        %v2346 = vpop.f32.mrb[0].mxu0
        %v2347 = vadd.f32 0.0, %v2346
        %2348 = vmatprep.mubr.f32.mxu0 %v1094
        %2349 = vmatmul.mubr.f32.gmra.mrb[0].mxu0 %v1093
        %v2350 = vpop.f32.mrb[0].mxu0
        %v2351 = vadd.f32 0.0, %v2350
        %v2352 = vpop.f32.mrb[0].mxu0
        %v2353 = vadd.f32 0.0, %v2352
        %2354 = vmatprep.mubr.f32.mxu0 %v1096
        %2355 = vmatmul.mubr.f32.gmra.mrb[0].mxu0 %v1095
        %v2356 = vpop.f32.mrb[0].mxu0
        %v2357 = vadd.f32 0.0, %v2356
        %v2358 = vpop.f32.mrb[0].mxu0
        %v2359 = vadd.f32 0.0, %v2358
        %2360 = vmatprep.mubr.f32.mxu0 %v1098
        %2361 = vmatmul.mubr.f32.gmra.mrb[0].mxu0 %v1097
        %v2362 = vpop.f32.mrb[0].mxu0
        %v2363 = vadd.f32 0.0, %v2362
        %v2364 = vpop.f32.mrb[0].mxu0
        %v2365 = vadd.f32 0.0, %v2364
        %2366 = vmatprep.mubr.f32.mxu0 %v1100
        %2367 = vmatmul.mubr.f32.gmra.mrb[0].mxu0 %v1099
        %v2368 = vpop.f32.mrb[0].mxu0
        %v2369 = vadd.f32 0.0, %v2368
        %v2370 = vpop.f32.mrb[0].mxu0
        %v2371 = vadd.f32 0.0, %v2370
        %2372 = vmatprep.mubr.f32.mxu0 %v1102
        %2373 = vmatmul.mubr.f32.gmra.mrb[0].mxu0 %v1101
        %v2374 = vpop.f32.mrb[0].mxu0
        %v2375 = vadd.f32 0.0, %v2374
        %v2376 = vpop.f32.mrb[0].mxu0
        %v2377 = vadd.f32 0.0, %v2376
        %2378 = vmatprep.mubr.f32.mxu0 %v1104
        %2379 = vmatmul.mubr.f32.gmra.mrb[0].mxu0 %v1103
        %v2380 = vpop.f32.mrb[0].mxu0
        %v2381 = vadd.f32 0.0, %v2380
        %v2382 = vpop.f32.mrb[0].mxu0
        %v2383 = vadd.f32 0.0, %v2382
        %2384 = vmatprep.mubr.f32.mxu0 %v1106
        %2385 = vmatmul.mubr.f32.gmra.mrb[0].mxu0 %v1105
        %v2386 = vpop.f32.mrb[0].mxu0
        %v2387 = vadd.f32 0.0, %v2386
        %v2388 = vpop.f32.mrb[0].mxu0
        %v2389 = vadd.f32 0.0, %v2388
        %2390 = vdwg.mxu0
        %v2391 = vadd.f32 %v787, %v1430
        %v2392 = vadd.f32 %v788, %v1432
        %v2393 = vadd.f32 %v789, %v1687
        %v2394 = vadd.f32 %v790, %v1689
        %v2395 = vadd.f32 %v791, %v1944
        %v2396 = vadd.f32 %v792, %v1946
        %v2397 = vadd.f32 %v793, %v2201
        %v2398 = vadd.f32 %v794, %v2203
        %v2399 = vadd.f32 %v795, %v1436
        %v2400 = vadd.f32 %v796, %v1438
        %v2401 = vadd.f32 %v797, %v1693
        %v2402 = vadd.f32 %v798, %v1695
        %v2403 = vadd.f32 %v799, %v1950
        %v2404 = vadd.f32 %v800, %v1952
        %v2405 = vadd.f32 %v801, %v2207
        %v2406 = vadd.f32 %v802, %v2209
        %v2407 = vadd.f32 %v803, %v1442
        %v2408 = vadd.f32 %v804, %v1444
        %v2409 = vadd.f32 %v805, %v1699
        %v2410 = vadd.f32 %v806, %v1701
        %v2411 = vadd.f32 %v807, %v1956
        %v2412 = vadd.f32 %v808, %v1958
        %v2413 = vadd.f32 %v809, %v2213
        %v2414 = vadd.f32 %v810, %v2215
        %v2415 = vadd.f32 %v811, %v1448
        %v2416 = vadd.f32 %v812, %v1450
        %v2417 = vadd.f32 %v813, %v1705
        %v2418 = vadd.f32 %v814, %v1707
        %v2419 = vadd.f32 %v815, %v1962
        %v2420 = vadd.f32 %v816, %v1964
        %v2421 = vadd.f32 %v817, %v2219
        %v2422 = vadd.f32 %v818, %v2221
        %v2423 = vadd.f32 %v819, %v1454
        %v2424 = vadd.f32 %v820, %v1456
        %v2425 = vadd.f32 %v821, %v1711
        %v2426 = vadd.f32 %v822, %v1713
        %v2427 = vadd.f32 %v823, %v1968
        %v2428 = vadd.f32 %v824, %v1970
        %v2429 = vadd.f32 %v825, %v2225
        %v2430 = vadd.f32 %v826, %v2227
        %v2431 = vadd.f32 %v827, %v1460
        %v2432 = vadd.f32 %v828, %v1462
        %v2433 = vadd.f32 %v829, %v1717
        %v2434 = vadd.f32 %v830, %v1719
        %v2435 = vadd.f32 %v831, %v1974
        %v2436 = vadd.f32 %v832, %v1976
        %v2437 = vadd.f32 %v833, %v2231
        %v2438 = vadd.f32 %v834, %v2233
        %v2439 = vadd.f32 %v835, %v1466
        %v2440 = vadd.f32 %v836, %v1468
        %v2441 = vadd.f32 %v837, %v1723
        %v2442 = vadd.f32 %v838, %v1725
        %v2443 = vadd.f32 %v839, %v1980
        %v2444 = vadd.f32 %v840, %v1982
        %v2445 = vadd.f32 %v841, %v2237
        %v2446 = vadd.f32 %v842, %v2239
        %v2447 = vadd.f32 %v843, %v1472
        %v2448 = vadd.f32 %v844, %v1474
        %v2449 = vadd.f32 %v845, %v1729
        %v2450 = vadd.f32 %v846, %v1731
        %v2451 = vadd.f32 %v847, %v1986
        %v2452 = vadd.f32 %v848, %v1988
        %v2453 = vadd.f32 %v849, %v2243
        %v2454 = vadd.f32 %v850, %v2245
        %v2455 = vadd.f32 %v851, %v1478
        %v2456 = vadd.f32 %v852, %v1480
        %v2457 = vadd.f32 %v853, %v1735
        %v2458 = vadd.f32 %v854, %v1737
        %v2459 = vadd.f32 %v855, %v1992
        %v2460 = vadd.f32 %v856, %v1994
        %v2461 = vadd.f32 %v857, %v2249
        %v2462 = vadd.f32 %v858, %v2251
        %v2463 = vadd.f32 %v859, %v1484
        %v2464 = vadd.f32 %v860, %v1486
        %v2465 = vadd.f32 %v861, %v1741
        %v2466 = vadd.f32 %v862, %v1743
        %v2467 = vadd.f32 %v863, %v1998
        %v2468 = vadd.f32 %v864, %v2000
        %v2469 = vadd.f32 %v865, %v2255
        %v2470 = vadd.f32 %v866, %v2257
        %v2471 = vadd.f32 %v867, %v1490
        %v2472 = vadd.f32 %v868, %v1492
        %v2473 = vadd.f32 %v869, %v1747
        %v2474 = vadd.f32 %v870, %v1749
        %v2475 = vadd.f32 %v871, %v2004
        %v2476 = vadd.f32 %v872, %v2006
        %v2477 = vadd.f32 %v873, %v2261
        %v2478 = vadd.f32 %v874, %v2263
        %v2479 = vadd.f32 %v875, %v1496
        %v2480 = vadd.f32 %v876, %v1498
        %v2481 = vadd.f32 %v877, %v1753
        %v2482 = vadd.f32 %v878, %v1755
        %v2483 = vadd.f32 %v879, %v2010
        %v2484 = vadd.f32 %v880, %v2012
        %v2485 = vadd.f32 %v881, %v2267
        %v2486 = vadd.f32 %v882, %v2269
        %v2487 = vadd.f32 %v883, %v1502
        %v2488 = vadd.f32 %v884, %v1504
        %v2489 = vadd.f32 %v885, %v1759
        %v2490 = vadd.f32 %v886, %v1761
        %v2491 = vadd.f32 %v887, %v2016
        %v2492 = vadd.f32 %v888, %v2018
        %v2493 = vadd.f32 %v889, %v2273
        %v2494 = vadd.f32 %v890, %v2275
        %v2495 = vadd.f32 %v891, %v1508
        %v2496 = vadd.f32 %v892, %v1510
        %v2497 = vadd.f32 %v893, %v1765
        %v2498 = vadd.f32 %v894, %v1767
        %v2499 = vadd.f32 %v895, %v2022
        %v2500 = vadd.f32 %v896, %v2024
        %v2501 = vadd.f32 %v897, %v2279
        %v2502 = vadd.f32 %v898, %v2281
        %v2503 = vadd.f32 %v899, %v1514
        %v2504 = vadd.f32 %v900, %v1516
        %v2505 = vadd.f32 %v901, %v1771
        %v2506 = vadd.f32 %v902, %v1773
        %v2507 = vadd.f32 %v903, %v2028
        %v2508 = vadd.f32 %v904, %v2030
        %v2509 = vadd.f32 %v905, %v2285
        %v2510 = vadd.f32 %v906, %v2287
        %v2511 = vadd.f32 %v907, %v1520
        %v2512 = vadd.f32 %v908, %v1522
        %v2513 = vadd.f32 %v909, %v1777
        %v2514 = vadd.f32 %v910, %v1779
        %v2515 = vadd.f32 %v911, %v2034
        %v2516 = vadd.f32 %v912, %v2036
        %v2517 = vadd.f32 %v913, %v2291
        %v2518 = vadd.f32 %v914, %v2293
        %v2519 = vadd.f32 %v915, %v1526
        %v2520 = vadd.f32 %v916, %v1528
        %v2521 = vadd.f32 %v917, %v1783
        %v2522 = vadd.f32 %v918, %v1785
        %v2523 = vadd.f32 %v919, %v2040
        %v2524 = vadd.f32 %v920, %v2042
        %v2525 = vadd.f32 %v921, %v2297
        %v2526 = vadd.f32 %v922, %v2299
        %v2527 = vadd.f32 %v923, %v1532
        %v2528 = vadd.f32 %v924, %v1534
        %v2529 = vadd.f32 %v925, %v1789
        %v2530 = vadd.f32 %v926, %v1791
        %v2531 = vadd.f32 %v927, %v2046
        %v2532 = vadd.f32 %v928, %v2048
        %v2533 = vadd.f32 %v929, %v2303
        %v2534 = vadd.f32 %v930, %v2305
        %v2535 = vadd.f32 %v931, %v1538
        %v2536 = vadd.f32 %v932, %v1540
        %v2537 = vadd.f32 %v933, %v1795
        %v2538 = vadd.f32 %v934, %v1797
        %v2539 = vadd.f32 %v935, %v2052
        %v2540 = vadd.f32 %v936, %v2054
        %v2541 = vadd.f32 %v937, %v2309
        %v2542 = vadd.f32 %v938, %v2311
        %v2543 = vadd.f32 %v939, %v1544
        %v2544 = vadd.f32 %v940, %v1546
        %v2545 = vadd.f32 %v941, %v1801
        %v2546 = vadd.f32 %v942, %v1803
        %v2547 = vadd.f32 %v943, %v2058
        %v2548 = vadd.f32 %v944, %v2060
        %v2549 = vadd.f32 %v945, %v2315
        %v2550 = vadd.f32 %v946, %v2317
        %v2551 = vadd.f32 %v947, %v1550
        %v2552 = vadd.f32 %v948, %v1552
        %v2553 = vadd.f32 %v949, %v1807
        %v2554 = vadd.f32 %v950, %v1809
        %v2555 = vadd.f32 %v951, %v2064
        %v2556 = vadd.f32 %v952, %v2066
        %v2557 = vadd.f32 %v953, %v2321
        %v2558 = vadd.f32 %v954, %v2323
        %v2559 = vadd.f32 %v955, %v1556
        %v2560 = vadd.f32 %v956, %v1558
        %v2561 = vadd.f32 %v957, %v1813
        %v2562 = vadd.f32 %v958, %v1815
        %v2563 = vadd.f32 %v959, %v2070
        %v2564 = vadd.f32 %v960, %v2072
        %v2565 = vadd.f32 %v961, %v2327
        %v2566 = vadd.f32 %v962, %v2329
        %v2567 = vadd.f32 %v963, %v1562
        %v2568 = vadd.f32 %v964, %v1564
        %v2569 = vadd.f32 %v965, %v1819
        %v2570 = vadd.f32 %v966, %v1821
        %v2571 = vadd.f32 %v967, %v2076
        %v2572 = vadd.f32 %v968, %v2078
        %v2573 = vadd.f32 %v969, %v2333
        %v2574 = vadd.f32 %v970, %v2335
        %v2575 = vadd.f32 %v971, %v1568
        %v2576 = vadd.f32 %v972, %v1570
        %v2577 = vadd.f32 %v973, %v1825
        %v2578 = vadd.f32 %v974, %v1827
        %v2579 = vadd.f32 %v975, %v2082
        %v2580 = vadd.f32 %v976, %v2084
        %v2581 = vadd.f32 %v977, %v2339
        %v2582 = vadd.f32 %v978, %v2341
        %v2583 = vadd.f32 %v979, %v1574
        %v2584 = vadd.f32 %v980, %v1576
        %v2585 = vadd.f32 %v981, %v1831
        %v2586 = vadd.f32 %v982, %v1833
        %v2587 = vadd.f32 %v983, %v2088
        %v2588 = vadd.f32 %v984, %v2090
        %v2589 = vadd.f32 %v985, %v2345
        %v2590 = vadd.f32 %v986, %v2347
        %v2591 = vadd.f32 %v987, %v1580
        %v2592 = vadd.f32 %v988, %v1582
        %v2593 = vadd.f32 %v989, %v1837
        %v2594 = vadd.f32 %v990, %v1839
        %v2595 = vadd.f32 %v991, %v2094
        %v2596 = vadd.f32 %v992, %v2096
        %v2597 = vadd.f32 %v993, %v2351
        %v2598 = vadd.f32 %v994, %v2353
        %v2599 = vadd.f32 %v995, %v1586
        %v2600 = vadd.f32 %v996, %v1588
        %v2601 = vadd.f32 %v997, %v1843
        %v2602 = vadd.f32 %v998, %v1845
        %v2603 = vadd.f32 %v999, %v2100
        %v2604 = vadd.f32 %v1000, %v2102
        %v2605 = vadd.f32 %v1001, %v2357
        %v2606 = vadd.f32 %v1002, %v2359
        %v2607 = vadd.f32 %v1003, %v1592
        %v2608 = vadd.f32 %v1004, %v1594
        %v2609 = vadd.f32 %v1005, %v1849
        %v2610 = vadd.f32 %v1006, %v1851
        %v2611 = vadd.f32 %v1007, %v2106
        %v2612 = vadd.f32 %v1008, %v2108
        %v2613 = vadd.f32 %v1009, %v2363
        %v2614 = vadd.f32 %v1010, %v2365
        %v2615 = vadd.f32 %v1011, %v1598
        %v2616 = vadd.f32 %v1012, %v1600
        %v2617 = vadd.f32 %v1013, %v1855
        %v2618 = vadd.f32 %v1014, %v1857
        %v2619 = vadd.f32 %v1015, %v2112
        %v2620 = vadd.f32 %v1016, %v2114
        %v2621 = vadd.f32 %v1017, %v2369
        %v2622 = vadd.f32 %v1018, %v2371
        %v2623 = vadd.f32 %v1019, %v1604
        %v2624 = vadd.f32 %v1020, %v1606
        %v2625 = vadd.f32 %v1021, %v1861
        %v2626 = vadd.f32 %v1022, %v1863
        %v2627 = vadd.f32 %v1023, %v2118
        %v2628 = vadd.f32 %v1024, %v2120
        %v2629 = vadd.f32 %v1025, %v2375
        %v2630 = vadd.f32 %v1026, %v2377
        %v2631 = vadd.f32 %v1027, %v1610
        %v2632 = vadd.f32 %v1028, %v1612
        %v2633 = vadd.f32 %v1029, %v1867
        %v2634 = vadd.f32 %v1030, %v1869
        %v2635 = vadd.f32 %v1031, %v2124
        %v2636 = vadd.f32 %v1032, %v2126
        %v2637 = vadd.f32 %v1033, %v2381
        %v2638 = vadd.f32 %v1034, %v2383
        %v2639 = vadd.f32 %v1035, %v1616
        %v2640 = vadd.f32 %v1036, %v1618
        %v2641 = vadd.f32 %v1037, %v1873
        %v2642 = vadd.f32 %v1038, %v1875
        %v2643 = vadd.f32 %v1039, %v2130
        %v2644 = vadd.f32 %v1040, %v2132
        %v2645 = vadd.f32 %v1041, %v2387
        %v2646 = vadd.f32 %v1042, %v2389
        %2647 = vst [vmem:[#allocation2] sm:$0xff] %v2391
        %2648 = vst [vmem:[#allocation2 + $0x8] sm:$0xff] %v2392
        %2649 = vst [vmem:[#allocation2 + $0x10] sm:$0xff] %v2393
        %2650 = vst [vmem:[#allocation2 + $0x18] sm:$0xff] %v2394
        %2651 = vst [vmem:[#allocation2 + $0x20] sm:$0xff] %v2395
        %2652 = vst [vmem:[#allocation2 + $0x28] sm:$0xff] %v2396
        %2653 = vst [vmem:[#allocation2 + $0x30] sm:$0xff] %v2397
        %2654 = vst [vmem:[#allocation2 + $0x38] sm:$0xff] %v2398
        %2655 = vst [vmem:[#allocation2 + $0x40] sm:$0xff] %v2399
        %2656 = vst [vmem:[#allocation2 + $0x48] sm:$0xff] %v2400
        %2657 = vst [vmem:[#allocation2 + $0x50] sm:$0xff] %v2401
        %2658 = vst [vmem:[#allocation2 + $0x58] sm:$0xff] %v2402
        %2659 = vst [vmem:[#allocation2 + $0x60] sm:$0xff] %v2403
        %2660 = vst [vmem:[#allocation2 + $0x68] sm:$0xff] %v2404
        %2661 = vst [vmem:[#allocation2 + $0x70] sm:$0xff] %v2405
        %2662 = vst [vmem:[#allocation2 + $0x78] sm:$0xff] %v2406
        %2663 = vst [vmem:[#allocation2 + $0x80] sm:$0xff] %v2407
        %2664 = vst [vmem:[#allocation2 + $0x88] sm:$0xff] %v2408
        %2665 = vst [vmem:[#allocation2 + $0x90] sm:$0xff] %v2409
        %2666 = vst [vmem:[#allocation2 + $0x98] sm:$0xff] %v2410
        %2667 = vst [vmem:[#allocation2 + $0xa0] sm:$0xff] %v2411
        %2668 = vst [vmem:[#allocation2 + $0xa8] sm:$0xff] %v2412
        %2669 = vst [vmem:[#allocation2 + $0xb0] sm:$0xff] %v2413
        %2670 = vst [vmem:[#allocation2 + $0xb8] sm:$0xff] %v2414
        %2671 = vst [vmem:[#allocation2 + $0xc0] sm:$0xff] %v2415
        %2672 = vst [vmem:[#allocation2 + $0xc8] sm:$0xff] %v2416
        %2673 = vst [vmem:[#allocation2 + $0xd0] sm:$0xff] %v2417
        %2674 = vst [vmem:[#allocation2 + $0xd8] sm:$0xff] %v2418
        %2675 = vst [vmem:[#allocation2 + $0xe0] sm:$0xff] %v2419
        %2676 = vst [vmem:[#allocation2 + $0xe8] sm:$0xff] %v2420
        %2677 = vst [vmem:[#allocation2 + $0xf0] sm:$0xff] %v2421
        %2678 = vst [vmem:[#allocation2 + $0xf8] sm:$0xff] %v2422
        %2679 = vst [vmem:[#allocation2 + $0x100] sm:$0xff] %v2423
        %2680 = vst [vmem:[#allocation2 + $0x108] sm:$0xff] %v2424
        %2681 = vst [vmem:[#allocation2 + $0x110] sm:$0xff] %v2425
        %2682 = vst [vmem:[#allocation2 + $0x118] sm:$0xff] %v2426
        %2683 = vst [vmem:[#allocation2 + $0x120] sm:$0xff] %v2427
        %2684 = vst [vmem:[#allocation2 + $0x128] sm:$0xff] %v2428
        %2685 = vst [vmem:[#allocation2 + $0x130] sm:$0xff] %v2429
        %2686 = vst [vmem:[#allocation2 + $0x138] sm:$0xff] %v2430
        %2687 = vst [vmem:[#allocation2 + $0x140] sm:$0xff] %v2431
        %2688 = vst [vmem:[#allocation2 + $0x148] sm:$0xff] %v2432
        %2689 = vst [vmem:[#allocation2 + $0x150] sm:$0xff] %v2433
        %2690 = vst [vmem:[#allocation2 + $0x158] sm:$0xff] %v2434
        %2691 = vst [vmem:[#allocation2 + $0x160] sm:$0xff] %v2435
        %2692 = vst [vmem:[#allocation2 + $0x168] sm:$0xff] %v2436
        %2693 = vst [vmem:[#allocation2 + $0x170] sm:$0xff] %v2437
        %2694 = vst [vmem:[#allocation2 + $0x178] sm:$0xff] %v2438
        %2695 = vst [vmem:[#allocation2 + $0x180] sm:$0xff] %v2439
        %2696 = vst [vmem:[#allocation2 + $0x188] sm:$0xff] %v2440
        %2697 = vst [vmem:[#allocation2 + $0x190] sm:$0xff] %v2441
        %2698 = vst [vmem:[#allocation2 + $0x198] sm:$0xff] %v2442
        %2699 = vst [vmem:[#allocation2 + $0x1a0] sm:$0xff] %v2443
        %2700 = vst [vmem:[#allocation2 + $0x1a8] sm:$0xff] %v2444
        %2701 = vst [vmem:[#allocation2 + $0x1b0] sm:$0xff] %v2445
        %2702 = vst [vmem:[#allocation2 + $0x1b8] sm:$0xff] %v2446
        %2703 = vst [vmem:[#allocation2 + $0x1c0] sm:$0xff] %v2447
        %2704 = vst [vmem:[#allocation2 + $0x1c8] sm:$0xff] %v2448
        %2705 = vst [vmem:[#allocation2 + $0x1d0] sm:$0xff] %v2449
        %2706 = vst [vmem:[#allocation2 + $0x1d8] sm:$0xff] %v2450
        %2707 = vst [vmem:[#allocation2 + $0x1e0] sm:$0xff] %v2451
        %2708 = vst [vmem:[#allocation2 + $0x1e8] sm:$0xff] %v2452
        %2709 = vst [vmem:[#allocation2 + $0x1f0] sm:$0xff] %v2453
        %2710 = vst [vmem:[#allocation2 + $0x1f8] sm:$0xff] %v2454
        %2711 = vst [vmem:[#allocation2 + $0x200] sm:$0xff] %v2455
        %2712 = vst [vmem:[#allocation2 + $0x208] sm:$0xff] %v2456
        %2713 = vst [vmem:[#allocation2 + $0x210] sm:$0xff] %v2457
        %2714 = vst [vmem:[#allocation2 + $0x218] sm:$0xff] %v2458
        %2715 = vst [vmem:[#allocation2 + $0x220] sm:$0xff] %v2459
        %2716 = vst [vmem:[#allocation2 + $0x228] sm:$0xff] %v2460
        %2717 = vst [vmem:[#allocation2 + $0x230] sm:$0xff] %v2461
        %2718 = vst [vmem:[#allocation2 + $0x238] sm:$0xff] %v2462
        %2719 = vst [vmem:[#allocation2 + $0x240] sm:$0xff] %v2463
        %2720 = vst [vmem:[#allocation2 + $0x248] sm:$0xff] %v2464
        %2721 = vst [vmem:[#allocation2 + $0x250] sm:$0xff] %v2465
        %2722 = vst [vmem:[#allocation2 + $0x258] sm:$0xff] %v2466
        %2723 = vst [vmem:[#allocation2 + $0x260] sm:$0xff] %v2467
        %2724 = vst [vmem:[#allocation2 + $0x268] sm:$0xff] %v2468
        %2725 = vst [vmem:[#allocation2 + $0x270] sm:$0xff] %v2469
        %2726 = vst [vmem:[#allocation2 + $0x278] sm:$0xff] %v2470
        %2727 = vst [vmem:[#allocation2 + $0x280] sm:$0xff] %v2471
        %2728 = vst [vmem:[#allocation2 + $0x288] sm:$0xff] %v2472
        %2729 = vst [vmem:[#allocation2 + $0x290] sm:$0xff] %v2473
        %2730 = vst [vmem:[#allocation2 + $0x298] sm:$0xff] %v2474
        %2731 = vst [vmem:[#allocation2 + $0x2a0] sm:$0xff] %v2475
        %2732 = vst [vmem:[#allocation2 + $0x2a8] sm:$0xff] %v2476
        %2733 = vst [vmem:[#allocation2 + $0x2b0] sm:$0xff] %v2477
        %2734 = vst [vmem:[#allocation2 + $0x2b8] sm:$0xff] %v2478
        %2735 = vst [vmem:[#allocation2 + $0x2c0] sm:$0xff] %v2479
        %2736 = vst [vmem:[#allocation2 + $0x2c8] sm:$0xff] %v2480
        %2737 = vst [vmem:[#allocation2 + $0x2d0] sm:$0xff] %v2481
        %2738 = vst [vmem:[#allocation2 + $0x2d8] sm:$0xff] %v2482
        %2739 = vst [vmem:[#allocation2 + $0x2e0] sm:$0xff] %v2483
        %2740 = vst [vmem:[#allocation2 + $0x2e8] sm:$0xff] %v2484
        %2741 = vst [vmem:[#allocation2 + $0x2f0] sm:$0xff] %v2485
        %2742 = vst [vmem:[#allocation2 + $0x2f8] sm:$0xff] %v2486
        %2743 = vst [vmem:[#allocation2 + $0x300] sm:$0xff] %v2487
        %2744 = vst [vmem:[#allocation2 + $0x308] sm:$0xff] %v2488
        %2745 = vst [vmem:[#allocation2 + $0x310] sm:$0xff] %v2489
        %2746 = vst [vmem:[#allocation2 + $0x318] sm:$0xff] %v2490
        %2747 = vst [vmem:[#allocation2 + $0x320] sm:$0xff] %v2491
        %2748 = vst [vmem:[#allocation2 + $0x328] sm:$0xff] %v2492
        %2749 = vst [vmem:[#allocation2 + $0x330] sm:$0xff] %v2493
        %2750 = vst [vmem:[#allocation2 + $0x338] sm:$0xff] %v2494
        %2751 = vst [vmem:[#allocation2 + $0x340] sm:$0xff] %v2495
        %2752 = vst [vmem:[#allocation2 + $0x348] sm:$0xff] %v2496
        %2753 = vst [vmem:[#allocation2 + $0x350] sm:$0xff] %v2497
        %2754 = vst [vmem:[#allocation2 + $0x358] sm:$0xff] %v2498
        %2755 = vst [vmem:[#allocation2 + $0x360] sm:$0xff] %v2499
        %2756 = vst [vmem:[#allocation2 + $0x368] sm:$0xff] %v2500
        %2757 = vst [vmem:[#allocation2 + $0x370] sm:$0xff] %v2501
        %2758 = vst [vmem:[#allocation2 + $0x378] sm:$0xff] %v2502
        %2759 = vst [vmem:[#allocation2 + $0x380] sm:$0xff] %v2503
        %2760 = vst [vmem:[#allocation2 + $0x388] sm:$0xff] %v2504
        %2761 = vst [vmem:[#allocation2 + $0x390] sm:$0xff] %v2505
        %2762 = vst [vmem:[#allocation2 + $0x398] sm:$0xff] %v2506
        %2763 = vst [vmem:[#allocation2 + $0x3a0] sm:$0xff] %v2507
        %2764 = vst [vmem:[#allocation2 + $0x3a8] sm:$0xff] %v2508
        %2765 = vst [vmem:[#allocation2 + $0x3b0] sm:$0xff] %v2509
        %2766 = vst [vmem:[#allocation2 + $0x3b8] sm:$0xff] %v2510
        %2767 = vst [vmem:[#allocation2 + $0x3c0] sm:$0xff] %v2511
        %2768 = vst [vmem:[#allocation2 + $0x3c8] sm:$0xff] %v2512
        %2769 = vst [vmem:[#allocation2 + $0x3d0] sm:$0xff] %v2513
        %2770 = vst [vmem:[#allocation2 + $0x3d8] sm:$0xff] %v2514
        %2771 = vst [vmem:[#allocation2 + $0x3e0] sm:$0xff] %v2515
        %2772 = vst [vmem:[#allocation2 + $0x3e8] sm:$0xff] %v2516
        %2773 = vst [vmem:[#allocation2 + $0x3f0] sm:$0xff] %v2517
        %2774 = vst [vmem:[#allocation2 + $0x3f8] sm:$0xff] %v2518
        %2775 = vst [vmem:[#allocation2 + $0x400] sm:$0xff] %v2519
        %2776 = vst [vmem:[#allocation2 + $0x408] sm:$0xff] %v2520
        %2777 = vst [vmem:[#allocation2 + $0x410] sm:$0xff] %v2521
        %2778 = vst [vmem:[#allocation2 + $0x418] sm:$0xff] %v2522
        %2779 = vst [vmem:[#allocation2 + $0x420] sm:$0xff] %v2523
        %2780 = vst [vmem:[#allocation2 + $0x428] sm:$0xff] %v2524
        %2781 = vst [vmem:[#allocation2 + $0x430] sm:$0xff] %v2525
        %2782 = vst [vmem:[#allocation2 + $0x438] sm:$0xff] %v2526
        %2783 = vst [vmem:[#allocation2 + $0x440] sm:$0xff] %v2527
        %2784 = vst [vmem:[#allocation2 + $0x448] sm:$0xff] %v2528
        %2785 = vst [vmem:[#allocation2 + $0x450] sm:$0xff] %v2529
        %2786 = vst [vmem:[#allocation2 + $0x458] sm:$0xff] %v2530
        %2787 = vst [vmem:[#allocation2 + $0x460] sm:$0xff] %v2531
        %2788 = vst [vmem:[#allocation2 + $0x468] sm:$0xff] %v2532
        %2789 = vst [vmem:[#allocation2 + $0x470] sm:$0xff] %v2533
        %2790 = vst [vmem:[#allocation2 + $0x478] sm:$0xff] %v2534
        %2791 = vst [vmem:[#allocation2 + $0x480] sm:$0xff] %v2535
        %2792 = vst [vmem:[#allocation2 + $0x488] sm:$0xff] %v2536
        %2793 = vst [vmem:[#allocation2 + $0x490] sm:$0xff] %v2537
        %2794 = vst [vmem:[#allocation2 + $0x498] sm:$0xff] %v2538
        %2795 = vst [vmem:[#allocation2 + $0x4a0] sm:$0xff] %v2539
        %2796 = vst [vmem:[#allocation2 + $0x4a8] sm:$0xff] %v2540
        %2797 = vst [vmem:[#allocation2 + $0x4b0] sm:$0xff] %v2541
        %2798 = vst [vmem:[#allocation2 + $0x4b8] sm:$0xff] %v2542
        %2799 = vst [vmem:[#allocation2 + $0x4c0] sm:$0xff] %v2543
        %2800 = vst [vmem:[#allocation2 + $0x4c8] sm:$0xff] %v2544
        %2801 = vst [vmem:[#allocation2 + $0x4d0] sm:$0xff] %v2545
        %2802 = vst [vmem:[#allocation2 + $0x4d8] sm:$0xff] %v2546
        %2803 = vst [vmem:[#allocation2 + $0x4e0] sm:$0xff] %v2547
        %2804 = vst [vmem:[#allocation2 + $0x4e8] sm:$0xff] %v2548
        %2805 = vst [vmem:[#allocation2 + $0x4f0] sm:$0xff] %v2549
        %2806 = vst [vmem:[#allocation2 + $0x4f8] sm:$0xff] %v2550
        %2807 = vst [vmem:[#allocation2 + $0x500] sm:$0xff] %v2551
        %2808 = vst [vmem:[#allocation2 + $0x508] sm:$0xff] %v2552
        %2809 = vst [vmem:[#allocation2 + $0x510] sm:$0xff] %v2553
        %2810 = vst [vmem:[#allocation2 + $0x518] sm:$0xff] %v2554
        %2811 = vst [vmem:[#allocation2 + $0x520] sm:$0xff] %v2555
        %2812 = vst [vmem:[#allocation2 + $0x528] sm:$0xff] %v2556
        %2813 = vst [vmem:[#allocation2 + $0x530] sm:$0xff] %v2557
        %2814 = vst [vmem:[#allocation2 + $0x538] sm:$0xff] %v2558
        %2815 = vst [vmem:[#allocation2 + $0x540] sm:$0xff] %v2559
        %2816 = vst [vmem:[#allocation2 + $0x548] sm:$0xff] %v2560
        %2817 = vst [vmem:[#allocation2 + $0x550] sm:$0xff] %v2561
        %2818 = vst [vmem:[#allocation2 + $0x558] sm:$0xff] %v2562
        %2819 = vst [vmem:[#allocation2 + $0x560] sm:$0xff] %v2563
        %2820 = vst [vmem:[#allocation2 + $0x568] sm:$0xff] %v2564
        %2821 = vst [vmem:[#allocation2 + $0x570] sm:$0xff] %v2565
        %2822 = vst [vmem:[#allocation2 + $0x578] sm:$0xff] %v2566
        %2823 = vst [vmem:[#allocation2 + $0x580] sm:$0xff] %v2567
        %2824 = vst [vmem:[#allocation2 + $0x588] sm:$0xff] %v2568
        %2825 = vst [vmem:[#allocation2 + $0x590] sm:$0xff] %v2569
        %2826 = vst [vmem:[#allocation2 + $0x598] sm:$0xff] %v2570
        %2827 = vst [vmem:[#allocation2 + $0x5a0] sm:$0xff] %v2571
        %2828 = vst [vmem:[#allocation2 + $0x5a8] sm:$0xff] %v2572
        %2829 = vst [vmem:[#allocation2 + $0x5b0] sm:$0xff] %v2573
        %2830 = vst [vmem:[#allocation2 + $0x5b8] sm:$0xff] %v2574
        %2831 = vst [vmem:[#allocation2 + $0x5c0] sm:$0xff] %v2575
        %2832 = vst [vmem:[#allocation2 + $0x5c8] sm:$0xff] %v2576
        %2833 = vst [vmem:[#allocation2 + $0x5d0] sm:$0xff] %v2577
        %2834 = vst [vmem:[#allocation2 + $0x5d8] sm:$0xff] %v2578
        %2835 = vst [vmem:[#allocation2 + $0x5e0] sm:$0xff] %v2579
        %2836 = vst [vmem:[#allocation2 + $0x5e8] sm:$0xff] %v2580
        %2837 = vst [vmem:[#allocation2 + $0x5f0] sm:$0xff] %v2581
        %2838 = vst [vmem:[#allocation2 + $0x5f8] sm:$0xff] %v2582
        %2839 = vst [vmem:[#allocation2 + $0x600] sm:$0xff] %v2583
        %2840 = vst [vmem:[#allocation2 + $0x608] sm:$0xff] %v2584
        %2841 = vst [vmem:[#allocation2 + $0x610] sm:$0xff] %v2585
        %2842 = vst [vmem:[#allocation2 + $0x618] sm:$0xff] %v2586
        %2843 = vst [vmem:[#allocation2 + $0x620] sm:$0xff] %v2587
        %2844 = vst [vmem:[#allocation2 + $0x628] sm:$0xff] %v2588
        %2845 = vst [vmem:[#allocation2 + $0x630] sm:$0xff] %v2589
        %2846 = vst [vmem:[#allocation2 + $0x638] sm:$0xff] %v2590
        %2847 = vst [vmem:[#allocation2 + $0x640] sm:$0xff] %v2591
        %2848 = vst [vmem:[#allocation2 + $0x648] sm:$0xff] %v2592
        %2849 = vst [vmem:[#allocation2 + $0x650] sm:$0xff] %v2593
        %2850 = vst [vmem:[#allocation2 + $0x658] sm:$0xff] %v2594
        %2851 = vst [vmem:[#allocation2 + $0x660] sm:$0xff] %v2595
        %2852 = vst [vmem:[#allocation2 + $0x668] sm:$0xff] %v2596
        %2853 = vst [vmem:[#allocation2 + $0x670] sm:$0xff] %v2597
        %2854 = vst [vmem:[#allocation2 + $0x678] sm:$0xff] %v2598
        %2855 = vst [vmem:[#allocation2 + $0x680] sm:$0xff] %v2599
        %2856 = vst [vmem:[#allocation2 + $0x688] sm:$0xff] %v2600
        %2857 = vst [vmem:[#allocation2 + $0x690] sm:$0xff] %v2601
        %2858 = vst [vmem:[#allocation2 + $0x698] sm:$0xff] %v2602
        %2859 = vst [vmem:[#allocation2 + $0x6a0] sm:$0xff] %v2603
        %2860 = vst [vmem:[#allocation2 + $0x6a8] sm:$0xff] %v2604
        %2861 = vst [vmem:[#allocation2 + $0x6b0] sm:$0xff] %v2605
        %2862 = vst [vmem:[#allocation2 + $0x6b8] sm:$0xff] %v2606
        %2863 = vst [vmem:[#allocation2 + $0x6c0] sm:$0xff] %v2607
        %2864 = vst [vmem:[#allocation2 + $0x6c8] sm:$0xff] %v2608
        %2865 = vst [vmem:[#allocation2 + $0x6d0] sm:$0xff] %v2609
        %2866 = vst [vmem:[#allocation2 + $0x6d8] sm:$0xff] %v2610
        %2867 = vst [vmem:[#allocation2 + $0x6e0] sm:$0xff] %v2611
        %2868 = vst [vmem:[#allocation2 + $0x6e8] sm:$0xff] %v2612
        %2869 = vst [vmem:[#allocation2 + $0x6f0] sm:$0xff] %v2613
        %2870 = vst [vmem:[#allocation2 + $0x6f8] sm:$0xff] %v2614
        %2871 = vst [vmem:[#allocation2 + $0x700] sm:$0xff] %v2615
        %2872 = vst [vmem:[#allocation2 + $0x708] sm:$0xff] %v2616
        %2873 = vst [vmem:[#allocation2 + $0x710] sm:$0xff] %v2617
        %2874 = vst [vmem:[#allocation2 + $0x718] sm:$0xff] %v2618
        %2875 = vst [vmem:[#allocation2 + $0x720] sm:$0xff] %v2619
        %2876 = vst [vmem:[#allocation2 + $0x728] sm:$0xff] %v2620
        %2877 = vst [vmem:[#allocation2 + $0x730] sm:$0xff] %v2621
        %2878 = vst [vmem:[#allocation2 + $0x738] sm:$0xff] %v2622
        %2879 = vst [vmem:[#allocation2 + $0x740] sm:$0xff] %v2623
        %2880 = vst [vmem:[#allocation2 + $0x748] sm:$0xff] %v2624
        %2881 = vst [vmem:[#allocation2 + $0x750] sm:$0xff] %v2625
        %2882 = vst [vmem:[#allocation2 + $0x758] sm:$0xff] %v2626
        %2883 = vst [vmem:[#allocation2 + $0x760] sm:$0xff] %v2627
        %2884 = vst [vmem:[#allocation2 + $0x768] sm:$0xff] %v2628
        %2885 = vst [vmem:[#allocation2 + $0x770] sm:$0xff] %v2629
        %2886 = vst [vmem:[#allocation2 + $0x778] sm:$0xff] %v2630
        %2887 = vst [vmem:[#allocation2 + $0x780] sm:$0xff] %v2631
        %2888 = vst [vmem:[#allocation2 + $0x788] sm:$0xff] %v2632
        %2889 = vst [vmem:[#allocation2 + $0x790] sm:$0xff] %v2633
        %2890 = vst [vmem:[#allocation2 + $0x798] sm:$0xff] %v2634
        %2891 = vst [vmem:[#allocation2 + $0x7a0] sm:$0xff] %v2635
        %2892 = vst [vmem:[#allocation2 + $0x7a8] sm:$0xff] %v2636
        %2893 = vst [vmem:[#allocation2 + $0x7b0] sm:$0xff] %v2637
        %2894 = vst [vmem:[#allocation2 + $0x7b8] sm:$0xff] %v2638
        %2895 = vst [vmem:[#allocation2 + $0x7c0] sm:$0xff] %v2639
        %2896 = vst [vmem:[#allocation2 + $0x7c8] sm:$0xff] %v2640
        %2897 = vst [vmem:[#allocation2 + $0x7d0] sm:$0xff] %v2641
        %2898 = vst [vmem:[#allocation2 + $0x7d8] sm:$0xff] %v2642
        %2899 = vst [vmem:[#allocation2 + $0x7e0] sm:$0xff] %v2643
        %2900 = vst [vmem:[#allocation2 + $0x7e8] sm:$0xff] %v2644
        %2901 = vst [vmem:[#allocation2 + $0x7f0] sm:$0xff] %v2645
        %2902 = vst [vmem:[#allocation2 + $0x7f8] sm:$0xff] %v2646
        %p2903 = scmp.eq.s32.totalorder %s43, 1
        // Predicated region
        $region73: #{tpu_custom_call.1} parent=43 // pred_check
          %p2904 = pneg %p2903
        $region74: #{tpu_custom_call.1} parent=43 // pred_check_branch
          %2906 = sbr.rel (%p2904) target = $region76
        $region75: #{tpu_custom_call.1} parent=43 // pred_region
          %v2907 = vld [vmem:[%s435] sm:$0xff]
          %v2908 = vld [vmem:[%s435 + $0x8] sm:$0xff]
          %v2909 = vld [vmem:[%s435 + $0x10] sm:$0xff]
          %v2910 = vld [vmem:[%s435 + $0x18] sm:$0xff]
          %v2911 = vld [vmem:[%s435 + $0x20] sm:$0xff]
          %v2912 = vld [vmem:[%s435 + $0x28] sm:$0xff]
          %v2913 = vld [vmem:[%s435 + $0x30] sm:$0xff]
          %v2914 = vld [vmem:[%s435 + $0x38] sm:$0xff]
          %v2915 = vld [vmem:[%s435 + $0x40] sm:$0xff]
          %v2916 = vld [vmem:[%s435 + $0x48] sm:$0xff]
          %v2917 = vld [vmem:[%s435 + $0x50] sm:$0xff]
          %v2918 = vld [vmem:[%s435 + $0x58] sm:$0xff]
          %v2919 = vld [vmem:[%s435 + $0x60] sm:$0xff]
          %v2920 = vld [vmem:[%s435 + $0x68] sm:$0xff]
          %v2921 = vld [vmem:[%s435 + $0x70] sm:$0xff]
          %v2922 = vld [vmem:[%s435 + $0x78] sm:$0xff]
          %v2923 = vld [vmem:[%s435 + $0x80] sm:$0xff]
          %v2924 = vld [vmem:[%s435 + $0x88] sm:$0xff]
          %v2925 = vld [vmem:[%s435 + $0x90] sm:$0xff]
          %v2926 = vld [vmem:[%s435 + $0x98] sm:$0xff]
          %v2927 = vld [vmem:[%s435 + $0xa0] sm:$0xff]
          %v2928 = vld [vmem:[%s435 + $0xa8] sm:$0xff]
          %v2929 = vld [vmem:[%s435 + $0xb0] sm:$0xff]
          %v2930 = vld [vmem:[%s435 + $0xb8] sm:$0xff]
          %v2931 = vld [vmem:[%s435 + $0xc0] sm:$0xff]
          %v2932 = vld [vmem:[%s435 + $0xc8] sm:$0xff]
          %v2933 = vld [vmem:[%s435 + $0xd0] sm:$0xff]
          %v2934 = vld [vmem:[%s435 + $0xd8] sm:$0xff]
          %v2935 = vld [vmem:[%s435 + $0xe0] sm:$0xff]
          %v2936 = vld [vmem:[%s435 + $0xe8] sm:$0xff]
          %v2937 = vld [vmem:[%s435 + $0xf0] sm:$0xff]
          %v2938 = vld [vmem:[%s435 + $0xf8] sm:$0xff]
          %v2939 = vld [vmem:[%s444] sm:$0xff]
          %v2940 = vld [vmem:[%s444 + $0x8] sm:$0xff]
          %v2941 = vld [vmem:[%s444 + $0x10] sm:$0xff]
          %v2942 = vld [vmem:[%s444 + $0x18] sm:$0xff]
          %v2943 = vld [vmem:[%s444 + $0x20] sm:$0xff]
          %v2944 = vld [vmem:[%s444 + $0x28] sm:$0xff]
          %v2945 = vld [vmem:[%s444 + $0x30] sm:$0xff]
          %v2946 = vld [vmem:[%s444 + $0x38] sm:$0xff]
          %v2947 = vld [vmem:[%s444 + $0x40] sm:$0xff]
          %v2948 = vld [vmem:[%s444 + $0x48] sm:$0xff]
          %v2949 = vld [vmem:[%s444 + $0x50] sm:$0xff]
          %v2950 = vld [vmem:[%s444 + $0x58] sm:$0xff]
          %v2951 = vld [vmem:[%s444 + $0x60] sm:$0xff]
          %v2952 = vld [vmem:[%s444 + $0x68] sm:$0xff]
          %v2953 = vld [vmem:[%s444 + $0x70] sm:$0xff]
          %v2954 = vld [vmem:[%s444 + $0x78] sm:$0xff]
          %v2955 = vld [vmem:[%s444 + $0x80] sm:$0xff]
          %v2956 = vld [vmem:[%s444 + $0x88] sm:$0xff]
          %v2957 = vld [vmem:[%s444 + $0x90] sm:$0xff]
          %v2958 = vld [vmem:[%s444 + $0x98] sm:$0xff]
          %v2959 = vld [vmem:[%s444 + $0xa0] sm:$0xff]
          %v2960 = vld [vmem:[%s444 + $0xa8] sm:$0xff]
          %v2961 = vld [vmem:[%s444 + $0xb0] sm:$0xff]
          %v2962 = vld [vmem:[%s444 + $0xb8] sm:$0xff]
          %v2963 = vld [vmem:[%s444 + $0xc0] sm:$0xff]
          %v2964 = vld [vmem:[%s444 + $0xc8] sm:$0xff]
          %v2965 = vld [vmem:[%s444 + $0xd0] sm:$0xff]
          %v2966 = vld [vmem:[%s444 + $0xd8] sm:$0xff]
          %v2967 = vld [vmem:[%s444 + $0xe0] sm:$0xff]
          %v2968 = vld [vmem:[%s444 + $0xe8] sm:$0xff]
          %v2969 = vld [vmem:[%s444 + $0xf0] sm:$0xff]
          %v2970 = vld [vmem:[%s444 + $0xf8] sm:$0xff]
          %v2971 = vld [vmem:[#allocation11] sm:$0x1]
          %v2972 = vld [vmem:[#allocation12] sm:$0x1]
          %v2973 = vld [vmem:[#allocation2] sm:$0xff]
          %v2974 = vld [vmem:[#allocation2 + $0x40] sm:$0xff]
          %v2975 = vld [vmem:[#allocation2 + $0x80] sm:$0xff]
          %v2976 = vld [vmem:[#allocation2 + $0xc0] sm:$0xff]
          %v2977 = vld [vmem:[#allocation2 + $0x100] sm:$0xff]
          %v2978 = vld [vmem:[#allocation2 + $0x140] sm:$0xff]
          %v2979 = vld [vmem:[#allocation2 + $0x180] sm:$0xff]
          %v2980 = vld [vmem:[#allocation2 + $0x1c0] sm:$0xff]
          %v2981 = vld [vmem:[#allocation2 + $0x200] sm:$0xff]
          %v2982 = vld [vmem:[#allocation2 + $0x240] sm:$0xff]
          %v2983 = vld [vmem:[#allocation2 + $0x280] sm:$0xff]
          %v2984 = vld [vmem:[#allocation2 + $0x2c0] sm:$0xff]
          %v2985 = vld [vmem:[#allocation2 + $0x300] sm:$0xff]
          %v2986 = vld [vmem:[#allocation2 + $0x340] sm:$0xff]
          %v2987 = vld [vmem:[#allocation2 + $0x380] sm:$0xff]
          %v2988 = vld [vmem:[#allocation2 + $0x3c0] sm:$0xff]
          %v2989 = vld [vmem:[#allocation2 + $0x400] sm:$0xff]
          %v2990 = vld [vmem:[#allocation2 + $0x440] sm:$0xff]
          %v2991 = vld [vmem:[#allocation2 + $0x480] sm:$0xff]
          %v2992 = vld [vmem:[#allocation2 + $0x4c0] sm:$0xff]
          %v2993 = vld [vmem:[#allocation2 + $0x500] sm:$0xff]
          %v2994 = vld [vmem:[#allocation2 + $0x540] sm:$0xff]
          %v2995 = vld [vmem:[#allocation2 + $0x580] sm:$0xff]
          %v2996 = vld [vmem:[#allocation2 + $0x5c0] sm:$0xff]
          %v2997 = vld [vmem:[#allocation2 + $0x600] sm:$0xff]
          %v2998 = vld [vmem:[#allocation2 + $0x640] sm:$0xff]
          %v2999 = vld [vmem:[#allocation2 + $0x680] sm:$0xff]
          %v3000 = vld [vmem:[#allocation2 + $0x6c0] sm:$0xff]
          %v3001 = vld [vmem:[#allocation2 + $0x700] sm:$0xff]
          %v3002 = vld [vmem:[#allocation2 + $0x740] sm:$0xff]
          %v3003 = vld [vmem:[#allocation2 + $0x780] sm:$0xff]
          %v3004 = vld [vmem:[#allocation2 + $0x7c0] sm:$0xff]
          %v3005 = vmul.f32 %v2973, %v2973
          %v3006 = vmul.f32 %v2974, %v2974
          %v3007 = vmul.f32 %v2975, %v2975
          %v3008 = vmul.f32 %v2976, %v2976
          %v3009 = vmul.f32 %v2977, %v2977
          %v3010 = vmul.f32 %v2978, %v2978
          %v3011 = vmul.f32 %v2979, %v2979
          %v3012 = vmul.f32 %v2980, %v2980
          %v3013 = vmul.f32 %v2981, %v2981
          %v3014 = vmul.f32 %v2982, %v2982
          %v3015 = vmul.f32 %v2983, %v2983
          %v3016 = vmul.f32 %v2984, %v2984
          %v3017 = vmul.f32 %v2985, %v2985
          %v3018 = vmul.f32 %v2986, %v2986
          %v3019 = vmul.f32 %v2987, %v2987
          %v3020 = vmul.f32 %v2988, %v2988
          %v3021 = vmul.f32 %v2989, %v2989
          %v3022 = vmul.f32 %v2990, %v2990
          %v3023 = vmul.f32 %v2991, %v2991
          %v3024 = vmul.f32 %v2992, %v2992
          %v3025 = vmul.f32 %v2993, %v2993
          %v3026 = vmul.f32 %v2994, %v2994
          %v3027 = vmul.f32 %v2995, %v2995
          %v3028 = vmul.f32 %v2996, %v2996
          %v3029 = vmul.f32 %v2997, %v2997
          %v3030 = vmul.f32 %v2998, %v2998
          %v3031 = vmul.f32 %v2999, %v2999
          %v3032 = vmul.f32 %v3000, %v3000
          %v3033 = vmul.f32 %v3001, %v3001
          %v3034 = vmul.f32 %v3002, %v3002
          %v3035 = vmul.f32 %v3003, %v3003
          %v3036 = vmul.f32 %v3004, %v3004
          %3037 = vadd.xlane.f32.xlu0 %v3005
          %v3038 = vpop.xlane.xlu0 %3037
          %3039 = vadd.xlane.f32.xlu0 %v3006
          %v3040 = vpop.xlane.xlu0 %3039
          %3041 = vadd.xlane.f32.xlu0 %v3007
          %v3042 = vpop.xlane.xlu0 %3041
          %3043 = vadd.xlane.f32.xlu0 %v3008
          %v3044 = vpop.xlane.xlu0 %3043
          %3045 = vadd.xlane.f32.xlu0 %v3009
          %v3046 = vpop.xlane.xlu0 %3045
          %3047 = vadd.xlane.f32.xlu0 %v3010
          %v3048 = vpop.xlane.xlu0 %3047
          %3049 = vadd.xlane.f32.xlu0 %v3011
          %v3050 = vpop.xlane.xlu0 %3049
          %3051 = vadd.xlane.f32.xlu0 %v3012
          %v3052 = vpop.xlane.xlu0 %3051
          %3053 = vadd.xlane.f32.xlu0 %v3013
          %v3054 = vpop.xlane.xlu0 %3053
          %3055 = vadd.xlane.f32.xlu0 %v3014
          %v3056 = vpop.xlane.xlu0 %3055
          %3057 = vadd.xlane.f32.xlu0 %v3015
          %v3058 = vpop.xlane.xlu0 %3057
          %3059 = vadd.xlane.f32.xlu0 %v3016
          %v3060 = vpop.xlane.xlu0 %3059
          %3061 = vadd.xlane.f32.xlu0 %v3017
          %v3062 = vpop.xlane.xlu0 %3061
          %3063 = vadd.xlane.f32.xlu0 %v3018
          %v3064 = vpop.xlane.xlu0 %3063
          %3065 = vadd.xlane.f32.xlu0 %v3019
          %v3066 = vpop.xlane.xlu0 %3065
          %3067 = vadd.xlane.f32.xlu0 %v3020
          %v3068 = vpop.xlane.xlu0 %3067
          %3069 = vadd.xlane.f32.xlu0 %v3021
          %v3070 = vpop.xlane.xlu0 %3069
          %3071 = vadd.xlane.f32.xlu0 %v3022
          %v3072 = vpop.xlane.xlu0 %3071
          %3073 = vadd.xlane.f32.xlu0 %v3023
          %v3074 = vpop.xlane.xlu0 %3073
          %3075 = vadd.xlane.f32.xlu0 %v3024
          %v3076 = vpop.xlane.xlu0 %3075
          %3077 = vadd.xlane.f32.xlu0 %v3025
          %v3078 = vpop.xlane.xlu0 %3077
          %3079 = vadd.xlane.f32.xlu0 %v3026
          %v3080 = vpop.xlane.xlu0 %3079
          %3081 = vadd.xlane.f32.xlu0 %v3027
          %v3082 = vpop.xlane.xlu0 %3081
          %3083 = vadd.xlane.f32.xlu0 %v3028
          %v3084 = vpop.xlane.xlu0 %3083
          %3085 = vadd.xlane.f32.xlu0 %v3029
          %v3086 = vpop.xlane.xlu0 %3085
          %3087 = vadd.xlane.f32.xlu0 %v3030
          %v3088 = vpop.xlane.xlu0 %3087
          %3089 = vadd.xlane.f32.xlu0 %v3031
          %v3090 = vpop.xlane.xlu0 %3089
          %3091 = vadd.xlane.f32.xlu0 %v3032
          %v3092 = vpop.xlane.xlu0 %3091
          %3093 = vadd.xlane.f32.xlu0 %v3033
          %v3094 = vpop.xlane.xlu0 %3093
          %3095 = vadd.xlane.f32.xlu0 %v3034
          %v3096 = vpop.xlane.xlu0 %3095
          %3097 = vadd.xlane.f32.xlu0 %v3035
          %v3098 = vpop.xlane.xlu0 %3097
          %3099 = vadd.xlane.f32.xlu0 %v3036
          %v3100 = vpop.xlane.xlu0 %3099
          %v3101 = vrcp.pop 128.0
          %v3102 = vmul.f32 %v3038, %v3101
          %v3103 = vmul.f32 %v3040, %v3101
          %v3104 = vmul.f32 %v3042, %v3101
          %v3105 = vmul.f32 %v3044, %v3101
          %v3106 = vmul.f32 %v3046, %v3101
          %v3107 = vmul.f32 %v3048, %v3101
          %v3108 = vmul.f32 %v3050, %v3101
          %v3109 = vmul.f32 %v3052, %v3101
          %v3110 = vmul.f32 %v3054, %v3101
          %v3111 = vmul.f32 %v3056, %v3101
          %v3112 = vmul.f32 %v3058, %v3101
          %v3113 = vmul.f32 %v3060, %v3101
          %v3114 = vmul.f32 %v3062, %v3101
          %v3115 = vmul.f32 %v3064, %v3101
          %v3116 = vmul.f32 %v3066, %v3101
          %v3117 = vmul.f32 %v3068, %v3101
          %v3118 = vmul.f32 %v3070, %v3101
          %v3119 = vmul.f32 %v3072, %v3101
          %v3120 = vmul.f32 %v3074, %v3101
          %v3121 = vmul.f32 %v3076, %v3101
          %v3122 = vmul.f32 %v3078, %v3101
          %v3123 = vmul.f32 %v3080, %v3101
          %v3124 = vmul.f32 %v3082, %v3101
          %v3125 = vmul.f32 %v3084, %v3101
          %v3126 = vmul.f32 %v3086, %v3101
          %v3127 = vmul.f32 %v3088, %v3101
          %v3128 = vmul.f32 %v3090, %v3101
          %v3129 = vmul.f32 %v3092, %v3101
          %v3130 = vmul.f32 %v3094, %v3101
          %v3131 = vmul.f32 %v3096, %v3101
          %v3132 = vmul.f32 %v3098, %v3101
          %v3133 = vmul.f32 %v3100, %v3101
          %v3134 = vadd.f32 %v3102, 1e-06
          %v3135 = vadd.f32 %v3103, 1e-06
          %v3136 = vadd.f32 %v3104, 1e-06
          %v3137 = vadd.f32 %v3105, 1e-06
          %v3138 = vadd.f32 %v3106, 1e-06
          %v3139 = vadd.f32 %v3107, 1e-06
          %v3140 = vadd.f32 %v3108, 1e-06
          %v3141 = vadd.f32 %v3109, 1e-06
          %v3142 = vadd.f32 %v3110, 1e-06
          %v3143 = vadd.f32 %v3111, 1e-06
          %v3144 = vadd.f32 %v3112, 1e-06
          %v3145 = vadd.f32 %v3113, 1e-06
          %v3146 = vadd.f32 %v3114, 1e-06
          %v3147 = vadd.f32 %v3115, 1e-06
          %v3148 = vadd.f32 %v3116, 1e-06
          %v3149 = vadd.f32 %v3117, 1e-06
          %v3150 = vadd.f32 %v3118, 1e-06
          %v3151 = vadd.f32 %v3119, 1e-06
          %v3152 = vadd.f32 %v3120, 1e-06
          %v3153 = vadd.f32 %v3121, 1e-06
          %v3154 = vadd.f32 %v3122, 1e-06
          %v3155 = vadd.f32 %v3123, 1e-06
          %v3156 = vadd.f32 %v3124, 1e-06
          %v3157 = vadd.f32 %v3125, 1e-06
          %v3158 = vadd.f32 %v3126, 1e-06
          %v3159 = vadd.f32 %v3127, 1e-06
          %v3160 = vadd.f32 %v3128, 1e-06
          %v3161 = vadd.f32 %v3129, 1e-06
          %v3162 = vadd.f32 %v3130, 1e-06
          %v3163 = vadd.f32 %v3131, 1e-06
          %v3164 = vadd.f32 %v3132, 1e-06
          %v3165 = vadd.f32 %v3133, 1e-06
          %v3166 = vrsqrt.pop %v3134
          %v3167 = vrsqrt.pop %v3135
          %v3168 = vrsqrt.pop %v3136
          %v3169 = vrsqrt.pop %v3137
          %v3170 = vrsqrt.pop %v3138
          %v3171 = vrsqrt.pop %v3139
          %v3172 = vrsqrt.pop %v3140
          %v3173 = vrsqrt.pop %v3141
          %v3174 = vrsqrt.pop %v3142
          %v3175 = vrsqrt.pop %v3143
          %v3176 = vrsqrt.pop %v3144
          %v3177 = vrsqrt.pop %v3145
          %v3178 = vrsqrt.pop %v3146
          %v3179 = vrsqrt.pop %v3147
          %v3180 = vrsqrt.pop %v3148
          %v3181 = vrsqrt.pop %v3149
          %v3182 = vrsqrt.pop %v3150
          %v3183 = vrsqrt.pop %v3151
          %v3184 = vrsqrt.pop %v3152
          %v3185 = vrsqrt.pop %v3153
          %v3186 = vrsqrt.pop %v3154
          %v3187 = vrsqrt.pop %v3155
          %v3188 = vrsqrt.pop %v3156
          %v3189 = vrsqrt.pop %v3157
          %v3190 = vrsqrt.pop %v3158
          %v3191 = vrsqrt.pop %v3159
          %v3192 = vrsqrt.pop %v3160
          %v3193 = vrsqrt.pop %v3161
          %v3194 = vrsqrt.pop %v3162
          %v3195 = vrsqrt.pop %v3163
          %v3196 = vrsqrt.pop %v3164
          %v3197 = vrsqrt.pop %v3165
          %v3198 = vmul.f32 %v2973, %v3166
          %v3199 = vmul.f32 %v2974, %v3167
          %v3200 = vmul.f32 %v2975, %v3168
          %v3201 = vmul.f32 %v2976, %v3169
          %v3202 = vmul.f32 %v2977, %v3170
          %v3203 = vmul.f32 %v2978, %v3171
          %v3204 = vmul.f32 %v2979, %v3172
          %v3205 = vmul.f32 %v2980, %v3173
          %v3206 = vmul.f32 %v2981, %v3174
          %v3207 = vmul.f32 %v2982, %v3175
          %v3208 = vmul.f32 %v2983, %v3176
          %v3209 = vmul.f32 %v2984, %v3177
          %v3210 = vmul.f32 %v2985, %v3178
          %v3211 = vmul.f32 %v2986, %v3179
          %v3212 = vmul.f32 %v2987, %v3180
          %v3213 = vmul.f32 %v2988, %v3181
          %v3214 = vmul.f32 %v2989, %v3182
          %v3215 = vmul.f32 %v2990, %v3183
          %v3216 = vmul.f32 %v2991, %v3184
          %v3217 = vmul.f32 %v2992, %v3185
          %v3218 = vmul.f32 %v2993, %v3186
          %v3219 = vmul.f32 %v2994, %v3187
          %v3220 = vmul.f32 %v2995, %v3188
          %v3221 = vmul.f32 %v2996, %v3189
          %v3222 = vmul.f32 %v2997, %v3190
          %v3223 = vmul.f32 %v2998, %v3191
          %v3224 = vmul.f32 %v2999, %v3192
          %v3225 = vmul.f32 %v3000, %v3193
          %v3226 = vmul.f32 %v3001, %v3194
          %v3227 = vmul.f32 %v3002, %v3195
          %v3228 = vmul.f32 %v3003, %v3196
          %v3229 = vmul.f32 %v3004, %v3197
          %v3231 = vlaneseq
          %v3232 = vshrl.u32 %v3231, 7
          %v3233 = vsub.s32 0, %v3232
          %v3234 = vrot.slane %v2971, %v3233
          %v3236 = vmul.f32 %v3198, %v3234
          %v3237 = vmul.f32 %v3199, %v3234
          %v3238 = vmul.f32 %v3200, %v3234
          %v3239 = vmul.f32 %v3201, %v3234
          %v3240 = vmul.f32 %v3202, %v3234
          %v3241 = vmul.f32 %v3203, %v3234
          %v3242 = vmul.f32 %v3204, %v3234
          %v3243 = vmul.f32 %v3205, %v3234
          %v3244 = vmul.f32 %v3206, %v3234
          %v3245 = vmul.f32 %v3207, %v3234
          %v3246 = vmul.f32 %v3208, %v3234
          %v3247 = vmul.f32 %v3209, %v3234
          %v3248 = vmul.f32 %v3210, %v3234
          %v3249 = vmul.f32 %v3211, %v3234
          %v3250 = vmul.f32 %v3212, %v3234
          %v3251 = vmul.f32 %v3213, %v3234
          %v3252 = vmul.f32 %v3214, %v3234
          %v3253 = vmul.f32 %v3215, %v3234
          %v3254 = vmul.f32 %v3216, %v3234
          %v3255 = vmul.f32 %v3217, %v3234
          %v3256 = vmul.f32 %v3218, %v3234
          %v3257 = vmul.f32 %v3219, %v3234
          %v3258 = vmul.f32 %v3220, %v3234
          %v3259 = vmul.f32 %v3221, %v3234
          %v3260 = vmul.f32 %v3222, %v3234
          %v3261 = vmul.f32 %v3223, %v3234
          %v3262 = vmul.f32 %v3224, %v3234
          %v3263 = vmul.f32 %v3225, %v3234
          %v3264 = vmul.f32 %v3226, %v3234
          %v3265 = vmul.f32 %v3227, %v3234
          %v3266 = vmul.f32 %v3228, %v3234
          %v3267 = vmul.f32 %v3229, %v3234
          %v3268 = vmul.f32 %v3236, %v2907
          %v3269 = vmul.f32 %v3237, %v2908
          %v3270 = vmul.f32 %v3238, %v2909
          %v3271 = vmul.f32 %v3239, %v2910
          %v3272 = vmul.f32 %v3240, %v2911
          %v3273 = vmul.f32 %v3241, %v2912
          %v3274 = vmul.f32 %v3242, %v2913
          %v3275 = vmul.f32 %v3243, %v2914
          %v3276 = vmul.f32 %v3244, %v2915
          %v3277 = vmul.f32 %v3245, %v2916
          %v3278 = vmul.f32 %v3246, %v2917
          %v3279 = vmul.f32 %v3247, %v2918
          %v3280 = vmul.f32 %v3248, %v2919
          %v3281 = vmul.f32 %v3249, %v2920
          %v3282 = vmul.f32 %v3250, %v2921
          %v3283 = vmul.f32 %v3251, %v2922
          %v3284 = vmul.f32 %v3252, %v2923
          %v3285 = vmul.f32 %v3253, %v2924
          %v3286 = vmul.f32 %v3254, %v2925
          %v3287 = vmul.f32 %v3255, %v2926
          %v3288 = vmul.f32 %v3256, %v2927
          %v3289 = vmul.f32 %v3257, %v2928
          %v3290 = vmul.f32 %v3258, %v2929
          %v3291 = vmul.f32 %v3259, %v2930
          %v3292 = vmul.f32 %v3260, %v2931
          %v3293 = vmul.f32 %v3261, %v2932
          %v3294 = vmul.f32 %v3262, %v2933
          %v3295 = vmul.f32 %v3263, %v2934
          %v3296 = vmul.f32 %v3264, %v2935
          %v3297 = vmul.f32 %v3265, %v2936
          %v3298 = vmul.f32 %v3266, %v2937
          %v3299 = vmul.f32 %v3267, %v2938
          %3300 = vrot.lane.b32.xlu0 %v3236, 64
          %v3301 = vpop.permute.xlu0 %3300
          %3302 = vrot.lane.b32.xlu0 %v3237, 64
          %v3303 = vpop.permute.xlu0 %3302
          %3304 = vrot.lane.b32.xlu0 %v3238, 64
          %v3305 = vpop.permute.xlu0 %3304
          %3306 = vrot.lane.b32.xlu0 %v3239, 64
          %v3307 = vpop.permute.xlu0 %3306
          %3308 = vrot.lane.b32.xlu0 %v3240, 64
          %v3309 = vpop.permute.xlu0 %3308
          %3310 = vrot.lane.b32.xlu0 %v3241, 64
          %v3311 = vpop.permute.xlu0 %3310
          %3312 = vrot.lane.b32.xlu0 %v3242, 64
          %v3313 = vpop.permute.xlu0 %3312
          %3314 = vrot.lane.b32.xlu0 %v3243, 64
          %v3315 = vpop.permute.xlu0 %3314
          %3316 = vrot.lane.b32.xlu0 %v3244, 64
          %v3317 = vpop.permute.xlu0 %3316
          %3318 = vrot.lane.b32.xlu0 %v3245, 64
          %v3319 = vpop.permute.xlu0 %3318
          %3320 = vrot.lane.b32.xlu0 %v3246, 64
          %v3321 = vpop.permute.xlu0 %3320
          %3322 = vrot.lane.b32.xlu0 %v3247, 64
          %v3323 = vpop.permute.xlu0 %3322
          %3324 = vrot.lane.b32.xlu0 %v3248, 64
          %v3325 = vpop.permute.xlu0 %3324
          %3326 = vrot.lane.b32.xlu0 %v3249, 64
          %v3327 = vpop.permute.xlu0 %3326
          %3328 = vrot.lane.b32.xlu0 %v3250, 64
          %v3329 = vpop.permute.xlu0 %3328
          %3330 = vrot.lane.b32.xlu0 %v3251, 64
          %v3331 = vpop.permute.xlu0 %3330
          %3332 = vrot.lane.b32.xlu0 %v3252, 64
          %v3333 = vpop.permute.xlu0 %3332
          %3334 = vrot.lane.b32.xlu0 %v3253, 64
          %v3335 = vpop.permute.xlu0 %3334
          %3336 = vrot.lane.b32.xlu0 %v3254, 64
          %v3337 = vpop.permute.xlu0 %3336
          %3338 = vrot.lane.b32.xlu0 %v3255, 64
          %v3339 = vpop.permute.xlu0 %3338
          %3340 = vrot.lane.b32.xlu0 %v3256, 64
          %v3341 = vpop.permute.xlu0 %3340
          %3342 = vrot.lane.b32.xlu0 %v3257, 64
          %v3343 = vpop.permute.xlu0 %3342
          %3344 = vrot.lane.b32.xlu0 %v3258, 64
          %v3345 = vpop.permute.xlu0 %3344
          %3346 = vrot.lane.b32.xlu0 %v3259, 64
          %v3347 = vpop.permute.xlu0 %3346
          %3348 = vrot.lane.b32.xlu0 %v3260, 64
          %v3349 = vpop.permute.xlu0 %3348
          %3350 = vrot.lane.b32.xlu0 %v3261, 64
          %v3351 = vpop.permute.xlu0 %3350
          %3352 = vrot.lane.b32.xlu0 %v3262, 64
          %v3353 = vpop.permute.xlu0 %3352
          %3354 = vrot.lane.b32.xlu0 %v3263, 64
          %v3355 = vpop.permute.xlu0 %3354
          %3356 = vrot.lane.b32.xlu0 %v3264, 64
          %v3357 = vpop.permute.xlu0 %3356
          %3358 = vrot.lane.b32.xlu0 %v3265, 64
          %v3359 = vpop.permute.xlu0 %3358
          %3360 = vrot.lane.b32.xlu0 %v3266, 64
          %v3361 = vpop.permute.xlu0 %3360
          %3362 = vrot.lane.b32.xlu0 %v3267, 64
          %v3363 = vpop.permute.xlu0 %3362
          %v3364 = vmul.f32 %v3301, %v2939
          %v3365 = vmul.f32 %v3303, %v2940
          %v3366 = vmul.f32 %v3305, %v2941
          %v3367 = vmul.f32 %v3307, %v2942
          %v3368 = vmul.f32 %v3309, %v2943
          %v3369 = vmul.f32 %v3311, %v2944
          %v3370 = vmul.f32 %v3313, %v2945
          %v3371 = vmul.f32 %v3315, %v2946
          %v3372 = vmul.f32 %v3317, %v2947
          %v3373 = vmul.f32 %v3319, %v2948
          %v3374 = vmul.f32 %v3321, %v2949
          %v3375 = vmul.f32 %v3323, %v2950
          %v3376 = vmul.f32 %v3325, %v2951
          %v3377 = vmul.f32 %v3327, %v2952
          %v3378 = vmul.f32 %v3329, %v2953
          %v3379 = vmul.f32 %v3331, %v2954
          %v3380 = vmul.f32 %v3333, %v2955
          %v3381 = vmul.f32 %v3335, %v2956
          %v3382 = vmul.f32 %v3337, %v2957
          %v3383 = vmul.f32 %v3339, %v2958
          %v3384 = vmul.f32 %v3341, %v2959
          %v3385 = vmul.f32 %v3343, %v2960
          %v3386 = vmul.f32 %v3345, %v2961
          %v3387 = vmul.f32 %v3347, %v2962
          %v3388 = vmul.f32 %v3349, %v2963
          %v3389 = vmul.f32 %v3351, %v2964
          %v3390 = vmul.f32 %v3353, %v2965
          %v3391 = vmul.f32 %v3355, %v2966
          %v3392 = vmul.f32 %v3357, %v2967
          %v3393 = vmul.f32 %v3359, %v2968
          %v3394 = vmul.f32 %v3361, %v2969
          %v3395 = vmul.f32 %v3363, %v2970
          %v3396 = vadd.f32 %v3268, %v3364
          %v3397 = vadd.f32 %v3269, %v3365
          %v3398 = vadd.f32 %v3270, %v3366
          %v3399 = vadd.f32 %v3271, %v3367
          %v3400 = vadd.f32 %v3272, %v3368
          %v3401 = vadd.f32 %v3273, %v3369
          %v3402 = vadd.f32 %v3274, %v3370
          %v3403 = vadd.f32 %v3275, %v3371
          %v3404 = vadd.f32 %v3276, %v3372
          %v3405 = vadd.f32 %v3277, %v3373
          %v3406 = vadd.f32 %v3278, %v3374
          %v3407 = vadd.f32 %v3279, %v3375
          %v3408 = vadd.f32 %v3280, %v3376
          %v3409 = vadd.f32 %v3281, %v3377
          %v3410 = vadd.f32 %v3282, %v3378
          %v3411 = vadd.f32 %v3283, %v3379
          %v3412 = vadd.f32 %v3284, %v3380
          %v3413 = vadd.f32 %v3285, %v3381
          %v3414 = vadd.f32 %v3286, %v3382
          %v3415 = vadd.f32 %v3287, %v3383
          %v3416 = vadd.f32 %v3288, %v3384
          %v3417 = vadd.f32 %v3289, %v3385
          %v3418 = vadd.f32 %v3290, %v3386
          %v3419 = vadd.f32 %v3291, %v3387
          %v3420 = vadd.f32 %v3292, %v3388
          %v3421 = vadd.f32 %v3293, %v3389
          %v3422 = vadd.f32 %v3294, %v3390
          %v3423 = vadd.f32 %v3295, %v3391
          %v3424 = vadd.f32 %v3296, %v3392
          %v3425 = vadd.f32 %v3297, %v3393
          %v3426 = vadd.f32 %v3298, %v3394
          %v3427 = vadd.f32 %v3299, %v3395
          %3428 = vst [vmem:[%s504] sm:$0xff] %v3396
          %3429 = vst [vmem:[%s504 + $0x8] sm:$0xff] %v3397
          %3430 = vst [vmem:[%s504 + $0x10] sm:$0xff] %v3398
          %3431 = vst [vmem:[%s504 + $0x18] sm:$0xff] %v3399
          %3432 = vst [vmem:[%s504 + $0x20] sm:$0xff] %v3400
          %3433 = vst [vmem:[%s504 + $0x28] sm:$0xff] %v3401
          %3434 = vst [vmem:[%s504 + $0x30] sm:$0xff] %v3402
          %3435 = vst [vmem:[%s504 + $0x38] sm:$0xff] %v3403
          %3436 = vst [vmem:[%s504 + $0x40] sm:$0xff] %v3404
          %3437 = vst [vmem:[%s504 + $0x48] sm:$0xff] %v3405
          %3438 = vst [vmem:[%s504 + $0x50] sm:$0xff] %v3406
          %3439 = vst [vmem:[%s504 + $0x58] sm:$0xff] %v3407
          %3440 = vst [vmem:[%s504 + $0x60] sm:$0xff] %v3408
          %3441 = vst [vmem:[%s504 + $0x68] sm:$0xff] %v3409
          %3442 = vst [vmem:[%s504 + $0x70] sm:$0xff] %v3410
          %3443 = vst [vmem:[%s504 + $0x78] sm:$0xff] %v3411
          %3444 = vst [vmem:[%s504 + $0x80] sm:$0xff] %v3412
          %3445 = vst [vmem:[%s504 + $0x88] sm:$0xff] %v3413
          %3446 = vst [vmem:[%s504 + $0x90] sm:$0xff] %v3414
          %3447 = vst [vmem:[%s504 + $0x98] sm:$0xff] %v3415
          %3448 = vst [vmem:[%s504 + $0xa0] sm:$0xff] %v3416
          %3449 = vst [vmem:[%s504 + $0xa8] sm:$0xff] %v3417
          %3450 = vst [vmem:[%s504 + $0xb0] sm:$0xff] %v3418
          %3451 = vst [vmem:[%s504 + $0xb8] sm:$0xff] %v3419
          %3452 = vst [vmem:[%s504 + $0xc0] sm:$0xff] %v3420
          %3453 = vst [vmem:[%s504 + $0xc8] sm:$0xff] %v3421
          %3454 = vst [vmem:[%s504 + $0xd0] sm:$0xff] %v3422
          %3455 = vst [vmem:[%s504 + $0xd8] sm:$0xff] %v3423
          %3456 = vst [vmem:[%s504 + $0xe0] sm:$0xff] %v3424
          %3457 = vst [vmem:[%s504 + $0xe8] sm:$0xff] %v3425
          %3458 = vst [vmem:[%s504 + $0xf0] sm:$0xff] %v3426
          %3459 = vst [vmem:[%s504 + $0xf8] sm:$0xff] %v3427
          %v3460 = vld [vmem:[#allocation2 + $0x8] sm:$0xff]
          %v3461 = vld [vmem:[#allocation2 + $0x48] sm:$0xff]
          %v3462 = vld [vmem:[#allocation2 + $0x88] sm:$0xff]
          %v3463 = vld [vmem:[#allocation2 + $0xc8] sm:$0xff]
          %v3464 = vld [vmem:[#allocation2 + $0x108] sm:$0xff]
          %v3465 = vld [vmem:[#allocation2 + $0x148] sm:$0xff]
          %v3466 = vld [vmem:[#allocation2 + $0x188] sm:$0xff]
          %v3467 = vld [vmem:[#allocation2 + $0x1c8] sm:$0xff]
          %v3468 = vld [vmem:[#allocation2 + $0x208] sm:$0xff]
          %v3469 = vld [vmem:[#allocation2 + $0x248] sm:$0xff]
          %v3470 = vld [vmem:[#allocation2 + $0x288] sm:$0xff]
          %v3471 = vld [vmem:[#allocation2 + $0x2c8] sm:$0xff]
          %v3472 = vld [vmem:[#allocation2 + $0x308] sm:$0xff]
          %v3473 = vld [vmem:[#allocation2 + $0x348] sm:$0xff]
          %v3474 = vld [vmem:[#allocation2 + $0x388] sm:$0xff]
          %v3475 = vld [vmem:[#allocation2 + $0x3c8] sm:$0xff]
          %v3476 = vld [vmem:[#allocation2 + $0x408] sm:$0xff]
          %v3477 = vld [vmem:[#allocation2 + $0x448] sm:$0xff]
          %v3478 = vld [vmem:[#allocation2 + $0x488] sm:$0xff]
          %v3479 = vld [vmem:[#allocation2 + $0x4c8] sm:$0xff]
          %v3480 = vld [vmem:[#allocation2 + $0x508] sm:$0xff]
          %v3481 = vld [vmem:[#allocation2 + $0x548] sm:$0xff]
          %v3482 = vld [vmem:[#allocation2 + $0x588] sm:$0xff]
          %v3483 = vld [vmem:[#allocation2 + $0x5c8] sm:$0xff]
          %v3484 = vld [vmem:[#allocation2 + $0x608] sm:$0xff]
          %v3485 = vld [vmem:[#allocation2 + $0x648] sm:$0xff]
          %v3486 = vld [vmem:[#allocation2 + $0x688] sm:$0xff]
          %v3487 = vld [vmem:[#allocation2 + $0x6c8] sm:$0xff]
          %v3488 = vld [vmem:[#allocation2 + $0x708] sm:$0xff]
          %v3489 = vld [vmem:[#allocation2 + $0x748] sm:$0xff]
          %v3490 = vld [vmem:[#allocation2 + $0x788] sm:$0xff]
          %v3491 = vld [vmem:[#allocation2 + $0x7c8] sm:$0xff]
          %v3492 = vmul.f32 %v3460, %v3460
          %v3493 = vmul.f32 %v3461, %v3461
          %v3494 = vmul.f32 %v3462, %v3462
          %v3495 = vmul.f32 %v3463, %v3463
          %v3496 = vmul.f32 %v3464, %v3464
          %v3497 = vmul.f32 %v3465, %v3465
          %v3498 = vmul.f32 %v3466, %v3466
          %v3499 = vmul.f32 %v3467, %v3467
          %v3500 = vmul.f32 %v3468, %v3468
          %v3501 = vmul.f32 %v3469, %v3469
          %v3502 = vmul.f32 %v3470, %v3470
          %v3503 = vmul.f32 %v3471, %v3471
          %v3504 = vmul.f32 %v3472, %v3472
          %v3505 = vmul.f32 %v3473, %v3473
          %v3506 = vmul.f32 %v3474, %v3474
          %v3507 = vmul.f32 %v3475, %v3475
          %v3508 = vmul.f32 %v3476, %v3476
          %v3509 = vmul.f32 %v3477, %v3477
          %v3510 = vmul.f32 %v3478, %v3478
          %v3511 = vmul.f32 %v3479, %v3479
          %v3512 = vmul.f32 %v3480, %v3480
          %v3513 = vmul.f32 %v3481, %v3481
          %v3514 = vmul.f32 %v3482, %v3482
          %v3515 = vmul.f32 %v3483, %v3483
          %v3516 = vmul.f32 %v3484, %v3484
          %v3517 = vmul.f32 %v3485, %v3485
          %v3518 = vmul.f32 %v3486, %v3486
          %v3519 = vmul.f32 %v3487, %v3487
          %v3520 = vmul.f32 %v3488, %v3488
          %v3521 = vmul.f32 %v3489, %v3489
          %v3522 = vmul.f32 %v3490, %v3490
          %v3523 = vmul.f32 %v3491, %v3491
          %3524 = vadd.xlane.f32.xlu0 %v3492
          %v3525 = vpop.xlane.xlu0 %3524
          %3526 = vadd.xlane.f32.xlu0 %v3493
          %v3527 = vpop.xlane.xlu0 %3526
          %3528 = vadd.xlane.f32.xlu0 %v3494
          %v3529 = vpop.xlane.xlu0 %3528
          %3530 = vadd.xlane.f32.xlu0 %v3495
          %v3531 = vpop.xlane.xlu0 %3530
          %3532 = vadd.xlane.f32.xlu0 %v3496
          %v3533 = vpop.xlane.xlu0 %3532
          %3534 = vadd.xlane.f32.xlu0 %v3497
          %v3535 = vpop.xlane.xlu0 %3534
          %3536 = vadd.xlane.f32.xlu0 %v3498
          %v3537 = vpop.xlane.xlu0 %3536
          %3538 = vadd.xlane.f32.xlu0 %v3499
          %v3539 = vpop.xlane.xlu0 %3538
          %3540 = vadd.xlane.f32.xlu0 %v3500
          %v3541 = vpop.xlane.xlu0 %3540
          %3542 = vadd.xlane.f32.xlu0 %v3501
          %v3543 = vpop.xlane.xlu0 %3542
          %3544 = vadd.xlane.f32.xlu0 %v3502
          %v3545 = vpop.xlane.xlu0 %3544
          %3546 = vadd.xlane.f32.xlu0 %v3503
          %v3547 = vpop.xlane.xlu0 %3546
          %3548 = vadd.xlane.f32.xlu0 %v3504
          %v3549 = vpop.xlane.xlu0 %3548
          %3550 = vadd.xlane.f32.xlu0 %v3505
          %v3551 = vpop.xlane.xlu0 %3550
          %3552 = vadd.xlane.f32.xlu0 %v3506
          %v3553 = vpop.xlane.xlu0 %3552
          %3554 = vadd.xlane.f32.xlu0 %v3507
          %v3555 = vpop.xlane.xlu0 %3554
          %3556 = vadd.xlane.f32.xlu0 %v3508
          %v3557 = vpop.xlane.xlu0 %3556
          %3558 = vadd.xlane.f32.xlu0 %v3509
          %v3559 = vpop.xlane.xlu0 %3558
          %3560 = vadd.xlane.f32.xlu0 %v3510
          %v3561 = vpop.xlane.xlu0 %3560
          %3562 = vadd.xlane.f32.xlu0 %v3511
          %v3563 = vpop.xlane.xlu0 %3562
          %3564 = vadd.xlane.f32.xlu0 %v3512
          %v3565 = vpop.xlane.xlu0 %3564
          %3566 = vadd.xlane.f32.xlu0 %v3513
          %v3567 = vpop.xlane.xlu0 %3566
          %3568 = vadd.xlane.f32.xlu0 %v3514
          %v3569 = vpop.xlane.xlu0 %3568
          %3570 = vadd.xlane.f32.xlu0 %v3515
          %v3571 = vpop.xlane.xlu0 %3570
          %3572 = vadd.xlane.f32.xlu0 %v3516
          %v3573 = vpop.xlane.xlu0 %3572
          %3574 = vadd.xlane.f32.xlu0 %v3517
          %v3575 = vpop.xlane.xlu0 %3574
          %3576 = vadd.xlane.f32.xlu0 %v3518
          %v3577 = vpop.xlane.xlu0 %3576
          %3578 = vadd.xlane.f32.xlu0 %v3519
          %v3579 = vpop.xlane.xlu0 %3578
          %3580 = vadd.xlane.f32.xlu0 %v3520
          %v3581 = vpop.xlane.xlu0 %3580
          %3582 = vadd.xlane.f32.xlu0 %v3521
          %v3583 = vpop.xlane.xlu0 %3582
          %3584 = vadd.xlane.f32.xlu0 %v3522
          %v3585 = vpop.xlane.xlu0 %3584
          %3586 = vadd.xlane.f32.xlu0 %v3523
          %v3587 = vpop.xlane.xlu0 %3586
          %v3588 = vmul.f32 %v3525, %v3101
          %v3589 = vmul.f32 %v3527, %v3101
          %v3590 = vmul.f32 %v3529, %v3101
          %v3591 = vmul.f32 %v3531, %v3101
          %v3592 = vmul.f32 %v3533, %v3101
          %v3593 = vmul.f32 %v3535, %v3101
          %v3594 = vmul.f32 %v3537, %v3101
          %v3595 = vmul.f32 %v3539, %v3101
          %v3596 = vmul.f32 %v3541, %v3101
          %v3597 = vmul.f32 %v3543, %v3101
          %v3598 = vmul.f32 %v3545, %v3101
          %v3599 = vmul.f32 %v3547, %v3101
          %v3600 = vmul.f32 %v3549, %v3101
          %v3601 = vmul.f32 %v3551, %v3101
          %v3602 = vmul.f32 %v3553, %v3101
          %v3603 = vmul.f32 %v3555, %v3101
          %v3604 = vmul.f32 %v3557, %v3101
          %v3605 = vmul.f32 %v3559, %v3101
          %v3606 = vmul.f32 %v3561, %v3101
          %v3607 = vmul.f32 %v3563, %v3101
          %v3608 = vmul.f32 %v3565, %v3101
          %v3609 = vmul.f32 %v3567, %v3101
          %v3610 = vmul.f32 %v3569, %v3101
          %v3611 = vmul.f32 %v3571, %v3101
          %v3612 = vmul.f32 %v3573, %v3101
          %v3613 = vmul.f32 %v3575, %v3101
          %v3614 = vmul.f32 %v3577, %v3101
          %v3615 = vmul.f32 %v3579, %v3101
          %v3616 = vmul.f32 %v3581, %v3101
          %v3617 = vmul.f32 %v3583, %v3101
          %v3618 = vmul.f32 %v3585, %v3101
          %v3619 = vmul.f32 %v3587, %v3101
          %v3620 = vadd.f32 %v3588, 1e-06
          %v3621 = vadd.f32 %v3589, 1e-06
          %v3622 = vadd.f32 %v3590, 1e-06
          %v3623 = vadd.f32 %v3591, 1e-06
          %v3624 = vadd.f32 %v3592, 1e-06
          %v3625 = vadd.f32 %v3593, 1e-06
          %v3626 = vadd.f32 %v3594, 1e-06
          %v3627 = vadd.f32 %v3595, 1e-06
          %v3628 = vadd.f32 %v3596, 1e-06
          %v3629 = vadd.f32 %v3597, 1e-06
          %v3630 = vadd.f32 %v3598, 1e-06
          %v3631 = vadd.f32 %v3599, 1e-06
          %v3632 = vadd.f32 %v3600, 1e-06
          %v3633 = vadd.f32 %v3601, 1e-06
          %v3634 = vadd.f32 %v3602, 1e-06
          %v3635 = vadd.f32 %v3603, 1e-06
          %v3636 = vadd.f32 %v3604, 1e-06
          %v3637 = vadd.f32 %v3605, 1e-06
          %v3638 = vadd.f32 %v3606, 1e-06
          %v3639 = vadd.f32 %v3607, 1e-06
          %v3640 = vadd.f32 %v3608, 1e-06
          %v3641 = vadd.f32 %v3609, 1e-06
          %v3642 = vadd.f32 %v3610, 1e-06
          %v3643 = vadd.f32 %v3611, 1e-06
          %v3644 = vadd.f32 %v3612, 1e-06
          %v3645 = vadd.f32 %v3613, 1e-06
          %v3646 = vadd.f32 %v3614, 1e-06
          %v3647 = vadd.f32 %v3615, 1e-06
          %v3648 = vadd.f32 %v3616, 1e-06
          %v3649 = vadd.f32 %v3617, 1e-06
          %v3650 = vadd.f32 %v3618, 1e-06
          %v3651 = vadd.f32 %v3619, 1e-06
          %v3652 = vrsqrt.pop %v3620
          %v3653 = vrsqrt.pop %v3621
          %v3654 = vrsqrt.pop %v3622
          %v3655 = vrsqrt.pop %v3623
          %v3656 = vrsqrt.pop %v3624
          %v3657 = vrsqrt.pop %v3625
          %v3658 = vrsqrt.pop %v3626
          %v3659 = vrsqrt.pop %v3627
          %v3660 = vrsqrt.pop %v3628
          %v3661 = vrsqrt.pop %v3629
          %v3662 = vrsqrt.pop %v3630
          %v3663 = vrsqrt.pop %v3631
          %v3664 = vrsqrt.pop %v3632
          %v3665 = vrsqrt.pop %v3633
          %v3666 = vrsqrt.pop %v3634
          %v3667 = vrsqrt.pop %v3635
          %v3668 = vrsqrt.pop %v3636
          %v3669 = vrsqrt.pop %v3637
          %v3670 = vrsqrt.pop %v3638
          %v3671 = vrsqrt.pop %v3639
          %v3672 = vrsqrt.pop %v3640
          %v3673 = vrsqrt.pop %v3641
          %v3674 = vrsqrt.pop %v3642
          %v3675 = vrsqrt.pop %v3643
          %v3676 = vrsqrt.pop %v3644
          %v3677 = vrsqrt.pop %v3645
          %v3678 = vrsqrt.pop %v3646
          %v3679 = vrsqrt.pop %v3647
          %v3680 = vrsqrt.pop %v3648
          %v3681 = vrsqrt.pop %v3649
          %v3682 = vrsqrt.pop %v3650
          %v3683 = vrsqrt.pop %v3651
          %v3684 = vmul.f32 %v3460, %v3652
          %v3685 = vmul.f32 %v3461, %v3653
          %v3686 = vmul.f32 %v3462, %v3654
          %v3687 = vmul.f32 %v3463, %v3655
          %v3688 = vmul.f32 %v3464, %v3656
          %v3689 = vmul.f32 %v3465, %v3657
          %v3690 = vmul.f32 %v3466, %v3658
          %v3691 = vmul.f32 %v3467, %v3659
          %v3692 = vmul.f32 %v3468, %v3660
          %v3693 = vmul.f32 %v3469, %v3661
          %v3694 = vmul.f32 %v3470, %v3662
          %v3695 = vmul.f32 %v3471, %v3663
          %v3696 = vmul.f32 %v3472, %v3664
          %v3697 = vmul.f32 %v3473, %v3665
          %v3698 = vmul.f32 %v3474, %v3666
          %v3699 = vmul.f32 %v3475, %v3667
          %v3700 = vmul.f32 %v3476, %v3668
          %v3701 = vmul.f32 %v3477, %v3669
          %v3702 = vmul.f32 %v3478, %v3670
          %v3703 = vmul.f32 %v3479, %v3671
          %v3704 = vmul.f32 %v3480, %v3672
          %v3705 = vmul.f32 %v3481, %v3673
          %v3706 = vmul.f32 %v3482, %v3674
          %v3707 = vmul.f32 %v3483, %v3675
          %v3708 = vmul.f32 %v3484, %v3676
          %v3709 = vmul.f32 %v3485, %v3677
          %v3710 = vmul.f32 %v3486, %v3678
          %v3711 = vmul.f32 %v3487, %v3679
          %v3712 = vmul.f32 %v3488, %v3680
          %v3713 = vmul.f32 %v3489, %v3681
          %v3714 = vmul.f32 %v3490, %v3682
          %v3715 = vmul.f32 %v3491, %v3683
          %v3716 = vmul.f32 %v3684, %v3234
          %v3717 = vmul.f32 %v3685, %v3234
          %v3718 = vmul.f32 %v3686, %v3234
          %v3719 = vmul.f32 %v3687, %v3234
          %v3720 = vmul.f32 %v3688, %v3234
          %v3721 = vmul.f32 %v3689, %v3234
          %v3722 = vmul.f32 %v3690, %v3234
          %v3723 = vmul.f32 %v3691, %v3234
          %v3724 = vmul.f32 %v3692, %v3234
          %v3725 = vmul.f32 %v3693, %v3234
          %v3726 = vmul.f32 %v3694, %v3234
          %v3727 = vmul.f32 %v3695, %v3234
          %v3728 = vmul.f32 %v3696, %v3234
          %v3729 = vmul.f32 %v3697, %v3234
          %v3730 = vmul.f32 %v3698, %v3234
          %v3731 = vmul.f32 %v3699, %v3234
          %v3732 = vmul.f32 %v3700, %v3234
          %v3733 = vmul.f32 %v3701, %v3234
          %v3734 = vmul.f32 %v3702, %v3234
          %v3735 = vmul.f32 %v3703, %v3234
          %v3736 = vmul.f32 %v3704, %v3234
          %v3737 = vmul.f32 %v3705, %v3234
          %v3738 = vmul.f32 %v3706, %v3234
          %v3739 = vmul.f32 %v3707, %v3234
          %v3740 = vmul.f32 %v3708, %v3234
          %v3741 = vmul.f32 %v3709, %v3234
          %v3742 = vmul.f32 %v3710, %v3234
          %v3743 = vmul.f32 %v3711, %v3234
          %v3744 = vmul.f32 %v3712, %v3234
          %v3745 = vmul.f32 %v3713, %v3234
          %v3746 = vmul.f32 %v3714, %v3234
          %v3747 = vmul.f32 %v3715, %v3234
          %v3748 = vmul.f32 %v3716, %v2907
          %v3749 = vmul.f32 %v3717, %v2908
          %v3750 = vmul.f32 %v3718, %v2909
          %v3751 = vmul.f32 %v3719, %v2910
          %v3752 = vmul.f32 %v3720, %v2911
          %v3753 = vmul.f32 %v3721, %v2912
          %v3754 = vmul.f32 %v3722, %v2913
          %v3755 = vmul.f32 %v3723, %v2914
          %v3756 = vmul.f32 %v3724, %v2915
          %v3757 = vmul.f32 %v3725, %v2916
          %v3758 = vmul.f32 %v3726, %v2917
          %v3759 = vmul.f32 %v3727, %v2918
          %v3760 = vmul.f32 %v3728, %v2919
          %v3761 = vmul.f32 %v3729, %v2920
          %v3762 = vmul.f32 %v3730, %v2921
          %v3763 = vmul.f32 %v3731, %v2922
          %v3764 = vmul.f32 %v3732, %v2923
          %v3765 = vmul.f32 %v3733, %v2924
          %v3766 = vmul.f32 %v3734, %v2925
          %v3767 = vmul.f32 %v3735, %v2926
          %v3768 = vmul.f32 %v3736, %v2927
          %v3769 = vmul.f32 %v3737, %v2928
          %v3770 = vmul.f32 %v3738, %v2929
          %v3771 = vmul.f32 %v3739, %v2930
          %v3772 = vmul.f32 %v3740, %v2931
          %v3773 = vmul.f32 %v3741, %v2932
          %v3774 = vmul.f32 %v3742, %v2933
          %v3775 = vmul.f32 %v3743, %v2934
          %v3776 = vmul.f32 %v3744, %v2935
          %v3777 = vmul.f32 %v3745, %v2936
          %v3778 = vmul.f32 %v3746, %v2937
          %v3779 = vmul.f32 %v3747, %v2938
          %3780 = vrot.lane.b32.xlu0 %v3716, 64
          %v3781 = vpop.permute.xlu0 %3780
          %3782 = vrot.lane.b32.xlu0 %v3717, 64
          %v3783 = vpop.permute.xlu0 %3782
          %3784 = vrot.lane.b32.xlu0 %v3718, 64
          %v3785 = vpop.permute.xlu0 %3784
          %3786 = vrot.lane.b32.xlu0 %v3719, 64
          %v3787 = vpop.permute.xlu0 %3786
          %3788 = vrot.lane.b32.xlu0 %v3720, 64
          %v3789 = vpop.permute.xlu0 %3788
          %3790 = vrot.lane.b32.xlu0 %v3721, 64
          %v3791 = vpop.permute.xlu0 %3790
          %3792 = vrot.lane.b32.xlu0 %v3722, 64
          %v3793 = vpop.permute.xlu0 %3792
          %3794 = vrot.lane.b32.xlu0 %v3723, 64
          %v3795 = vpop.permute.xlu0 %3794
          %3796 = vrot.lane.b32.xlu0 %v3724, 64
          %v3797 = vpop.permute.xlu0 %3796
          %3798 = vrot.lane.b32.xlu0 %v3725, 64
          %v3799 = vpop.permute.xlu0 %3798
          %3800 = vrot.lane.b32.xlu0 %v3726, 64
          %v3801 = vpop.permute.xlu0 %3800
          %3802 = vrot.lane.b32.xlu0 %v3727, 64
          %v3803 = vpop.permute.xlu0 %3802
          %3804 = vrot.lane.b32.xlu0 %v3728, 64
          %v3805 = vpop.permute.xlu0 %3804
          %3806 = vrot.lane.b32.xlu0 %v3729, 64
          %v3807 = vpop.permute.xlu0 %3806
          %3808 = vrot.lane.b32.xlu0 %v3730, 64
          %v3809 = vpop.permute.xlu0 %3808
          %3810 = vrot.lane.b32.xlu0 %v3731, 64
          %v3811 = vpop.permute.xlu0 %3810
          %3812 = vrot.lane.b32.xlu0 %v3732, 64
          %v3813 = vpop.permute.xlu0 %3812
          %3814 = vrot.lane.b32.xlu0 %v3733, 64
          %v3815 = vpop.permute.xlu0 %3814
          %3816 = vrot.lane.b32.xlu0 %v3734, 64
          %v3817 = vpop.permute.xlu0 %3816
          %3818 = vrot.lane.b32.xlu0 %v3735, 64
          %v3819 = vpop.permute.xlu0 %3818
          %3820 = vrot.lane.b32.xlu0 %v3736, 64
          %v3821 = vpop.permute.xlu0 %3820
          %3822 = vrot.lane.b32.xlu0 %v3737, 64
          %v3823 = vpop.permute.xlu0 %3822
          %3824 = vrot.lane.b32.xlu0 %v3738, 64
          %v3825 = vpop.permute.xlu0 %3824
          %3826 = vrot.lane.b32.xlu0 %v3739, 64
          %v3827 = vpop.permute.xlu0 %3826
          %3828 = vrot.lane.b32.xlu0 %v3740, 64
          %v3829 = vpop.permute.xlu0 %3828
          %3830 = vrot.lane.b32.xlu0 %v3741, 64
          %v3831 = vpop.permute.xlu0 %3830
          %3832 = vrot.lane.b32.xlu0 %v3742, 64
          %v3833 = vpop.permute.xlu0 %3832
          %3834 = vrot.lane.b32.xlu0 %v3743, 64
          %v3835 = vpop.permute.xlu0 %3834
          %3836 = vrot.lane.b32.xlu0 %v3744, 64
          %v3837 = vpop.permute.xlu0 %3836
          %3838 = vrot.lane.b32.xlu0 %v3745, 64
          %v3839 = vpop.permute.xlu0 %3838
          %3840 = vrot.lane.b32.xlu0 %v3746, 64
          %v3841 = vpop.permute.xlu0 %3840
          %3842 = vrot.lane.b32.xlu0 %v3747, 64
          %v3843 = vpop.permute.xlu0 %3842
          %v3844 = vmul.f32 %v3781, %v2939
          %v3845 = vmul.f32 %v3783, %v2940
          %v3846 = vmul.f32 %v3785, %v2941
          %v3847 = vmul.f32 %v3787, %v2942
          %v3848 = vmul.f32 %v3789, %v2943
          %v3849 = vmul.f32 %v3791, %v2944
          %v3850 = vmul.f32 %v3793, %v2945
          %v3851 = vmul.f32 %v3795, %v2946
          %v3852 = vmul.f32 %v3797, %v2947
          %v3853 = vmul.f32 %v3799, %v2948
          %v3854 = vmul.f32 %v3801, %v2949
          %v3855 = vmul.f32 %v3803, %v2950
          %v3856 = vmul.f32 %v3805, %v2951
          %v3857 = vmul.f32 %v3807, %v2952
          %v3858 = vmul.f32 %v3809, %v2953
          %v3859 = vmul.f32 %v3811, %v2954
          %v3860 = vmul.f32 %v3813, %v2955
          %v3861 = vmul.f32 %v3815, %v2956
          %v3862 = vmul.f32 %v3817, %v2957
          %v3863 = vmul.f32 %v3819, %v2958
          %v3864 = vmul.f32 %v3821, %v2959
          %v3865 = vmul.f32 %v3823, %v2960
          %v3866 = vmul.f32 %v3825, %v2961
          %v3867 = vmul.f32 %v3827, %v2962
          %v3868 = vmul.f32 %v3829, %v2963
          %v3869 = vmul.f32 %v3831, %v2964
          %v3870 = vmul.f32 %v3833, %v2965
          %v3871 = vmul.f32 %v3835, %v2966
          %v3872 = vmul.f32 %v3837, %v2967
          %v3873 = vmul.f32 %v3839, %v2968
          %v3874 = vmul.f32 %v3841, %v2969
          %v3875 = vmul.f32 %v3843, %v2970
          %v3876 = vadd.f32 %v3748, %v3844
          %v3877 = vadd.f32 %v3749, %v3845
          %v3878 = vadd.f32 %v3750, %v3846
          %v3879 = vadd.f32 %v3751, %v3847
          %v3880 = vadd.f32 %v3752, %v3848
          %v3881 = vadd.f32 %v3753, %v3849
          %v3882 = vadd.f32 %v3754, %v3850
          %v3883 = vadd.f32 %v3755, %v3851
          %v3884 = vadd.f32 %v3756, %v3852
          %v3885 = vadd.f32 %v3757, %v3853
          %v3886 = vadd.f32 %v3758, %v3854
          %v3887 = vadd.f32 %v3759, %v3855
          %v3888 = vadd.f32 %v3760, %v3856
          %v3889 = vadd.f32 %v3761, %v3857
          %v3890 = vadd.f32 %v3762, %v3858
          %v3891 = vadd.f32 %v3763, %v3859
          %v3892 = vadd.f32 %v3764, %v3860
          %v3893 = vadd.f32 %v3765, %v3861
          %v3894 = vadd.f32 %v3766, %v3862
          %v3895 = vadd.f32 %v3767, %v3863
          %v3896 = vadd.f32 %v3768, %v3864
          %v3897 = vadd.f32 %v3769, %v3865
          %v3898 = vadd.f32 %v3770, %v3866
          %v3899 = vadd.f32 %v3771, %v3867
          %v3900 = vadd.f32 %v3772, %v3868
          %v3901 = vadd.f32 %v3773, %v3869
          %v3902 = vadd.f32 %v3774, %v3870
          %v3903 = vadd.f32 %v3775, %v3871
          %v3904 = vadd.f32 %v3776, %v3872
          %v3905 = vadd.f32 %v3777, %v3873
          %v3906 = vadd.f32 %v3778, %v3874
          %v3907 = vadd.f32 %v3779, %v3875
          %s3908 = scalar_lea.vmem %s504, 256 [#allocation14]
          %3909 = vst [vmem:[%s3908] sm:$0xff] %v3876
          %3910 = vst [vmem:[%s3908 + $0x8] sm:$0xff] %v3877
          %3911 = vst [vmem:[%s3908 + $0x10] sm:$0xff] %v3878
          %3912 = vst [vmem:[%s3908 + $0x18] sm:$0xff] %v3879
          %3913 = vst [vmem:[%s3908 + $0x20] sm:$0xff] %v3880
          %3914 = vst [vmem:[%s3908 + $0x28] sm:$0xff] %v3881
          %3915 = vst [vmem:[%s3908 + $0x30] sm:$0xff] %v3882
          %3916 = vst [vmem:[%s3908 + $0x38] sm:$0xff] %v3883
          %3917 = vst [vmem:[%s3908 + $0x40] sm:$0xff] %v3884
          %3918 = vst [vmem:[%s3908 + $0x48] sm:$0xff] %v3885
          %3919 = vst [vmem:[%s3908 + $0x50] sm:$0xff] %v3886
          %3920 = vst [vmem:[%s3908 + $0x58] sm:$0xff] %v3887
          %3921 = vst [vmem:[%s3908 + $0x60] sm:$0xff] %v3888
          %3922 = vst [vmem:[%s3908 + $0x68] sm:$0xff] %v3889
          %3923 = vst [vmem:[%s3908 + $0x70] sm:$0xff] %v3890
          %3924 = vst [vmem:[%s3908 + $0x78] sm:$0xff] %v3891
          %3925 = vst [vmem:[%s3908 + $0x80] sm:$0xff] %v3892
          %3926 = vst [vmem:[%s3908 + $0x88] sm:$0xff] %v3893
          %3927 = vst [vmem:[%s3908 + $0x90] sm:$0xff] %v3894
          %3928 = vst [vmem:[%s3908 + $0x98] sm:$0xff] %v3895
          %3929 = vst [vmem:[%s3908 + $0xa0] sm:$0xff] %v3896
          %3930 = vst [vmem:[%s3908 + $0xa8] sm:$0xff] %v3897
          %3931 = vst [vmem:[%s3908 + $0xb0] sm:$0xff] %v3898
          %3932 = vst [vmem:[%s3908 + $0xb8] sm:$0xff] %v3899
          %3933 = vst [vmem:[%s3908 + $0xc0] sm:$0xff] %v3900
          %3934 = vst [vmem:[%s3908 + $0xc8] sm:$0xff] %v3901
          %3935 = vst [vmem:[%s3908 + $0xd0] sm:$0xff] %v3902
          %3936 = vst [vmem:[%s3908 + $0xd8] sm:$0xff] %v3903
          %3937 = vst [vmem:[%s3908 + $0xe0] sm:$0xff] %v3904
          %3938 = vst [vmem:[%s3908 + $0xe8] sm:$0xff] %v3905
          %3939 = vst [vmem:[%s3908 + $0xf0] sm:$0xff] %v3906
          %3940 = vst [vmem:[%s3908 + $0xf8] sm:$0xff] %v3907
          %v3941 = vld [vmem:[#allocation2 + $0x10] sm:$0xff]
          %v3942 = vld [vmem:[#allocation2 + $0x50] sm:$0xff]
          %v3943 = vld [vmem:[#allocation2 + $0x90] sm:$0xff]
          %v3944 = vld [vmem:[#allocation2 + $0xd0] sm:$0xff]
          %v3945 = vld [vmem:[#allocation2 + $0x110] sm:$0xff]
          %v3946 = vld [vmem:[#allocation2 + $0x150] sm:$0xff]
          %v3947 = vld [vmem:[#allocation2 + $0x190] sm:$0xff]
          %v3948 = vld [vmem:[#allocation2 + $0x1d0] sm:$0xff]
          %v3949 = vld [vmem:[#allocation2 + $0x210] sm:$0xff]
          %v3950 = vld [vmem:[#allocation2 + $0x250] sm:$0xff]
          %v3951 = vld [vmem:[#allocation2 + $0x290] sm:$0xff]
          %v3952 = vld [vmem:[#allocation2 + $0x2d0] sm:$0xff]
          %v3953 = vld [vmem:[#allocation2 + $0x310] sm:$0xff]
          %v3954 = vld [vmem:[#allocation2 + $0x350] sm:$0xff]
          %v3955 = vld [vmem:[#allocation2 + $0x390] sm:$0xff]
          %v3956 = vld [vmem:[#allocation2 + $0x3d0] sm:$0xff]
          %v3957 = vld [vmem:[#allocation2 + $0x410] sm:$0xff]
          %v3958 = vld [vmem:[#allocation2 + $0x450] sm:$0xff]
          %v3959 = vld [vmem:[#allocation2 + $0x490] sm:$0xff]
          %v3960 = vld [vmem:[#allocation2 + $0x4d0] sm:$0xff]
          %v3961 = vld [vmem:[#allocation2 + $0x510] sm:$0xff]
          %v3962 = vld [vmem:[#allocation2 + $0x550] sm:$0xff]
          %v3963 = vld [vmem:[#allocation2 + $0x590] sm:$0xff]
          %v3964 = vld [vmem:[#allocation2 + $0x5d0] sm:$0xff]
          %v3965 = vld [vmem:[#allocation2 + $0x610] sm:$0xff]
          %v3966 = vld [vmem:[#allocation2 + $0x650] sm:$0xff]
          %v3967 = vld [vmem:[#allocation2 + $0x690] sm:$0xff]
          %v3968 = vld [vmem:[#allocation2 + $0x6d0] sm:$0xff]
          %v3969 = vld [vmem:[#allocation2 + $0x710] sm:$0xff]
          %v3970 = vld [vmem:[#allocation2 + $0x750] sm:$0xff]
          %v3971 = vld [vmem:[#allocation2 + $0x790] sm:$0xff]
          %v3972 = vld [vmem:[#allocation2 + $0x7d0] sm:$0xff]
          %v3973 = vmul.f32 %v3941, %v3941
          %v3974 = vmul.f32 %v3942, %v3942
          %v3975 = vmul.f32 %v3943, %v3943
          %v3976 = vmul.f32 %v3944, %v3944
          %v3977 = vmul.f32 %v3945, %v3945
          %v3978 = vmul.f32 %v3946, %v3946
          %v3979 = vmul.f32 %v3947, %v3947
          %v3980 = vmul.f32 %v3948, %v3948
          %v3981 = vmul.f32 %v3949, %v3949
          %v3982 = vmul.f32 %v3950, %v3950
          %v3983 = vmul.f32 %v3951, %v3951
          %v3984 = vmul.f32 %v3952, %v3952
          %v3985 = vmul.f32 %v3953, %v3953
          %v3986 = vmul.f32 %v3954, %v3954
          %v3987 = vmul.f32 %v3955, %v3955
          %v3988 = vmul.f32 %v3956, %v3956
          %v3989 = vmul.f32 %v3957, %v3957
          %v3990 = vmul.f32 %v3958, %v3958
          %v3991 = vmul.f32 %v3959, %v3959
          %v3992 = vmul.f32 %v3960, %v3960
          %v3993 = vmul.f32 %v3961, %v3961
          %v3994 = vmul.f32 %v3962, %v3962
          %v3995 = vmul.f32 %v3963, %v3963
          %v3996 = vmul.f32 %v3964, %v3964
          %v3997 = vmul.f32 %v3965, %v3965
          %v3998 = vmul.f32 %v3966, %v3966
          %v3999 = vmul.f32 %v3967, %v3967
          %v4000 = vmul.f32 %v3968, %v3968
          %v4001 = vmul.f32 %v3969, %v3969
          %v4002 = vmul.f32 %v3970, %v3970
          %v4003 = vmul.f32 %v3971, %v3971
          %v4004 = vmul.f32 %v3972, %v3972
          %4005 = vadd.xlane.f32.xlu0 %v3973
          %v4006 = vpop.xlane.xlu0 %4005
          %4007 = vadd.xlane.f32.xlu0 %v3974
          %v4008 = vpop.xlane.xlu0 %4007
          %4009 = vadd.xlane.f32.xlu0 %v3975
          %v4010 = vpop.xlane.xlu0 %4009
          %4011 = vadd.xlane.f32.xlu0 %v3976
          %v4012 = vpop.xlane.xlu0 %4011
          %4013 = vadd.xlane.f32.xlu0 %v3977
          %v4014 = vpop.xlane.xlu0 %4013
          %4015 = vadd.xlane.f32.xlu0 %v3978
          %v4016 = vpop.xlane.xlu0 %4015
          %4017 = vadd.xlane.f32.xlu0 %v3979
          %v4018 = vpop.xlane.xlu0 %4017
          %4019 = vadd.xlane.f32.xlu0 %v3980
          %v4020 = vpop.xlane.xlu0 %4019
          %4021 = vadd.xlane.f32.xlu0 %v3981
          %v4022 = vpop.xlane.xlu0 %4021
          %4023 = vadd.xlane.f32.xlu0 %v3982
          %v4024 = vpop.xlane.xlu0 %4023
          %4025 = vadd.xlane.f32.xlu0 %v3983
          %v4026 = vpop.xlane.xlu0 %4025
          %4027 = vadd.xlane.f32.xlu0 %v3984
          %v4028 = vpop.xlane.xlu0 %4027
          %4029 = vadd.xlane.f32.xlu0 %v3985
          %v4030 = vpop.xlane.xlu0 %4029
          %4031 = vadd.xlane.f32.xlu0 %v3986
          %v4032 = vpop.xlane.xlu0 %4031
          %4033 = vadd.xlane.f32.xlu0 %v3987
          %v4034 = vpop.xlane.xlu0 %4033
          %4035 = vadd.xlane.f32.xlu0 %v3988
          %v4036 = vpop.xlane.xlu0 %4035
          %4037 = vadd.xlane.f32.xlu0 %v3989
          %v4038 = vpop.xlane.xlu0 %4037
          %4039 = vadd.xlane.f32.xlu0 %v3990
          %v4040 = vpop.xlane.xlu0 %4039
          %4041 = vadd.xlane.f32.xlu0 %v3991
          %v4042 = vpop.xlane.xlu0 %4041
          %4043 = vadd.xlane.f32.xlu0 %v3992
          %v4044 = vpop.xlane.xlu0 %4043
          %4045 = vadd.xlane.f32.xlu0 %v3993
          %v4046 = vpop.xlane.xlu0 %4045
          %4047 = vadd.xlane.f32.xlu0 %v3994
          %v4048 = vpop.xlane.xlu0 %4047
          %4049 = vadd.xlane.f32.xlu0 %v3995
          %v4050 = vpop.xlane.xlu0 %4049
          %4051 = vadd.xlane.f32.xlu0 %v3996
          %v4052 = vpop.xlane.xlu0 %4051
          %4053 = vadd.xlane.f32.xlu0 %v3997
          %v4054 = vpop.xlane.xlu0 %4053
          %4055 = vadd.xlane.f32.xlu0 %v3998
          %v4056 = vpop.xlane.xlu0 %4055
          %4057 = vadd.xlane.f32.xlu0 %v3999
          %v4058 = vpop.xlane.xlu0 %4057
          %4059 = vadd.xlane.f32.xlu0 %v4000
          %v4060 = vpop.xlane.xlu0 %4059
          %4061 = vadd.xlane.f32.xlu0 %v4001
          %v4062 = vpop.xlane.xlu0 %4061
          %4063 = vadd.xlane.f32.xlu0 %v4002
          %v4064 = vpop.xlane.xlu0 %4063
          %4065 = vadd.xlane.f32.xlu0 %v4003
          %v4066 = vpop.xlane.xlu0 %4065
          %4067 = vadd.xlane.f32.xlu0 %v4004
          %v4068 = vpop.xlane.xlu0 %4067
          %v4069 = vmul.f32 %v4006, %v3101
          %v4070 = vmul.f32 %v4008, %v3101
          %v4071 = vmul.f32 %v4010, %v3101
          %v4072 = vmul.f32 %v4012, %v3101
          %v4073 = vmul.f32 %v4014, %v3101
          %v4074 = vmul.f32 %v4016, %v3101
          %v4075 = vmul.f32 %v4018, %v3101
          %v4076 = vmul.f32 %v4020, %v3101
          %v4077 = vmul.f32 %v4022, %v3101
          %v4078 = vmul.f32 %v4024, %v3101
          %v4079 = vmul.f32 %v4026, %v3101
          %v4080 = vmul.f32 %v4028, %v3101
          %v4081 = vmul.f32 %v4030, %v3101
          %v4082 = vmul.f32 %v4032, %v3101
          %v4083 = vmul.f32 %v4034, %v3101
          %v4084 = vmul.f32 %v4036, %v3101
          %v4085 = vmul.f32 %v4038, %v3101
          %v4086 = vmul.f32 %v4040, %v3101
          %v4087 = vmul.f32 %v4042, %v3101
          %v4088 = vmul.f32 %v4044, %v3101
          %v4089 = vmul.f32 %v4046, %v3101
          %v4090 = vmul.f32 %v4048, %v3101
          %v4091 = vmul.f32 %v4050, %v3101
          %v4092 = vmul.f32 %v4052, %v3101
          %v4093 = vmul.f32 %v4054, %v3101
          %v4094 = vmul.f32 %v4056, %v3101
          %v4095 = vmul.f32 %v4058, %v3101
          %v4096 = vmul.f32 %v4060, %v3101
          %v4097 = vmul.f32 %v4062, %v3101
          %v4098 = vmul.f32 %v4064, %v3101
          %v4099 = vmul.f32 %v4066, %v3101
          %v4100 = vmul.f32 %v4068, %v3101
          %v4101 = vadd.f32 %v4069, 1e-06
          %v4102 = vadd.f32 %v4070, 1e-06
          %v4103 = vadd.f32 %v4071, 1e-06
          %v4104 = vadd.f32 %v4072, 1e-06
          %v4105 = vadd.f32 %v4073, 1e-06
          %v4106 = vadd.f32 %v4074, 1e-06
          %v4107 = vadd.f32 %v4075, 1e-06
          %v4108 = vadd.f32 %v4076, 1e-06
          %v4109 = vadd.f32 %v4077, 1e-06
          %v4110 = vadd.f32 %v4078, 1e-06
          %v4111 = vadd.f32 %v4079, 1e-06
          %v4112 = vadd.f32 %v4080, 1e-06
          %v4113 = vadd.f32 %v4081, 1e-06
          %v4114 = vadd.f32 %v4082, 1e-06
          %v4115 = vadd.f32 %v4083, 1e-06
          %v4116 = vadd.f32 %v4084, 1e-06
          %v4117 = vadd.f32 %v4085, 1e-06
          %v4118 = vadd.f32 %v4086, 1e-06
          %v4119 = vadd.f32 %v4087, 1e-06
          %v4120 = vadd.f32 %v4088, 1e-06
          %v4121 = vadd.f32 %v4089, 1e-06
          %v4122 = vadd.f32 %v4090, 1e-06
          %v4123 = vadd.f32 %v4091, 1e-06
          %v4124 = vadd.f32 %v4092, 1e-06
          %v4125 = vadd.f32 %v4093, 1e-06
          %v4126 = vadd.f32 %v4094, 1e-06
          %v4127 = vadd.f32 %v4095, 1e-06
          %v4128 = vadd.f32 %v4096, 1e-06
          %v4129 = vadd.f32 %v4097, 1e-06
          %v4130 = vadd.f32 %v4098, 1e-06
          %v4131 = vadd.f32 %v4099, 1e-06
          %v4132 = vadd.f32 %v4100, 1e-06
          %v4133 = vrsqrt.pop %v4101
          %v4134 = vrsqrt.pop %v4102
          %v4135 = vrsqrt.pop %v4103
          %v4136 = vrsqrt.pop %v4104
          %v4137 = vrsqrt.pop %v4105
          %v4138 = vrsqrt.pop %v4106
          %v4139 = vrsqrt.pop %v4107
          %v4140 = vrsqrt.pop %v4108
          %v4141 = vrsqrt.pop %v4109
          %v4142 = vrsqrt.pop %v4110
          %v4143 = vrsqrt.pop %v4111
          %v4144 = vrsqrt.pop %v4112
          %v4145 = vrsqrt.pop %v4113
          %v4146 = vrsqrt.pop %v4114
          %v4147 = vrsqrt.pop %v4115
          %v4148 = vrsqrt.pop %v4116
          %v4149 = vrsqrt.pop %v4117
          %v4150 = vrsqrt.pop %v4118
          %v4151 = vrsqrt.pop %v4119
          %v4152 = vrsqrt.pop %v4120
          %v4153 = vrsqrt.pop %v4121
          %v4154 = vrsqrt.pop %v4122
          %v4155 = vrsqrt.pop %v4123
          %v4156 = vrsqrt.pop %v4124
          %v4157 = vrsqrt.pop %v4125
          %v4158 = vrsqrt.pop %v4126
          %v4159 = vrsqrt.pop %v4127
          %v4160 = vrsqrt.pop %v4128
          %v4161 = vrsqrt.pop %v4129
          %v4162 = vrsqrt.pop %v4130
          %v4163 = vrsqrt.pop %v4131
          %v4164 = vrsqrt.pop %v4132
          %v4165 = vmul.f32 %v3941, %v4133
          %v4166 = vmul.f32 %v3942, %v4134
          %v4167 = vmul.f32 %v3943, %v4135
          %v4168 = vmul.f32 %v3944, %v4136
          %v4169 = vmul.f32 %v3945, %v4137
          %v4170 = vmul.f32 %v3946, %v4138
          %v4171 = vmul.f32 %v3947, %v4139
          %v4172 = vmul.f32 %v3948, %v4140
          %v4173 = vmul.f32 %v3949, %v4141
          %v4174 = vmul.f32 %v3950, %v4142
          %v4175 = vmul.f32 %v3951, %v4143
          %v4176 = vmul.f32 %v3952, %v4144
          %v4177 = vmul.f32 %v3953, %v4145
          %v4178 = vmul.f32 %v3954, %v4146
          %v4179 = vmul.f32 %v3955, %v4147
          %v4180 = vmul.f32 %v3956, %v4148
          %v4181 = vmul.f32 %v3957, %v4149
          %v4182 = vmul.f32 %v3958, %v4150
          %v4183 = vmul.f32 %v3959, %v4151
          %v4184 = vmul.f32 %v3960, %v4152
          %v4185 = vmul.f32 %v3961, %v4153
          %v4186 = vmul.f32 %v3962, %v4154
          %v4187 = vmul.f32 %v3963, %v4155
          %v4188 = vmul.f32 %v3964, %v4156
          %v4189 = vmul.f32 %v3965, %v4157
          %v4190 = vmul.f32 %v3966, %v4158
          %v4191 = vmul.f32 %v3967, %v4159
          %v4192 = vmul.f32 %v3968, %v4160
          %v4193 = vmul.f32 %v3969, %v4161
          %v4194 = vmul.f32 %v3970, %v4162
          %v4195 = vmul.f32 %v3971, %v4163
          %v4196 = vmul.f32 %v3972, %v4164
          %v4197 = vmul.f32 %v4165, %v3234
          %v4198 = vmul.f32 %v4166, %v3234
          %v4199 = vmul.f32 %v4167, %v3234
          %v4200 = vmul.f32 %v4168, %v3234
          %v4201 = vmul.f32 %v4169, %v3234
          %v4202 = vmul.f32 %v4170, %v3234
          %v4203 = vmul.f32 %v4171, %v3234
          %v4204 = vmul.f32 %v4172, %v3234
          %v4205 = vmul.f32 %v4173, %v3234
          %v4206 = vmul.f32 %v4174, %v3234
          %v4207 = vmul.f32 %v4175, %v3234
          %v4208 = vmul.f32 %v4176, %v3234
          %v4209 = vmul.f32 %v4177, %v3234
          %v4210 = vmul.f32 %v4178, %v3234
          %v4211 = vmul.f32 %v4179, %v3234
          %v4212 = vmul.f32 %v4180, %v3234
          %v4213 = vmul.f32 %v4181, %v3234
          %v4214 = vmul.f32 %v4182, %v3234
          %v4215 = vmul.f32 %v4183, %v3234
          %v4216 = vmul.f32 %v4184, %v3234
          %v4217 = vmul.f32 %v4185, %v3234
          %v4218 = vmul.f32 %v4186, %v3234
          %v4219 = vmul.f32 %v4187, %v3234
          %v4220 = vmul.f32 %v4188, %v3234
          %v4221 = vmul.f32 %v4189, %v3234
          %v4222 = vmul.f32 %v4190, %v3234
          %v4223 = vmul.f32 %v4191, %v3234
          %v4224 = vmul.f32 %v4192, %v3234
          %v4225 = vmul.f32 %v4193, %v3234
          %v4226 = vmul.f32 %v4194, %v3234
          %v4227 = vmul.f32 %v4195, %v3234
          %v4228 = vmul.f32 %v4196, %v3234
          %v4229 = vmul.f32 %v4197, %v2907
          %v4230 = vmul.f32 %v4198, %v2908
          %v4231 = vmul.f32 %v4199, %v2909
          %v4232 = vmul.f32 %v4200, %v2910
          %v4233 = vmul.f32 %v4201, %v2911
          %v4234 = vmul.f32 %v4202, %v2912
          %v4235 = vmul.f32 %v4203, %v2913
          %v4236 = vmul.f32 %v4204, %v2914
          %v4237 = vmul.f32 %v4205, %v2915
          %v4238 = vmul.f32 %v4206, %v2916
          %v4239 = vmul.f32 %v4207, %v2917
          %v4240 = vmul.f32 %v4208, %v2918
          %v4241 = vmul.f32 %v4209, %v2919
          %v4242 = vmul.f32 %v4210, %v2920
          %v4243 = vmul.f32 %v4211, %v2921
          %v4244 = vmul.f32 %v4212, %v2922
          %v4245 = vmul.f32 %v4213, %v2923
          %v4246 = vmul.f32 %v4214, %v2924
          %v4247 = vmul.f32 %v4215, %v2925
          %v4248 = vmul.f32 %v4216, %v2926
          %v4249 = vmul.f32 %v4217, %v2927
          %v4250 = vmul.f32 %v4218, %v2928
          %v4251 = vmul.f32 %v4219, %v2929
          %v4252 = vmul.f32 %v4220, %v2930
          %v4253 = vmul.f32 %v4221, %v2931
          %v4254 = vmul.f32 %v4222, %v2932
          %v4255 = vmul.f32 %v4223, %v2933
          %v4256 = vmul.f32 %v4224, %v2934
          %v4257 = vmul.f32 %v4225, %v2935
          %v4258 = vmul.f32 %v4226, %v2936
          %v4259 = vmul.f32 %v4227, %v2937
          %v4260 = vmul.f32 %v4228, %v2938
          %4261 = vrot.lane.b32.xlu0 %v4197, 64
          %v4262 = vpop.permute.xlu0 %4261
          %4263 = vrot.lane.b32.xlu0 %v4198, 64
          %v4264 = vpop.permute.xlu0 %4263
          %4265 = vrot.lane.b32.xlu0 %v4199, 64
          %v4266 = vpop.permute.xlu0 %4265
          %4267 = vrot.lane.b32.xlu0 %v4200, 64
          %v4268 = vpop.permute.xlu0 %4267
          %4269 = vrot.lane.b32.xlu0 %v4201, 64
          %v4270 = vpop.permute.xlu0 %4269
          %4271 = vrot.lane.b32.xlu0 %v4202, 64
          %v4272 = vpop.permute.xlu0 %4271
          %4273 = vrot.lane.b32.xlu0 %v4203, 64
          %v4274 = vpop.permute.xlu0 %4273
          %4275 = vrot.lane.b32.xlu0 %v4204, 64
          %v4276 = vpop.permute.xlu0 %4275
          %4277 = vrot.lane.b32.xlu0 %v4205, 64
          %v4278 = vpop.permute.xlu0 %4277
          %4279 = vrot.lane.b32.xlu0 %v4206, 64
          %v4280 = vpop.permute.xlu0 %4279
          %4281 = vrot.lane.b32.xlu0 %v4207, 64
          %v4282 = vpop.permute.xlu0 %4281
          %4283 = vrot.lane.b32.xlu0 %v4208, 64
          %v4284 = vpop.permute.xlu0 %4283
          %4285 = vrot.lane.b32.xlu0 %v4209, 64
          %v4286 = vpop.permute.xlu0 %4285
          %4287 = vrot.lane.b32.xlu0 %v4210, 64
          %v4288 = vpop.permute.xlu0 %4287
          %4289 = vrot.lane.b32.xlu0 %v4211, 64
          %v4290 = vpop.permute.xlu0 %4289
          %4291 = vrot.lane.b32.xlu0 %v4212, 64
          %v4292 = vpop.permute.xlu0 %4291
          %4293 = vrot.lane.b32.xlu0 %v4213, 64
          %v4294 = vpop.permute.xlu0 %4293
          %4295 = vrot.lane.b32.xlu0 %v4214, 64
          %v4296 = vpop.permute.xlu0 %4295
          %4297 = vrot.lane.b32.xlu0 %v4215, 64
          %v4298 = vpop.permute.xlu0 %4297
          %4299 = vrot.lane.b32.xlu0 %v4216, 64
          %v4300 = vpop.permute.xlu0 %4299
          %4301 = vrot.lane.b32.xlu0 %v4217, 64
          %v4302 = vpop.permute.xlu0 %4301
          %4303 = vrot.lane.b32.xlu0 %v4218, 64
          %v4304 = vpop.permute.xlu0 %4303
          %4305 = vrot.lane.b32.xlu0 %v4219, 64
          %v4306 = vpop.permute.xlu0 %4305
          %4307 = vrot.lane.b32.xlu0 %v4220, 64
          %v4308 = vpop.permute.xlu0 %4307
          %4309 = vrot.lane.b32.xlu0 %v4221, 64
          %v4310 = vpop.permute.xlu0 %4309
          %4311 = vrot.lane.b32.xlu0 %v4222, 64
          %v4312 = vpop.permute.xlu0 %4311
          %4313 = vrot.lane.b32.xlu0 %v4223, 64
          %v4314 = vpop.permute.xlu0 %4313
          %4315 = vrot.lane.b32.xlu0 %v4224, 64
          %v4316 = vpop.permute.xlu0 %4315
          %4317 = vrot.lane.b32.xlu0 %v4225, 64
          %v4318 = vpop.permute.xlu0 %4317
          %4319 = vrot.lane.b32.xlu0 %v4226, 64
          %v4320 = vpop.permute.xlu0 %4319
          %4321 = vrot.lane.b32.xlu0 %v4227, 64
          %v4322 = vpop.permute.xlu0 %4321
          %4323 = vrot.lane.b32.xlu0 %v4228, 64
          %v4324 = vpop.permute.xlu0 %4323
          %v4325 = vmul.f32 %v4262, %v2939
          %v4326 = vmul.f32 %v4264, %v2940
          %v4327 = vmul.f32 %v4266, %v2941
          %v4328 = vmul.f32 %v4268, %v2942
          %v4329 = vmul.f32 %v4270, %v2943
          %v4330 = vmul.f32 %v4272, %v2944
          %v4331 = vmul.f32 %v4274, %v2945
          %v4332 = vmul.f32 %v4276, %v2946
          %v4333 = vmul.f32 %v4278, %v2947
          %v4334 = vmul.f32 %v4280, %v2948
          %v4335 = vmul.f32 %v4282, %v2949
          %v4336 = vmul.f32 %v4284, %v2950
          %v4337 = vmul.f32 %v4286, %v2951
          %v4338 = vmul.f32 %v4288, %v2952
          %v4339 = vmul.f32 %v4290, %v2953
          %v4340 = vmul.f32 %v4292, %v2954
          %v4341 = vmul.f32 %v4294, %v2955
          %v4342 = vmul.f32 %v4296, %v2956
          %v4343 = vmul.f32 %v4298, %v2957
          %v4344 = vmul.f32 %v4300, %v2958
          %v4345 = vmul.f32 %v4302, %v2959
          %v4346 = vmul.f32 %v4304, %v2960
          %v4347 = vmul.f32 %v4306, %v2961
          %v4348 = vmul.f32 %v4308, %v2962
          %v4349 = vmul.f32 %v4310, %v2963
          %v4350 = vmul.f32 %v4312, %v2964
          %v4351 = vmul.f32 %v4314, %v2965
          %v4352 = vmul.f32 %v4316, %v2966
          %v4353 = vmul.f32 %v4318, %v2967
          %v4354 = vmul.f32 %v4320, %v2968
          %v4355 = vmul.f32 %v4322, %v2969
          %v4356 = vmul.f32 %v4324, %v2970
          %v4357 = vadd.f32 %v4229, %v4325
          %v4358 = vadd.f32 %v4230, %v4326
          %v4359 = vadd.f32 %v4231, %v4327
          %v4360 = vadd.f32 %v4232, %v4328
          %v4361 = vadd.f32 %v4233, %v4329
          %v4362 = vadd.f32 %v4234, %v4330
          %v4363 = vadd.f32 %v4235, %v4331
          %v4364 = vadd.f32 %v4236, %v4332
          %v4365 = vadd.f32 %v4237, %v4333
          %v4366 = vadd.f32 %v4238, %v4334
          %v4367 = vadd.f32 %v4239, %v4335
          %v4368 = vadd.f32 %v4240, %v4336
          %v4369 = vadd.f32 %v4241, %v4337
          %v4370 = vadd.f32 %v4242, %v4338
          %v4371 = vadd.f32 %v4243, %v4339
          %v4372 = vadd.f32 %v4244, %v4340
          %v4373 = vadd.f32 %v4245, %v4341
          %v4374 = vadd.f32 %v4246, %v4342
          %v4375 = vadd.f32 %v4247, %v4343
          %v4376 = vadd.f32 %v4248, %v4344
          %v4377 = vadd.f32 %v4249, %v4345
          %v4378 = vadd.f32 %v4250, %v4346
          %v4379 = vadd.f32 %v4251, %v4347
          %v4380 = vadd.f32 %v4252, %v4348
          %v4381 = vadd.f32 %v4253, %v4349
          %v4382 = vadd.f32 %v4254, %v4350
          %v4383 = vadd.f32 %v4255, %v4351
          %v4384 = vadd.f32 %v4256, %v4352
          %v4385 = vadd.f32 %v4257, %v4353
          %v4386 = vadd.f32 %v4258, %v4354
          %v4387 = vadd.f32 %v4259, %v4355
          %v4388 = vadd.f32 %v4260, %v4356
          %s4389 = scalar_lea.vmem %s504, 512 [#allocation14]
          %4390 = vst [vmem:[%s4389] sm:$0xff] %v4357
          %4391 = vst [vmem:[%s4389 + $0x8] sm:$0xff] %v4358
          %4392 = vst [vmem:[%s4389 + $0x10] sm:$0xff] %v4359
          %4393 = vst [vmem:[%s4389 + $0x18] sm:$0xff] %v4360
          %4394 = vst [vmem:[%s4389 + $0x20] sm:$0xff] %v4361
          %4395 = vst [vmem:[%s4389 + $0x28] sm:$0xff] %v4362
          %4396 = vst [vmem:[%s4389 + $0x30] sm:$0xff] %v4363
          %4397 = vst [vmem:[%s4389 + $0x38] sm:$0xff] %v4364
          %4398 = vst [vmem:[%s4389 + $0x40] sm:$0xff] %v4365
          %4399 = vst [vmem:[%s4389 + $0x48] sm:$0xff] %v4366
          %4400 = vst [vmem:[%s4389 + $0x50] sm:$0xff] %v4367
          %4401 = vst [vmem:[%s4389 + $0x58] sm:$0xff] %v4368
          %4402 = vst [vmem:[%s4389 + $0x60] sm:$0xff] %v4369
          %4403 = vst [vmem:[%s4389 + $0x68] sm:$0xff] %v4370
          %4404 = vst [vmem:[%s4389 + $0x70] sm:$0xff] %v4371
          %4405 = vst [vmem:[%s4389 + $0x78] sm:$0xff] %v4372
          %4406 = vst [vmem:[%s4389 + $0x80] sm:$0xff] %v4373
          %4407 = vst [vmem:[%s4389 + $0x88] sm:$0xff] %v4374
          %4408 = vst [vmem:[%s4389 + $0x90] sm:$0xff] %v4375
          %4409 = vst [vmem:[%s4389 + $0x98] sm:$0xff] %v4376
          %4410 = vst [vmem:[%s4389 + $0xa0] sm:$0xff] %v4377
          %4411 = vst [vmem:[%s4389 + $0xa8] sm:$0xff] %v4378
          %4412 = vst [vmem:[%s4389 + $0xb0] sm:$0xff] %v4379
          %4413 = vst [vmem:[%s4389 + $0xb8] sm:$0xff] %v4380
          %4414 = vst [vmem:[%s4389 + $0xc0] sm:$0xff] %v4381
          %4415 = vst [vmem:[%s4389 + $0xc8] sm:$0xff] %v4382
          %4416 = vst [vmem:[%s4389 + $0xd0] sm:$0xff] %v4383
          %4417 = vst [vmem:[%s4389 + $0xd8] sm:$0xff] %v4384
          %4418 = vst [vmem:[%s4389 + $0xe0] sm:$0xff] %v4385
          %4419 = vst [vmem:[%s4389 + $0xe8] sm:$0xff] %v4386
          %4420 = vst [vmem:[%s4389 + $0xf0] sm:$0xff] %v4387
          %4421 = vst [vmem:[%s4389 + $0xf8] sm:$0xff] %v4388
          %v4422 = vld [vmem:[#allocation2 + $0x18] sm:$0xff]
          %v4423 = vld [vmem:[#allocation2 + $0x58] sm:$0xff]
          %v4424 = vld [vmem:[#allocation2 + $0x98] sm:$0xff]
          %v4425 = vld [vmem:[#allocation2 + $0xd8] sm:$0xff]
          %v4426 = vld [vmem:[#allocation2 + $0x118] sm:$0xff]
          %v4427 = vld [vmem:[#allocation2 + $0x158] sm:$0xff]
          %v4428 = vld [vmem:[#allocation2 + $0x198] sm:$0xff]
          %v4429 = vld [vmem:[#allocation2 + $0x1d8] sm:$0xff]
          %v4430 = vld [vmem:[#allocation2 + $0x218] sm:$0xff]
          %v4431 = vld [vmem:[#allocation2 + $0x258] sm:$0xff]
          %v4432 = vld [vmem:[#allocation2 + $0x298] sm:$0xff]
          %v4433 = vld [vmem:[#allocation2 + $0x2d8] sm:$0xff]
          %v4434 = vld [vmem:[#allocation2 + $0x318] sm:$0xff]
          %v4435 = vld [vmem:[#allocation2 + $0x358] sm:$0xff]
          %v4436 = vld [vmem:[#allocation2 + $0x398] sm:$0xff]
          %v4437 = vld [vmem:[#allocation2 + $0x3d8] sm:$0xff]
          %v4438 = vld [vmem:[#allocation2 + $0x418] sm:$0xff]
          %v4439 = vld [vmem:[#allocation2 + $0x458] sm:$0xff]
          %v4440 = vld [vmem:[#allocation2 + $0x498] sm:$0xff]
          %v4441 = vld [vmem:[#allocation2 + $0x4d8] sm:$0xff]
          %v4442 = vld [vmem:[#allocation2 + $0x518] sm:$0xff]
          %v4443 = vld [vmem:[#allocation2 + $0x558] sm:$0xff]
          %v4444 = vld [vmem:[#allocation2 + $0x598] sm:$0xff]
          %v4445 = vld [vmem:[#allocation2 + $0x5d8] sm:$0xff]
          %v4446 = vld [vmem:[#allocation2 + $0x618] sm:$0xff]
          %v4447 = vld [vmem:[#allocation2 + $0x658] sm:$0xff]
          %v4448 = vld [vmem:[#allocation2 + $0x698] sm:$0xff]
          %v4449 = vld [vmem:[#allocation2 + $0x6d8] sm:$0xff]
          %v4450 = vld [vmem:[#allocation2 + $0x718] sm:$0xff]
          %v4451 = vld [vmem:[#allocation2 + $0x758] sm:$0xff]
          %v4452 = vld [vmem:[#allocation2 + $0x798] sm:$0xff]
          %v4453 = vld [vmem:[#allocation2 + $0x7d8] sm:$0xff]
          %v4454 = vmul.f32 %v4422, %v4422
          %v4455 = vmul.f32 %v4423, %v4423
          %v4456 = vmul.f32 %v4424, %v4424
          %v4457 = vmul.f32 %v4425, %v4425
          %v4458 = vmul.f32 %v4426, %v4426
          %v4459 = vmul.f32 %v4427, %v4427
          %v4460 = vmul.f32 %v4428, %v4428
          %v4461 = vmul.f32 %v4429, %v4429
          %v4462 = vmul.f32 %v4430, %v4430
          %v4463 = vmul.f32 %v4431, %v4431
          %v4464 = vmul.f32 %v4432, %v4432
          %v4465 = vmul.f32 %v4433, %v4433
          %v4466 = vmul.f32 %v4434, %v4434
          %v4467 = vmul.f32 %v4435, %v4435
          %v4468 = vmul.f32 %v4436, %v4436
          %v4469 = vmul.f32 %v4437, %v4437
          %v4470 = vmul.f32 %v4438, %v4438
          %v4471 = vmul.f32 %v4439, %v4439
          %v4472 = vmul.f32 %v4440, %v4440
          %v4473 = vmul.f32 %v4441, %v4441
          %v4474 = vmul.f32 %v4442, %v4442
          %v4475 = vmul.f32 %v4443, %v4443
          %v4476 = vmul.f32 %v4444, %v4444
          %v4477 = vmul.f32 %v4445, %v4445
          %v4478 = vmul.f32 %v4446, %v4446
          %v4479 = vmul.f32 %v4447, %v4447
          %v4480 = vmul.f32 %v4448, %v4448
          %v4481 = vmul.f32 %v4449, %v4449
          %v4482 = vmul.f32 %v4450, %v4450
          %v4483 = vmul.f32 %v4451, %v4451
          %v4484 = vmul.f32 %v4452, %v4452
          %v4485 = vmul.f32 %v4453, %v4453
          %4486 = vadd.xlane.f32.xlu0 %v4454
          %v4487 = vpop.xlane.xlu0 %4486
          %4488 = vadd.xlane.f32.xlu0 %v4455
          %v4489 = vpop.xlane.xlu0 %4488
          %4490 = vadd.xlane.f32.xlu0 %v4456
          %v4491 = vpop.xlane.xlu0 %4490
          %4492 = vadd.xlane.f32.xlu0 %v4457
          %v4493 = vpop.xlane.xlu0 %4492
          %4494 = vadd.xlane.f32.xlu0 %v4458
          %v4495 = vpop.xlane.xlu0 %4494
          %4496 = vadd.xlane.f32.xlu0 %v4459
          %v4497 = vpop.xlane.xlu0 %4496
          %4498 = vadd.xlane.f32.xlu0 %v4460
          %v4499 = vpop.xlane.xlu0 %4498
          %4500 = vadd.xlane.f32.xlu0 %v4461
          %v4501 = vpop.xlane.xlu0 %4500
          %4502 = vadd.xlane.f32.xlu0 %v4462
          %v4503 = vpop.xlane.xlu0 %4502
          %4504 = vadd.xlane.f32.xlu0 %v4463
          %v4505 = vpop.xlane.xlu0 %4504
          %4506 = vadd.xlane.f32.xlu0 %v4464
          %v4507 = vpop.xlane.xlu0 %4506
          %4508 = vadd.xlane.f32.xlu0 %v4465
          %v4509 = vpop.xlane.xlu0 %4508
          %4510 = vadd.xlane.f32.xlu0 %v4466
          %v4511 = vpop.xlane.xlu0 %4510
          %4512 = vadd.xlane.f32.xlu0 %v4467
          %v4513 = vpop.xlane.xlu0 %4512
          %4514 = vadd.xlane.f32.xlu0 %v4468
          %v4515 = vpop.xlane.xlu0 %4514
          %4516 = vadd.xlane.f32.xlu0 %v4469
          %v4517 = vpop.xlane.xlu0 %4516
          %4518 = vadd.xlane.f32.xlu0 %v4470
          %v4519 = vpop.xlane.xlu0 %4518
          %4520 = vadd.xlane.f32.xlu0 %v4471
          %v4521 = vpop.xlane.xlu0 %4520
          %4522 = vadd.xlane.f32.xlu0 %v4472
          %v4523 = vpop.xlane.xlu0 %4522
          %4524 = vadd.xlane.f32.xlu0 %v4473
          %v4525 = vpop.xlane.xlu0 %4524
          %4526 = vadd.xlane.f32.xlu0 %v4474
          %v4527 = vpop.xlane.xlu0 %4526
          %4528 = vadd.xlane.f32.xlu0 %v4475
          %v4529 = vpop.xlane.xlu0 %4528
          %4530 = vadd.xlane.f32.xlu0 %v4476
          %v4531 = vpop.xlane.xlu0 %4530
          %4532 = vadd.xlane.f32.xlu0 %v4477
          %v4533 = vpop.xlane.xlu0 %4532
          %4534 = vadd.xlane.f32.xlu0 %v4478
          %v4535 = vpop.xlane.xlu0 %4534
          %4536 = vadd.xlane.f32.xlu0 %v4479
          %v4537 = vpop.xlane.xlu0 %4536
          %4538 = vadd.xlane.f32.xlu0 %v4480
          %v4539 = vpop.xlane.xlu0 %4538
          %4540 = vadd.xlane.f32.xlu0 %v4481
          %v4541 = vpop.xlane.xlu0 %4540
          %4542 = vadd.xlane.f32.xlu0 %v4482
          %v4543 = vpop.xlane.xlu0 %4542
          %4544 = vadd.xlane.f32.xlu0 %v4483
          %v4545 = vpop.xlane.xlu0 %4544
          %4546 = vadd.xlane.f32.xlu0 %v4484
          %v4547 = vpop.xlane.xlu0 %4546
          %4548 = vadd.xlane.f32.xlu0 %v4485
          %v4549 = vpop.xlane.xlu0 %4548
          %v4550 = vmul.f32 %v4487, %v3101
          %v4551 = vmul.f32 %v4489, %v3101
          %v4552 = vmul.f32 %v4491, %v3101
          %v4553 = vmul.f32 %v4493, %v3101
          %v4554 = vmul.f32 %v4495, %v3101
          %v4555 = vmul.f32 %v4497, %v3101
          %v4556 = vmul.f32 %v4499, %v3101
          %v4557 = vmul.f32 %v4501, %v3101
          %v4558 = vmul.f32 %v4503, %v3101
          %v4559 = vmul.f32 %v4505, %v3101
          %v4560 = vmul.f32 %v4507, %v3101
          %v4561 = vmul.f32 %v4509, %v3101
          %v4562 = vmul.f32 %v4511, %v3101
          %v4563 = vmul.f32 %v4513, %v3101
          %v4564 = vmul.f32 %v4515, %v3101
          %v4565 = vmul.f32 %v4517, %v3101
          %v4566 = vmul.f32 %v4519, %v3101
          %v4567 = vmul.f32 %v4521, %v3101
          %v4568 = vmul.f32 %v4523, %v3101
          %v4569 = vmul.f32 %v4525, %v3101
          %v4570 = vmul.f32 %v4527, %v3101
          %v4571 = vmul.f32 %v4529, %v3101
          %v4572 = vmul.f32 %v4531, %v3101
          %v4573 = vmul.f32 %v4533, %v3101
          %v4574 = vmul.f32 %v4535, %v3101
          %v4575 = vmul.f32 %v4537, %v3101
          %v4576 = vmul.f32 %v4539, %v3101
          %v4577 = vmul.f32 %v4541, %v3101
          %v4578 = vmul.f32 %v4543, %v3101
          %v4579 = vmul.f32 %v4545, %v3101
          %v4580 = vmul.f32 %v4547, %v3101
          %v4581 = vmul.f32 %v4549, %v3101
          %v4582 = vadd.f32 %v4550, 1e-06
          %v4583 = vadd.f32 %v4551, 1e-06
          %v4584 = vadd.f32 %v4552, 1e-06
          %v4585 = vadd.f32 %v4553, 1e-06
          %v4586 = vadd.f32 %v4554, 1e-06
          %v4587 = vadd.f32 %v4555, 1e-06
          %v4588 = vadd.f32 %v4556, 1e-06
          %v4589 = vadd.f32 %v4557, 1e-06
          %v4590 = vadd.f32 %v4558, 1e-06
          %v4591 = vadd.f32 %v4559, 1e-06
          %v4592 = vadd.f32 %v4560, 1e-06
          %v4593 = vadd.f32 %v4561, 1e-06
          %v4594 = vadd.f32 %v4562, 1e-06
          %v4595 = vadd.f32 %v4563, 1e-06
          %v4596 = vadd.f32 %v4564, 1e-06
          %v4597 = vadd.f32 %v4565, 1e-06
          %v4598 = vadd.f32 %v4566, 1e-06
          %v4599 = vadd.f32 %v4567, 1e-06
          %v4600 = vadd.f32 %v4568, 1e-06
          %v4601 = vadd.f32 %v4569, 1e-06
          %v4602 = vadd.f32 %v4570, 1e-06
          %v4603 = vadd.f32 %v4571, 1e-06
          %v4604 = vadd.f32 %v4572, 1e-06
          %v4605 = vadd.f32 %v4573, 1e-06
          %v4606 = vadd.f32 %v4574, 1e-06
          %v4607 = vadd.f32 %v4575, 1e-06
          %v4608 = vadd.f32 %v4576, 1e-06
          %v4609 = vadd.f32 %v4577, 1e-06
          %v4610 = vadd.f32 %v4578, 1e-06
          %v4611 = vadd.f32 %v4579, 1e-06
          %v4612 = vadd.f32 %v4580, 1e-06
          %v4613 = vadd.f32 %v4581, 1e-06
          %v4614 = vrsqrt.pop %v4582
          %v4615 = vrsqrt.pop %v4583
          %v4616 = vrsqrt.pop %v4584
          %v4617 = vrsqrt.pop %v4585
          %v4618 = vrsqrt.pop %v4586
          %v4619 = vrsqrt.pop %v4587
          %v4620 = vrsqrt.pop %v4588
          %v4621 = vrsqrt.pop %v4589
          %v4622 = vrsqrt.pop %v4590
          %v4623 = vrsqrt.pop %v4591
          %v4624 = vrsqrt.pop %v4592
          %v4625 = vrsqrt.pop %v4593
          %v4626 = vrsqrt.pop %v4594
          %v4627 = vrsqrt.pop %v4595
          %v4628 = vrsqrt.pop %v4596
          %v4629 = vrsqrt.pop %v4597
          %v4630 = vrsqrt.pop %v4598
          %v4631 = vrsqrt.pop %v4599
          %v4632 = vrsqrt.pop %v4600
          %v4633 = vrsqrt.pop %v4601
          %v4634 = vrsqrt.pop %v4602
          %v4635 = vrsqrt.pop %v4603
          %v4636 = vrsqrt.pop %v4604
          %v4637 = vrsqrt.pop %v4605
          %v4638 = vrsqrt.pop %v4606
          %v4639 = vrsqrt.pop %v4607
          %v4640 = vrsqrt.pop %v4608
          %v4641 = vrsqrt.pop %v4609
          %v4642 = vrsqrt.pop %v4610
          %v4643 = vrsqrt.pop %v4611
          %v4644 = vrsqrt.pop %v4612
          %v4645 = vrsqrt.pop %v4613
          %v4646 = vmul.f32 %v4422, %v4614
          %v4647 = vmul.f32 %v4423, %v4615
          %v4648 = vmul.f32 %v4424, %v4616
          %v4649 = vmul.f32 %v4425, %v4617
          %v4650 = vmul.f32 %v4426, %v4618
          %v4651 = vmul.f32 %v4427, %v4619
          %v4652 = vmul.f32 %v4428, %v4620
          %v4653 = vmul.f32 %v4429, %v4621
          %v4654 = vmul.f32 %v4430, %v4622
          %v4655 = vmul.f32 %v4431, %v4623
          %v4656 = vmul.f32 %v4432, %v4624
          %v4657 = vmul.f32 %v4433, %v4625
          %v4658 = vmul.f32 %v4434, %v4626
          %v4659 = vmul.f32 %v4435, %v4627
          %v4660 = vmul.f32 %v4436, %v4628
          %v4661 = vmul.f32 %v4437, %v4629
          %v4662 = vmul.f32 %v4438, %v4630
          %v4663 = vmul.f32 %v4439, %v4631
          %v4664 = vmul.f32 %v4440, %v4632
          %v4665 = vmul.f32 %v4441, %v4633
          %v4666 = vmul.f32 %v4442, %v4634
          %v4667 = vmul.f32 %v4443, %v4635
          %v4668 = vmul.f32 %v4444, %v4636
          %v4669 = vmul.f32 %v4445, %v4637
          %v4670 = vmul.f32 %v4446, %v4638
          %v4671 = vmul.f32 %v4447, %v4639
          %v4672 = vmul.f32 %v4448, %v4640
          %v4673 = vmul.f32 %v4449, %v4641
          %v4674 = vmul.f32 %v4450, %v4642
          %v4675 = vmul.f32 %v4451, %v4643
          %v4676 = vmul.f32 %v4452, %v4644
          %v4677 = vmul.f32 %v4453, %v4645
          %v4678 = vmul.f32 %v4646, %v3234
          %v4679 = vmul.f32 %v4647, %v3234
          %v4680 = vmul.f32 %v4648, %v3234
          %v4681 = vmul.f32 %v4649, %v3234
          %v4682 = vmul.f32 %v4650, %v3234
          %v4683 = vmul.f32 %v4651, %v3234
          %v4684 = vmul.f32 %v4652, %v3234
          %v4685 = vmul.f32 %v4653, %v3234
          %v4686 = vmul.f32 %v4654, %v3234
          %v4687 = vmul.f32 %v4655, %v3234
          %v4688 = vmul.f32 %v4656, %v3234
          %v4689 = vmul.f32 %v4657, %v3234
          %v4690 = vmul.f32 %v4658, %v3234
          %v4691 = vmul.f32 %v4659, %v3234
          %v4692 = vmul.f32 %v4660, %v3234
          %v4693 = vmul.f32 %v4661, %v3234
          %v4694 = vmul.f32 %v4662, %v3234
          %v4695 = vmul.f32 %v4663, %v3234
          %v4696 = vmul.f32 %v4664, %v3234
          %v4697 = vmul.f32 %v4665, %v3234
          %v4698 = vmul.f32 %v4666, %v3234
          %v4699 = vmul.f32 %v4667, %v3234
          %v4700 = vmul.f32 %v4668, %v3234
          %v4701 = vmul.f32 %v4669, %v3234
          %v4702 = vmul.f32 %v4670, %v3234
          %v4703 = vmul.f32 %v4671, %v3234
          %v4704 = vmul.f32 %v4672, %v3234
          %v4705 = vmul.f32 %v4673, %v3234
          %v4706 = vmul.f32 %v4674, %v3234
          %v4707 = vmul.f32 %v4675, %v3234
          %v4708 = vmul.f32 %v4676, %v3234
          %v4709 = vmul.f32 %v4677, %v3234
          %v4710 = vmul.f32 %v4678, %v2907
          %v4711 = vmul.f32 %v4679, %v2908
          %v4712 = vmul.f32 %v4680, %v2909
          %v4713 = vmul.f32 %v4681, %v2910
          %v4714 = vmul.f32 %v4682, %v2911
          %v4715 = vmul.f32 %v4683, %v2912
          %v4716 = vmul.f32 %v4684, %v2913
          %v4717 = vmul.f32 %v4685, %v2914
          %v4718 = vmul.f32 %v4686, %v2915
          %v4719 = vmul.f32 %v4687, %v2916
          %v4720 = vmul.f32 %v4688, %v2917
          %v4721 = vmul.f32 %v4689, %v2918
          %v4722 = vmul.f32 %v4690, %v2919
          %v4723 = vmul.f32 %v4691, %v2920
          %v4724 = vmul.f32 %v4692, %v2921
          %v4725 = vmul.f32 %v4693, %v2922
          %v4726 = vmul.f32 %v4694, %v2923
          %v4727 = vmul.f32 %v4695, %v2924
          %v4728 = vmul.f32 %v4696, %v2925
          %v4729 = vmul.f32 %v4697, %v2926
          %v4730 = vmul.f32 %v4698, %v2927
          %v4731 = vmul.f32 %v4699, %v2928
          %v4732 = vmul.f32 %v4700, %v2929
          %v4733 = vmul.f32 %v4701, %v2930
          %v4734 = vmul.f32 %v4702, %v2931
          %v4735 = vmul.f32 %v4703, %v2932
          %v4736 = vmul.f32 %v4704, %v2933
          %v4737 = vmul.f32 %v4705, %v2934
          %v4738 = vmul.f32 %v4706, %v2935
          %v4739 = vmul.f32 %v4707, %v2936
          %v4740 = vmul.f32 %v4708, %v2937
          %v4741 = vmul.f32 %v4709, %v2938
          %4742 = vrot.lane.b32.xlu0 %v4678, 64
          %v4743 = vpop.permute.xlu0 %4742
          %4744 = vrot.lane.b32.xlu0 %v4679, 64
          %v4745 = vpop.permute.xlu0 %4744
          %4746 = vrot.lane.b32.xlu0 %v4680, 64
          %v4747 = vpop.permute.xlu0 %4746
          %4748 = vrot.lane.b32.xlu0 %v4681, 64
          %v4749 = vpop.permute.xlu0 %4748
          %4750 = vrot.lane.b32.xlu0 %v4682, 64
          %v4751 = vpop.permute.xlu0 %4750
          %4752 = vrot.lane.b32.xlu0 %v4683, 64
          %v4753 = vpop.permute.xlu0 %4752
          %4754 = vrot.lane.b32.xlu0 %v4684, 64
          %v4755 = vpop.permute.xlu0 %4754
          %4756 = vrot.lane.b32.xlu0 %v4685, 64
          %v4757 = vpop.permute.xlu0 %4756
          %4758 = vrot.lane.b32.xlu0 %v4686, 64
          %v4759 = vpop.permute.xlu0 %4758
          %4760 = vrot.lane.b32.xlu0 %v4687, 64
          %v4761 = vpop.permute.xlu0 %4760
          %4762 = vrot.lane.b32.xlu0 %v4688, 64
          %v4763 = vpop.permute.xlu0 %4762
          %4764 = vrot.lane.b32.xlu0 %v4689, 64
          %v4765 = vpop.permute.xlu0 %4764
          %4766 = vrot.lane.b32.xlu0 %v4690, 64
          %v4767 = vpop.permute.xlu0 %4766
          %4768 = vrot.lane.b32.xlu0 %v4691, 64
          %v4769 = vpop.permute.xlu0 %4768
          %4770 = vrot.lane.b32.xlu0 %v4692, 64
          %v4771 = vpop.permute.xlu0 %4770
          %4772 = vrot.lane.b32.xlu0 %v4693, 64
          %v4773 = vpop.permute.xlu0 %4772
          %4774 = vrot.lane.b32.xlu0 %v4694, 64
          %v4775 = vpop.permute.xlu0 %4774
          %4776 = vrot.lane.b32.xlu0 %v4695, 64
          %v4777 = vpop.permute.xlu0 %4776
          %4778 = vrot.lane.b32.xlu0 %v4696, 64
          %v4779 = vpop.permute.xlu0 %4778
          %4780 = vrot.lane.b32.xlu0 %v4697, 64
          %v4781 = vpop.permute.xlu0 %4780
          %4782 = vrot.lane.b32.xlu0 %v4698, 64
          %v4783 = vpop.permute.xlu0 %4782
          %4784 = vrot.lane.b32.xlu0 %v4699, 64
          %v4785 = vpop.permute.xlu0 %4784
          %4786 = vrot.lane.b32.xlu0 %v4700, 64
          %v4787 = vpop.permute.xlu0 %4786
          %4788 = vrot.lane.b32.xlu0 %v4701, 64
          %v4789 = vpop.permute.xlu0 %4788
          %4790 = vrot.lane.b32.xlu0 %v4702, 64
          %v4791 = vpop.permute.xlu0 %4790
          %4792 = vrot.lane.b32.xlu0 %v4703, 64
          %v4793 = vpop.permute.xlu0 %4792
          %4794 = vrot.lane.b32.xlu0 %v4704, 64
          %v4795 = vpop.permute.xlu0 %4794
          %4796 = vrot.lane.b32.xlu0 %v4705, 64
          %v4797 = vpop.permute.xlu0 %4796
          %4798 = vrot.lane.b32.xlu0 %v4706, 64
          %v4799 = vpop.permute.xlu0 %4798
          %4800 = vrot.lane.b32.xlu0 %v4707, 64
          %v4801 = vpop.permute.xlu0 %4800
          %4802 = vrot.lane.b32.xlu0 %v4708, 64
          %v4803 = vpop.permute.xlu0 %4802
          %4804 = vrot.lane.b32.xlu0 %v4709, 64
          %v4805 = vpop.permute.xlu0 %4804
          %v4806 = vmul.f32 %v4743, %v2939
          %v4807 = vmul.f32 %v4745, %v2940
          %v4808 = vmul.f32 %v4747, %v2941
          %v4809 = vmul.f32 %v4749, %v2942
          %v4810 = vmul.f32 %v4751, %v2943
          %v4811 = vmul.f32 %v4753, %v2944
          %v4812 = vmul.f32 %v4755, %v2945
          %v4813 = vmul.f32 %v4757, %v2946
          %v4814 = vmul.f32 %v4759, %v2947
          %v4815 = vmul.f32 %v4761, %v2948
          %v4816 = vmul.f32 %v4763, %v2949
          %v4817 = vmul.f32 %v4765, %v2950
          %v4818 = vmul.f32 %v4767, %v2951
          %v4819 = vmul.f32 %v4769, %v2952
          %v4820 = vmul.f32 %v4771, %v2953
          %v4821 = vmul.f32 %v4773, %v2954
          %v4822 = vmul.f32 %v4775, %v2955
          %v4823 = vmul.f32 %v4777, %v2956
          %v4824 = vmul.f32 %v4779, %v2957
          %v4825 = vmul.f32 %v4781, %v2958
          %v4826 = vmul.f32 %v4783, %v2959
          %v4827 = vmul.f32 %v4785, %v2960
          %v4828 = vmul.f32 %v4787, %v2961
          %v4829 = vmul.f32 %v4789, %v2962
          %v4830 = vmul.f32 %v4791, %v2963
          %v4831 = vmul.f32 %v4793, %v2964
          %v4832 = vmul.f32 %v4795, %v2965
          %v4833 = vmul.f32 %v4797, %v2966
          %v4834 = vmul.f32 %v4799, %v2967
          %v4835 = vmul.f32 %v4801, %v2968
          %v4836 = vmul.f32 %v4803, %v2969
          %v4837 = vmul.f32 %v4805, %v2970
          %v4838 = vadd.f32 %v4710, %v4806
          %v4839 = vadd.f32 %v4711, %v4807
          %v4840 = vadd.f32 %v4712, %v4808
          %v4841 = vadd.f32 %v4713, %v4809
          %v4842 = vadd.f32 %v4714, %v4810
          %v4843 = vadd.f32 %v4715, %v4811
          %v4844 = vadd.f32 %v4716, %v4812
          %v4845 = vadd.f32 %v4717, %v4813
          %v4846 = vadd.f32 %v4718, %v4814
          %v4847 = vadd.f32 %v4719, %v4815
          %v4848 = vadd.f32 %v4720, %v4816
          %v4849 = vadd.f32 %v4721, %v4817
          %v4850 = vadd.f32 %v4722, %v4818
          %v4851 = vadd.f32 %v4723, %v4819
          %v4852 = vadd.f32 %v4724, %v4820
          %v4853 = vadd.f32 %v4725, %v4821
          %v4854 = vadd.f32 %v4726, %v4822
          %v4855 = vadd.f32 %v4727, %v4823
          %v4856 = vadd.f32 %v4728, %v4824
          %v4857 = vadd.f32 %v4729, %v4825
          %v4858 = vadd.f32 %v4730, %v4826
          %v4859 = vadd.f32 %v4731, %v4827
          %v4860 = vadd.f32 %v4732, %v4828
          %v4861 = vadd.f32 %v4733, %v4829
          %v4862 = vadd.f32 %v4734, %v4830
          %v4863 = vadd.f32 %v4735, %v4831
          %v4864 = vadd.f32 %v4736, %v4832
          %v4865 = vadd.f32 %v4737, %v4833
          %v4866 = vadd.f32 %v4738, %v4834
          %v4867 = vadd.f32 %v4739, %v4835
          %v4868 = vadd.f32 %v4740, %v4836
          %v4869 = vadd.f32 %v4741, %v4837
          %s4870 = scalar_lea.vmem %s504, 768 [#allocation14]
          %4871 = vst [vmem:[%s4870] sm:$0xff] %v4838
          %4872 = vst [vmem:[%s4870 + $0x8] sm:$0xff] %v4839
          %4873 = vst [vmem:[%s4870 + $0x10] sm:$0xff] %v4840
          %4874 = vst [vmem:[%s4870 + $0x18] sm:$0xff] %v4841
          %4875 = vst [vmem:[%s4870 + $0x20] sm:$0xff] %v4842
          %4876 = vst [vmem:[%s4870 + $0x28] sm:$0xff] %v4843
          %4877 = vst [vmem:[%s4870 + $0x30] sm:$0xff] %v4844
          %4878 = vst [vmem:[%s4870 + $0x38] sm:$0xff] %v4845
          %4879 = vst [vmem:[%s4870 + $0x40] sm:$0xff] %v4846
          %4880 = vst [vmem:[%s4870 + $0x48] sm:$0xff] %v4847
          %4881 = vst [vmem:[%s4870 + $0x50] sm:$0xff] %v4848
          %4882 = vst [vmem:[%s4870 + $0x58] sm:$0xff] %v4849
          %4883 = vst [vmem:[%s4870 + $0x60] sm:$0xff] %v4850
          %4884 = vst [vmem:[%s4870 + $0x68] sm:$0xff] %v4851
          %4885 = vst [vmem:[%s4870 + $0x70] sm:$0xff] %v4852
          %4886 = vst [vmem:[%s4870 + $0x78] sm:$0xff] %v4853
          %4887 = vst [vmem:[%s4870 + $0x80] sm:$0xff] %v4854
          %4888 = vst [vmem:[%s4870 + $0x88] sm:$0xff] %v4855
          %4889 = vst [vmem:[%s4870 + $0x90] sm:$0xff] %v4856
          %4890 = vst [vmem:[%s4870 + $0x98] sm:$0xff] %v4857
          %4891 = vst [vmem:[%s4870 + $0xa0] sm:$0xff] %v4858
          %4892 = vst [vmem:[%s4870 + $0xa8] sm:$0xff] %v4859
          %4893 = vst [vmem:[%s4870 + $0xb0] sm:$0xff] %v4860
          %4894 = vst [vmem:[%s4870 + $0xb8] sm:$0xff] %v4861
          %4895 = vst [vmem:[%s4870 + $0xc0] sm:$0xff] %v4862
          %4896 = vst [vmem:[%s4870 + $0xc8] sm:$0xff] %v4863
          %4897 = vst [vmem:[%s4870 + $0xd0] sm:$0xff] %v4864
          %4898 = vst [vmem:[%s4870 + $0xd8] sm:$0xff] %v4865
          %4899 = vst [vmem:[%s4870 + $0xe0] sm:$0xff] %v4866
          %4900 = vst [vmem:[%s4870 + $0xe8] sm:$0xff] %v4867
          %4901 = vst [vmem:[%s4870 + $0xf0] sm:$0xff] %v4868
          %4902 = vst [vmem:[%s4870 + $0xf8] sm:$0xff] %v4869
          %v4903 = vld [vmem:[#allocation2 + $0x20] sm:$0xff]
          %v4904 = vld [vmem:[#allocation2 + $0x60] sm:$0xff]
          %v4905 = vld [vmem:[#allocation2 + $0xa0] sm:$0xff]
          %v4906 = vld [vmem:[#allocation2 + $0xe0] sm:$0xff]
          %v4907 = vld [vmem:[#allocation2 + $0x120] sm:$0xff]
          %v4908 = vld [vmem:[#allocation2 + $0x160] sm:$0xff]
          %v4909 = vld [vmem:[#allocation2 + $0x1a0] sm:$0xff]
          %v4910 = vld [vmem:[#allocation2 + $0x1e0] sm:$0xff]
          %v4911 = vld [vmem:[#allocation2 + $0x220] sm:$0xff]
          %v4912 = vld [vmem:[#allocation2 + $0x260] sm:$0xff]
          %v4913 = vld [vmem:[#allocation2 + $0x2a0] sm:$0xff]
          %v4914 = vld [vmem:[#allocation2 + $0x2e0] sm:$0xff]
          %v4915 = vld [vmem:[#allocation2 + $0x320] sm:$0xff]
          %v4916 = vld [vmem:[#allocation2 + $0x360] sm:$0xff]
          %v4917 = vld [vmem:[#allocation2 + $0x3a0] sm:$0xff]
          %v4918 = vld [vmem:[#allocation2 + $0x3e0] sm:$0xff]
          %v4919 = vld [vmem:[#allocation2 + $0x420] sm:$0xff]
          %v4920 = vld [vmem:[#allocation2 + $0x460] sm:$0xff]
          %v4921 = vld [vmem:[#allocation2 + $0x4a0] sm:$0xff]
          %v4922 = vld [vmem:[#allocation2 + $0x4e0] sm:$0xff]
          %v4923 = vld [vmem:[#allocation2 + $0x520] sm:$0xff]
          %v4924 = vld [vmem:[#allocation2 + $0x560] sm:$0xff]
          %v4925 = vld [vmem:[#allocation2 + $0x5a0] sm:$0xff]
          %v4926 = vld [vmem:[#allocation2 + $0x5e0] sm:$0xff]
          %v4927 = vld [vmem:[#allocation2 + $0x620] sm:$0xff]
          %v4928 = vld [vmem:[#allocation2 + $0x660] sm:$0xff]
          %v4929 = vld [vmem:[#allocation2 + $0x6a0] sm:$0xff]
          %v4930 = vld [vmem:[#allocation2 + $0x6e0] sm:$0xff]
          %v4931 = vld [vmem:[#allocation2 + $0x720] sm:$0xff]
          %v4932 = vld [vmem:[#allocation2 + $0x760] sm:$0xff]
          %v4933 = vld [vmem:[#allocation2 + $0x7a0] sm:$0xff]
          %v4934 = vld [vmem:[#allocation2 + $0x7e0] sm:$0xff]
          %v4935 = vmul.f32 %v4903, %v4903
          %v4936 = vmul.f32 %v4904, %v4904
          %v4937 = vmul.f32 %v4905, %v4905
          %v4938 = vmul.f32 %v4906, %v4906
          %v4939 = vmul.f32 %v4907, %v4907
          %v4940 = vmul.f32 %v4908, %v4908
          %v4941 = vmul.f32 %v4909, %v4909
          %v4942 = vmul.f32 %v4910, %v4910
          %v4943 = vmul.f32 %v4911, %v4911
          %v4944 = vmul.f32 %v4912, %v4912
          %v4945 = vmul.f32 %v4913, %v4913
          %v4946 = vmul.f32 %v4914, %v4914
          %v4947 = vmul.f32 %v4915, %v4915
          %v4948 = vmul.f32 %v4916, %v4916
          %v4949 = vmul.f32 %v4917, %v4917
          %v4950 = vmul.f32 %v4918, %v4918
          %v4951 = vmul.f32 %v4919, %v4919
          %v4952 = vmul.f32 %v4920, %v4920
          %v4953 = vmul.f32 %v4921, %v4921
          %v4954 = vmul.f32 %v4922, %v4922
          %v4955 = vmul.f32 %v4923, %v4923
          %v4956 = vmul.f32 %v4924, %v4924
          %v4957 = vmul.f32 %v4925, %v4925
          %v4958 = vmul.f32 %v4926, %v4926
          %v4959 = vmul.f32 %v4927, %v4927
          %v4960 = vmul.f32 %v4928, %v4928
          %v4961 = vmul.f32 %v4929, %v4929
          %v4962 = vmul.f32 %v4930, %v4930
          %v4963 = vmul.f32 %v4931, %v4931
          %v4964 = vmul.f32 %v4932, %v4932
          %v4965 = vmul.f32 %v4933, %v4933
          %v4966 = vmul.f32 %v4934, %v4934
          %4967 = vadd.xlane.f32.xlu0 %v4935
          %v4968 = vpop.xlane.xlu0 %4967
          %4969 = vadd.xlane.f32.xlu0 %v4936
          %v4970 = vpop.xlane.xlu0 %4969
          %4971 = vadd.xlane.f32.xlu0 %v4937
          %v4972 = vpop.xlane.xlu0 %4971
          %4973 = vadd.xlane.f32.xlu0 %v4938
          %v4974 = vpop.xlane.xlu0 %4973
          %4975 = vadd.xlane.f32.xlu0 %v4939
          %v4976 = vpop.xlane.xlu0 %4975
          %4977 = vadd.xlane.f32.xlu0 %v4940
          %v4978 = vpop.xlane.xlu0 %4977
          %4979 = vadd.xlane.f32.xlu0 %v4941
          %v4980 = vpop.xlane.xlu0 %4979
          %4981 = vadd.xlane.f32.xlu0 %v4942
          %v4982 = vpop.xlane.xlu0 %4981
          %4983 = vadd.xlane.f32.xlu0 %v4943
          %v4984 = vpop.xlane.xlu0 %4983
          %4985 = vadd.xlane.f32.xlu0 %v4944
          %v4986 = vpop.xlane.xlu0 %4985
          %4987 = vadd.xlane.f32.xlu0 %v4945
          %v4988 = vpop.xlane.xlu0 %4987
          %4989 = vadd.xlane.f32.xlu0 %v4946
          %v4990 = vpop.xlane.xlu0 %4989
          %4991 = vadd.xlane.f32.xlu0 %v4947
          %v4992 = vpop.xlane.xlu0 %4991
          %4993 = vadd.xlane.f32.xlu0 %v4948
          %v4994 = vpop.xlane.xlu0 %4993
          %4995 = vadd.xlane.f32.xlu0 %v4949
          %v4996 = vpop.xlane.xlu0 %4995
          %4997 = vadd.xlane.f32.xlu0 %v4950
          %v4998 = vpop.xlane.xlu0 %4997
          %4999 = vadd.xlane.f32.xlu0 %v4951
          %v5000 = vpop.xlane.xlu0 %4999
          %5001 = vadd.xlane.f32.xlu0 %v4952
          %v5002 = vpop.xlane.xlu0 %5001
          %5003 = vadd.xlane.f32.xlu0 %v4953
          %v5004 = vpop.xlane.xlu0 %5003
          %5005 = vadd.xlane.f32.xlu0 %v4954
          %v5006 = vpop.xlane.xlu0 %5005
          %5007 = vadd.xlane.f32.xlu0 %v4955
          %v5008 = vpop.xlane.xlu0 %5007
          %5009 = vadd.xlane.f32.xlu0 %v4956
          %v5010 = vpop.xlane.xlu0 %5009
          %5011 = vadd.xlane.f32.xlu0 %v4957
          %v5012 = vpop.xlane.xlu0 %5011
          %5013 = vadd.xlane.f32.xlu0 %v4958
          %v5014 = vpop.xlane.xlu0 %5013
          %5015 = vadd.xlane.f32.xlu0 %v4959
          %v5016 = vpop.xlane.xlu0 %5015
          %5017 = vadd.xlane.f32.xlu0 %v4960
          %v5018 = vpop.xlane.xlu0 %5017
          %5019 = vadd.xlane.f32.xlu0 %v4961
          %v5020 = vpop.xlane.xlu0 %5019
          %5021 = vadd.xlane.f32.xlu0 %v4962
          %v5022 = vpop.xlane.xlu0 %5021
          %5023 = vadd.xlane.f32.xlu0 %v4963
          %v5024 = vpop.xlane.xlu0 %5023
          %5025 = vadd.xlane.f32.xlu0 %v4964
          %v5026 = vpop.xlane.xlu0 %5025
          %5027 = vadd.xlane.f32.xlu0 %v4965
          %v5028 = vpop.xlane.xlu0 %5027
          %5029 = vadd.xlane.f32.xlu0 %v4966
          %v5030 = vpop.xlane.xlu0 %5029
          %v5031 = vmul.f32 %v4968, %v3101
          %v5032 = vmul.f32 %v4970, %v3101
          %v5033 = vmul.f32 %v4972, %v3101
          %v5034 = vmul.f32 %v4974, %v3101
          %v5035 = vmul.f32 %v4976, %v3101
          %v5036 = vmul.f32 %v4978, %v3101
          %v5037 = vmul.f32 %v4980, %v3101
          %v5038 = vmul.f32 %v4982, %v3101
          %v5039 = vmul.f32 %v4984, %v3101
          %v5040 = vmul.f32 %v4986, %v3101
          %v5041 = vmul.f32 %v4988, %v3101
          %v5042 = vmul.f32 %v4990, %v3101
          %v5043 = vmul.f32 %v4992, %v3101
          %v5044 = vmul.f32 %v4994, %v3101
          %v5045 = vmul.f32 %v4996, %v3101
          %v5046 = vmul.f32 %v4998, %v3101
          %v5047 = vmul.f32 %v5000, %v3101
          %v5048 = vmul.f32 %v5002, %v3101
          %v5049 = vmul.f32 %v5004, %v3101
          %v5050 = vmul.f32 %v5006, %v3101
          %v5051 = vmul.f32 %v5008, %v3101
          %v5052 = vmul.f32 %v5010, %v3101
          %v5053 = vmul.f32 %v5012, %v3101
          %v5054 = vmul.f32 %v5014, %v3101
          %v5055 = vmul.f32 %v5016, %v3101
          %v5056 = vmul.f32 %v5018, %v3101
          %v5057 = vmul.f32 %v5020, %v3101
          %v5058 = vmul.f32 %v5022, %v3101
          %v5059 = vmul.f32 %v5024, %v3101
          %v5060 = vmul.f32 %v5026, %v3101
          %v5061 = vmul.f32 %v5028, %v3101
          %v5062 = vmul.f32 %v5030, %v3101
          %v5063 = vadd.f32 %v5031, 1e-06
          %v5064 = vadd.f32 %v5032, 1e-06
          %v5065 = vadd.f32 %v5033, 1e-06
          %v5066 = vadd.f32 %v5034, 1e-06
          %v5067 = vadd.f32 %v5035, 1e-06
          %v5068 = vadd.f32 %v5036, 1e-06
          %v5069 = vadd.f32 %v5037, 1e-06
          %v5070 = vadd.f32 %v5038, 1e-06
          %v5071 = vadd.f32 %v5039, 1e-06
          %v5072 = vadd.f32 %v5040, 1e-06
          %v5073 = vadd.f32 %v5041, 1e-06
          %v5074 = vadd.f32 %v5042, 1e-06
          %v5075 = vadd.f32 %v5043, 1e-06
          %v5076 = vadd.f32 %v5044, 1e-06
          %v5077 = vadd.f32 %v5045, 1e-06
          %v5078 = vadd.f32 %v5046, 1e-06
          %v5079 = vadd.f32 %v5047, 1e-06
          %v5080 = vadd.f32 %v5048, 1e-06
          %v5081 = vadd.f32 %v5049, 1e-06
          %v5082 = vadd.f32 %v5050, 1e-06
          %v5083 = vadd.f32 %v5051, 1e-06
          %v5084 = vadd.f32 %v5052, 1e-06
          %v5085 = vadd.f32 %v5053, 1e-06
          %v5086 = vadd.f32 %v5054, 1e-06
          %v5087 = vadd.f32 %v5055, 1e-06
          %v5088 = vadd.f32 %v5056, 1e-06
          %v5089 = vadd.f32 %v5057, 1e-06
          %v5090 = vadd.f32 %v5058, 1e-06
          %v5091 = vadd.f32 %v5059, 1e-06
          %v5092 = vadd.f32 %v5060, 1e-06
          %v5093 = vadd.f32 %v5061, 1e-06
          %v5094 = vadd.f32 %v5062, 1e-06
          %v5095 = vrsqrt.pop %v5063
          %v5096 = vrsqrt.pop %v5064
          %v5097 = vrsqrt.pop %v5065
          %v5098 = vrsqrt.pop %v5066
          %v5099 = vrsqrt.pop %v5067
          %v5100 = vrsqrt.pop %v5068
          %v5101 = vrsqrt.pop %v5069
          %v5102 = vrsqrt.pop %v5070
          %v5103 = vrsqrt.pop %v5071
          %v5104 = vrsqrt.pop %v5072
          %v5105 = vrsqrt.pop %v5073
          %v5106 = vrsqrt.pop %v5074
          %v5107 = vrsqrt.pop %v5075
          %v5108 = vrsqrt.pop %v5076
          %v5109 = vrsqrt.pop %v5077
          %v5110 = vrsqrt.pop %v5078
          %v5111 = vrsqrt.pop %v5079
          %v5112 = vrsqrt.pop %v5080
          %v5113 = vrsqrt.pop %v5081
          %v5114 = vrsqrt.pop %v5082
          %v5115 = vrsqrt.pop %v5083
          %v5116 = vrsqrt.pop %v5084
          %v5117 = vrsqrt.pop %v5085
          %v5118 = vrsqrt.pop %v5086
          %v5119 = vrsqrt.pop %v5087
          %v5120 = vrsqrt.pop %v5088
          %v5121 = vrsqrt.pop %v5089
          %v5122 = vrsqrt.pop %v5090
          %v5123 = vrsqrt.pop %v5091
          %v5124 = vrsqrt.pop %v5092
          %v5125 = vrsqrt.pop %v5093
          %v5126 = vrsqrt.pop %v5094
          %v5127 = vmul.f32 %v4903, %v5095
          %v5128 = vmul.f32 %v4904, %v5096
          %v5129 = vmul.f32 %v4905, %v5097
          %v5130 = vmul.f32 %v4906, %v5098
          %v5131 = vmul.f32 %v4907, %v5099
          %v5132 = vmul.f32 %v4908, %v5100
          %v5133 = vmul.f32 %v4909, %v5101
          %v5134 = vmul.f32 %v4910, %v5102
          %v5135 = vmul.f32 %v4911, %v5103
          %v5136 = vmul.f32 %v4912, %v5104
          %v5137 = vmul.f32 %v4913, %v5105
          %v5138 = vmul.f32 %v4914, %v5106
          %v5139 = vmul.f32 %v4915, %v5107
          %v5140 = vmul.f32 %v4916, %v5108
          %v5141 = vmul.f32 %v4917, %v5109
          %v5142 = vmul.f32 %v4918, %v5110
          %v5143 = vmul.f32 %v4919, %v5111
          %v5144 = vmul.f32 %v4920, %v5112
          %v5145 = vmul.f32 %v4921, %v5113
          %v5146 = vmul.f32 %v4922, %v5114
          %v5147 = vmul.f32 %v4923, %v5115
          %v5148 = vmul.f32 %v4924, %v5116
          %v5149 = vmul.f32 %v4925, %v5117
          %v5150 = vmul.f32 %v4926, %v5118
          %v5151 = vmul.f32 %v4927, %v5119
          %v5152 = vmul.f32 %v4928, %v5120
          %v5153 = vmul.f32 %v4929, %v5121
          %v5154 = vmul.f32 %v4930, %v5122
          %v5155 = vmul.f32 %v4931, %v5123
          %v5156 = vmul.f32 %v4932, %v5124
          %v5157 = vmul.f32 %v4933, %v5125
          %v5158 = vmul.f32 %v4934, %v5126
          %v5160 = vlaneseq
          %v5161 = vshrl.u32 %v5160, 7
          %v5162 = vsub.s32 0, %v5161
          %v5163 = vrot.slane %v2972, %v5162
          %v5165 = vmul.f32 %v5127, %v5163
          %v5166 = vmul.f32 %v5128, %v5163
          %v5167 = vmul.f32 %v5129, %v5163
          %v5168 = vmul.f32 %v5130, %v5163
          %v5169 = vmul.f32 %v5131, %v5163
          %v5170 = vmul.f32 %v5132, %v5163
          %v5171 = vmul.f32 %v5133, %v5163
          %v5172 = vmul.f32 %v5134, %v5163
          %v5173 = vmul.f32 %v5135, %v5163
          %v5174 = vmul.f32 %v5136, %v5163
          %v5175 = vmul.f32 %v5137, %v5163
          %v5176 = vmul.f32 %v5138, %v5163
          %v5177 = vmul.f32 %v5139, %v5163
          %v5178 = vmul.f32 %v5140, %v5163
          %v5179 = vmul.f32 %v5141, %v5163
          %v5180 = vmul.f32 %v5142, %v5163
          %v5181 = vmul.f32 %v5143, %v5163
          %v5182 = vmul.f32 %v5144, %v5163
          %v5183 = vmul.f32 %v5145, %v5163
          %v5184 = vmul.f32 %v5146, %v5163
          %v5185 = vmul.f32 %v5147, %v5163
          %v5186 = vmul.f32 %v5148, %v5163
          %v5187 = vmul.f32 %v5149, %v5163
          %v5188 = vmul.f32 %v5150, %v5163
          %v5189 = vmul.f32 %v5151, %v5163
          %v5190 = vmul.f32 %v5152, %v5163
          %v5191 = vmul.f32 %v5153, %v5163
          %v5192 = vmul.f32 %v5154, %v5163
          %v5193 = vmul.f32 %v5155, %v5163
          %v5194 = vmul.f32 %v5156, %v5163
          %v5195 = vmul.f32 %v5157, %v5163
          %v5196 = vmul.f32 %v5158, %v5163
          %v5197 = vmul.f32 %v5165, %v2907
          %v5198 = vmul.f32 %v5166, %v2908
          %v5199 = vmul.f32 %v5167, %v2909
          %v5200 = vmul.f32 %v5168, %v2910
          %v5201 = vmul.f32 %v5169, %v2911
          %v5202 = vmul.f32 %v5170, %v2912
          %v5203 = vmul.f32 %v5171, %v2913
          %v5204 = vmul.f32 %v5172, %v2914
          %v5205 = vmul.f32 %v5173, %v2915
          %v5206 = vmul.f32 %v5174, %v2916
          %v5207 = vmul.f32 %v5175, %v2917
          %v5208 = vmul.f32 %v5176, %v2918
          %v5209 = vmul.f32 %v5177, %v2919
          %v5210 = vmul.f32 %v5178, %v2920
          %v5211 = vmul.f32 %v5179, %v2921
          %v5212 = vmul.f32 %v5180, %v2922
          %v5213 = vmul.f32 %v5181, %v2923
          %v5214 = vmul.f32 %v5182, %v2924
          %v5215 = vmul.f32 %v5183, %v2925
          %v5216 = vmul.f32 %v5184, %v2926
          %v5217 = vmul.f32 %v5185, %v2927
          %v5218 = vmul.f32 %v5186, %v2928
          %v5219 = vmul.f32 %v5187, %v2929
          %v5220 = vmul.f32 %v5188, %v2930
          %v5221 = vmul.f32 %v5189, %v2931
          %v5222 = vmul.f32 %v5190, %v2932
          %v5223 = vmul.f32 %v5191, %v2933
          %v5224 = vmul.f32 %v5192, %v2934
          %v5225 = vmul.f32 %v5193, %v2935
          %v5226 = vmul.f32 %v5194, %v2936
          %v5227 = vmul.f32 %v5195, %v2937
          %v5228 = vmul.f32 %v5196, %v2938
          %5229 = vrot.lane.b32.xlu0 %v5165, 64
          %v5230 = vpop.permute.xlu0 %5229
          %5231 = vrot.lane.b32.xlu0 %v5166, 64
          %v5232 = vpop.permute.xlu0 %5231
          %5233 = vrot.lane.b32.xlu0 %v5167, 64
          %v5234 = vpop.permute.xlu0 %5233
          %5235 = vrot.lane.b32.xlu0 %v5168, 64
          %v5236 = vpop.permute.xlu0 %5235
          %5237 = vrot.lane.b32.xlu0 %v5169, 64
          %v5238 = vpop.permute.xlu0 %5237
          %5239 = vrot.lane.b32.xlu0 %v5170, 64
          %v5240 = vpop.permute.xlu0 %5239
          %5241 = vrot.lane.b32.xlu0 %v5171, 64
          %v5242 = vpop.permute.xlu0 %5241
          %5243 = vrot.lane.b32.xlu0 %v5172, 64
          %v5244 = vpop.permute.xlu0 %5243
          %5245 = vrot.lane.b32.xlu0 %v5173, 64
          %v5246 = vpop.permute.xlu0 %5245
          %5247 = vrot.lane.b32.xlu0 %v5174, 64
          %v5248 = vpop.permute.xlu0 %5247
          %5249 = vrot.lane.b32.xlu0 %v5175, 64
          %v5250 = vpop.permute.xlu0 %5249
          %5251 = vrot.lane.b32.xlu0 %v5176, 64
          %v5252 = vpop.permute.xlu0 %5251
          %5253 = vrot.lane.b32.xlu0 %v5177, 64
          %v5254 = vpop.permute.xlu0 %5253
          %5255 = vrot.lane.b32.xlu0 %v5178, 64
          %v5256 = vpop.permute.xlu0 %5255
          %5257 = vrot.lane.b32.xlu0 %v5179, 64
          %v5258 = vpop.permute.xlu0 %5257
          %5259 = vrot.lane.b32.xlu0 %v5180, 64
          %v5260 = vpop.permute.xlu0 %5259
          %5261 = vrot.lane.b32.xlu0 %v5181, 64
          %v5262 = vpop.permute.xlu0 %5261
          %5263 = vrot.lane.b32.xlu0 %v5182, 64
          %v5264 = vpop.permute.xlu0 %5263
          %5265 = vrot.lane.b32.xlu0 %v5183, 64
          %v5266 = vpop.permute.xlu0 %5265
          %5267 = vrot.lane.b32.xlu0 %v5184, 64
          %v5268 = vpop.permute.xlu0 %5267
          %5269 = vrot.lane.b32.xlu0 %v5185, 64
          %v5270 = vpop.permute.xlu0 %5269
          %5271 = vrot.lane.b32.xlu0 %v5186, 64
          %v5272 = vpop.permute.xlu0 %5271
          %5273 = vrot.lane.b32.xlu0 %v5187, 64
          %v5274 = vpop.permute.xlu0 %5273
          %5275 = vrot.lane.b32.xlu0 %v5188, 64
          %v5276 = vpop.permute.xlu0 %5275
          %5277 = vrot.lane.b32.xlu0 %v5189, 64
          %v5278 = vpop.permute.xlu0 %5277
          %5279 = vrot.lane.b32.xlu0 %v5190, 64
          %v5280 = vpop.permute.xlu0 %5279
          %5281 = vrot.lane.b32.xlu0 %v5191, 64
          %v5282 = vpop.permute.xlu0 %5281
          %5283 = vrot.lane.b32.xlu0 %v5192, 64
          %v5284 = vpop.permute.xlu0 %5283
          %5285 = vrot.lane.b32.xlu0 %v5193, 64
          %v5286 = vpop.permute.xlu0 %5285
          %5287 = vrot.lane.b32.xlu0 %v5194, 64
          %v5288 = vpop.permute.xlu0 %5287
          %5289 = vrot.lane.b32.xlu0 %v5195, 64
          %v5290 = vpop.permute.xlu0 %5289
          %5291 = vrot.lane.b32.xlu0 %v5196, 64
          %v5292 = vpop.permute.xlu0 %5291
          %v5293 = vmul.f32 %v5230, %v2939
          %v5294 = vmul.f32 %v5232, %v2940
          %v5295 = vmul.f32 %v5234, %v2941
          %v5296 = vmul.f32 %v5236, %v2942
          %v5297 = vmul.f32 %v5238, %v2943
          %v5298 = vmul.f32 %v5240, %v2944
          %v5299 = vmul.f32 %v5242, %v2945
          %v5300 = vmul.f32 %v5244, %v2946
          %v5301 = vmul.f32 %v5246, %v2947
          %v5302 = vmul.f32 %v5248, %v2948
          %v5303 = vmul.f32 %v5250, %v2949
          %v5304 = vmul.f32 %v5252, %v2950
          %v5305 = vmul.f32 %v5254, %v2951
          %v5306 = vmul.f32 %v5256, %v2952
          %v5307 = vmul.f32 %v5258, %v2953
          %v5308 = vmul.f32 %v5260, %v2954
          %v5309 = vmul.f32 %v5262, %v2955
          %v5310 = vmul.f32 %v5264, %v2956
          %v5311 = vmul.f32 %v5266, %v2957
          %v5312 = vmul.f32 %v5268, %v2958
          %v5313 = vmul.f32 %v5270, %v2959
          %v5314 = vmul.f32 %v5272, %v2960
          %v5315 = vmul.f32 %v5274, %v2961
          %v5316 = vmul.f32 %v5276, %v2962
          %v5317 = vmul.f32 %v5278, %v2963
          %v5318 = vmul.f32 %v5280, %v2964
          %v5319 = vmul.f32 %v5282, %v2965
          %v5320 = vmul.f32 %v5284, %v2966
          %v5321 = vmul.f32 %v5286, %v2967
          %v5322 = vmul.f32 %v5288, %v2968
          %v5323 = vmul.f32 %v5290, %v2969
          %v5324 = vmul.f32 %v5292, %v2970
          %v5325 = vadd.f32 %v5197, %v5293
          %v5326 = vadd.f32 %v5198, %v5294
          %v5327 = vadd.f32 %v5199, %v5295
          %v5328 = vadd.f32 %v5200, %v5296
          %v5329 = vadd.f32 %v5201, %v5297
          %v5330 = vadd.f32 %v5202, %v5298
          %v5331 = vadd.f32 %v5203, %v5299
          %v5332 = vadd.f32 %v5204, %v5300
          %v5333 = vadd.f32 %v5205, %v5301
          %v5334 = vadd.f32 %v5206, %v5302
          %v5335 = vadd.f32 %v5207, %v5303
          %v5336 = vadd.f32 %v5208, %v5304
          %v5337 = vadd.f32 %v5209, %v5305
          %v5338 = vadd.f32 %v5210, %v5306
          %v5339 = vadd.f32 %v5211, %v5307
          %v5340 = vadd.f32 %v5212, %v5308
          %v5341 = vadd.f32 %v5213, %v5309
          %v5342 = vadd.f32 %v5214, %v5310
          %v5343 = vadd.f32 %v5215, %v5311
          %v5344 = vadd.f32 %v5216, %v5312
          %v5345 = vadd.f32 %v5217, %v5313
          %v5346 = vadd.f32 %v5218, %v5314
          %v5347 = vadd.f32 %v5219, %v5315
          %v5348 = vadd.f32 %v5220, %v5316
          %v5349 = vadd.f32 %v5221, %v5317
          %v5350 = vadd.f32 %v5222, %v5318
          %v5351 = vadd.f32 %v5223, %v5319
          %v5352 = vadd.f32 %v5224, %v5320
          %v5353 = vadd.f32 %v5225, %v5321
          %v5354 = vadd.f32 %v5226, %v5322
          %v5355 = vadd.f32 %v5227, %v5323
          %v5356 = vadd.f32 %v5228, %v5324
          %5357 = vst [vmem:[%s511] sm:$0xff] %v5325
          %5358 = vst [vmem:[%s511 + $0x8] sm:$0xff] %v5326
          %5359 = vst [vmem:[%s511 + $0x10] sm:$0xff] %v5327
          %5360 = vst [vmem:[%s511 + $0x18] sm:$0xff] %v5328
          %5361 = vst [vmem:[%s511 + $0x20] sm:$0xff] %v5329
          %5362 = vst [vmem:[%s511 + $0x28] sm:$0xff] %v5330
          %5363 = vst [vmem:[%s511 + $0x30] sm:$0xff] %v5331
          %5364 = vst [vmem:[%s511 + $0x38] sm:$0xff] %v5332
          %5365 = vst [vmem:[%s511 + $0x40] sm:$0xff] %v5333
          %5366 = vst [vmem:[%s511 + $0x48] sm:$0xff] %v5334
          %5367 = vst [vmem:[%s511 + $0x50] sm:$0xff] %v5335
          %5368 = vst [vmem:[%s511 + $0x58] sm:$0xff] %v5336
          %5369 = vst [vmem:[%s511 + $0x60] sm:$0xff] %v5337
          %5370 = vst [vmem:[%s511 + $0x68] sm:$0xff] %v5338
          %5371 = vst [vmem:[%s511 + $0x70] sm:$0xff] %v5339
          %5372 = vst [vmem:[%s511 + $0x78] sm:$0xff] %v5340
          %5373 = vst [vmem:[%s511 + $0x80] sm:$0xff] %v5341
          %5374 = vst [vmem:[%s511 + $0x88] sm:$0xff] %v5342
          %5375 = vst [vmem:[%s511 + $0x90] sm:$0xff] %v5343
          %5376 = vst [vmem:[%s511 + $0x98] sm:$0xff] %v5344
          %5377 = vst [vmem:[%s511 + $0xa0] sm:$0xff] %v5345
          %5378 = vst [vmem:[%s511 + $0xa8] sm:$0xff] %v5346
          %5379 = vst [vmem:[%s511 + $0xb0] sm:$0xff] %v5347
          %5380 = vst [vmem:[%s511 + $0xb8] sm:$0xff] %v5348
          %5381 = vst [vmem:[%s511 + $0xc0] sm:$0xff] %v5349
          %5382 = vst [vmem:[%s511 + $0xc8] sm:$0xff] %v5350
          %5383 = vst [vmem:[%s511 + $0xd0] sm:$0xff] %v5351
          %5384 = vst [vmem:[%s511 + $0xd8] sm:$0xff] %v5352
          %5385 = vst [vmem:[%s511 + $0xe0] sm:$0xff] %v5353
          %5386 = vst [vmem:[%s511 + $0xe8] sm:$0xff] %v5354
          %5387 = vst [vmem:[%s511 + $0xf0] sm:$0xff] %v5355
          %5388 = vst [vmem:[%s511 + $0xf8] sm:$0xff] %v5356
          %v5389 = vld [vmem:[#allocation2 + $0x30] sm:$0xff]
          %v5390 = vld [vmem:[#allocation2 + $0x70] sm:$0xff]
          %v5391 = vld [vmem:[#allocation2 + $0xb0] sm:$0xff]
          %v5392 = vld [vmem:[#allocation2 + $0xf0] sm:$0xff]
          %v5393 = vld [vmem:[#allocation2 + $0x130] sm:$0xff]
          %v5394 = vld [vmem:[#allocation2 + $0x170] sm:$0xff]
          %v5395 = vld [vmem:[#allocation2 + $0x1b0] sm:$0xff]
          %v5396 = vld [vmem:[#allocation2 + $0x1f0] sm:$0xff]
          %v5397 = vld [vmem:[#allocation2 + $0x230] sm:$0xff]
          %v5398 = vld [vmem:[#allocation2 + $0x270] sm:$0xff]
          %v5399 = vld [vmem:[#allocation2 + $0x2b0] sm:$0xff]
          %v5400 = vld [vmem:[#allocation2 + $0x2f0] sm:$0xff]
          %v5401 = vld [vmem:[#allocation2 + $0x330] sm:$0xff]
          %v5402 = vld [vmem:[#allocation2 + $0x370] sm:$0xff]
          %v5403 = vld [vmem:[#allocation2 + $0x3b0] sm:$0xff]
          %v5404 = vld [vmem:[#allocation2 + $0x3f0] sm:$0xff]
          %v5405 = vld [vmem:[#allocation2 + $0x430] sm:$0xff]
          %v5406 = vld [vmem:[#allocation2 + $0x470] sm:$0xff]
          %v5407 = vld [vmem:[#allocation2 + $0x4b0] sm:$0xff]
          %v5408 = vld [vmem:[#allocation2 + $0x4f0] sm:$0xff]
          %v5409 = vld [vmem:[#allocation2 + $0x530] sm:$0xff]
          %v5410 = vld [vmem:[#allocation2 + $0x570] sm:$0xff]
          %v5411 = vld [vmem:[#allocation2 + $0x5b0] sm:$0xff]
          %v5412 = vld [vmem:[#allocation2 + $0x5f0] sm:$0xff]
          %v5413 = vld [vmem:[#allocation2 + $0x630] sm:$0xff]
          %v5414 = vld [vmem:[#allocation2 + $0x670] sm:$0xff]
          %v5415 = vld [vmem:[#allocation2 + $0x6b0] sm:$0xff]
          %v5416 = vld [vmem:[#allocation2 + $0x6f0] sm:$0xff]
          %v5417 = vld [vmem:[#allocation2 + $0x730] sm:$0xff]
          %v5418 = vld [vmem:[#allocation2 + $0x770] sm:$0xff]
          %v5419 = vld [vmem:[#allocation2 + $0x7b0] sm:$0xff]
          %v5420 = vld [vmem:[#allocation2 + $0x7f0] sm:$0xff]
          %5421 = vst [vmem:[%s518] sm:$0xff] %v5389
          %5422 = vst [vmem:[%s518 + $0x8] sm:$0xff] %v5390
          %5423 = vst [vmem:[%s518 + $0x10] sm:$0xff] %v5391
          %5424 = vst [vmem:[%s518 + $0x18] sm:$0xff] %v5392
          %5425 = vst [vmem:[%s518 + $0x20] sm:$0xff] %v5393
          %5426 = vst [vmem:[%s518 + $0x28] sm:$0xff] %v5394
          %5427 = vst [vmem:[%s518 + $0x30] sm:$0xff] %v5395
          %5428 = vst [vmem:[%s518 + $0x38] sm:$0xff] %v5396
          %5429 = vst [vmem:[%s518 + $0x40] sm:$0xff] %v5397
          %5430 = vst [vmem:[%s518 + $0x48] sm:$0xff] %v5398
          %5431 = vst [vmem:[%s518 + $0x50] sm:$0xff] %v5399
          %5432 = vst [vmem:[%s518 + $0x58] sm:$0xff] %v5400
          %5433 = vst [vmem:[%s518 + $0x60] sm:$0xff] %v5401
          %5434 = vst [vmem:[%s518 + $0x68] sm:$0xff] %v5402
          %5435 = vst [vmem:[%s518 + $0x70] sm:$0xff] %v5403
          %5436 = vst [vmem:[%s518 + $0x78] sm:$0xff] %v5404
          %5437 = vst [vmem:[%s518 + $0x80] sm:$0xff] %v5405
          %5438 = vst [vmem:[%s518 + $0x88] sm:$0xff] %v5406
          %5439 = vst [vmem:[%s518 + $0x90] sm:$0xff] %v5407
          %5440 = vst [vmem:[%s518 + $0x98] sm:$0xff] %v5408
          %5441 = vst [vmem:[%s518 + $0xa0] sm:$0xff] %v5409
          %5442 = vst [vmem:[%s518 + $0xa8] sm:$0xff] %v5410
          %5443 = vst [vmem:[%s518 + $0xb0] sm:$0xff] %v5411
          %5444 = vst [vmem:[%s518 + $0xb8] sm:$0xff] %v5412
          %5445 = vst [vmem:[%s518 + $0xc0] sm:$0xff] %v5413
          %5446 = vst [vmem:[%s518 + $0xc8] sm:$0xff] %v5414
          %5447 = vst [vmem:[%s518 + $0xd0] sm:$0xff] %v5415
          %5448 = vst [vmem:[%s518 + $0xd8] sm:$0xff] %v5416
          %5449 = vst [vmem:[%s518 + $0xe0] sm:$0xff] %v5417
          %5450 = vst [vmem:[%s518 + $0xe8] sm:$0xff] %v5418
          %5451 = vst [vmem:[%s518 + $0xf0] sm:$0xff] %v5419
          %5452 = vst [vmem:[%s518 + $0xf8] sm:$0xff] %v5420
          %v5453 = vld [vmem:[#allocation2 + $0x28] sm:$0xff]
          %v5454 = vld [vmem:[#allocation2 + $0x68] sm:$0xff]
          %v5455 = vld [vmem:[#allocation2 + $0xa8] sm:$0xff]
          %v5456 = vld [vmem:[#allocation2 + $0xe8] sm:$0xff]
          %v5457 = vld [vmem:[#allocation2 + $0x128] sm:$0xff]
          %v5458 = vld [vmem:[#allocation2 + $0x168] sm:$0xff]
          %v5459 = vld [vmem:[#allocation2 + $0x1a8] sm:$0xff]
          %v5460 = vld [vmem:[#allocation2 + $0x1e8] sm:$0xff]
          %v5461 = vld [vmem:[#allocation2 + $0x228] sm:$0xff]
          %v5462 = vld [vmem:[#allocation2 + $0x268] sm:$0xff]
          %v5463 = vld [vmem:[#allocation2 + $0x2a8] sm:$0xff]
          %v5464 = vld [vmem:[#allocation2 + $0x2e8] sm:$0xff]
          %v5465 = vld [vmem:[#allocation2 + $0x328] sm:$0xff]
          %v5466 = vld [vmem:[#allocation2 + $0x368] sm:$0xff]
          %v5467 = vld [vmem:[#allocation2 + $0x3a8] sm:$0xff]
          %v5468 = vld [vmem:[#allocation2 + $0x3e8] sm:$0xff]
          %v5469 = vld [vmem:[#allocation2 + $0x428] sm:$0xff]
          %v5470 = vld [vmem:[#allocation2 + $0x468] sm:$0xff]
          %v5471 = vld [vmem:[#allocation2 + $0x4a8] sm:$0xff]
          %v5472 = vld [vmem:[#allocation2 + $0x4e8] sm:$0xff]
          %v5473 = vld [vmem:[#allocation2 + $0x528] sm:$0xff]
          %v5474 = vld [vmem:[#allocation2 + $0x568] sm:$0xff]
          %v5475 = vld [vmem:[#allocation2 + $0x5a8] sm:$0xff]
          %v5476 = vld [vmem:[#allocation2 + $0x5e8] sm:$0xff]
          %v5477 = vld [vmem:[#allocation2 + $0x628] sm:$0xff]
          %v5478 = vld [vmem:[#allocation2 + $0x668] sm:$0xff]
          %v5479 = vld [vmem:[#allocation2 + $0x6a8] sm:$0xff]
          %v5480 = vld [vmem:[#allocation2 + $0x6e8] sm:$0xff]
          %v5481 = vld [vmem:[#allocation2 + $0x728] sm:$0xff]
          %v5482 = vld [vmem:[#allocation2 + $0x768] sm:$0xff]
          %v5483 = vld [vmem:[#allocation2 + $0x7a8] sm:$0xff]
          %v5484 = vld [vmem:[#allocation2 + $0x7e8] sm:$0xff]
          %v5485 = vmul.f32 %v5453, %v5453
          %v5486 = vmul.f32 %v5454, %v5454
          %v5487 = vmul.f32 %v5455, %v5455
          %v5488 = vmul.f32 %v5456, %v5456
          %v5489 = vmul.f32 %v5457, %v5457
          %v5490 = vmul.f32 %v5458, %v5458
          %v5491 = vmul.f32 %v5459, %v5459
          %v5492 = vmul.f32 %v5460, %v5460
          %v5493 = vmul.f32 %v5461, %v5461
          %v5494 = vmul.f32 %v5462, %v5462
          %v5495 = vmul.f32 %v5463, %v5463
          %v5496 = vmul.f32 %v5464, %v5464
          %v5497 = vmul.f32 %v5465, %v5465
          %v5498 = vmul.f32 %v5466, %v5466
          %v5499 = vmul.f32 %v5467, %v5467
          %v5500 = vmul.f32 %v5468, %v5468
          %v5501 = vmul.f32 %v5469, %v5469
          %v5502 = vmul.f32 %v5470, %v5470
          %v5503 = vmul.f32 %v5471, %v5471
          %v5504 = vmul.f32 %v5472, %v5472
          %v5505 = vmul.f32 %v5473, %v5473
          %v5506 = vmul.f32 %v5474, %v5474
          %v5507 = vmul.f32 %v5475, %v5475
          %v5508 = vmul.f32 %v5476, %v5476
          %v5509 = vmul.f32 %v5477, %v5477
          %v5510 = vmul.f32 %v5478, %v5478
          %v5511 = vmul.f32 %v5479, %v5479
          %v5512 = vmul.f32 %v5480, %v5480
          %v5513 = vmul.f32 %v5481, %v5481
          %v5514 = vmul.f32 %v5482, %v5482
          %v5515 = vmul.f32 %v5483, %v5483
          %v5516 = vmul.f32 %v5484, %v5484
          %5517 = vadd.xlane.f32.xlu0 %v5485
          %v5518 = vpop.xlane.xlu0 %5517
          %5519 = vadd.xlane.f32.xlu0 %v5486
          %v5520 = vpop.xlane.xlu0 %5519
          %5521 = vadd.xlane.f32.xlu0 %v5487
          %v5522 = vpop.xlane.xlu0 %5521
          %5523 = vadd.xlane.f32.xlu0 %v5488
          %v5524 = vpop.xlane.xlu0 %5523
          %5525 = vadd.xlane.f32.xlu0 %v5489
          %v5526 = vpop.xlane.xlu0 %5525
          %5527 = vadd.xlane.f32.xlu0 %v5490
          %v5528 = vpop.xlane.xlu0 %5527
          %5529 = vadd.xlane.f32.xlu0 %v5491
          %v5530 = vpop.xlane.xlu0 %5529
          %5531 = vadd.xlane.f32.xlu0 %v5492
          %v5532 = vpop.xlane.xlu0 %5531
          %5533 = vadd.xlane.f32.xlu0 %v5493
          %v5534 = vpop.xlane.xlu0 %5533
          %5535 = vadd.xlane.f32.xlu0 %v5494
          %v5536 = vpop.xlane.xlu0 %5535
          %5537 = vadd.xlane.f32.xlu0 %v5495
          %v5538 = vpop.xlane.xlu0 %5537
          %5539 = vadd.xlane.f32.xlu0 %v5496
          %v5540 = vpop.xlane.xlu0 %5539
          %5541 = vadd.xlane.f32.xlu0 %v5497
          %v5542 = vpop.xlane.xlu0 %5541
          %5543 = vadd.xlane.f32.xlu0 %v5498
          %v5544 = vpop.xlane.xlu0 %5543
          %5545 = vadd.xlane.f32.xlu0 %v5499
          %v5546 = vpop.xlane.xlu0 %5545
          %5547 = vadd.xlane.f32.xlu0 %v5500
          %v5548 = vpop.xlane.xlu0 %5547
          %5549 = vadd.xlane.f32.xlu0 %v5501
          %v5550 = vpop.xlane.xlu0 %5549
          %5551 = vadd.xlane.f32.xlu0 %v5502
          %v5552 = vpop.xlane.xlu0 %5551
          %5553 = vadd.xlane.f32.xlu0 %v5503
          %v5554 = vpop.xlane.xlu0 %5553
          %5555 = vadd.xlane.f32.xlu0 %v5504
          %v5556 = vpop.xlane.xlu0 %5555
          %5557 = vadd.xlane.f32.xlu0 %v5505
          %v5558 = vpop.xlane.xlu0 %5557
          %5559 = vadd.xlane.f32.xlu0 %v5506
          %v5560 = vpop.xlane.xlu0 %5559
          %5561 = vadd.xlane.f32.xlu0 %v5507
          %v5562 = vpop.xlane.xlu0 %5561
          %5563 = vadd.xlane.f32.xlu0 %v5508
          %v5564 = vpop.xlane.xlu0 %5563
          %5565 = vadd.xlane.f32.xlu0 %v5509
          %v5566 = vpop.xlane.xlu0 %5565
          %5567 = vadd.xlane.f32.xlu0 %v5510
          %v5568 = vpop.xlane.xlu0 %5567
          %5569 = vadd.xlane.f32.xlu0 %v5511
          %v5570 = vpop.xlane.xlu0 %5569
          %5571 = vadd.xlane.f32.xlu0 %v5512
          %v5572 = vpop.xlane.xlu0 %5571
          %5573 = vadd.xlane.f32.xlu0 %v5513
          %v5574 = vpop.xlane.xlu0 %5573
          %5575 = vadd.xlane.f32.xlu0 %v5514
          %v5576 = vpop.xlane.xlu0 %5575
          %5577 = vadd.xlane.f32.xlu0 %v5515
          %v5578 = vpop.xlane.xlu0 %5577
          %5579 = vadd.xlane.f32.xlu0 %v5516
          %v5580 = vpop.xlane.xlu0 %5579
          %v5581 = vmul.f32 %v5518, %v3101
          %v5582 = vmul.f32 %v5520, %v3101
          %v5583 = vmul.f32 %v5522, %v3101
          %v5584 = vmul.f32 %v5524, %v3101
          %v5585 = vmul.f32 %v5526, %v3101
          %v5586 = vmul.f32 %v5528, %v3101
          %v5587 = vmul.f32 %v5530, %v3101
          %v5588 = vmul.f32 %v5532, %v3101
          %v5589 = vmul.f32 %v5534, %v3101
          %v5590 = vmul.f32 %v5536, %v3101
          %v5591 = vmul.f32 %v5538, %v3101
          %v5592 = vmul.f32 %v5540, %v3101
          %v5593 = vmul.f32 %v5542, %v3101
          %v5594 = vmul.f32 %v5544, %v3101
          %v5595 = vmul.f32 %v5546, %v3101
          %v5596 = vmul.f32 %v5548, %v3101
          %v5597 = vmul.f32 %v5550, %v3101
          %v5598 = vmul.f32 %v5552, %v3101
          %v5599 = vmul.f32 %v5554, %v3101
          %v5600 = vmul.f32 %v5556, %v3101
          %v5601 = vmul.f32 %v5558, %v3101
          %v5602 = vmul.f32 %v5560, %v3101
          %v5603 = vmul.f32 %v5562, %v3101
          %v5604 = vmul.f32 %v5564, %v3101
          %v5605 = vmul.f32 %v5566, %v3101
          %v5606 = vmul.f32 %v5568, %v3101
          %v5607 = vmul.f32 %v5570, %v3101
          %v5608 = vmul.f32 %v5572, %v3101
          %v5609 = vmul.f32 %v5574, %v3101
          %v5610 = vmul.f32 %v5576, %v3101
          %v5611 = vmul.f32 %v5578, %v3101
          %v5612 = vmul.f32 %v5580, %v3101
          %v5613 = vadd.f32 %v5581, 1e-06
          %v5614 = vadd.f32 %v5582, 1e-06
          %v5615 = vadd.f32 %v5583, 1e-06
          %v5616 = vadd.f32 %v5584, 1e-06
          %v5617 = vadd.f32 %v5585, 1e-06
          %v5618 = vadd.f32 %v5586, 1e-06
          %v5619 = vadd.f32 %v5587, 1e-06
          %v5620 = vadd.f32 %v5588, 1e-06
          %v5621 = vadd.f32 %v5589, 1e-06
          %v5622 = vadd.f32 %v5590, 1e-06
          %v5623 = vadd.f32 %v5591, 1e-06
          %v5624 = vadd.f32 %v5592, 1e-06
          %v5625 = vadd.f32 %v5593, 1e-06
          %v5626 = vadd.f32 %v5594, 1e-06
          %v5627 = vadd.f32 %v5595, 1e-06
          %v5628 = vadd.f32 %v5596, 1e-06
          %v5629 = vadd.f32 %v5597, 1e-06
          %v5630 = vadd.f32 %v5598, 1e-06
          %v5631 = vadd.f32 %v5599, 1e-06
          %v5632 = vadd.f32 %v5600, 1e-06
          %v5633 = vadd.f32 %v5601, 1e-06
          %v5634 = vadd.f32 %v5602, 1e-06
          %v5635 = vadd.f32 %v5603, 1e-06
          %v5636 = vadd.f32 %v5604, 1e-06
          %v5637 = vadd.f32 %v5605, 1e-06
          %v5638 = vadd.f32 %v5606, 1e-06
          %v5639 = vadd.f32 %v5607, 1e-06
          %v5640 = vadd.f32 %v5608, 1e-06
          %v5641 = vadd.f32 %v5609, 1e-06
          %v5642 = vadd.f32 %v5610, 1e-06
          %v5643 = vadd.f32 %v5611, 1e-06
          %v5644 = vadd.f32 %v5612, 1e-06
          %v5645 = vrsqrt.pop %v5613
          %v5646 = vrsqrt.pop %v5614
          %v5647 = vrsqrt.pop %v5615
          %v5648 = vrsqrt.pop %v5616
          %v5649 = vrsqrt.pop %v5617
          %v5650 = vrsqrt.pop %v5618
          %v5651 = vrsqrt.pop %v5619
          %v5652 = vrsqrt.pop %v5620
          %v5653 = vrsqrt.pop %v5621
          %v5654 = vrsqrt.pop %v5622
          %v5655 = vrsqrt.pop %v5623
          %v5656 = vrsqrt.pop %v5624
          %v5657 = vrsqrt.pop %v5625
          %v5658 = vrsqrt.pop %v5626
          %v5659 = vrsqrt.pop %v5627
          %v5660 = vrsqrt.pop %v5628
          %v5661 = vrsqrt.pop %v5629
          %v5662 = vrsqrt.pop %v5630
          %v5663 = vrsqrt.pop %v5631
          %v5664 = vrsqrt.pop %v5632
          %v5665 = vrsqrt.pop %v5633
          %v5666 = vrsqrt.pop %v5634
          %v5667 = vrsqrt.pop %v5635
          %v5668 = vrsqrt.pop %v5636
          %v5669 = vrsqrt.pop %v5637
          %v5670 = vrsqrt.pop %v5638
          %v5671 = vrsqrt.pop %v5639
          %v5672 = vrsqrt.pop %v5640
          %v5673 = vrsqrt.pop %v5641
          %v5674 = vrsqrt.pop %v5642
          %v5675 = vrsqrt.pop %v5643
          %v5676 = vrsqrt.pop %v5644
          %v5677 = vmul.f32 %v5453, %v5645
          %v5678 = vmul.f32 %v5454, %v5646
          %v5679 = vmul.f32 %v5455, %v5647
          %v5680 = vmul.f32 %v5456, %v5648
          %v5681 = vmul.f32 %v5457, %v5649
          %v5682 = vmul.f32 %v5458, %v5650
          %v5683 = vmul.f32 %v5459, %v5651
          %v5684 = vmul.f32 %v5460, %v5652
          %v5685 = vmul.f32 %v5461, %v5653
          %v5686 = vmul.f32 %v5462, %v5654
          %v5687 = vmul.f32 %v5463, %v5655
          %v5688 = vmul.f32 %v5464, %v5656
          %v5689 = vmul.f32 %v5465, %v5657
          %v5690 = vmul.f32 %v5466, %v5658
          %v5691 = vmul.f32 %v5467, %v5659
          %v5692 = vmul.f32 %v5468, %v5660
          %v5693 = vmul.f32 %v5469, %v5661
          %v5694 = vmul.f32 %v5470, %v5662
          %v5695 = vmul.f32 %v5471, %v5663
          %v5696 = vmul.f32 %v5472, %v5664
          %v5697 = vmul.f32 %v5473, %v5665
          %v5698 = vmul.f32 %v5474, %v5666
          %v5699 = vmul.f32 %v5475, %v5667
          %v5700 = vmul.f32 %v5476, %v5668
          %v5701 = vmul.f32 %v5477, %v5669
          %v5702 = vmul.f32 %v5478, %v5670
          %v5703 = vmul.f32 %v5479, %v5671
          %v5704 = vmul.f32 %v5480, %v5672
          %v5705 = vmul.f32 %v5481, %v5673
          %v5706 = vmul.f32 %v5482, %v5674
          %v5707 = vmul.f32 %v5483, %v5675
          %v5708 = vmul.f32 %v5484, %v5676
          %v5709 = vmul.f32 %v5677, %v5163
          %v5710 = vmul.f32 %v5678, %v5163
          %v5711 = vmul.f32 %v5679, %v5163
          %v5712 = vmul.f32 %v5680, %v5163
          %v5713 = vmul.f32 %v5681, %v5163
          %v5714 = vmul.f32 %v5682, %v5163
          %v5715 = vmul.f32 %v5683, %v5163
          %v5716 = vmul.f32 %v5684, %v5163
          %v5717 = vmul.f32 %v5685, %v5163
          %v5718 = vmul.f32 %v5686, %v5163
          %v5719 = vmul.f32 %v5687, %v5163
          %v5720 = vmul.f32 %v5688, %v5163
          %v5721 = vmul.f32 %v5689, %v5163
          %v5722 = vmul.f32 %v5690, %v5163
          %v5723 = vmul.f32 %v5691, %v5163
          %v5724 = vmul.f32 %v5692, %v5163
          %v5725 = vmul.f32 %v5693, %v5163
          %v5726 = vmul.f32 %v5694, %v5163
          %v5727 = vmul.f32 %v5695, %v5163
          %v5728 = vmul.f32 %v5696, %v5163
          %v5729 = vmul.f32 %v5697, %v5163
          %v5730 = vmul.f32 %v5698, %v5163
          %v5731 = vmul.f32 %v5699, %v5163
          %v5732 = vmul.f32 %v5700, %v5163
          %v5733 = vmul.f32 %v5701, %v5163
          %v5734 = vmul.f32 %v5702, %v5163
          %v5735 = vmul.f32 %v5703, %v5163
          %v5736 = vmul.f32 %v5704, %v5163
          %v5737 = vmul.f32 %v5705, %v5163
          %v5738 = vmul.f32 %v5706, %v5163
          %v5739 = vmul.f32 %v5707, %v5163
          %v5740 = vmul.f32 %v5708, %v5163
          %v5741 = vmul.f32 %v5709, %v2907
          %v5742 = vmul.f32 %v5710, %v2908
          %v5743 = vmul.f32 %v5711, %v2909
          %v5744 = vmul.f32 %v5712, %v2910
          %v5745 = vmul.f32 %v5713, %v2911
          %v5746 = vmul.f32 %v5714, %v2912
          %v5747 = vmul.f32 %v5715, %v2913
          %v5748 = vmul.f32 %v5716, %v2914
          %v5749 = vmul.f32 %v5717, %v2915
          %v5750 = vmul.f32 %v5718, %v2916
          %v5751 = vmul.f32 %v5719, %v2917
          %v5752 = vmul.f32 %v5720, %v2918
          %v5753 = vmul.f32 %v5721, %v2919
          %v5754 = vmul.f32 %v5722, %v2920
          %v5755 = vmul.f32 %v5723, %v2921
          %v5756 = vmul.f32 %v5724, %v2922
          %v5757 = vmul.f32 %v5725, %v2923
          %v5758 = vmul.f32 %v5726, %v2924
          %v5759 = vmul.f32 %v5727, %v2925
          %v5760 = vmul.f32 %v5728, %v2926
          %v5761 = vmul.f32 %v5729, %v2927
          %v5762 = vmul.f32 %v5730, %v2928
          %v5763 = vmul.f32 %v5731, %v2929
          %v5764 = vmul.f32 %v5732, %v2930
          %v5765 = vmul.f32 %v5733, %v2931
          %v5766 = vmul.f32 %v5734, %v2932
          %v5767 = vmul.f32 %v5735, %v2933
          %v5768 = vmul.f32 %v5736, %v2934
          %v5769 = vmul.f32 %v5737, %v2935
          %v5770 = vmul.f32 %v5738, %v2936
          %v5771 = vmul.f32 %v5739, %v2937
          %v5772 = vmul.f32 %v5740, %v2938
          %5773 = vrot.lane.b32.xlu0 %v5709, 64
          %v5774 = vpop.permute.xlu0 %5773
          %5775 = vrot.lane.b32.xlu0 %v5710, 64
          %v5776 = vpop.permute.xlu0 %5775
          %5777 = vrot.lane.b32.xlu0 %v5711, 64
          %v5778 = vpop.permute.xlu0 %5777
          %5779 = vrot.lane.b32.xlu0 %v5712, 64
          %v5780 = vpop.permute.xlu0 %5779
          %5781 = vrot.lane.b32.xlu0 %v5713, 64
          %v5782 = vpop.permute.xlu0 %5781
          %5783 = vrot.lane.b32.xlu0 %v5714, 64
          %v5784 = vpop.permute.xlu0 %5783
          %5785 = vrot.lane.b32.xlu0 %v5715, 64
          %v5786 = vpop.permute.xlu0 %5785
          %5787 = vrot.lane.b32.xlu0 %v5716, 64
          %v5788 = vpop.permute.xlu0 %5787
          %5789 = vrot.lane.b32.xlu0 %v5717, 64
          %v5790 = vpop.permute.xlu0 %5789
          %5791 = vrot.lane.b32.xlu0 %v5718, 64
          %v5792 = vpop.permute.xlu0 %5791
          %5793 = vrot.lane.b32.xlu0 %v5719, 64
          %v5794 = vpop.permute.xlu0 %5793
          %5795 = vrot.lane.b32.xlu0 %v5720, 64
          %v5796 = vpop.permute.xlu0 %5795
          %5797 = vrot.lane.b32.xlu0 %v5721, 64
          %v5798 = vpop.permute.xlu0 %5797
          %5799 = vrot.lane.b32.xlu0 %v5722, 64
          %v5800 = vpop.permute.xlu0 %5799
          %5801 = vrot.lane.b32.xlu0 %v5723, 64
          %v5802 = vpop.permute.xlu0 %5801
          %5803 = vrot.lane.b32.xlu0 %v5724, 64
          %v5804 = vpop.permute.xlu0 %5803
          %5805 = vrot.lane.b32.xlu0 %v5725, 64
          %v5806 = vpop.permute.xlu0 %5805
          %5807 = vrot.lane.b32.xlu0 %v5726, 64
          %v5808 = vpop.permute.xlu0 %5807
          %5809 = vrot.lane.b32.xlu0 %v5727, 64
          %v5810 = vpop.permute.xlu0 %5809
          %5811 = vrot.lane.b32.xlu0 %v5728, 64
          %v5812 = vpop.permute.xlu0 %5811
          %5813 = vrot.lane.b32.xlu0 %v5729, 64
          %v5814 = vpop.permute.xlu0 %5813
          %5815 = vrot.lane.b32.xlu0 %v5730, 64
          %v5816 = vpop.permute.xlu0 %5815
          %5817 = vrot.lane.b32.xlu0 %v5731, 64
          %v5818 = vpop.permute.xlu0 %5817
          %5819 = vrot.lane.b32.xlu0 %v5732, 64
          %v5820 = vpop.permute.xlu0 %5819
          %5821 = vrot.lane.b32.xlu0 %v5733, 64
          %v5822 = vpop.permute.xlu0 %5821
          %5823 = vrot.lane.b32.xlu0 %v5734, 64
          %v5824 = vpop.permute.xlu0 %5823
          %5825 = vrot.lane.b32.xlu0 %v5735, 64
          %v5826 = vpop.permute.xlu0 %5825
          %5827 = vrot.lane.b32.xlu0 %v5736, 64
          %v5828 = vpop.permute.xlu0 %5827
          %5829 = vrot.lane.b32.xlu0 %v5737, 64
          %v5830 = vpop.permute.xlu0 %5829
          %5831 = vrot.lane.b32.xlu0 %v5738, 64
          %v5832 = vpop.permute.xlu0 %5831
          %5833 = vrot.lane.b32.xlu0 %v5739, 64
          %v5834 = vpop.permute.xlu0 %5833
          %5835 = vrot.lane.b32.xlu0 %v5740, 64
          %v5836 = vpop.permute.xlu0 %5835
          %v5837 = vmul.f32 %v5774, %v2939
          %v5838 = vmul.f32 %v5776, %v2940
          %v5839 = vmul.f32 %v5778, %v2941
          %v5840 = vmul.f32 %v5780, %v2942
          %v5841 = vmul.f32 %v5782, %v2943
          %v5842 = vmul.f32 %v5784, %v2944
          %v5843 = vmul.f32 %v5786, %v2945
          %v5844 = vmul.f32 %v5788, %v2946
          %v5845 = vmul.f32 %v5790, %v2947
          %v5846 = vmul.f32 %v5792, %v2948
          %v5847 = vmul.f32 %v5794, %v2949
          %v5848 = vmul.f32 %v5796, %v2950
          %v5849 = vmul.f32 %v5798, %v2951
          %v5850 = vmul.f32 %v5800, %v2952
          %v5851 = vmul.f32 %v5802, %v2953
          %v5852 = vmul.f32 %v5804, %v2954
          %v5853 = vmul.f32 %v5806, %v2955
          %v5854 = vmul.f32 %v5808, %v2956
          %v5855 = vmul.f32 %v5810, %v2957
          %v5856 = vmul.f32 %v5812, %v2958
          %v5857 = vmul.f32 %v5814, %v2959
          %v5858 = vmul.f32 %v5816, %v2960
          %v5859 = vmul.f32 %v5818, %v2961
          %v5860 = vmul.f32 %v5820, %v2962
          %v5861 = vmul.f32 %v5822, %v2963
          %v5862 = vmul.f32 %v5824, %v2964
          %v5863 = vmul.f32 %v5826, %v2965
          %v5864 = vmul.f32 %v5828, %v2966
          %v5865 = vmul.f32 %v5830, %v2967
          %v5866 = vmul.f32 %v5832, %v2968
          %v5867 = vmul.f32 %v5834, %v2969
          %v5868 = vmul.f32 %v5836, %v2970
          %v5869 = vadd.f32 %v5741, %v5837
          %v5870 = vadd.f32 %v5742, %v5838
          %v5871 = vadd.f32 %v5743, %v5839
          %v5872 = vadd.f32 %v5744, %v5840
          %v5873 = vadd.f32 %v5745, %v5841
          %v5874 = vadd.f32 %v5746, %v5842
          %v5875 = vadd.f32 %v5747, %v5843
          %v5876 = vadd.f32 %v5748, %v5844
          %v5877 = vadd.f32 %v5749, %v5845
          %v5878 = vadd.f32 %v5750, %v5846
          %v5879 = vadd.f32 %v5751, %v5847
          %v5880 = vadd.f32 %v5752, %v5848
          %v5881 = vadd.f32 %v5753, %v5849
          %v5882 = vadd.f32 %v5754, %v5850
          %v5883 = vadd.f32 %v5755, %v5851
          %v5884 = vadd.f32 %v5756, %v5852
          %v5885 = vadd.f32 %v5757, %v5853
          %v5886 = vadd.f32 %v5758, %v5854
          %v5887 = vadd.f32 %v5759, %v5855
          %v5888 = vadd.f32 %v5760, %v5856
          %v5889 = vadd.f32 %v5761, %v5857
          %v5890 = vadd.f32 %v5762, %v5858
          %v5891 = vadd.f32 %v5763, %v5859
          %v5892 = vadd.f32 %v5764, %v5860
          %v5893 = vadd.f32 %v5765, %v5861
          %v5894 = vadd.f32 %v5766, %v5862
          %v5895 = vadd.f32 %v5767, %v5863
          %v5896 = vadd.f32 %v5768, %v5864
          %v5897 = vadd.f32 %v5769, %v5865
          %v5898 = vadd.f32 %v5770, %v5866
          %v5899 = vadd.f32 %v5771, %v5867
          %v5900 = vadd.f32 %v5772, %v5868
          %s5901 = scalar_lea.vmem %s511, 256 [#allocation15]
          %5902 = vst [vmem:[%s5901] sm:$0xff] %v5869
          %5903 = vst [vmem:[%s5901 + $0x8] sm:$0xff] %v5870
          %5904 = vst [vmem:[%s5901 + $0x10] sm:$0xff] %v5871
          %5905 = vst [vmem:[%s5901 + $0x18] sm:$0xff] %v5872
          %5906 = vst [vmem:[%s5901 + $0x20] sm:$0xff] %v5873
          %5907 = vst [vmem:[%s5901 + $0x28] sm:$0xff] %v5874
          %5908 = vst [vmem:[%s5901 + $0x30] sm:$0xff] %v5875
          %5909 = vst [vmem:[%s5901 + $0x38] sm:$0xff] %v5876
          %5910 = vst [vmem:[%s5901 + $0x40] sm:$0xff] %v5877
          %5911 = vst [vmem:[%s5901 + $0x48] sm:$0xff] %v5878
          %5912 = vst [vmem:[%s5901 + $0x50] sm:$0xff] %v5879
          %5913 = vst [vmem:[%s5901 + $0x58] sm:$0xff] %v5880
          %5914 = vst [vmem:[%s5901 + $0x60] sm:$0xff] %v5881
          %5915 = vst [vmem:[%s5901 + $0x68] sm:$0xff] %v5882
          %5916 = vst [vmem:[%s5901 + $0x70] sm:$0xff] %v5883
          %5917 = vst [vmem:[%s5901 + $0x78] sm:$0xff] %v5884
          %5918 = vst [vmem:[%s5901 + $0x80] sm:$0xff] %v5885
          %5919 = vst [vmem:[%s5901 + $0x88] sm:$0xff] %v5886
          %5920 = vst [vmem:[%s5901 + $0x90] sm:$0xff] %v5887
          %5921 = vst [vmem:[%s5901 + $0x98] sm:$0xff] %v5888
          %5922 = vst [vmem:[%s5901 + $0xa0] sm:$0xff] %v5889
          %5923 = vst [vmem:[%s5901 + $0xa8] sm:$0xff] %v5890
          %5924 = vst [vmem:[%s5901 + $0xb0] sm:$0xff] %v5891
          %5925 = vst [vmem:[%s5901 + $0xb8] sm:$0xff] %v5892
          %5926 = vst [vmem:[%s5901 + $0xc0] sm:$0xff] %v5893
          %5927 = vst [vmem:[%s5901 + $0xc8] sm:$0xff] %v5894
          %5928 = vst [vmem:[%s5901 + $0xd0] sm:$0xff] %v5895
          %5929 = vst [vmem:[%s5901 + $0xd8] sm:$0xff] %v5896
          %5930 = vst [vmem:[%s5901 + $0xe0] sm:$0xff] %v5897
          %5931 = vst [vmem:[%s5901 + $0xe8] sm:$0xff] %v5898
          %5932 = vst [vmem:[%s5901 + $0xf0] sm:$0xff] %v5899
          %5933 = vst [vmem:[%s5901 + $0xf8] sm:$0xff] %v5900
          %v5934 = vld [vmem:[#allocation2 + $0x38] sm:$0xff]
          %v5935 = vld [vmem:[#allocation2 + $0x78] sm:$0xff]
          %v5936 = vld [vmem:[#allocation2 + $0xb8] sm:$0xff]
          %v5937 = vld [vmem:[#allocation2 + $0xf8] sm:$0xff]
          %v5938 = vld [vmem:[#allocation2 + $0x138] sm:$0xff]
          %v5939 = vld [vmem:[#allocation2 + $0x178] sm:$0xff]
          %v5940 = vld [vmem:[#allocation2 + $0x1b8] sm:$0xff]
          %v5941 = vld [vmem:[#allocation2 + $0x1f8] sm:$0xff]
          %v5942 = vld [vmem:[#allocation2 + $0x238] sm:$0xff]
          %v5943 = vld [vmem:[#allocation2 + $0x278] sm:$0xff]
          %v5944 = vld [vmem:[#allocation2 + $0x2b8] sm:$0xff]
          %v5945 = vld [vmem:[#allocation2 + $0x2f8] sm:$0xff]
          %v5946 = vld [vmem:[#allocation2 + $0x338] sm:$0xff]
          %v5947 = vld [vmem:[#allocation2 + $0x378] sm:$0xff]
          %v5948 = vld [vmem:[#allocation2 + $0x3b8] sm:$0xff]
          %v5949 = vld [vmem:[#allocation2 + $0x3f8] sm:$0xff]
          %v5950 = vld [vmem:[#allocation2 + $0x438] sm:$0xff]
          %v5951 = vld [vmem:[#allocation2 + $0x478] sm:$0xff]
          %v5952 = vld [vmem:[#allocation2 + $0x4b8] sm:$0xff]
          %v5953 = vld [vmem:[#allocation2 + $0x4f8] sm:$0xff]
          %v5954 = vld [vmem:[#allocation2 + $0x538] sm:$0xff]
          %v5955 = vld [vmem:[#allocation2 + $0x578] sm:$0xff]
          %v5956 = vld [vmem:[#allocation2 + $0x5b8] sm:$0xff]
          %v5957 = vld [vmem:[#allocation2 + $0x5f8] sm:$0xff]
          %v5958 = vld [vmem:[#allocation2 + $0x638] sm:$0xff]
          %v5959 = vld [vmem:[#allocation2 + $0x678] sm:$0xff]
          %v5960 = vld [vmem:[#allocation2 + $0x6b8] sm:$0xff]
          %v5961 = vld [vmem:[#allocation2 + $0x6f8] sm:$0xff]
          %v5962 = vld [vmem:[#allocation2 + $0x738] sm:$0xff]
          %v5963 = vld [vmem:[#allocation2 + $0x778] sm:$0xff]
          %v5964 = vld [vmem:[#allocation2 + $0x7b8] sm:$0xff]
          %v5965 = vld [vmem:[#allocation2 + $0x7f8] sm:$0xff]
          %s5966 = scalar_lea.vmem %s518, 256 [#allocation17]
          %5967 = vst [vmem:[%s5966] sm:$0xff] %v5934
          %5968 = vst [vmem:[%s5966 + $0x8] sm:$0xff] %v5935
          %5969 = vst [vmem:[%s5966 + $0x10] sm:$0xff] %v5936
          %5970 = vst [vmem:[%s5966 + $0x18] sm:$0xff] %v5937
          %5971 = vst [vmem:[%s5966 + $0x20] sm:$0xff] %v5938
          %5972 = vst [vmem:[%s5966 + $0x28] sm:$0xff] %v5939
          %5973 = vst [vmem:[%s5966 + $0x30] sm:$0xff] %v5940
          %5974 = vst [vmem:[%s5966 + $0x38] sm:$0xff] %v5941
          %5975 = vst [vmem:[%s5966 + $0x40] sm:$0xff] %v5942
          %5976 = vst [vmem:[%s5966 + $0x48] sm:$0xff] %v5943
          %5977 = vst [vmem:[%s5966 + $0x50] sm:$0xff] %v5944
          %5978 = vst [vmem:[%s5966 + $0x58] sm:$0xff] %v5945
          %5979 = vst [vmem:[%s5966 + $0x60] sm:$0xff] %v5946
          %5980 = vst [vmem:[%s5966 + $0x68] sm:$0xff] %v5947
          %5981 = vst [vmem:[%s5966 + $0x70] sm:$0xff] %v5948
          %5982 = vst [vmem:[%s5966 + $0x78] sm:$0xff] %v5949
          %5983 = vst [vmem:[%s5966 + $0x80] sm:$0xff] %v5950
          %5984 = vst [vmem:[%s5966 + $0x88] sm:$0xff] %v5951
          %5985 = vst [vmem:[%s5966 + $0x90] sm:$0xff] %v5952
          %5986 = vst [vmem:[%s5966 + $0x98] sm:$0xff] %v5953
          %5987 = vst [vmem:[%s5966 + $0xa0] sm:$0xff] %v5954
          %5988 = vst [vmem:[%s5966 + $0xa8] sm:$0xff] %v5955
          %5989 = vst [vmem:[%s5966 + $0xb0] sm:$0xff] %v5956
          %5990 = vst [vmem:[%s5966 + $0xb8] sm:$0xff] %v5957
          %5991 = vst [vmem:[%s5966 + $0xc0] sm:$0xff] %v5958
          %5992 = vst [vmem:[%s5966 + $0xc8] sm:$0xff] %v5959
          %5993 = vst [vmem:[%s5966 + $0xd0] sm:$0xff] %v5960
          %5994 = vst [vmem:[%s5966 + $0xd8] sm:$0xff] %v5961
          %5995 = vst [vmem:[%s5966 + $0xe0] sm:$0xff] %v5962
          %5996 = vst [vmem:[%s5966 + $0xe8] sm:$0xff] %v5963
          %5997 = vst [vmem:[%s5966 + $0xf0] sm:$0xff] %v5964
          %5998 = vst [vmem:[%s5966 + $0xf8] sm:$0xff] %v5965
        $region76: #{tpu_custom_call.1} parent=43 // pred_fallthru
          _
        %s5999 = sand.u32 %s215, 1
        %s6000 = scalar_lea.sflag [#allocation5], %s5999
        %s6001 = sand.u32 %s215, 1
        %s6002 = smul.addr %s6001, 1024
        %s6003 = scalar_lea.vmem [#allocation14], %s6002
        %s6004 = sand.u32 %s36, 1
        %s6005 = scalar_lea.sflag [#allocation16], %s6004
        %s6006 = sand.u32 %s243, 1
        %s6007 = smul.addr %s6006, 512
        %s6008 = scalar_lea.vmem [#allocation15], %s6007
        %s6009 = sand.u32 %s36, 1
        %s6010 = scalar_lea.sflag [#allocation16], %s6009
        %s6011 = sand.u32 %s271, 1
        %s6012 = smul.addr %s6011, 512
        %s6013 = scalar_lea.vmem [#allocation17], %s6012
        // Predicated region
        $region77: #{tpu_custom_call.1} parent=43 // pred_check
          %p6014 = pneg %p225
        $region78: #{tpu_custom_call.1} parent=43 // pred_check_branch
          %6016 = sbr.rel (%p6014) target = $region80
        $region79: #{tpu_custom_call.1} parent=43 // pred_region
          #allocation19 [shape = 'u32[6]{0}', space=smem, size = 0x18, scoped, tag = 'DMA stride descriptor']
          %s6017 = smul.u32 32, %s42
          %s6019 = ssub.s32 16384, 16384
          %6020 = vsyncadd %s6000, %s6019
          %s6021 = smul.addr %s41, 256
          %s6022 = sadd.s32 %s6017, %s6021
          %s6023 = smul.addr %s6022, 128
          %s6024 = scalar_lea.hbm %s6, %s6023
          %s6026 = sshll.u32 1, 14
          %s6027 = sxor.u32 4294967295, %s6026
          %s6030 = sshll.u32 7, 18
          %s6031 = sxor.u32 4294967295, %s6030
          %s6032 = sand.u32 0, %s6031
          %s6034 = sor.u32 %s6032, 0
          %s6036 = sshll.u32 3, 24
          %s6037 = sxor.u32 4294967295, %s6036
          %s6038 = sand.u32 %s6034, %s6037
          %s6040 = sor.u32 %s6038, 0
          %s6041 = sshll.u32 %s6003, 4
          %s6042 = int_to_ptr.vmem [resolvable:$true] %s6041
          %6048 = sst [smem:[#allocation19]] 4096
          %s6049 = scalar_lea.smem [#allocation19], 1
          %6050 = sst [smem:[%s6049]] 8192
          %s6051 = scalar_lea.smem [#allocation19], 2
          %6052 = sst [smem:[%s6051]] 32
          %s6053 = scalar_lea.smem [#allocation19], 3
          %6054 = sst [smem:[%s6053]] 128
          %s6055 = scalar_lea.smem [#allocation19], 4
          %6056 = sst [smem:[%s6055]] 128
          %s6057 = scalar_lea.smem [#allocation19], 5
          %6058 = sst [smem:[%s6057]] 8
          %6060 = dma.general %s6042, 16384, %s6024, %s6000, [#allocation18], [#allocation19], %s6040, 0
        $region80: #{tpu_custom_call.1} parent=43 // pred_fallthru
          _
        // Predicated region
        $region81: #{tpu_custom_call.1} parent=43 // pred_check
          %p6061 = pneg %p253
        $region82: #{tpu_custom_call.1} parent=43 // pred_check_branch
          %6063 = sbr.rel (%p6061) target = $region84
        $region83: #{tpu_custom_call.1} parent=43 // pred_region
          #allocation21 [shape = 'u32[6]{0}', space=smem, size = 0x18, scoped, tag = 'DMA stride descriptor']
          %s6064 = smul.u32 32, %s42
          %s6066 = ssub.s32 8192, 8192
          %6067 = vsyncadd %s6005, %s6066
          %s6068 = smul.addr %s41, 128
          %s6069 = sadd.s32 %s6064, %s6068
          %s6070 = smul.addr %s6069, 128
          %s6071 = scalar_lea.hbm %s7, %s6070
          %s6073 = sshll.u32 1, 14
          %s6074 = sxor.u32 4294967295, %s6073
          %s6077 = sshll.u32 7, 18
          %s6078 = sxor.u32 4294967295, %s6077
          %s6079 = sand.u32 0, %s6078
          %s6081 = sor.u32 %s6079, 0
          %s6083 = sshll.u32 3, 24
          %s6084 = sxor.u32 4294967295, %s6083
          %s6085 = sand.u32 %s6081, %s6084
          %s6087 = sor.u32 %s6085, 0
          %s6088 = sshll.u32 %s6008, 4
          %s6089 = int_to_ptr.vmem [resolvable:$true] %s6088
          %6095 = sst [smem:[#allocation21]] 4096
          %s6096 = scalar_lea.smem [#allocation21], 1
          %6097 = sst [smem:[%s6096]] 8192
          %s6098 = scalar_lea.smem [#allocation21], 2
          %6099 = sst [smem:[%s6098]] 32
          %s6100 = scalar_lea.smem [#allocation21], 3
          %6101 = sst [smem:[%s6100]] 128
          %s6102 = scalar_lea.smem [#allocation21], 4
          %6103 = sst [smem:[%s6102]] 128
          %s6104 = scalar_lea.smem [#allocation21], 5
          %6105 = sst [smem:[%s6104]] 8
          %6107 = dma.general %s6089, 8192, %s6071, %s6005, [#allocation20], [#allocation21], %s6087, 0
        $region84: #{tpu_custom_call.1} parent=43 // pred_fallthru
          _
        // Predicated region
        $region85: #{tpu_custom_call.1} parent=43 // pred_check
          %p6108 = pneg %p281
        $region86: #{tpu_custom_call.1} parent=43 // pred_check_branch
          %6110 = sbr.rel (%p6108) target = $region88
        $region87: #{tpu_custom_call.1} parent=43 // pred_region
          #allocation23 [shape = 'u32[6]{0}', space=smem, size = 0x18, scoped, tag = 'DMA stride descriptor']
          %s6111 = smul.u32 32, %s42
          %s6113 = ssub.s32 8192, 8192
          %6114 = vsyncadd %s6010, %s6113
          %s6115 = smul.addr %s41, 128
          %s6116 = sadd.s32 %s6111, %s6115
          %s6117 = smul.addr %s6116, 128
          %s6118 = scalar_lea.hbm %s8, %s6117
          %s6120 = sshll.u32 1, 14
          %s6121 = sxor.u32 4294967295, %s6120
          %s6124 = sshll.u32 7, 18
          %s6125 = sxor.u32 4294967295, %s6124
          %s6126 = sand.u32 0, %s6125
          %s6128 = sor.u32 %s6126, 0
          %s6130 = sshll.u32 3, 24
          %s6131 = sxor.u32 4294967295, %s6130
          %s6132 = sand.u32 %s6128, %s6131
          %s6134 = sor.u32 %s6132, 0
          %s6135 = sshll.u32 %s6013, 4
          %s6136 = int_to_ptr.vmem [resolvable:$true] %s6135
          %6142 = sst [smem:[#allocation23]] 4096
          %s6143 = scalar_lea.smem [#allocation23], 1
          %6144 = sst [smem:[%s6143]] 8192
          %s6145 = scalar_lea.smem [#allocation23], 2
          %6146 = sst [smem:[%s6145]] 32
          %s6147 = scalar_lea.smem [#allocation23], 3
          %6148 = sst [smem:[%s6147]] 128
          %s6149 = scalar_lea.smem [#allocation23], 4
          %6150 = sst [smem:[%s6149]] 128
          %s6151 = scalar_lea.smem [#allocation23], 5
          %6152 = sst [smem:[%s6151]] 8
          %6154 = dma.general %s6136, 8192, %s6118, %s6010, [#allocation22], [#allocation23], %s6134, 0
        $region88: #{tpu_custom_call.1} parent=43 // pred_fallthru
          _
      $region44: #{tpu_custom_call.1} parent=5 // pred_fallthru
        _
      %p6155 = scmp.le.s32.totalorder 2, %s31
      // Predicated region
      $region89: #{tpu_custom_call.1} parent=5 // pred_check
        %p6156 = pneg %p6155
      $region90: #{tpu_custom_call.1} parent=5 // pred_check_branch
        %6158 = sbr.rel (%p6156) target = $region92
      $region91: #{tpu_custom_call.1} parent=5 // pred_region
        %s6159 = ssub.s32 %s31, 2
        // Predicated region
        $region93: #{tpu_custom_call.1} parent=91 // pred_check
          %p6160 = pneg %p231
        $region94: #{tpu_custom_call.1} parent=91 // pred_check_branch
          %6162 = sbr.rel (%p6160) target = $region96
        $region95: #{tpu_custom_call.1} parent=91 // pred_region
          %s6163 = sand.u32 %s216, 1
          %s6164 = scalar_lea.sflag [#allocation5], %s6163
          %s6165 = sand.u32 %s216, 1
          %s6166 = smul.addr %s6165, 1024
          %s6167 = scalar_lea.vmem [#allocation14], %s6166
          %6168 = dma.done %s6164, 16384
        $region96: #{tpu_custom_call.1} parent=91 // pred_fallthru
          _
        // Predicated region
        $region97: #{tpu_custom_call.1} parent=91 // pred_check
          %p6169 = pneg %p259
        $region98: #{tpu_custom_call.1} parent=91 // pred_check_branch
          %6171 = sbr.rel (%p6169) target = $region100
        $region99: #{tpu_custom_call.1} parent=91 // pred_region
          %s6172 = sand.u32 %s37, 1
          %s6173 = scalar_lea.sflag [#allocation16], %s6172
          %s6174 = sand.u32 %s244, 1
          %s6175 = smul.addr %s6174, 512
          %s6176 = scalar_lea.vmem [#allocation15], %s6175
          %6177 = dma.done %s6173, 8192
        $region100: #{tpu_custom_call.1} parent=91 // pred_fallthru
          _
        // Predicated region
        $region101: #{tpu_custom_call.1} parent=91 // pred_check
          %p6178 = pneg %p287
        $region102: #{tpu_custom_call.1} parent=91 // pred_check_branch
          %6180 = sbr.rel (%p6178) target = $region104
        $region103: #{tpu_custom_call.1} parent=91 // pred_region
          %s6181 = sand.u32 %s37, 1
          %s6182 = scalar_lea.sflag [#allocation16], %s6181
          %s6183 = sand.u32 %s272, 1
          %s6184 = smul.addr %s6183, 512
          %s6185 = scalar_lea.vmem [#allocation17], %s6184
          %6186 = dma.done %s6182, 8192
        $region104: #{tpu_custom_call.1} parent=91 // pred_fallthru
          _
      $region92: #{tpu_custom_call.1} parent=5 // pred_fallthru
        _
    $region6: #{tpu_custom_call.1} parent=1 // loop_footer
      %s35 = sadd.s32 1, %s31
    $region7: #{tpu_custom_call.1} parent=1 // loop_footer_branch
      %30 = sbr.rel target = $region3
    $region8: #{tpu_custom_call.1} parent=1 // loop_exit
      _
    %6187 = vsyncpa [#allocation4], 1
    %s6188 = scalar_lea.sflag [#allocation4], 1
    %6189 = vsyncpa %s6188, 1
    %6190 = vsyncpa [#allocation7], 1
    %s6191 = scalar_lea.sflag [#allocation7], 1
    %6192 = vsyncpa %s6191, 1
    %6193 = vsyncpa [#allocation10], 1
    %s6194 = scalar_lea.sflag [#allocation10], 1
    %6195 = vsyncpa %s6194, 1
    %6196 = vsyncpa [#allocation13], 1
    %6197 = vsyncpa [#allocation5], 1
    %s6198 = scalar_lea.sflag [#allocation5], 1
    %6199 = vsyncpa %s6198, 1
    %6200 = vsyncpa [#allocation16], 1
    %s6201 = scalar_lea.sflag [#allocation16], 1
    %6202 = vsyncpa %s6201, 1

</llo_original>
